<compile_context>
chip_gen: v7x
topology: tpu7x:2x2x1
jax: 0.10.0
libtpu: 0.0.40
codegen_flags: <defaults>
</compile_context>

<pallas_src>
import functools

import jax
import jax.numpy as jnp
from jax import lax
from jax.experimental import pallas as pl
from jax.experimental.pallas import tpu as pltpu


# ---------------------------------------------------------------------------
# Fused Pallas kernel (one image per grid step)
# ---------------------------------------------------------------------------

def _bottleneck_kernel(x_ref, w1_ref, b1_ref, w2_ref, b2_ref, w3_ref, b3_ref,
                       o_ref, y1_ref, acc_ref):
    """Fused Bottleneck forward for one image (NHWC, stride=1).

    x_ref  : (H, W, Cin)        input plane, original dtype, unpadded
    w1_ref : (Cin, Cmid)        bf16, conv1 weight * bn1 scale
    w2_ref : (9, Cmid, Cmid)    bf16, conv2 taps (t = kh*3 + kw), * bn2 scale
    w3_ref : (Cmid, Cexp)       bf16, conv3 weight * bn3 scale
    b*_ref : (1, C)             f32 folded BN biases
    o_ref  : (H, W, Cexp)       output plane
    y1_ref : (H+2, W+2, Cmid)   VMEM scratch: zero-padded conv1 output
    acc_ref: (H*W, Cmid)        VMEM scratch: f32 conv2 accumulator
    """
    h, w, cin = x_ref.shape
    cmid = w1_ref.shape[1]
    cexp = w3_ref.shape[1]

    # ---- conv1 (1x1) + bn1 + relu -------------------------------------------
    x2d = x_ref[...].reshape(h * w, cin)                  # full-precision x
    y1 = jnp.dot(x2d.astype(w1_ref.dtype), w1_ref[...],
                 preferred_element_type=jnp.float32)
    y1 = jnp.maximum(y1 + b1_ref[...], 0.0)

    # conv2's zero-padding applies to y1 (NOT to x), so the halo ring of the
    # y1 plane must be zero.  Zero only the ring; the interior is fully
    # rewritten every step.
    zero_row = jnp.zeros((1, w + 2, cmid), y1_ref.dtype)
    zero_col = jnp.zeros((h + 2, 1, cmid), y1_ref.dtype)
    y1_ref[0:1, :, :] = zero_row
    y1_ref[h + 1:h + 2, :, :] = zero_row
    y1_ref[:, 0:1, :] = zero_col
    y1_ref[:, w + 1:w + 2, :] = zero_col
    y1_ref[1:h + 1, 1:w + 1, :] = y1.reshape(h, w, cmid).astype(y1_ref.dtype)

    # ---- conv2 (3x3, stride 1, pad 1) + bn2 + relu ---------------------------
    # 9 accumulated MXU dots (one per tap) into the f32 VMEM accumulator.
    # No materialized im2col scratch; accumulation stays next to the MXU.
    for t in range(9):
        kh, kw = divmod(t, 3)
        tap = y1_ref[kh:kh + h, kw:kw + w, :].reshape(h * w, cmid)
        contrib = jnp.dot(tap, w2_ref[t], preferred_element_type=jnp.float32)
        if t == 0:
            acc_ref[...] = contrib
        else:
            acc_ref[...] += contrib
    y2 = jnp.maximum(acc_ref[...] + b2_ref[...], 0.0).astype(w3_ref.dtype)

    # ---- conv3 (1x1) + bn3 + residual add + relu -----------------------------
    y3 = jnp.dot(y2, w3_ref[...], preferred_element_type=jnp.float32)
    out = jnp.maximum(y3 + b3_ref[...] + x2d.astype(jnp.float32), 0.0)
    o_ref[...] = out.reshape(h, w, cexp).astype(o_ref.dtype)


# ---------------------------------------------------------------------------
# Wrappers
# ---------------------------------------------------------------------------

def _fold_bn(gamma, beta, mean, var, eps=1e-5):
    scale = gamma / jnp.sqrt(var + eps)
    bias = beta - mean * scale
    return scale, bias


@functools.partial(jax.jit, static_argnames=("out_dtype",))
def bottleneck_forward_nhwc(x_nhwc, params, out_dtype=None):
    """Fused Bottleneck forward. NHWC in / NHWC out (kernel-native layout).

    Pass out_dtype=jnp.bfloat16 when chaining blocks to halve output HBM
    writeback and the double-buffered output VMEM tile.
    """
    n, h, w, cin = x_nhwc.shape
    cmid = params["w1"].shape[1]
    cexp = params["w3"].shape[1]
    assert cexp == cin, (cexp, cin)   # stride=1, downsample=None => identity add
    out_dtype = x_nhwc.dtype if out_dtype is None else out_dtype

    s1, b1 = _fold_bn(*params["bn1"])
    s2, b2 = _fold_bn(*params["bn2"])
    s3, b3 = _fold_bn(*params["bn3"])

    cdt = jnp.bfloat16   # MXU-native compute dtype; accumulation stays f32
    w1f = (params["w1"] * s1[None, :]).astype(cdt)                 # (Cin, Cmid)
    w2f = (params["w2"] * s2[None, None, :]).astype(cdt)           # (9, Cmid, Cmid)
    w3f = (params["w3"] * s3[None, :]).astype(cdt)                 # (Cmid, Cexp)
    b1 = b1.reshape(1, cmid).astype(jnp.float32)
    b2 = b2.reshape(1, cmid).astype(jnp.float32)
    b3 = b3.reshape(1, cexp).astype(jnp.float32)

    return pl.pallas_call(
        _bottleneck_kernel,
        out_shape=jax.ShapeDtypeStruct((n, h, w, cexp), out_dtype),
        grid_spec=pltpu.PrefetchScalarGridSpec(
            num_scalar_prefetch=0,
            grid=(n,),
            in_specs=[
                pl.BlockSpec((None, h, w, cin), lambda b: (b, 0, 0, 0)),   # x (unpadded, orig dtype)
                pl.BlockSpec((cin, cmid), lambda b: (0, 0)),               # w1 folded
                pl.BlockSpec((1, cmid), lambda b: (0, 0)),                 # b1
                pl.BlockSpec((9, cmid, cmid), lambda b: (0, 0, 0)),        # w2 folded (per-tap)
                pl.BlockSpec((1, cmid), lambda b: (0, 0)),                 # b2
                pl.BlockSpec((cmid, cexp), lambda b: (0, 0)),              # w3 folded
                pl.BlockSpec((1, cexp), lambda b: (0, 0)),                 # b3
            ],
            out_specs=pl.BlockSpec((None, h, w, cexp), lambda b: (b, 0, 0, 0)),
            scratch_shapes=[
                pltpu.VMEM((h + 2, w + 2, cmid), jnp.bfloat16),  # y1 (padded plane)
                pltpu.VMEM((h * w, cmid), jnp.float32),          # conv2 accumulator
            ],
        ),
        compiler_params=pltpu.CompilerParams(
            dimension_semantics=("parallel",),   # grid >= 2 feeds both TCs
            vmem_limit_bytes=48 << 20,           # > default scoped limit, < v7x physical
        ),
    )(x_nhwc, w1f, b1, w2f, b2, w3f, b3)


@jax.jit
def bottleneck_forward(x_nchw, params):
    """PyTorch-parity wrapper (NCHW in/out).  Prefer bottleneck_forward_nhwc
    when chaining blocks: the boundary transposes are pure HBM overhead."""
    x = jnp.transpose(x_nchw, (0, 2, 3, 1))          # NCHW -> NHWC
    y = bottleneck_forward_nhwc(x, params)
    return jnp.transpose(y, (0, 3, 1, 2))            # NHWC -> NCHW


# ---------------------------------------------------------------------------
# Pure-JAX f32 reference (independent path through lax.conv) for validation
# ---------------------------------------------------------------------------

def bottleneck_reference(x_nchw, params):
    def bn(y, g, b, m, v, eps=1e-5):
        return (y - m) / jnp.sqrt(v + eps) * g + b

    x = jnp.transpose(x_nchw, (0, 2, 3, 1))
    y = jnp.einsum("nhwc,co->nhwo", x, params["w1"])
    y = jax.nn.relu(bn(y, *params["bn1"]))
    w2_hwio = params["w2"].reshape(3, 3, y.shape[-1], y.shape[-1])
    y = lax.conv_general_dilated(
        y, w2_hwio, window_strides=(1, 1), padding="SAME",
        dimension_numbers=("NHWC", "HWIO", "NHWC"))
    y = jax.nn.relu(bn(y, *params["bn2"]))
    y = jnp.einsum("nhwc,co->nhwo", y, params["w3"])
    y = jax.nn.relu(bn(y, *params["bn3"]) + x)
    return jnp.transpose(y, (0, 3, 1, 2))


# ---------------------------------------------------------------------------
# Main
# ---------------------------------------------------------------------------

if __name__ == "__main__":
    key = jax.random.PRNGKey(0)
    expansion = 4
    out_channels = 32                          # Cmid
    in_channels = out_channels * expansion     # 128: lane-dense output, identity add valid
    N, H, W = 2, 16, 16

    ks = jax.random.split(key, 16)
    x = jax.random.normal(ks[0], (N, in_channels, H, W), dtype=jnp.float32)

    def bn_params(k, c):
        k1, k2, k3, k4 = jax.random.split(k, 4)
        gamma = jax.random.uniform(k1, (c,), jnp.float32, 0.5, 1.5)
        beta = 0.1 * jax.random.normal(k2, (c,), jnp.float32)
        mean = 0.1 * jax.random.normal(k3, (c,), jnp.float32)
        var = jax.random.uniform(k4, (c,), jnp.float32, 0.5, 1.5)
        return (gamma, beta, mean, var)

    params = {
        # conv1: (Cin, Cmid) ; conv2: (9, Cmid, Cmid), tap order t = kh*3 + kw ;
        # conv3: (Cmid, Cexp) with Cexp == Cin
        "w1": 0.05 * jax.random.normal(ks[1], (in_channels, out_channels), jnp.float32),
        "w2": 0.05 * jax.random.normal(ks[2], (9, out_channels, out_channels), jnp.float32),
        "w3": 0.05 * jax.random.normal(ks[3], (out_channels, in_channels), jnp.float32),
        "bn1": bn_params(ks[4], out_channels),
        "bn2": bn_params(ks[5], out_channels),
        "bn3": bn_params(ks[6], in_channels),
    }

    out = bottleneck_forward(x, params)
    out = jax.block_until_ready(out)

    ref = bottleneck_reference(x, params)
    assert out.shape == (N, in_channels, H, W), out.shape
    # bf16 weights/activations (f32 accumulation, f32 residual) vs f32 reference.
    assert jnp.allclose(out, ref, atol=5e-2, rtol=5e-2), (
        "mismatch vs reference, max abs err = "
        f"{float(jnp.max(jnp.abs(out - ref)))}"
    )

    print("KERNEL_OK")
</pallas_src>

<mosaic_0001>
module attributes {stable_mosaic.version = 11 : i64} {
  func.func @_bottleneck_kernel(%arg0: i32, %arg1: memref<1x16x16x128xf32, #tpu.memory_space<vmem>>, %arg2: memref<128x32xbf16, #tpu.memory_space<vmem>>, %arg3: memref<1x32xf32, #tpu.memory_space<vmem>>, %arg4: memref<9x32x32xbf16, #tpu.memory_space<vmem>>, %arg5: memref<1x32xf32, #tpu.memory_space<vmem>>, %arg6: memref<32x128xbf16, #tpu.memory_space<vmem>>, %arg7: memref<1x128xf32, #tpu.memory_space<vmem>>, %arg8: memref<1x16x16x128xf32, #tpu.memory_space<vmem>>, %arg9: memref<18x18x32xbf16, #tpu.memory_space<vmem>>, %arg10: memref<256x32xf32, #tpu.memory_space<vmem>>) attributes {dimension_semantics = [#tpu.dimension_semantics<parallel>], iteration_bounds = array<i64: 2>, scalar_prefetch = 0 : i64, scratch_operands = 2 : i64, tpu.core_type = #tpu.core_type<tc>, window_params = [{transform_indices = @transform_0, window_bounds = array<i64: 1, 16, 16, 128>}, {pipeline_mode = #tpu.pipeline_mode<synchronous>, transform_indices = @transform_1, window_bounds = array<i64: 128, 32>}, {pipeline_mode = #tpu.pipeline_mode<synchronous>, transform_indices = @transform_2, window_bounds = array<i64: 1, 32>}, {pipeline_mode = #tpu.pipeline_mode<synchronous>, transform_indices = @transform_3, window_bounds = array<i64: 9, 32, 32>}, {pipeline_mode = #tpu.pipeline_mode<synchronous>, transform_indices = @transform_4, window_bounds = array<i64: 1, 32>}, {pipeline_mode = #tpu.pipeline_mode<synchronous>, transform_indices = @transform_5, window_bounds = array<i64: 32, 128>}, {pipeline_mode = #tpu.pipeline_mode<synchronous>, transform_indices = @transform_6, window_bounds = array<i64: 1, 128>}, {transform_indices = @transform_7, window_bounds = array<i64: 1, 16, 16, 128>}]} {
    %c0 = arith.constant 0 : index
    %c0_0 = arith.constant 0 : index
    %c0_1 = arith.constant 0 : index
    %c0_2 = arith.constant 0 : index
    %0 = vector.load %arg1[%c0, %c0_0, %c0_1, %c0_2] : memref<1x16x16x128xf32, #tpu.memory_space<vmem>>, vector<1x16x16x128xf32>
    %1 = vector.shape_cast %0 : vector<1x16x16x128xf32> to vector<16x16x128xf32>
    %2 = vector.shape_cast %1 : vector<16x16x128xf32> to vector<256x128xf32>
    %3 = arith.truncf %2 : vector<256x128xf32> to vector<256x128xbf16>
    %c0_3 = arith.constant 0 : index
    %c0_4 = arith.constant 0 : index
    %4 = vector.load %arg2[%c0_3, %c0_4] : memref<128x32xbf16, #tpu.memory_space<vmem>>, vector<128x32xbf16>
    %cst = arith.constant dense<0.000000e+00> : vector<256x32xf32>
    %5 = tpu.matmul %3, %4, %cst {dimension_numbers = #tpu.dot_dimension_numbers<[1], [0], [0], [1], [0, 0, 1, 1], [], []>} : vector<256x128xbf16>, vector<128x32xbf16>, vector<256x32xf32> -> vector<256x32xf32>
    %c0_5 = arith.constant 0 : index
    %c0_6 = arith.constant 0 : index
    %6 = vector.load %arg3[%c0_5, %c0_6] : memref<1x32xf32, #tpu.memory_space<vmem>>, vector<1x32xf32>
    %7 = vector.broadcast %6 : vector<1x32xf32> to vector<256x32xf32>
    %8 = arith.addf %5, %7 : vector<256x32xf32>
    %cst_7 = arith.constant 0.000000e+00 : f32
    %9 = vector.broadcast %cst_7 : f32 to vector<256x32xf32>
    %10 = arith.maximumf %8, %9 : vector<256x32xf32>
    %cst_8 = arith.constant 0.000000e+00 : bf16
    %11 = vector.broadcast %cst_8 : bf16 to vector<1x18x32xbf16>
    %cst_9 = arith.constant 0.000000e+00 : bf16
    %12 = vector.broadcast %cst_9 : bf16 to vector<18x1x32xbf16>
    %c0_10 = arith.constant 0 : index
    %c0_11 = arith.constant 0 : index
    %c0_12 = arith.constant 0 : index
    %13 = vector.load %arg9[%c0_10, %c0_11, %c0_12] : memref<18x18x32xbf16, #tpu.memory_space<vmem>>, vector<1x18x32xbf16>
    tpu.vector_store %arg9[%c0_10, %c0_11, %c0_12], %11 {strides = array<i32>} : memref<18x18x32xbf16, #tpu.memory_space<vmem>>, vector<1x18x32xbf16>,
    %c17 = arith.constant 17 : index
    %c0_13 = arith.constant 0 : index
    %c0_14 = arith.constant 0 : index
    %14 = vector.load %arg9[%c17, %c0_13, %c0_14] : memref<18x18x32xbf16, #tpu.memory_space<vmem>>, vector<1x18x32xbf16>
    tpu.vector_store %arg9[%c17, %c0_13, %c0_14], %11 {strides = array<i32>} : memref<18x18x32xbf16, #tpu.memory_space<vmem>>, vector<1x18x32xbf16>,
    %c0_15 = arith.constant 0 : index
    %c0_16 = arith.constant 0 : index
    %c0_17 = arith.constant 0 : index
    %15 = vector.load %arg9[%c0_15, %c0_16, %c0_17] : memref<18x18x32xbf16, #tpu.memory_space<vmem>>, vector<18x1x32xbf16>
    tpu.vector_store %arg9[%c0_15, %c0_16, %c0_17], %12 {strides = array<i32>} : memref<18x18x32xbf16, #tpu.memory_space<vmem>>, vector<18x1x32xbf16>,
    %c0_18 = arith.constant 0 : index
    %c17_19 = arith.constant 17 : index
    %c0_20 = arith.constant 0 : index
    %16 = vector.load %arg9[%c0_18, %c17_19, %c0_20] : memref<18x18x32xbf16, #tpu.memory_space<vmem>>, vector<18x1x32xbf16>
    tpu.vector_store %arg9[%c0_18, %c17_19, %c0_20], %12 {strides = array<i32>} : memref<18x18x32xbf16, #tpu.memory_space<vmem>>, vector<18x1x32xbf16>,
    %17 = vector.shape_cast %10 : vector<256x32xf32> to vector<16x16x32xf32>
    %18 = arith.truncf %17 : vector<16x16x32xf32> to vector<16x16x32xbf16>
    %c1 = arith.constant 1 : index
    %c1_21 = arith.constant 1 : index
    %c0_22 = arith.constant 0 : index
    %19 = vector.load %arg9[%c1, %c1_21, %c0_22] : memref<18x18x32xbf16, #tpu.memory_space<vmem>>, vector<16x16x32xbf16>
    tpu.vector_store %arg9[%c1, %c1_21, %c0_22], %18 {strides = array<i32>} : memref<18x18x32xbf16, #tpu.memory_space<vmem>>, vector<16x16x32xbf16>,
    %c0_23 = arith.constant 0 : index
    %c0_24 = arith.constant 0 : index
    %c0_25 = arith.constant 0 : index
    %20 = vector.load %arg9[%c0_23, %c0_24, %c0_25] : memref<18x18x32xbf16, #tpu.memory_space<vmem>>, vector<16x16x32xbf16>
    %21 = vector.shape_cast %20 : vector<16x16x32xbf16> to vector<256x32xbf16>
    %c0_26 = arith.constant 0 : index
    %c0_27 = arith.constant 0 : index
    %c0_28 = arith.constant 0 : index
    %22 = vector.load %arg4[%c0_26, %c0_27, %c0_28] : memref<9x32x32xbf16, #tpu.memory_space<vmem>>, vector<1x32x32xbf16>
    %23 = vector.shape_cast %22 : vector<1x32x32xbf16> to vector<32x32xbf16>
    %cst_29 = arith.constant dense<0.000000e+00> : vector<256x32xf32>
    %24 = tpu.matmul %21, %23, %cst_29 {dimension_numbers = #tpu.dot_dimension_numbers<[1], [0], [0], [1], [0, 0, 1, 1], [], []>} : vector<256x32xbf16>, vector<32x32xbf16>, vector<256x32xf32> -> vector<256x32xf32>
    %c0_30 = arith.constant 0 : index
    %c0_31 = arith.constant 0 : index
    %25 = vector.load %arg10[%c0_30, %c0_31] : memref<256x32xf32, #tpu.memory_space<vmem>>, vector<256x32xf32>
    tpu.vector_store %arg10[%c0_30, %c0_31], %24 {strides = array<i32>} : memref<256x32xf32, #tpu.memory_space<vmem>>, vector<256x32xf32>,
    %c0_32 = arith.constant 0 : index
    %c1_33 = arith.constant 1 : index
    %c0_34 = arith.constant 0 : index
    %26 = vector.load %arg9[%c0_32, %c1_33, %c0_34] : memref<18x18x32xbf16, #tpu.memory_space<vmem>>, vector<16x16x32xbf16>
    %27 = vector.shape_cast %26 : vector<16x16x32xbf16> to vector<256x32xbf16>
    %c1_35 = arith.constant 1 : index
    %c0_36 = arith.constant 0 : index
    %c0_37 = arith.constant 0 : index
    %28 = vector.load %arg4[%c1_35, %c0_36, %c0_37] : memref<9x32x32xbf16, #tpu.memory_space<vmem>>, vector<1x32x32xbf16>
    %29 = vector.shape_cast %28 : vector<1x32x32xbf16> to vector<32x32xbf16>
    %cst_38 = arith.constant dense<0.000000e+00> : vector<256x32xf32>
    %30 = tpu.matmul %27, %29, %cst_38 {dimension_numbers = #tpu.dot_dimension_numbers<[1], [0], [0], [1], [0, 0, 1, 1], [], []>} : vector<256x32xbf16>, vector<32x32xbf16>, vector<256x32xf32> -> vector<256x32xf32>
    %c0_39 = arith.constant 0 : index
    %c0_40 = arith.constant 0 : index
    %31 = vector.load %arg10[%c0_39, %c0_40] : memref<256x32xf32, #tpu.memory_space<vmem>>, vector<256x32xf32>
    %32 = arith.addf %31, %30 : vector<256x32xf32>
    %c0_41 = arith.constant 0 : index
    %c0_42 = arith.constant 0 : index
    %33 = vector.load %arg10[%c0_41, %c0_42] : memref<256x32xf32, #tpu.memory_space<vmem>>, vector<256x32xf32>
    tpu.vector_store %arg10[%c0_41, %c0_42], %32 {strides = array<i32>} : memref<256x32xf32, #tpu.memory_space<vmem>>, vector<256x32xf32>,
    %c0_43 = arith.constant 0 : index
    %c2 = arith.constant 2 : index
    %c0_44 = arith.constant 0 : index
    %34 = vector.load %arg9[%c0_43, %c2, %c0_44] : memref<18x18x32xbf16, #tpu.memory_space<vmem>>, vector<16x16x32xbf16>
    %35 = vector.shape_cast %34 : vector<16x16x32xbf16> to vector<256x32xbf16>
    %c2_45 = arith.constant 2 : index
    %c0_46 = arith.constant 0 : index
    %c0_47 = arith.constant 0 : index
    %36 = vector.load %arg4[%c2_45, %c0_46, %c0_47] : memref<9x32x32xbf16, #tpu.memory_space<vmem>>, vector<1x32x32xbf16>
    %37 = vector.shape_cast %36 : vector<1x32x32xbf16> to vector<32x32xbf16>
    %cst_48 = arith.constant dense<0.000000e+00> : vector<256x32xf32>
    %38 = tpu.matmul %35, %37, %cst_48 {dimension_numbers = #tpu.dot_dimension_numbers<[1], [0], [0], [1], [0, 0, 1, 1], [], []>} : vector<256x32xbf16>, vector<32x32xbf16>, vector<256x32xf32> -> vector<256x32xf32>
    %c0_49 = arith.constant 0 : index
    %c0_50 = arith.constant 0 : index
    %39 = vector.load %arg10[%c0_49, %c0_50] : memref<256x32xf32, #tpu.memory_space<vmem>>, vector<256x32xf32>
    %40 = arith.addf %39, %38 : vector<256x32xf32>
    %c0_51 = arith.constant 0 : index
    %c0_52 = arith.constant 0 : index
    %41 = vector.load %arg10[%c0_51, %c0_52] : memref<256x32xf32, #tpu.memory_space<vmem>>, vector<256x32xf32>
    tpu.vector_store %arg10[%c0_51, %c0_52], %40 {strides = array<i32>} : memref<256x32xf32, #tpu.memory_space<vmem>>, vector<256x32xf32>,
    %c1_53 = arith.constant 1 : index
    %c0_54 = arith.constant 0 : index
    %c0_55 = arith.constant 0 : index
    %42 = vector.load %arg9[%c1_53, %c0_54, %c0_55] : memref<18x18x32xbf16, #tpu.memory_space<vmem>>, vector<16x16x32xbf16>
    %43 = vector.shape_cast %42 : vector<16x16x32xbf16> to vector<256x32xbf16>
    %c3 = arith.constant 3 : index
    %c0_56 = arith.constant 0 : index
    %c0_57 = arith.constant 0 : index
    %44 = vector.load %arg4[%c3, %c0_56, %c0_57] : memref<9x32x32xbf16, #tpu.memory_space<vmem>>, vector<1x32x32xbf16>
    %45 = vector.shape_cast %44 : vector<1x32x32xbf16> to vector<32x32xbf16>
    %cst_58 = arith.constant dense<0.000000e+00> : vector<256x32xf32>
    %46 = tpu.matmul %43, %45, %cst_58 {dimension_numbers = #tpu.dot_dimension_numbers<[1], [0], [0], [1], [0, 0, 1, 1], [], []>} : vector<256x32xbf16>, vector<32x32xbf16>, vector<256x32xf32> -> vector<256x32xf32>
    %c0_59 = arith.constant 0 : index
    %c0_60 = arith.constant 0 : index
    %47 = vector.load %arg10[%c0_59, %c0_60] : memref<256x32xf32, #tpu.memory_space<vmem>>, vector<256x32xf32>
    %48 = arith.addf %47, %46 : vector<256x32xf32>
    %c0_61 = arith.constant 0 : index
    %c0_62 = arith.constant 0 : index
    %49 = vector.load %arg10[%c0_61, %c0_62] : memref<256x32xf32, #tpu.memory_space<vmem>>, vector<256x32xf32>
    tpu.vector_store %arg10[%c0_61, %c0_62], %48 {strides = array<i32>} : memref<256x32xf32, #tpu.memory_space<vmem>>, vector<256x32xf32>,
    %c1_63 = arith.constant 1 : index
    %c1_64 = arith.constant 1 : index
    %c0_65 = arith.constant 0 : index
    %50 = vector.load %arg9[%c1_63, %c1_64, %c0_65] : memref<18x18x32xbf16, #tpu.memory_space<vmem>>, vector<16x16x32xbf16>
    %51 = vector.shape_cast %50 : vector<16x16x32xbf16> to vector<256x32xbf16>
    %c4 = arith.constant 4 : index
    %c0_66 = arith.constant 0 : index
    %c0_67 = arith.constant 0 : index
    %52 = vector.load %arg4[%c4, %c0_66, %c0_67] : memref<9x32x32xbf16, #tpu.memory_space<vmem>>, vector<1x32x32xbf16>
    %53 = vector.shape_cast %52 : vector<1x32x32xbf16> to vector<32x32xbf16>
    %cst_68 = arith.constant dense<0.000000e+00> : vector<256x32xf32>
    %54 = tpu.matmul %51, %53, %cst_68 {dimension_numbers = #tpu.dot_dimension_numbers<[1], [0], [0], [1], [0, 0, 1, 1], [], []>} : vector<256x32xbf16>, vector<32x32xbf16>, vector<256x32xf32> -> vector<256x32xf32>
    %c0_69 = arith.constant 0 : index
    %c0_70 = arith.constant 0 : index
    %55 = vector.load %arg10[%c0_69, %c0_70] : memref<256x32xf32, #tpu.memory_space<vmem>>, vector<256x32xf32>
    %56 = arith.addf %55, %54 : vector<256x32xf32>
    %c0_71 = arith.constant 0 : index
    %c0_72 = arith.constant 0 : index
    %57 = vector.load %arg10[%c0_71, %c0_72] : memref<256x32xf32, #tpu.memory_space<vmem>>, vector<256x32xf32>
    tpu.vector_store %arg10[%c0_71, %c0_72], %56 {strides = array<i32>} : memref<256x32xf32, #tpu.memory_space<vmem>>, vector<256x32xf32>,
    %c1_73 = arith.constant 1 : index
    %c2_74 = arith.constant 2 : index
    %c0_75 = arith.constant 0 : index
    %58 = vector.load %arg9[%c1_73, %c2_74, %c0_75] : memref<18x18x32xbf16, #tpu.memory_space<vmem>>, vector<16x16x32xbf16>
    %59 = vector.shape_cast %58 : vector<16x16x32xbf16> to vector<256x32xbf16>
    %c5 = arith.constant 5 : index
    %c0_76 = arith.constant 0 : index
    %c0_77 = arith.constant 0 : index
    %60 = vector.load %arg4[%c5, %c0_76, %c0_77] : memref<9x32x32xbf16, #tpu.memory_space<vmem>>, vector<1x32x32xbf16>
    %61 = vector.shape_cast %60 : vector<1x32x32xbf16> to vector<32x32xbf16>
    %cst_78 = arith.constant dense<0.000000e+00> : vector<256x32xf32>
    %62 = tpu.matmul %59, %61, %cst_78 {dimension_numbers = #tpu.dot_dimension_numbers<[1], [0], [0], [1], [0, 0, 1, 1], [], []>} : vector<256x32xbf16>, vector<32x32xbf16>, vector<256x32xf32> -> vector<256x32xf32>
    %c0_79 = arith.constant 0 : index
    %c0_80 = arith.constant 0 : index
    %63 = vector.load %arg10[%c0_79, %c0_80] : memref<256x32xf32, #tpu.memory_space<vmem>>, vector<256x32xf32>
    %64 = arith.addf %63, %62 : vector<256x32xf32>
    %c0_81 = arith.constant 0 : index
    %c0_82 = arith.constant 0 : index
    %65 = vector.load %arg10[%c0_81, %c0_82] : memref<256x32xf32, #tpu.memory_space<vmem>>, vector<256x32xf32>
    tpu.vector_store %arg10[%c0_81, %c0_82], %64 {strides = array<i32>} : memref<256x32xf32, #tpu.memory_space<vmem>>, vector<256x32xf32>,
    %c2_83 = arith.constant 2 : index
    %c0_84 = arith.constant 0 : index
    %c0_85 = arith.constant 0 : index
    %66 = vector.load %arg9[%c2_83, %c0_84, %c0_85] : memref<18x18x32xbf16, #tpu.memory_space<vmem>>, vector<16x16x32xbf16>
    %67 = vector.shape_cast %66 : vector<16x16x32xbf16> to vector<256x32xbf16>
    %c6 = arith.constant 6 : index
    %c0_86 = arith.constant 0 : index
    %c0_87 = arith.constant 0 : index
    %68 = vector.load %arg4[%c6, %c0_86, %c0_87] : memref<9x32x32xbf16, #tpu.memory_space<vmem>>, vector<1x32x32xbf16>
    %69 = vector.shape_cast %68 : vector<1x32x32xbf16> to vector<32x32xbf16>
    %cst_88 = arith.constant dense<0.000000e+00> : vector<256x32xf32>
    %70 = tpu.matmul %67, %69, %cst_88 {dimension_numbers = #tpu.dot_dimension_numbers<[1], [0], [0], [1], [0, 0, 1, 1], [], []>} : vector<256x32xbf16>, vector<32x32xbf16>, vector<256x32xf32> -> vector<256x32xf32>
    %c0_89 = arith.constant 0 : index
    %c0_90 = arith.constant 0 : index
    %71 = vector.load %arg10[%c0_89, %c0_90] : memref<256x32xf32, #tpu.memory_space<vmem>>, vector<256x32xf32>
    %72 = arith.addf %71, %70 : vector<256x32xf32>
    %c0_91 = arith.constant 0 : index
    %c0_92 = arith.constant 0 : index
    %73 = vector.load %arg10[%c0_91, %c0_92] : memref<256x32xf32, #tpu.memory_space<vmem>>, vector<256x32xf32>
    tpu.vector_store %arg10[%c0_91, %c0_92], %72 {strides = array<i32>} : memref<256x32xf32, #tpu.memory_space<vmem>>, vector<256x32xf32>,
    %c2_93 = arith.constant 2 : index
    %c1_94 = arith.constant 1 : index
    %c0_95 = arith.constant 0 : index
    %74 = vector.load %arg9[%c2_93, %c1_94, %c0_95] : memref<18x18x32xbf16, #tpu.memory_space<vmem>>, vector<16x16x32xbf16>
    %75 = vector.shape_cast %74 : vector<16x16x32xbf16> to vector<256x32xbf16>
    %c7 = arith.constant 7 : index
    %c0_96 = arith.constant 0 : index
    %c0_97 = arith.constant 0 : index
    %76 = vector.load %arg4[%c7, %c0_96, %c0_97] : memref<9x32x32xbf16, #tpu.memory_space<vmem>>, vector<1x32x32xbf16>
    %77 = vector.shape_cast %76 : vector<1x32x32xbf16> to vector<32x32xbf16>
    %cst_98 = arith.constant dense<0.000000e+00> : vector<256x32xf32>
    %78 = tpu.matmul %75, %77, %cst_98 {dimension_numbers = #tpu.dot_dimension_numbers<[1], [0], [0], [1], [0, 0, 1, 1], [], []>} : vector<256x32xbf16>, vector<32x32xbf16>, vector<256x32xf32> -> vector<256x32xf32>
    %c0_99 = arith.constant 0 : index
    %c0_100 = arith.constant 0 : index
    %79 = vector.load %arg10[%c0_99, %c0_100] : memref<256x32xf32, #tpu.memory_space<vmem>>, vector<256x32xf32>
    %80 = arith.addf %79, %78 : vector<256x32xf32>
    %c0_101 = arith.constant 0 : index
    %c0_102 = arith.constant 0 : index
    %81 = vector.load %arg10[%c0_101, %c0_102] : memref<256x32xf32, #tpu.memory_space<vmem>>, vector<256x32xf32>
    tpu.vector_store %arg10[%c0_101, %c0_102], %80 {strides = array<i32>} : memref<256x32xf32, #tpu.memory_space<vmem>>, vector<256x32xf32>,
    %c2_103 = arith.constant 2 : index
    %c2_104 = arith.constant 2 : index
    %c0_105 = arith.constant 0 : index
    %82 = vector.load %arg9[%c2_103, %c2_104, %c0_105] : memref<18x18x32xbf16, #tpu.memory_space<vmem>>, vector<16x16x32xbf16>
    %83 = vector.shape_cast %82 : vector<16x16x32xbf16> to vector<256x32xbf16>
    %c8 = arith.constant 8 : index
    %c0_106 = arith.constant 0 : index
    %c0_107 = arith.constant 0 : index
    %84 = vector.load %arg4[%c8, %c0_106, %c0_107] : memref<9x32x32xbf16, #tpu.memory_space<vmem>>, vector<1x32x32xbf16>
    %85 = vector.shape_cast %84 : vector<1x32x32xbf16> to vector<32x32xbf16>
    %cst_108 = arith.constant dense<0.000000e+00> : vector<256x32xf32>
    %86 = tpu.matmul %83, %85, %cst_108 {dimension_numbers = #tpu.dot_dimension_numbers<[1], [0], [0], [1], [0, 0, 1, 1], [], []>} : vector<256x32xbf16>, vector<32x32xbf16>, vector<256x32xf32> -> vector<256x32xf32>
    %c0_109 = arith.constant 0 : index
    %c0_110 = arith.constant 0 : index
    %87 = vector.load %arg10[%c0_109, %c0_110] : memref<256x32xf32, #tpu.memory_space<vmem>>, vector<256x32xf32>
    %88 = arith.addf %87, %86 : vector<256x32xf32>
    %c0_111 = arith.constant 0 : index
    %c0_112 = arith.constant 0 : index
    %89 = vector.load %arg10[%c0_111, %c0_112] : memref<256x32xf32, #tpu.memory_space<vmem>>, vector<256x32xf32>
    tpu.vector_store %arg10[%c0_111, %c0_112], %88 {strides = array<i32>} : memref<256x32xf32, #tpu.memory_space<vmem>>, vector<256x32xf32>,
    %c0_113 = arith.constant 0 : index
    %c0_114 = arith.constant 0 : index
    %90 = vector.load %arg10[%c0_113, %c0_114] : memref<256x32xf32, #tpu.memory_space<vmem>>, vector<256x32xf32>
    %c0_115 = arith.constant 0 : index
    %c0_116 = arith.constant 0 : index
    %91 = vector.load %arg5[%c0_115, %c0_116] : memref<1x32xf32, #tpu.memory_space<vmem>>, vector<1x32xf32>
    %92 = vector.broadcast %91 : vector<1x32xf32> to vector<256x32xf32>
    %93 = arith.addf %90, %92 : vector<256x32xf32>
    %cst_117 = arith.constant 0.000000e+00 : f32
    %94 = vector.broadcast %cst_117 : f32 to vector<256x32xf32>
    %95 = arith.maximumf %93, %94 : vector<256x32xf32>
    %96 = arith.truncf %95 : vector<256x32xf32> to vector<256x32xbf16>
    %c0_118 = arith.constant 0 : index
    %c0_119 = arith.constant 0 : index
    %97 = vector.load %arg6[%c0_118, %c0_119] : memref<32x128xbf16, #tpu.memory_space<vmem>>, vector<32x128xbf16>
    %cst_120 = arith.constant dense<0.000000e+00> : vector<256x128xf32>
    %98 = tpu.matmul %96, %97, %cst_120 {dimension_numbers = #tpu.dot_dimension_numbers<[1], [0], [0], [1], [0, 0, 1, 1], [], []>} : vector<256x32xbf16>, vector<32x128xbf16>, vector<256x128xf32> -> vector<256x128xf32>
    %c0_121 = arith.constant 0 : index
    %c0_122 = arith.constant 0 : index
    %99 = vector.load %arg7[%c0_121, %c0_122] : memref<1x128xf32, #tpu.memory_space<vmem>>, vector<1x128xf32>
    %100 = vector.broadcast %99 : vector<1x128xf32> to vector<256x128xf32>
    %101 = arith.addf %98, %100 : vector<256x128xf32>
    %102 = arith.addf %101, %2 : vector<256x128xf32>
    %cst_123 = arith.constant 0.000000e+00 : f32
    %103 = vector.broadcast %cst_123 : f32 to vector<256x128xf32>
    %104 = arith.maximumf %102, %103 : vector<256x128xf32>
    %105 = vector.shape_cast %104 : vector<256x128xf32> to vector<16x16x128xf32>
    %c0_124 = arith.constant 0 : index
    %c0_125 = arith.constant 0 : index
    %c0_126 = arith.constant 0 : index
    %c0_127 = arith.constant 0 : index
    %106 = vector.load %arg8[%c0_124, %c0_125, %c0_126, %c0_127] : memref<1x16x16x128xf32, #tpu.memory_space<vmem>>, vector<1x16x16x128xf32>
    %107 = vector.shape_cast %106 : vector<1x16x16x128xf32> to vector<16x16x128xf32>
    %108 = vector.shape_cast %105 : vector<16x16x128xf32> to vector<1x16x16x128xf32>
    tpu.vector_store %arg8[%c0_124, %c0_125, %c0_126, %c0_127], %108 {strides = array<i32>} : memref<1x16x16x128xf32, #tpu.memory_space<vmem>>, vector<1x16x16x128xf32>,
    return
  }
  func.func @transform_0(%arg0: i32) -> (i32, i32, i32, i32) {
    %c0_i32 = arith.constant 0 : i32
    %c0_i32_0 = arith.constant 0 : i32
    %c0_i32_1 = arith.constant 0 : i32
    %c0_i32_2 = arith.constant 0 : i32
    return %arg0, %c0_i32, %c0_i32_0, %c0_i32_1 : i32, i32, i32, i32
  }
  func.func @transform_1(%arg0: i32) -> (i32, i32) {
    %c0_i32 = arith.constant 0 : i32
    %c0_i32_0 = arith.constant 0 : i32
    %c0_i32_1 = arith.constant 0 : i32
    return %c0_i32, %c0_i32_0 : i32, i32
  }
  func.func @transform_2(%arg0: i32) -> (i32, i32) {
    %c0_i32 = arith.constant 0 : i32
    %c0_i32_0 = arith.constant 0 : i32
    %c0_i32_1 = arith.constant 0 : i32
    return %c0_i32, %c0_i32_0 : i32, i32
  }
  func.func @transform_3(%arg0: i32) -> (i32, i32, i32) {
    %c0_i32 = arith.constant 0 : i32
    %c0_i32_0 = arith.constant 0 : i32
    %c0_i32_1 = arith.constant 0 : i32
    %c0_i32_2 = arith.constant 0 : i32
    return %c0_i32, %c0_i32_0, %c0_i32_1 : i32, i32, i32
  }
  func.func @transform_4(%arg0: i32) -> (i32, i32) {
    %c0_i32 = arith.constant 0 : i32
    %c0_i32_0 = arith.constant 0 : i32
    %c0_i32_1 = arith.constant 0 : i32
    return %c0_i32, %c0_i32_0 : i32, i32
  }
  func.func @transform_5(%arg0: i32) -> (i32, i32) {
    %c0_i32 = arith.constant 0 : i32
    %c0_i32_0 = arith.constant 0 : i32
    %c0_i32_1 = arith.constant 0 : i32
    return %c0_i32, %c0_i32_0 : i32, i32
  }
  func.func @transform_6(%arg0: i32) -> (i32, i32) {
    %c0_i32 = arith.constant 0 : i32
    %c0_i32_0 = arith.constant 0 : i32
    %c0_i32_1 = arith.constant 0 : i32
    return %c0_i32, %c0_i32_0 : i32, i32
  }
  func.func @transform_7(%arg0: i32) -> (i32, i32, i32, i32) {
    %c0_i32 = arith.constant 0 : i32
    %c0_i32_0 = arith.constant 0 : i32
    %c0_i32_1 = arith.constant 0 : i32
    %c0_i32_2 = arith.constant 0 : i32
    return %arg0, %c0_i32, %c0_i32_0, %c0_i32_1 : i32, i32, i32, i32
  }
}

</mosaic_0001>

<llo_original>
// kernel: bottleneck_forward_nhwc.1
$region0: #{bottleneck_forward_nhwc.1}
  #allocation0 [shape = 'u32[]', space=smem, size = 0x4, offset = 0x4, fixed_abs, tag = 'smem constant byte address 0x4 - core index']
  #allocation1 [shape = 'u32[144,128]{1,0:T(1,128)}', space=vmem, size = 0x12000, scoped, tag = 'internal scratch']
  #allocation2 [shape = 'bf16[18,18,32]{2,1,0:T(8,128)(2,1)}', space=vmem, size = 0x1b000, scoped, tag = 'scratch operand']
  #allocation3 [shape = 'f32[256,32]{1,0:T(8,128)}', space=vmem, size = 0x20000, scoped, tag = 'scratch operand']
  %s0 = inlined_call_operand.vmem [shape: f32[2,16,16,128], index: 0, kind: input, shape index: {}]
  %s1 = inlined_call_operand.vmem [shape: bf16[128,32], index: 1, kind: input, shape index: {}]
  %s2 = inlined_call_operand.vmem [shape: f32[1,32], index: 2, kind: input, shape index: {}]
  %s3 = inlined_call_operand.vmem [shape: bf16[9,32,32], index: 3, kind: input, shape index: {}]
  %s4 = inlined_call_operand.vmem [shape: f32[1,32], index: 4, kind: input, shape index: {}]
  %s5 = inlined_call_operand.vmem [shape: bf16[32,128], index: 5, kind: input, shape index: {}]
  %s6 = inlined_call_operand.vmem [shape: f32[1,128], index: 6, kind: input, shape index: {}]
  %s7 = inlined_call_operand.hbm [shape: f32[2,16,16,128], index: 7, kind: output, shape index: {}]
  %s8 = sld [smem:[#allocation0]]
  $region61: #{bottleneck_forward_nhwc.1} parent=0
    _
  %s10 = ssub.s32 1, %s8
  %s11 = scalar_select 0, %s10, %s8
  $region1: #{bottleneck_forward_nhwc.1} parent=0
    #allocation4 [shape = 'u8[262144]{0}', space=vmem, size = 0x40000, scoped, tag = 'output window, operand 0']
    #allocation5 [shape = 's32[2]{0}', space=sflag, size = 0x8, scoped, tag = 'scoped memory for bottleneck_forward_nhwc.1']
    %12 = vsyncpa [#allocation5], 0
    %s13 = scalar_lea.sflag [#allocation5], 1
    %14 = vsyncpa %s13, 0
    loop: start=0, step=1, limit=4
    $region2: #{bottleneck_forward_nhwc.1} parent=1 // loop_pre_header
      _
    $region3: #{bottleneck_forward_nhwc.1} parent=1 // loop_header
      %s16 = sphi 0, %s20
      %p17 = scmp.ge.s32.totalorder %s16, 4
      %s26 = sphi 0, %s28
      %s29 = sphi 0, %s26
      %s30 = sphi 0, %s29
      %s46 = sphi 0, %s30
      %s50 = sphi 0, %s50
      %s52 = sphi 0, %s50
      %s53 = sphi 0, %s52
      %s67 = sphi 0, %s53
      %s71 = sphi 0, %s71
      %s73 = sphi 0, %s71
      %s74 = sphi 0, %s73
      %s88 = sphi 0, %s74
      %s92 = sphi 0, %s92
      %s94 = sphi 0, %s92
      %s95 = sphi 0, %s94
      %s109 = sphi 0, %s95
      %s113 = sphi 0, %s113
      %s115 = sphi 0, %s113
      %s116 = sphi 0, %s115
      %s130 = sphi 0, %s116
      %s134 = sphi 0, %s134
      %s136 = sphi 0, %s134
      %s137 = sphi 0, %s136
      %s151 = sphi 0, %s137
      %s155 = sphi 0, %s155
      %s157 = sphi 0, %s155
      %s158 = sphi 0, %s157
      %s172 = sphi 0, %s158
      %s178 = sphi 0, %s180
      %s181 = sphi 0, %s178
      %s182 = sphi 0, %s181
      %s198 = sphi 0, %s182
    $region4: #{bottleneck_forward_nhwc.1} parent=1 // loop_header_branch
      %19 = sbr.rel (%p17) target = $region8
    $region5: #{bottleneck_forward_nhwc.1} parent=1 // loop_body
      %s21 = ssub.s32 %s16, 1
      %s22 = ssub.s32 %s16, 2
      %s23 = sadd.s32 %s16, 1
      %s24 = ssub.s32 %s16, %s23
      %p25 = scmp.eq.s32.totalorder %s24, 0
      %s27 = sadd.s32 %s26, 1
      %s28 = scalar_select %p25, %s26, %s27
      %p31 = pneg %p25
      %p32 = scmp.eq.s32.totalorder %s16, 1
      %p33 = por %p31, %p32
      %p34 = scmp.ne.s32.totalorder %s26, %s29
      %p35 = scmp.eq.s32.totalorder %s16, 0
      %p36 = por %p34, %p35
      %p37 = scmp.ne.s32.totalorder %s26, %s29
      %p38 = scmp.eq.s32.totalorder %s21, 1
      %p39 = por %p37, %p38
      %p40 = scmp.ne.s32.totalorder %s29, %s30
      %p41 = scmp.eq.s32.totalorder %s21, 0
      %p42 = por %p40, %p41
      %p43 = scmp.ne.s32.totalorder %s29, %s30
      %p44 = scmp.eq.s32.totalorder %s22, 1
      %p45 = por %p43, %p44
      %p47 = scmp.ne.s32.totalorder %s30, %s46
      %p48 = scmp.eq.s32.totalorder %s22, 0
      %p49 = por %p47, %p48
      %s51 = sadd.s32 %s50, 1
      %p54 = scmp.eq.s32.totalorder %s16, 1
      %p55 = scmp.ne.s32.totalorder %s50, %s52
      %p56 = scmp.eq.s32.totalorder %s16, 0
      %p57 = por %p55, %p56
      %p58 = scmp.ne.s32.totalorder %s50, %s52
      %p59 = scmp.eq.s32.totalorder %s21, 1
      %p60 = por %p58, %p59
      %p61 = scmp.ne.s32.totalorder %s52, %s53
      %p62 = scmp.eq.s32.totalorder %s21, 0
      %p63 = por %p61, %p62
      %p64 = scmp.ne.s32.totalorder %s52, %s53
      %p65 = scmp.eq.s32.totalorder %s22, 1
      %p66 = por %p64, %p65
      %p68 = scmp.ne.s32.totalorder %s53, %s67
      %p69 = scmp.eq.s32.totalorder %s22, 0
      %p70 = por %p68, %p69
      %s72 = sadd.s32 %s71, 1
      %p75 = scmp.eq.s32.totalorder %s16, 1
      %p76 = scmp.ne.s32.totalorder %s71, %s73
      %p77 = scmp.eq.s32.totalorder %s16, 0
      %p78 = por %p76, %p77
      %p79 = scmp.ne.s32.totalorder %s71, %s73
      %p80 = scmp.eq.s32.totalorder %s21, 1
      %p81 = por %p79, %p80
      %p82 = scmp.ne.s32.totalorder %s73, %s74
      %p83 = scmp.eq.s32.totalorder %s21, 0
      %p84 = por %p82, %p83
      %p85 = scmp.ne.s32.totalorder %s73, %s74
      %p86 = scmp.eq.s32.totalorder %s22, 1
      %p87 = por %p85, %p86
      %p89 = scmp.ne.s32.totalorder %s74, %s88
      %p90 = scmp.eq.s32.totalorder %s22, 0
      %p91 = por %p89, %p90
      %s93 = sadd.s32 %s92, 1
      %p96 = scmp.eq.s32.totalorder %s16, 1
      %p97 = scmp.ne.s32.totalorder %s92, %s94
      %p98 = scmp.eq.s32.totalorder %s16, 0
      %p99 = por %p97, %p98
      %p100 = scmp.ne.s32.totalorder %s92, %s94
      %p101 = scmp.eq.s32.totalorder %s21, 1
      %p102 = por %p100, %p101
      %p103 = scmp.ne.s32.totalorder %s94, %s95
      %p104 = scmp.eq.s32.totalorder %s21, 0
      %p105 = por %p103, %p104
      %p106 = scmp.ne.s32.totalorder %s94, %s95
      %p107 = scmp.eq.s32.totalorder %s22, 1
      %p108 = por %p106, %p107
      %p110 = scmp.ne.s32.totalorder %s95, %s109
      %p111 = scmp.eq.s32.totalorder %s22, 0
      %p112 = por %p110, %p111
      %s114 = sadd.s32 %s113, 1
      %p117 = scmp.eq.s32.totalorder %s16, 1
      %p118 = scmp.ne.s32.totalorder %s113, %s115
      %p119 = scmp.eq.s32.totalorder %s16, 0
      %p120 = por %p118, %p119
      %p121 = scmp.ne.s32.totalorder %s113, %s115
      %p122 = scmp.eq.s32.totalorder %s21, 1
      %p123 = por %p121, %p122
      %p124 = scmp.ne.s32.totalorder %s115, %s116
      %p125 = scmp.eq.s32.totalorder %s21, 0
      %p126 = por %p124, %p125
      %p127 = scmp.ne.s32.totalorder %s115, %s116
      %p128 = scmp.eq.s32.totalorder %s22, 1
      %p129 = por %p127, %p128
      %p131 = scmp.ne.s32.totalorder %s116, %s130
      %p132 = scmp.eq.s32.totalorder %s22, 0
      %p133 = por %p131, %p132
      %s135 = sadd.s32 %s134, 1
      %p138 = scmp.eq.s32.totalorder %s16, 1
      %p139 = scmp.ne.s32.totalorder %s134, %s136
      %p140 = scmp.eq.s32.totalorder %s16, 0
      %p141 = por %p139, %p140
      %p142 = scmp.ne.s32.totalorder %s134, %s136
      %p143 = scmp.eq.s32.totalorder %s21, 1
      %p144 = por %p142, %p143
      %p145 = scmp.ne.s32.totalorder %s136, %s137
      %p146 = scmp.eq.s32.totalorder %s21, 0
      %p147 = por %p145, %p146
      %p148 = scmp.ne.s32.totalorder %s136, %s137
      %p149 = scmp.eq.s32.totalorder %s22, 1
      %p150 = por %p148, %p149
      %p152 = scmp.ne.s32.totalorder %s137, %s151
      %p153 = scmp.eq.s32.totalorder %s22, 0
      %p154 = por %p152, %p153
      %s156 = sadd.s32 %s155, 1
      %p159 = scmp.eq.s32.totalorder %s16, 1
      %p160 = scmp.ne.s32.totalorder %s155, %s157
      %p161 = scmp.eq.s32.totalorder %s16, 0
      %p162 = por %p160, %p161
      %p163 = scmp.ne.s32.totalorder %s155, %s157
      %p164 = scmp.eq.s32.totalorder %s21, 1
      %p165 = por %p163, %p164
      %p166 = scmp.ne.s32.totalorder %s157, %s158
      %p167 = scmp.eq.s32.totalorder %s21, 0
      %p168 = por %p166, %p167
      %p169 = scmp.ne.s32.totalorder %s157, %s158
      %p170 = scmp.eq.s32.totalorder %s22, 1
      %p171 = por %p169, %p170
      %p173 = scmp.ne.s32.totalorder %s158, %s172
      %p174 = scmp.eq.s32.totalorder %s22, 0
      %p175 = por %p173, %p174
      %s176 = ssub.s32 %s16, %s23
      %p177 = scmp.eq.s32.totalorder %s176, 0
      %s179 = sadd.s32 %s178, 1
      %s180 = scalar_select %p177, %s178, %s179
      %p183 = pneg %p177
      %p184 = scmp.eq.s32.totalorder %s16, 1
      %p185 = por %p183, %p184
      %p186 = scmp.ne.s32.totalorder %s178, %s181
      %p187 = scmp.eq.s32.totalorder %s16, 0
      %p188 = por %p186, %p187
      %p189 = scmp.ne.s32.totalorder %s178, %s181
      %p190 = scmp.eq.s32.totalorder %s21, 1
      %p191 = por %p189, %p190
      %p192 = scmp.ne.s32.totalorder %s181, %s182
      %p193 = scmp.eq.s32.totalorder %s21, 0
      %p194 = por %p192, %p193
      %p195 = scmp.ne.s32.totalorder %s181, %s182
      %p196 = scmp.eq.s32.totalorder %s22, 1
      %p197 = por %p195, %p196
      %p199 = scmp.ne.s32.totalorder %s182, %s198
      %p200 = scmp.eq.s32.totalorder %s22, 0
      %p201 = por %p199, %p200
      %p202 = scmp.le.s32.totalorder 1, %s16
      %p203 = scmp.lt.s32.totalorder %s16, 3
      %p204 = pnand %p202, %p203
      %p205 = pneg %p204
      // Predicated region
      $region9: #{bottleneck_forward_nhwc.1} parent=5 // pred_check
        _
      $region10: #{bottleneck_forward_nhwc.1} parent=5 // pred_check_branch
        %207 = sbr.rel (%p204) target = $region12
      $region11: #{bottleneck_forward_nhwc.1} parent=5 // pred_region
        %s208 = ssub.s32 %s16, 1
        // Predicated region
        $region13: #{bottleneck_forward_nhwc.1} parent=11 // pred_check
          %p209 = pneg %p63
        $region14: #{bottleneck_forward_nhwc.1} parent=11 // pred_check_branch
          %211 = sbr.rel (%p209) target = $region16
        $region15: #{bottleneck_forward_nhwc.1} parent=11 // pred_region
          _
        $region16: #{bottleneck_forward_nhwc.1} parent=11 // pred_fallthru
          _
        // Predicated region
        $region17: #{bottleneck_forward_nhwc.1} parent=11 // pred_check
          %p212 = pneg %p84
        $region18: #{bottleneck_forward_nhwc.1} parent=11 // pred_check_branch
          %214 = sbr.rel (%p212) target = $region20
        $region19: #{bottleneck_forward_nhwc.1} parent=11 // pred_region
          _
        $region20: #{bottleneck_forward_nhwc.1} parent=11 // pred_fallthru
          _
        // Predicated region
        $region21: #{bottleneck_forward_nhwc.1} parent=11 // pred_check
          %p215 = pneg %p105
        $region22: #{bottleneck_forward_nhwc.1} parent=11 // pred_check_branch
          %217 = sbr.rel (%p215) target = $region24
        $region23: #{bottleneck_forward_nhwc.1} parent=11 // pred_region
          _
        $region24: #{bottleneck_forward_nhwc.1} parent=11 // pred_fallthru
          _
        // Predicated region
        $region25: #{bottleneck_forward_nhwc.1} parent=11 // pred_check
          %p218 = pneg %p126
        $region26: #{bottleneck_forward_nhwc.1} parent=11 // pred_check_branch
          %220 = sbr.rel (%p218) target = $region28
        $region27: #{bottleneck_forward_nhwc.1} parent=11 // pred_region
          _
        $region28: #{bottleneck_forward_nhwc.1} parent=11 // pred_fallthru
          _
        // Predicated region
        $region29: #{bottleneck_forward_nhwc.1} parent=11 // pred_check
          %p221 = pneg %p147
        $region30: #{bottleneck_forward_nhwc.1} parent=11 // pred_check_branch
          %223 = sbr.rel (%p221) target = $region32
        $region31: #{bottleneck_forward_nhwc.1} parent=11 // pred_region
          _
        $region32: #{bottleneck_forward_nhwc.1} parent=11 // pred_fallthru
          _
        // Predicated region
        $region33: #{bottleneck_forward_nhwc.1} parent=11 // pred_check
          %p224 = pneg %p168
        $region34: #{bottleneck_forward_nhwc.1} parent=11 // pred_check_branch
          %226 = sbr.rel (%p224) target = $region36
        $region35: #{bottleneck_forward_nhwc.1} parent=11 // pred_region
          _
        $region36: #{bottleneck_forward_nhwc.1} parent=11 // pred_fallthru
          _
      $region12: #{bottleneck_forward_nhwc.1} parent=5 // pred_fallthru
        _
      %p227 = scmp.lt.s32.totalorder %s16, 2
      // Predicated region
      $region37: #{bottleneck_forward_nhwc.1} parent=5 // pred_check
        %p228 = pneg %p227
      $region38: #{bottleneck_forward_nhwc.1} parent=5 // pred_check_branch
        %230 = sbr.rel (%p228) target = $region40
      $region39: #{bottleneck_forward_nhwc.1} parent=5 // pred_region
        // Predicated region
        $region41: #{bottleneck_forward_nhwc.1} parent=39 // pred_check
          %p231 = pneg %p36
        $region42: #{bottleneck_forward_nhwc.1} parent=39 // pred_check_branch
          %233 = sbr.rel (%p231) target = $region44
        $region43: #{bottleneck_forward_nhwc.1} parent=39 // pred_region
          %p234 = scmp.lt.s32.totalorder %s16, 1
          %s235 = scalar_select %p234, %s16, 1
          %s236 = smul.addr %s235, 32
          %s237 = smul.addr %s236, 8
          %s238 = scalar_lea.vmem %s0, %s237
        $region44: #{bottleneck_forward_nhwc.1} parent=39 // pred_fallthru
          _
      $region40: #{bottleneck_forward_nhwc.1} parent=5 // pred_fallthru
        _
      %p239 = scmp.le.s32.totalorder 1, %s16
      %p240 = scmp.lt.s32.totalorder %s16, 3
      %p241 = pnand %p239, %p240
      %p242 = pneg %p241
      // Predicated region
      $region45: #{bottleneck_forward_nhwc.1} parent=5 // pred_check
        _
      $region46: #{bottleneck_forward_nhwc.1} parent=5 // pred_check_branch
        %244 = sbr.rel (%p241) target = $region48
      $region47: #{bottleneck_forward_nhwc.1} parent=5 // pred_region
        %s245 = ssub.s32 %s16, 1
        %p246 = scmp.lt.s32.totalorder %s21, 1
        %s247 = scalar_select %p246, %s21, 1
        %s248 = smul.addr %s247, 32
        %s249 = smul.addr %s248, 8
        %s250 = scalar_lea.vmem %s0, %s249
        %p251 = pneg %p42
        %p252 = pneg %p39
        %p253 = pneg %p63
        %p254 = pneg %p60
        %p255 = pneg %p84
        %p256 = pneg %p81
        %p257 = pneg %p105
        %p258 = pneg %p102
        %p259 = pneg %p126
        %p260 = pneg %p123
        %p261 = pneg %p147
        %p262 = pneg %p144
        %p263 = pneg %p168
        %p264 = pneg %p165
        %p265 = pneg %p194
        %p266 = pneg %p191
        %s267 = sand.u32 %s181, 1
        %s268 = scalar_lea.sflag [#allocation5], %s267
        %s269 = sand.u32 %s181, 1
        %s270 = smul.addr %s269, 256
        %s271 = scalar_lea.vmem [#allocation4], %s270
        %p272 = scmp.lt.s32.totalorder %s21, 1
        %s273 = scalar_select %p272, %s21, 1
        %s274 = smul.addr %s273, 32
        %s275 = smul.addr %s274, 8
        %s276 = scalar_lea.vmem %s0, %s275
        %v278 = vld [vmem:[%s276] sm:$0xff]
        %v279 = vld [vmem:[%s276 + $0x8] sm:$0xff]
        %v280 = vld [vmem:[%s276 + $0x10] sm:$0xff]
        %v281 = vld [vmem:[%s276 + $0x18] sm:$0xff]
        %v282 = vld [vmem:[%s276 + $0x20] sm:$0xff]
        %v283 = vld [vmem:[%s276 + $0x28] sm:$0xff]
        %v284 = vld [vmem:[%s276 + $0x30] sm:$0xff]
        %v285 = vld [vmem:[%s276 + $0x38] sm:$0xff]
        %v286 = vld [vmem:[%s276 + $0x40] sm:$0xff]
        %v287 = vld [vmem:[%s276 + $0x48] sm:$0xff]
        %v288 = vld [vmem:[%s276 + $0x50] sm:$0xff]
        %v289 = vld [vmem:[%s276 + $0x58] sm:$0xff]
        %v290 = vld [vmem:[%s276 + $0x60] sm:$0xff]
        %v291 = vld [vmem:[%s276 + $0x68] sm:$0xff]
        %v292 = vld [vmem:[%s276 + $0x70] sm:$0xff]
        %v293 = vld [vmem:[%s276 + $0x78] sm:$0xff]
        %v294 = vld [vmem:[%s276 + $0x80] sm:$0xff]
        %v295 = vld [vmem:[%s276 + $0x88] sm:$0xff]
        %v296 = vld [vmem:[%s276 + $0x90] sm:$0xff]
        %v297 = vld [vmem:[%s276 + $0x98] sm:$0xff]
        %v298 = vld [vmem:[%s276 + $0xa0] sm:$0xff]
        %v299 = vld [vmem:[%s276 + $0xa8] sm:$0xff]
        %v300 = vld [vmem:[%s276 + $0xb0] sm:$0xff]
        %v301 = vld [vmem:[%s276 + $0xb8] sm:$0xff]
        %v302 = vld [vmem:[%s276 + $0xc0] sm:$0xff]
        %v303 = vld [vmem:[%s276 + $0xc8] sm:$0xff]
        %v304 = vld [vmem:[%s276 + $0xd0] sm:$0xff]
        %v305 = vld [vmem:[%s276 + $0xd8] sm:$0xff]
        %v306 = vld [vmem:[%s276 + $0xe0] sm:$0xff]
        %v307 = vld [vmem:[%s276 + $0xe8] sm:$0xff]
        %v308 = vld [vmem:[%s276 + $0xf0] sm:$0xff]
        %v309 = vld [vmem:[%s276 + $0xf8] sm:$0xff]
        %v310 = vpack.c.bf16 %v279, %v278
        %v311 = vpack.c.bf16 %v281, %v280
        %v312 = vpack.c.bf16 %v283, %v282
        %v313 = vpack.c.bf16 %v285, %v284
        %v314 = vpack.c.bf16 %v287, %v286
        %v315 = vpack.c.bf16 %v289, %v288
        %v316 = vpack.c.bf16 %v291, %v290
        %v317 = vpack.c.bf16 %v293, %v292
        %v318 = vpack.c.bf16 %v295, %v294
        %v319 = vpack.c.bf16 %v297, %v296
        %v320 = vpack.c.bf16 %v299, %v298
        %v321 = vpack.c.bf16 %v301, %v300
        %v322 = vpack.c.bf16 %v303, %v302
        %v323 = vpack.c.bf16 %v305, %v304
        %v324 = vpack.c.bf16 %v307, %v306
        %v325 = vpack.c.bf16 %v309, %v308
        %v326 = vld [vmem:[%s1] sm:$0xf]
        %v327 = vld [vmem:[%s1 + $0x4] sm:$0xf]
        %v328 = vld [vmem:[%s1 + $0x8] sm:$0xf]
        %v329 = vld [vmem:[%s1 + $0xc] sm:$0xf]
        %v330 = vld [vmem:[%s1 + $0x10] sm:$0xf]
        %v331 = vld [vmem:[%s1 + $0x14] sm:$0xf]
        %v332 = vld [vmem:[%s1 + $0x18] sm:$0xf]
        %v333 = vld [vmem:[%s1 + $0x1c] sm:$0xf]
        %v334 = vld [vmem:[%s1 + $0x20] sm:$0xf]
        %v335 = vld [vmem:[%s1 + $0x24] sm:$0xf]
        %v336 = vld [vmem:[%s1 + $0x28] sm:$0xf]
        %v337 = vld [vmem:[%s1 + $0x2c] sm:$0xf]
        %v338 = vld [vmem:[%s1 + $0x30] sm:$0xf]
        %v339 = vld [vmem:[%s1 + $0x34] sm:$0xf]
        %v340 = vld [vmem:[%s1 + $0x38] sm:$0xf]
        %v341 = vld [vmem:[%s1 + $0x3c] sm:$0xf]
        %v342 = vld [vmem:[%s2] sm:$0x1]
        %v344 = vlaneseq
        %v345 = vshrl.u32 %v344, 7
        %v346 = vsub.s32 0, %v345
        %v347 = vrot.slane %v342, %v346
        %v365 = vunpack.c.l.b16 %v326
        %v366 = vunpack.c.l.b16 %v327
        %v367 = vunpack.c.l.b16 %v328
        %v368 = vunpack.c.l.b16 %v329
        %v369 = vunpack.c.l.b16 %v330
        %v370 = vunpack.c.l.b16 %v331
        %v371 = vunpack.c.l.b16 %v332
        %v372 = vunpack.c.l.b16 %v333
        %v373 = vunpack.c.l.b16 %v334
        %v374 = vunpack.c.l.b16 %v335
        %v375 = vunpack.c.l.b16 %v336
        %v376 = vunpack.c.l.b16 %v337
        %v377 = vunpack.c.l.b16 %v338
        %v378 = vunpack.c.l.b16 %v339
        %v379 = vunpack.c.l.b16 %v340
        %v380 = vunpack.c.l.b16 %v341
        %v381 = vpack.c.b16 %v366, %v365
        %v382 = vpack.c.b16 %v368, %v367
        %v383 = vpack.c.b16 %v370, %v369
        %v384 = vpack.c.b16 %v372, %v371
        %v385 = vpack.c.b16 %v374, %v373
        %v386 = vpack.c.b16 %v376, %v375
        %v387 = vpack.c.b16 %v378, %v377
        %v388 = vpack.c.b16 %v380, %v379
        %397 = vmatprep.subr.bf16.mxu0 0
        %398 = vmatpush1.bf16.msra.mxu0 %v381
        %399 = vmatprep.subr.bf16.mxu0 0
        %400 = vmatpush1.bf16.msra.mxu0 %v382
        %401 = vmatprep.subr.bf16.mxu0 0
        %402 = vmatpush1.bf16.msra.mxu0 %v383
        %403 = vmatprep.subr.bf16.mxu0 0
        %404 = vmatpush1.bf16.msra.mxu0 %v384
        %405 = vmatprep.subr.bf16.mxu0 0
        %406 = vmatpush1.bf16.msra.mxu0 %v385
        %407 = vmatprep.subr.bf16.mxu0 0
        %408 = vmatpush1.bf16.msra.mxu0 %v386
        %409 = vmatprep.subr.bf16.mxu0 0
        %410 = vmatpush1.bf16.msra.mxu0 %v387
        %411 = vmatprep.subr.bf16.mxu0 0
        %412 = vmatpush1.bf16.msra.mxu0 %v388
        %413 = vmatprep.subr.bf16.mxu0 0
        %414 = vmatpush1.bf16.msra.mxu0 0
        %415 = vmatprep.subr.bf16.mxu0 0
        %416 = vmatpush1.bf16.msra.mxu0 0
        %417 = vmatprep.subr.bf16.mxu0 0
        %418 = vmatpush1.bf16.msra.mxu0 0
        %419 = vmatprep.subr.bf16.mxu0 0
        %420 = vmatpush1.bf16.msra.mxu0 0
        %421 = vmatprep.subr.bf16.mxu0 0
        %422 = vmatpush1.bf16.msra.mxu0 0
        %423 = vmatprep.subr.bf16.mxu0 0
        %424 = vmatpush1.bf16.msra.mxu0 0
        %425 = vmatprep.subr.bf16.mxu0 0
        %426 = vmatpush1.bf16.msra.mxu0 0
        %427 = vmatprep.subr.bf16.mxu0 0
        %428 = vmatpush1.bf16.msra.mxu0 0
        %429 = vmatprep.mubr.bf16.mxu0 0
        %430 = vmatmul.mubr.bf16.gmra.mrb[0].mxu0 %v310
        %v431 = vpop.f32.mrb[0].mxu0
        %v432 = vadd.f32 %v347, %v431
        %v433 = vpop.f32.mrb[0].mxu0
        %v434 = vpop.f32.mrb[0].mxu0
        %v435 = vadd.f32 %v347, %v434
        %v436 = vpop.f32.mrb[0].mxu0
        %437 = vmatprep.mubr.bf16.mxu0 0
        %438 = vmatmul.mubr.bf16.gmra.mrb[0].mxu0 %v311
        %v439 = vpop.f32.mrb[0].mxu0
        %v440 = vadd.f32 %v347, %v439
        %v441 = vpop.f32.mrb[0].mxu0
        %v442 = vpop.f32.mrb[0].mxu0
        %v443 = vadd.f32 %v347, %v442
        %v444 = vpop.f32.mrb[0].mxu0
        %445 = vmatprep.mubr.bf16.mxu0 0
        %446 = vmatmul.mubr.bf16.gmra.mrb[0].mxu0 %v312
        %v447 = vpop.f32.mrb[0].mxu0
        %v448 = vadd.f32 %v347, %v447
        %v449 = vpop.f32.mrb[0].mxu0
        %v450 = vpop.f32.mrb[0].mxu0
        %v451 = vadd.f32 %v347, %v450
        %v452 = vpop.f32.mrb[0].mxu0
        %453 = vmatprep.mubr.bf16.mxu0 0
        %454 = vmatmul.mubr.bf16.gmra.mrb[0].mxu0 %v313
        %v455 = vpop.f32.mrb[0].mxu0
        %v456 = vadd.f32 %v347, %v455
        %v457 = vpop.f32.mrb[0].mxu0
        %v458 = vpop.f32.mrb[0].mxu0
        %v459 = vadd.f32 %v347, %v458
        %v460 = vpop.f32.mrb[0].mxu0
        %461 = vmatprep.mubr.bf16.mxu0 0
        %462 = vmatmul.mubr.bf16.gmra.mrb[0].mxu0 %v314
        %v463 = vpop.f32.mrb[0].mxu0
        %v464 = vadd.f32 %v347, %v463
        %v465 = vpop.f32.mrb[0].mxu0
        %v466 = vpop.f32.mrb[0].mxu0
        %v467 = vadd.f32 %v347, %v466
        %v468 = vpop.f32.mrb[0].mxu0
        %469 = vmatprep.mubr.bf16.mxu0 0
        %470 = vmatmul.mubr.bf16.gmra.mrb[0].mxu0 %v315
        %v471 = vpop.f32.mrb[0].mxu0
        %v472 = vadd.f32 %v347, %v471
        %v473 = vpop.f32.mrb[0].mxu0
        %v474 = vpop.f32.mrb[0].mxu0
        %v475 = vadd.f32 %v347, %v474
        %v476 = vpop.f32.mrb[0].mxu0
        %477 = vmatprep.mubr.bf16.mxu0 0
        %478 = vmatmul.mubr.bf16.gmra.mrb[0].mxu0 %v316
        %v479 = vpop.f32.mrb[0].mxu0
        %v480 = vadd.f32 %v347, %v479
        %v481 = vpop.f32.mrb[0].mxu0
        %v482 = vpop.f32.mrb[0].mxu0
        %v483 = vadd.f32 %v347, %v482
        %v484 = vpop.f32.mrb[0].mxu0
        %485 = vmatprep.mubr.bf16.mxu0 0
        %486 = vmatmul.mubr.bf16.gmra.mrb[0].mxu0 %v317
        %v487 = vpop.f32.mrb[0].mxu0
        %v488 = vadd.f32 %v347, %v487
        %v489 = vpop.f32.mrb[0].mxu0
        %v490 = vpop.f32.mrb[0].mxu0
        %v491 = vadd.f32 %v347, %v490
        %v492 = vpop.f32.mrb[0].mxu0
        %493 = vmatprep.mubr.bf16.mxu0 0
        %494 = vmatmul.mubr.bf16.gmra.mrb[0].mxu0 %v318
        %v495 = vpop.f32.mrb[0].mxu0
        %v496 = vadd.f32 %v347, %v495
        %v497 = vpop.f32.mrb[0].mxu0
        %v498 = vpop.f32.mrb[0].mxu0
        %v499 = vadd.f32 %v347, %v498
        %v500 = vpop.f32.mrb[0].mxu0
        %501 = vmatprep.mubr.bf16.mxu0 0
        %502 = vmatmul.mubr.bf16.gmra.mrb[0].mxu0 %v319
        %v503 = vpop.f32.mrb[0].mxu0
        %v504 = vadd.f32 %v347, %v503
        %v505 = vpop.f32.mrb[0].mxu0
        %v506 = vpop.f32.mrb[0].mxu0
        %v507 = vadd.f32 %v347, %v506
        %v508 = vpop.f32.mrb[0].mxu0
        %509 = vmatprep.mubr.bf16.mxu0 0
        %510 = vmatmul.mubr.bf16.gmra.mrb[0].mxu0 %v320
        %v511 = vpop.f32.mrb[0].mxu0
        %v512 = vadd.f32 %v347, %v511
        %v513 = vpop.f32.mrb[0].mxu0
        %v514 = vpop.f32.mrb[0].mxu0
        %v515 = vadd.f32 %v347, %v514
        %v516 = vpop.f32.mrb[0].mxu0
        %517 = vmatprep.mubr.bf16.mxu0 0
        %518 = vmatmul.mubr.bf16.gmra.mrb[0].mxu0 %v321
        %v519 = vpop.f32.mrb[0].mxu0
        %v520 = vadd.f32 %v347, %v519
        %v521 = vpop.f32.mrb[0].mxu0
        %v522 = vpop.f32.mrb[0].mxu0
        %v523 = vadd.f32 %v347, %v522
        %v524 = vpop.f32.mrb[0].mxu0
        %525 = vmatprep.mubr.bf16.mxu0 0
        %526 = vmatmul.mubr.bf16.gmra.mrb[0].mxu0 %v322
        %v527 = vpop.f32.mrb[0].mxu0
        %v528 = vadd.f32 %v347, %v527
        %v529 = vpop.f32.mrb[0].mxu0
        %v530 = vpop.f32.mrb[0].mxu0
        %v531 = vadd.f32 %v347, %v530
        %v532 = vpop.f32.mrb[0].mxu0
        %533 = vmatprep.mubr.bf16.mxu0 0
        %534 = vmatmul.mubr.bf16.gmra.mrb[0].mxu0 %v323
        %v535 = vpop.f32.mrb[0].mxu0
        %v536 = vadd.f32 %v347, %v535
        %v537 = vpop.f32.mrb[0].mxu0
        %v538 = vpop.f32.mrb[0].mxu0
        %v539 = vadd.f32 %v347, %v538
        %v540 = vpop.f32.mrb[0].mxu0
        %541 = vmatprep.mubr.bf16.mxu0 0
        %542 = vmatmul.mubr.bf16.gmra.mrb[0].mxu0 %v324
        %v543 = vpop.f32.mrb[0].mxu0
        %v544 = vadd.f32 %v347, %v543
        %v545 = vpop.f32.mrb[0].mxu0
        %v546 = vpop.f32.mrb[0].mxu0
        %v547 = vadd.f32 %v347, %v546
        %v548 = vpop.f32.mrb[0].mxu0
        %549 = vmatprep.mubr.bf16.mxu0 0
        %550 = vmatmul.mubr.bf16.gmra.mrb[0].mxu0 %v325
        %v551 = vpop.f32.mrb[0].mxu0
        %v552 = vadd.f32 %v347, %v551
        %v553 = vpop.f32.mrb[0].mxu0
        %v554 = vpop.f32.mrb[0].mxu0
        %v555 = vadd.f32 %v347, %v554
        %v556 = vpop.f32.mrb[0].mxu0
        %557 = vdwg.mxu0
        %v558 = vmax.f32 %v432, 0.0
        %v559 = vmax.f32 %v435, 0.0
        %v560 = vmax.f32 %v440, 0.0
        %v561 = vmax.f32 %v443, 0.0
        %v562 = vmax.f32 %v448, 0.0
        %v563 = vmax.f32 %v451, 0.0
        %v564 = vmax.f32 %v456, 0.0
        %v565 = vmax.f32 %v459, 0.0
        %v566 = vmax.f32 %v464, 0.0
        %v567 = vmax.f32 %v467, 0.0
        %v568 = vmax.f32 %v472, 0.0
        %v569 = vmax.f32 %v475, 0.0
        %v570 = vmax.f32 %v480, 0.0
        %v571 = vmax.f32 %v483, 0.0
        %v572 = vmax.f32 %v488, 0.0
        %v573 = vmax.f32 %v491, 0.0
        %v574 = vmax.f32 %v496, 0.0
        %v575 = vmax.f32 %v499, 0.0
        %v576 = vmax.f32 %v504, 0.0
        %v577 = vmax.f32 %v507, 0.0
        %v578 = vmax.f32 %v512, 0.0
        %v579 = vmax.f32 %v515, 0.0
        %v580 = vmax.f32 %v520, 0.0
        %v581 = vmax.f32 %v523, 0.0
        %v582 = vmax.f32 %v528, 0.0
        %v583 = vmax.f32 %v531, 0.0
        %v584 = vmax.f32 %v536, 0.0
        %v585 = vmax.f32 %v539, 0.0
        %v586 = vmax.f32 %v544, 0.0
        %v587 = vmax.f32 %v547, 0.0
        %v588 = vmax.f32 %v552, 0.0
        %v589 = vmax.f32 %v555, 0.0
        %vm590 = vcmask 257024
        %591 = vst.msk [vmem:[#allocation2] sm:$0xf] %vm590, 0
        %592 = vst.msk [vmem:[#allocation2 + $0x4] sm:$0xf] %vm590, 0
        %vm593 = vcmask 253952
        %594 = vst.msk [vmem:[#allocation2 + $0x8] sm:$0x1] %vm593, 0
        %s595 = scalar_lea.vmem [#allocation2], 204
        %596 = vst.msk [vmem:[%s595] sm:$0xf] %vm590, 0
        %597 = vst.msk [vmem:[%s595 + $0x4] sm:$0xf] %vm590, 0
        %598 = vst.msk [vmem:[%s595 + $0x8] sm:$0x1] %vm593, 0
        %vm599 = vcmask 253952
        %vm600 = vsmask.f32 256
        %vm601 = vmand %vm599, %vm600
        %v602 = vld [vmem:[#allocation2] sm:$0x1]
        %v603 = vsel %vm601, 0, %v602
        %604 = vst [vmem:[#allocation2] sm:$0x1] %v603
        %v605 = vld [vmem:[#allocation2 + $0xc] sm:$0x1]
        %v606 = vsel %vm601, 0, %v605
        %607 = vst [vmem:[#allocation2 + $0xc] sm:$0x1] %v606
        %v608 = vld [vmem:[#allocation2 + $0x18] sm:$0x1]
        %v609 = vsel %vm601, 0, %v608
        %610 = vst [vmem:[#allocation2 + $0x18] sm:$0x1] %v609
        %v611 = vld [vmem:[#allocation2 + $0x24] sm:$0x1]
        %v612 = vsel %vm601, 0, %v611
        %613 = vst [vmem:[#allocation2 + $0x24] sm:$0x1] %v612
        %v614 = vld [vmem:[#allocation2 + $0x30] sm:$0x1]
        %v615 = vsel %vm601, 0, %v614
        %616 = vst [vmem:[#allocation2 + $0x30] sm:$0x1] %v615
        %v617 = vld [vmem:[#allocation2 + $0x3c] sm:$0x1]
        %v618 = vsel %vm601, 0, %v617
        %619 = vst [vmem:[#allocation2 + $0x3c] sm:$0x1] %v618
        %v620 = vld [vmem:[#allocation2 + $0x48] sm:$0x1]
        %v621 = vsel %vm601, 0, %v620
        %622 = vst [vmem:[#allocation2 + $0x48] sm:$0x1] %v621
        %v623 = vld [vmem:[#allocation2 + $0x54] sm:$0x1]
        %v624 = vsel %vm601, 0, %v623
        %625 = vst [vmem:[#allocation2 + $0x54] sm:$0x1] %v624
        %v626 = vld [vmem:[#allocation2 + $0x60] sm:$0x1]
        %v627 = vsel %vm601, 0, %v626
        %628 = vst [vmem:[#allocation2 + $0x60] sm:$0x1] %v627
        %v629 = vld [vmem:[#allocation2 + $0x6c] sm:$0x1]
        %v630 = vsel %vm601, 0, %v629
        %631 = vst [vmem:[#allocation2 + $0x6c] sm:$0x1] %v630
        %v632 = vld [vmem:[#allocation2 + $0x78] sm:$0x1]
        %v633 = vsel %vm601, 0, %v632
        %634 = vst [vmem:[#allocation2 + $0x78] sm:$0x1] %v633
        %v635 = vld [vmem:[#allocation2 + $0x84] sm:$0x1]
        %v636 = vsel %vm601, 0, %v635
        %637 = vst [vmem:[#allocation2 + $0x84] sm:$0x1] %v636
        %v638 = vld [vmem:[#allocation2 + $0x90] sm:$0x1]
        %v639 = vsel %vm601, 0, %v638
        %640 = vst [vmem:[#allocation2 + $0x90] sm:$0x1] %v639
        %v641 = vld [vmem:[#allocation2 + $0x9c] sm:$0x1]
        %v642 = vsel %vm601, 0, %v641
        %643 = vst [vmem:[#allocation2 + $0x9c] sm:$0x1] %v642
        %v644 = vld [vmem:[#allocation2 + $0xa8] sm:$0x1]
        %v645 = vsel %vm601, 0, %v644
        %646 = vst [vmem:[#allocation2 + $0xa8] sm:$0x1] %v645
        %v647 = vld [vmem:[#allocation2 + $0xb4] sm:$0x1]
        %v648 = vsel %vm601, 0, %v647
        %649 = vst [vmem:[#allocation2 + $0xb4] sm:$0x1] %v648
        %v650 = vld [vmem:[#allocation2 + $0xc0] sm:$0x1]
        %v651 = vsel %vm601, 0, %v650
        %652 = vst [vmem:[#allocation2 + $0xc0] sm:$0x1] %v651
        %v653 = vld [vmem:[#allocation2 + $0xcc] sm:$0x1]
        %v654 = vsel %vm601, 0, %v653
        %655 = vst [vmem:[#allocation2 + $0xcc] sm:$0x1] %v654
        %vm656 = vsmask.f32 7938
        %vm657 = vmand %vm599, %vm656
        %v658 = vld [vmem:[#allocation2 + $0x8] sm:$0x1]
        %v659 = vsel %vm657, 0, %v658
        %660 = vst [vmem:[#allocation2 + $0x8] sm:$0x1] %v659
        %v661 = vld [vmem:[#allocation2 + $0x14] sm:$0x1]
        %v662 = vsel %vm657, 0, %v661
        %663 = vst [vmem:[#allocation2 + $0x14] sm:$0x1] %v662
        %v664 = vld [vmem:[#allocation2 + $0x20] sm:$0x1]
        %v665 = vsel %vm657, 0, %v664
        %666 = vst [vmem:[#allocation2 + $0x20] sm:$0x1] %v665
        %v667 = vld [vmem:[#allocation2 + $0x2c] sm:$0x1]
        %v668 = vsel %vm657, 0, %v667
        %669 = vst [vmem:[#allocation2 + $0x2c] sm:$0x1] %v668
        %v670 = vld [vmem:[#allocation2 + $0x38] sm:$0x1]
        %v671 = vsel %vm657, 0, %v670
        %672 = vst [vmem:[#allocation2 + $0x38] sm:$0x1] %v671
        %v673 = vld [vmem:[#allocation2 + $0x44] sm:$0x1]
        %v674 = vsel %vm657, 0, %v673
        %675 = vst [vmem:[#allocation2 + $0x44] sm:$0x1] %v674
        %v676 = vld [vmem:[#allocation2 + $0x50] sm:$0x1]
        %v677 = vsel %vm657, 0, %v676
        %678 = vst [vmem:[#allocation2 + $0x50] sm:$0x1] %v677
        %v679 = vld [vmem:[#allocation2 + $0x5c] sm:$0x1]
        %v680 = vsel %vm657, 0, %v679
        %681 = vst [vmem:[#allocation2 + $0x5c] sm:$0x1] %v680
        %v682 = vld [vmem:[#allocation2 + $0x68] sm:$0x1]
        %v683 = vsel %vm657, 0, %v682
        %684 = vst [vmem:[#allocation2 + $0x68] sm:$0x1] %v683
        %v685 = vld [vmem:[#allocation2 + $0x74] sm:$0x1]
        %v686 = vsel %vm657, 0, %v685
        %687 = vst [vmem:[#allocation2 + $0x74] sm:$0x1] %v686
        %v688 = vld [vmem:[#allocation2 + $0x80] sm:$0x1]
        %v689 = vsel %vm657, 0, %v688
        %690 = vst [vmem:[#allocation2 + $0x80] sm:$0x1] %v689
        %v691 = vld [vmem:[#allocation2 + $0x8c] sm:$0x1]
        %v692 = vsel %vm657, 0, %v691
        %693 = vst [vmem:[#allocation2 + $0x8c] sm:$0x1] %v692
        %v694 = vld [vmem:[#allocation2 + $0x98] sm:$0x1]
        %v695 = vsel %vm657, 0, %v694
        %696 = vst [vmem:[#allocation2 + $0x98] sm:$0x1] %v695
        %v697 = vld [vmem:[#allocation2 + $0xa4] sm:$0x1]
        %v698 = vsel %vm657, 0, %v697
        %699 = vst [vmem:[#allocation2 + $0xa4] sm:$0x1] %v698
        %v700 = vld [vmem:[#allocation2 + $0xb0] sm:$0x1]
        %v701 = vsel %vm657, 0, %v700
        %702 = vst [vmem:[#allocation2 + $0xb0] sm:$0x1] %v701
        %v703 = vld [vmem:[#allocation2 + $0xbc] sm:$0x1]
        %v704 = vsel %vm657, 0, %v703
        %705 = vst [vmem:[#allocation2 + $0xbc] sm:$0x1] %v704
        %v706 = vld [vmem:[#allocation2 + $0xc8] sm:$0x1]
        %v707 = vsel %vm657, 0, %v706
        %708 = vst [vmem:[#allocation2 + $0xc8] sm:$0x1] %v707
        %v709 = vld [vmem:[#allocation2 + $0xd4] sm:$0x1]
        %v710 = vsel %vm657, 0, %v709
        %711 = vst [vmem:[#allocation2 + $0xd4] sm:$0x1] %v710
        %v712 = vpack.c.bf16 %v559, %v558
        %v713 = vpack.c.bf16 %v561, %v560
        %v714 = vpack.c.bf16 %v563, %v562
        %v715 = vpack.c.bf16 %v565, %v564
        %v716 = vpack.c.bf16 %v567, %v566
        %v717 = vpack.c.bf16 %v569, %v568
        %v718 = vpack.c.bf16 %v571, %v570
        %v719 = vpack.c.bf16 %v573, %v572
        %v720 = vpack.c.bf16 %v575, %v574
        %v721 = vpack.c.bf16 %v577, %v576
        %v722 = vpack.c.bf16 %v579, %v578
        %v723 = vpack.c.bf16 %v581, %v580
        %v724 = vpack.c.bf16 %v583, %v582
        %v725 = vpack.c.bf16 %v585, %v584
        %v726 = vpack.c.bf16 %v587, %v586
        %v727 = vpack.c.bf16 %v589, %v588
        %v744 = vunpack.c.l.b16 %v712
        %v745 = vunpack.c.h.b16 %v712
        %v746 = vunpack.c.l.b16 %v713
        %v747 = vunpack.c.h.b16 %v713
        %v748 = vunpack.c.l.b16 %v714
        %v749 = vunpack.c.h.b16 %v714
        %v750 = vunpack.c.l.b16 %v715
        %v751 = vunpack.c.h.b16 %v715
        %v752 = vunpack.c.l.b16 %v716
        %v753 = vunpack.c.h.b16 %v716
        %v754 = vunpack.c.l.b16 %v717
        %v755 = vunpack.c.h.b16 %v717
        %v756 = vunpack.c.l.b16 %v718
        %v757 = vunpack.c.h.b16 %v718
        %v758 = vunpack.c.l.b16 %v719
        %v759 = vunpack.c.h.b16 %v719
        %v760 = vunpack.c.l.b16 %v720
        %v761 = vunpack.c.h.b16 %v720
        %v762 = vunpack.c.l.b16 %v721
        %v763 = vunpack.c.h.b16 %v721
        %v764 = vunpack.c.l.b16 %v722
        %v765 = vunpack.c.h.b16 %v722
        %v766 = vunpack.c.l.b16 %v723
        %v767 = vunpack.c.h.b16 %v723
        %v768 = vunpack.c.l.b16 %v724
        %v769 = vunpack.c.h.b16 %v724
        %v770 = vunpack.c.l.b16 %v725
        %v771 = vunpack.c.h.b16 %v725
        %v772 = vunpack.c.l.b16 %v726
        %v773 = vunpack.c.h.b16 %v726
        %v774 = vunpack.c.l.b16 %v727
        %v775 = vunpack.c.h.b16 %v727
        %v776 = vpack.c.b16 %v744, %v744
        %v777 = vpack.c.b16 %v745, %v745
        %v778 = vpack.c.b16 %v746, %v746
        %v779 = vpack.c.b16 %v747, %v747
        %v780 = vpack.c.b16 %v748, %v748
        %v781 = vpack.c.b16 %v749, %v749
        %v782 = vpack.c.b16 %v750, %v750
        %v783 = vpack.c.b16 %v751, %v751
        %v784 = vpack.c.b16 %v752, %v752
        %v785 = vpack.c.b16 %v753, %v753
        %v786 = vpack.c.b16 %v754, %v754
        %v787 = vpack.c.b16 %v755, %v755
        %v788 = vpack.c.b16 %v756, %v756
        %v789 = vpack.c.b16 %v757, %v757
        %v790 = vpack.c.b16 %v758, %v758
        %v791 = vpack.c.b16 %v759, %v759
        %v792 = vpack.c.b16 %v760, %v760
        %v793 = vpack.c.b16 %v761, %v761
        %v794 = vpack.c.b16 %v762, %v762
        %v795 = vpack.c.b16 %v763, %v763
        %v796 = vpack.c.b16 %v764, %v764
        %v797 = vpack.c.b16 %v765, %v765
        %v798 = vpack.c.b16 %v766, %v766
        %v799 = vpack.c.b16 %v767, %v767
        %v800 = vpack.c.b16 %v768, %v768
        %v801 = vpack.c.b16 %v769, %v769
        %v802 = vpack.c.b16 %v770, %v770
        %v803 = vpack.c.b16 %v771, %v771
        %v804 = vpack.c.b16 %v772, %v772
        %v805 = vpack.c.b16 %v773, %v773
        %v806 = vpack.c.b16 %v774, %v774
        %v807 = vpack.c.b16 %v775, %v775
        %vm808 = vsmask.f32 4368
        %vm809 = vmor %vm600, %vm808
        %v811 = vshrl.u32 %v776, 16
        %v813 = vrot.slane %v811, 7
        %v814 = vshll.u32 %v776, 16
        %v816 = vor.u32 %v813, %v814
        %v817 = vrot.slane %v813, 4
        %v819 = vshrl.u32 %v777, 16
        %v821 = vrot.slane %v819, 7
        %v822 = vshll.u32 %v777, 16
        %v824 = vor.u32 %v821, %v822
        %v825 = vsel %vm809, %v817, %v824
        %v826 = vrot.slane %v821, 4
        %v828 = vshrl.u32 %v778, 16
        %v830 = vrot.slane %v828, 7
        %v831 = vshll.u32 %v778, 16
        %v833 = vor.u32 %v830, %v831
        %v834 = vrot.slane %v830, 4
        %v836 = vshrl.u32 %v779, 16
        %v838 = vrot.slane %v836, 7
        %v839 = vshll.u32 %v779, 16
        %v841 = vor.u32 %v838, %v839
        %v842 = vsel %vm809, %v834, %v841
        %v843 = vrot.slane %v838, 4
        %v845 = vshrl.u32 %v780, 16
        %v847 = vrot.slane %v845, 7
        %v848 = vshll.u32 %v780, 16
        %v850 = vor.u32 %v847, %v848
        %v851 = vrot.slane %v847, 4
        %v853 = vshrl.u32 %v781, 16
        %v855 = vrot.slane %v853, 7
        %v856 = vshll.u32 %v781, 16
        %v858 = vor.u32 %v855, %v856
        %v859 = vsel %vm809, %v851, %v858
        %v860 = vrot.slane %v855, 4
        %v862 = vshrl.u32 %v782, 16
        %v864 = vrot.slane %v862, 7
        %v865 = vshll.u32 %v782, 16
        %v867 = vor.u32 %v864, %v865
        %v868 = vrot.slane %v864, 4
        %v870 = vshrl.u32 %v783, 16
        %v872 = vrot.slane %v870, 7
        %v873 = vshll.u32 %v783, 16
        %v875 = vor.u32 %v872, %v873
        %v876 = vsel %vm809, %v868, %v875
        %v877 = vrot.slane %v872, 4
        %v879 = vshrl.u32 %v784, 16
        %v881 = vrot.slane %v879, 7
        %v882 = vshll.u32 %v784, 16
        %v884 = vor.u32 %v881, %v882
        %v885 = vrot.slane %v881, 4
        %v887 = vshrl.u32 %v785, 16
        %v889 = vrot.slane %v887, 7
        %v890 = vshll.u32 %v785, 16
        %v892 = vor.u32 %v889, %v890
        %v893 = vsel %vm809, %v885, %v892
        %v894 = vrot.slane %v889, 4
        %v896 = vshrl.u32 %v786, 16
        %v898 = vrot.slane %v896, 7
        %v899 = vshll.u32 %v786, 16
        %v901 = vor.u32 %v898, %v899
        %v902 = vrot.slane %v898, 4
        %v904 = vshrl.u32 %v787, 16
        %v906 = vrot.slane %v904, 7
        %v907 = vshll.u32 %v787, 16
        %v909 = vor.u32 %v906, %v907
        %v910 = vsel %vm809, %v902, %v909
        %v911 = vrot.slane %v906, 4
        %v913 = vshrl.u32 %v788, 16
        %v915 = vrot.slane %v913, 7
        %v916 = vshll.u32 %v788, 16
        %v918 = vor.u32 %v915, %v916
        %v919 = vrot.slane %v915, 4
        %v921 = vshrl.u32 %v789, 16
        %v923 = vrot.slane %v921, 7
        %v924 = vshll.u32 %v789, 16
        %v926 = vor.u32 %v923, %v924
        %v927 = vsel %vm809, %v919, %v926
        %v928 = vrot.slane %v923, 4
        %v930 = vshrl.u32 %v790, 16
        %v932 = vrot.slane %v930, 7
        %v933 = vshll.u32 %v790, 16
        %v935 = vor.u32 %v932, %v933
        %v936 = vrot.slane %v932, 4
        %v938 = vshrl.u32 %v791, 16
        %v940 = vrot.slane %v938, 7
        %v941 = vshll.u32 %v791, 16
        %v943 = vor.u32 %v940, %v941
        %v944 = vsel %vm809, %v936, %v943
        %v945 = vrot.slane %v940, 4
        %v947 = vshrl.u32 %v792, 16
        %v949 = vrot.slane %v947, 7
        %v950 = vshll.u32 %v792, 16
        %v952 = vor.u32 %v949, %v950
        %v953 = vrot.slane %v949, 4
        %v955 = vshrl.u32 %v793, 16
        %v957 = vrot.slane %v955, 7
        %v958 = vshll.u32 %v793, 16
        %v960 = vor.u32 %v957, %v958
        %v961 = vsel %vm809, %v953, %v960
        %v962 = vrot.slane %v957, 4
        %v964 = vshrl.u32 %v794, 16
        %v966 = vrot.slane %v964, 7
        %v967 = vshll.u32 %v794, 16
        %v969 = vor.u32 %v966, %v967
        %v970 = vrot.slane %v966, 4
        %v972 = vshrl.u32 %v795, 16
        %v974 = vrot.slane %v972, 7
        %v975 = vshll.u32 %v795, 16
        %v977 = vor.u32 %v974, %v975
        %v978 = vsel %vm809, %v970, %v977
        %v979 = vrot.slane %v974, 4
        %v981 = vshrl.u32 %v796, 16
        %v983 = vrot.slane %v981, 7
        %v984 = vshll.u32 %v796, 16
        %v986 = vor.u32 %v983, %v984
        %v987 = vrot.slane %v983, 4
        %v989 = vshrl.u32 %v797, 16
        %v991 = vrot.slane %v989, 7
        %v992 = vshll.u32 %v797, 16
        %v994 = vor.u32 %v991, %v992
        %v995 = vsel %vm809, %v987, %v994
        %v996 = vrot.slane %v991, 4
        %v998 = vshrl.u32 %v798, 16
        %v1000 = vrot.slane %v998, 7
        %v1001 = vshll.u32 %v798, 16
        %v1003 = vor.u32 %v1000, %v1001
        %v1004 = vrot.slane %v1000, 4
        %v1006 = vshrl.u32 %v799, 16
        %v1008 = vrot.slane %v1006, 7
        %v1009 = vshll.u32 %v799, 16
        %v1011 = vor.u32 %v1008, %v1009
        %v1012 = vsel %vm809, %v1004, %v1011
        %v1013 = vrot.slane %v1008, 4
        %v1015 = vshrl.u32 %v800, 16
        %v1017 = vrot.slane %v1015, 7
        %v1018 = vshll.u32 %v800, 16
        %v1020 = vor.u32 %v1017, %v1018
        %v1021 = vrot.slane %v1017, 4
        %v1023 = vshrl.u32 %v801, 16
        %v1025 = vrot.slane %v1023, 7
        %v1026 = vshll.u32 %v801, 16
        %v1028 = vor.u32 %v1025, %v1026
        %v1029 = vsel %vm809, %v1021, %v1028
        %v1030 = vrot.slane %v1025, 4
        %v1032 = vshrl.u32 %v802, 16
        %v1034 = vrot.slane %v1032, 7
        %v1035 = vshll.u32 %v802, 16
        %v1037 = vor.u32 %v1034, %v1035
        %v1038 = vrot.slane %v1034, 4
        %v1040 = vshrl.u32 %v803, 16
        %v1042 = vrot.slane %v1040, 7
        %v1043 = vshll.u32 %v803, 16
        %v1045 = vor.u32 %v1042, %v1043
        %v1046 = vsel %vm809, %v1038, %v1045
        %v1047 = vrot.slane %v1042, 4
        %v1049 = vshrl.u32 %v804, 16
        %v1051 = vrot.slane %v1049, 7
        %v1052 = vshll.u32 %v804, 16
        %v1054 = vor.u32 %v1051, %v1052
        %v1055 = vrot.slane %v1051, 4
        %v1057 = vshrl.u32 %v805, 16
        %v1059 = vrot.slane %v1057, 7
        %v1060 = vshll.u32 %v805, 16
        %v1062 = vor.u32 %v1059, %v1060
        %v1063 = vsel %vm809, %v1055, %v1062
        %v1064 = vrot.slane %v1059, 4
        %v1066 = vshrl.u32 %v806, 16
        %v1068 = vrot.slane %v1066, 7
        %v1069 = vshll.u32 %v806, 16
        %v1071 = vor.u32 %v1068, %v1069
        %v1072 = vrot.slane %v1068, 4
        %v1074 = vshrl.u32 %v807, 16
        %v1076 = vrot.slane %v1074, 7
        %v1077 = vshll.u32 %v807, 16
        %v1079 = vor.u32 %v1076, %v1077
        %v1080 = vsel %vm809, %v1072, %v1079
        %v1081 = vrot.slane %v1076, 4
        %s1130 = scalar_lea.vmem [#allocation2], 12
        %vm1131 = vcmask 257024
        %vm1132 = vmand %vm1131, %vm656
        %v1133 = vld [vmem:[%s1130] sm:$0xf]
        %v1134 = vsel %vm1132, %v816, %v1133
        %1135 = vst [vmem:[%s1130] sm:$0xf] %v1134
        %1136 = vst.msk [vmem:[%s1130 + $0x4] sm:$0xf] %vm590, %v825
        %v1137 = vld [vmem:[%s1130 + $0x8] sm:$0x1]
        %v1138 = vsel %vm601, %v826, %v1137
        %1139 = vst [vmem:[%s1130 + $0x8] sm:$0x1] %v1138
        %v1140 = vld [vmem:[%s1130 + $0xc] sm:$0xf]
        %v1141 = vsel %vm1132, %v833, %v1140
        %1142 = vst [vmem:[%s1130 + $0xc] sm:$0xf] %v1141
        %1143 = vst.msk [vmem:[%s1130 + $0x10] sm:$0xf] %vm590, %v842
        %v1144 = vld [vmem:[%s1130 + $0x14] sm:$0x1]
        %v1145 = vsel %vm601, %v843, %v1144
        %1146 = vst [vmem:[%s1130 + $0x14] sm:$0x1] %v1145
        %v1147 = vld [vmem:[%s1130 + $0x18] sm:$0xf]
        %v1148 = vsel %vm1132, %v850, %v1147
        %1149 = vst [vmem:[%s1130 + $0x18] sm:$0xf] %v1148
        %1150 = vst.msk [vmem:[%s1130 + $0x1c] sm:$0xf] %vm590, %v859
        %v1151 = vld [vmem:[%s1130 + $0x20] sm:$0x1]
        %v1152 = vsel %vm601, %v860, %v1151
        %1153 = vst [vmem:[%s1130 + $0x20] sm:$0x1] %v1152
        %v1154 = vld [vmem:[%s1130 + $0x24] sm:$0xf]
        %v1155 = vsel %vm1132, %v867, %v1154
        %1156 = vst [vmem:[%s1130 + $0x24] sm:$0xf] %v1155
        %1157 = vst.msk [vmem:[%s1130 + $0x28] sm:$0xf] %vm590, %v876
        %v1158 = vld [vmem:[%s1130 + $0x2c] sm:$0x1]
        %v1159 = vsel %vm601, %v877, %v1158
        %1160 = vst [vmem:[%s1130 + $0x2c] sm:$0x1] %v1159
        %v1161 = vld [vmem:[%s1130 + $0x30] sm:$0xf]
        %v1162 = vsel %vm1132, %v884, %v1161
        %1163 = vst [vmem:[%s1130 + $0x30] sm:$0xf] %v1162
        %1164 = vst.msk [vmem:[%s1130 + $0x34] sm:$0xf] %vm590, %v893
        %v1165 = vld [vmem:[%s1130 + $0x38] sm:$0x1]
        %v1166 = vsel %vm601, %v894, %v1165
        %1167 = vst [vmem:[%s1130 + $0x38] sm:$0x1] %v1166
        %v1168 = vld [vmem:[%s1130 + $0x3c] sm:$0xf]
        %v1169 = vsel %vm1132, %v901, %v1168
        %1170 = vst [vmem:[%s1130 + $0x3c] sm:$0xf] %v1169
        %1171 = vst.msk [vmem:[%s1130 + $0x40] sm:$0xf] %vm590, %v910
        %v1172 = vld [vmem:[%s1130 + $0x44] sm:$0x1]
        %v1173 = vsel %vm601, %v911, %v1172
        %1174 = vst [vmem:[%s1130 + $0x44] sm:$0x1] %v1173
        %v1175 = vld [vmem:[%s1130 + $0x48] sm:$0xf]
        %v1176 = vsel %vm1132, %v918, %v1175
        %1177 = vst [vmem:[%s1130 + $0x48] sm:$0xf] %v1176
        %1178 = vst.msk [vmem:[%s1130 + $0x4c] sm:$0xf] %vm590, %v927
        %v1179 = vld [vmem:[%s1130 + $0x50] sm:$0x1]
        %v1180 = vsel %vm601, %v928, %v1179
        %1181 = vst [vmem:[%s1130 + $0x50] sm:$0x1] %v1180
        %v1182 = vld [vmem:[%s1130 + $0x54] sm:$0xf]
        %v1183 = vsel %vm1132, %v935, %v1182
        %1184 = vst [vmem:[%s1130 + $0x54] sm:$0xf] %v1183
        %1185 = vst.msk [vmem:[%s1130 + $0x58] sm:$0xf] %vm590, %v944
        %v1186 = vld [vmem:[%s1130 + $0x5c] sm:$0x1]
        %v1187 = vsel %vm601, %v945, %v1186
        %1188 = vst [vmem:[%s1130 + $0x5c] sm:$0x1] %v1187
        %v1189 = vld [vmem:[%s1130 + $0x60] sm:$0xf]
        %v1190 = vsel %vm1132, %v952, %v1189
        %1191 = vst [vmem:[%s1130 + $0x60] sm:$0xf] %v1190
        %1192 = vst.msk [vmem:[%s1130 + $0x64] sm:$0xf] %vm590, %v961
        %v1193 = vld [vmem:[%s1130 + $0x68] sm:$0x1]
        %v1194 = vsel %vm601, %v962, %v1193
        %1195 = vst [vmem:[%s1130 + $0x68] sm:$0x1] %v1194
        %v1196 = vld [vmem:[%s1130 + $0x6c] sm:$0xf]
        %v1197 = vsel %vm1132, %v969, %v1196
        %1198 = vst [vmem:[%s1130 + $0x6c] sm:$0xf] %v1197
        %1199 = vst.msk [vmem:[%s1130 + $0x70] sm:$0xf] %vm590, %v978
        %v1200 = vld [vmem:[%s1130 + $0x74] sm:$0x1]
        %v1201 = vsel %vm601, %v979, %v1200
        %1202 = vst [vmem:[%s1130 + $0x74] sm:$0x1] %v1201
        %v1203 = vld [vmem:[%s1130 + $0x78] sm:$0xf]
        %v1204 = vsel %vm1132, %v986, %v1203
        %1205 = vst [vmem:[%s1130 + $0x78] sm:$0xf] %v1204
        %1206 = vst.msk [vmem:[%s1130 + $0x7c] sm:$0xf] %vm590, %v995
        %v1207 = vld [vmem:[%s1130 + $0x80] sm:$0x1]
        %v1208 = vsel %vm601, %v996, %v1207
        %1209 = vst [vmem:[%s1130 + $0x80] sm:$0x1] %v1208
        %v1210 = vld [vmem:[%s1130 + $0x84] sm:$0xf]
        %v1211 = vsel %vm1132, %v1003, %v1210
        %1212 = vst [vmem:[%s1130 + $0x84] sm:$0xf] %v1211
        %1213 = vst.msk [vmem:[%s1130 + $0x88] sm:$0xf] %vm590, %v1012
        %v1214 = vld [vmem:[%s1130 + $0x8c] sm:$0x1]
        %v1215 = vsel %vm601, %v1013, %v1214
        %1216 = vst [vmem:[%s1130 + $0x8c] sm:$0x1] %v1215
        %v1217 = vld [vmem:[%s1130 + $0x90] sm:$0xf]
        %v1218 = vsel %vm1132, %v1020, %v1217
        %1219 = vst [vmem:[%s1130 + $0x90] sm:$0xf] %v1218
        %1220 = vst.msk [vmem:[%s1130 + $0x94] sm:$0xf] %vm590, %v1029
        %v1221 = vld [vmem:[%s1130 + $0x98] sm:$0x1]
        %v1222 = vsel %vm601, %v1030, %v1221
        %1223 = vst [vmem:[%s1130 + $0x98] sm:$0x1] %v1222
        %v1224 = vld [vmem:[%s1130 + $0x9c] sm:$0xf]
        %v1225 = vsel %vm1132, %v1037, %v1224
        %1226 = vst [vmem:[%s1130 + $0x9c] sm:$0xf] %v1225
        %1227 = vst.msk [vmem:[%s1130 + $0xa0] sm:$0xf] %vm590, %v1046
        %v1228 = vld [vmem:[%s1130 + $0xa4] sm:$0x1]
        %v1229 = vsel %vm601, %v1047, %v1228
        %1230 = vst [vmem:[%s1130 + $0xa4] sm:$0x1] %v1229
        %v1231 = vld [vmem:[%s1130 + $0xa8] sm:$0xf]
        %v1232 = vsel %vm1132, %v1054, %v1231
        %1233 = vst [vmem:[%s1130 + $0xa8] sm:$0xf] %v1232
        %1234 = vst.msk [vmem:[%s1130 + $0xac] sm:$0xf] %vm590, %v1063
        %v1235 = vld [vmem:[%s1130 + $0xb0] sm:$0x1]
        %v1236 = vsel %vm601, %v1064, %v1235
        %1237 = vst [vmem:[%s1130 + $0xb0] sm:$0x1] %v1236
        %v1238 = vld [vmem:[%s1130 + $0xb4] sm:$0xf]
        %v1239 = vsel %vm1132, %v1071, %v1238
        %1240 = vst [vmem:[%s1130 + $0xb4] sm:$0xf] %v1239
        %1241 = vst.msk [vmem:[%s1130 + $0xb8] sm:$0xf] %vm590, %v1080
        %v1242 = vld [vmem:[%s1130 + $0xbc] sm:$0x1]
        %v1243 = vsel %vm601, %v1081, %v1242
        %1244 = vst [vmem:[%s1130 + $0xbc] sm:$0x1] %v1243
        %v1245 = vld [vmem:[#allocation2] sm:$0xf]
        %v1246 = vld [vmem:[#allocation2 + $0x4] sm:$0xf]
        %v1247 = vld [vmem:[#allocation2 + $0xc] sm:$0xf]
        %v1248 = vld [vmem:[#allocation2 + $0x10] sm:$0xf]
        %v1249 = vld [vmem:[#allocation2 + $0x18] sm:$0xf]
        %v1250 = vld [vmem:[#allocation2 + $0x1c] sm:$0xf]
        %v1251 = vld [vmem:[#allocation2 + $0x24] sm:$0xf]
        %v1252 = vld [vmem:[#allocation2 + $0x28] sm:$0xf]
        %v1253 = vld [vmem:[#allocation2 + $0x30] sm:$0xf]
        %v1254 = vld [vmem:[#allocation2 + $0x34] sm:$0xf]
        %v1255 = vld [vmem:[#allocation2 + $0x3c] sm:$0xf]
        %v1256 = vld [vmem:[#allocation2 + $0x40] sm:$0xf]
        %v1257 = vld [vmem:[#allocation2 + $0x48] sm:$0xf]
        %v1258 = vld [vmem:[#allocation2 + $0x4c] sm:$0xf]
        %v1259 = vld [vmem:[#allocation2 + $0x54] sm:$0xf]
        %v1260 = vld [vmem:[#allocation2 + $0x58] sm:$0xf]
        %v1261 = vld [vmem:[#allocation2 + $0x60] sm:$0xf]
        %v1262 = vld [vmem:[#allocation2 + $0x64] sm:$0xf]
        %v1263 = vld [vmem:[#allocation2 + $0x6c] sm:$0xf]
        %v1264 = vld [vmem:[#allocation2 + $0x70] sm:$0xf]
        %v1265 = vld [vmem:[#allocation2 + $0x78] sm:$0xf]
        %v1266 = vld [vmem:[#allocation2 + $0x7c] sm:$0xf]
        %v1267 = vld [vmem:[#allocation2 + $0x84] sm:$0xf]
        %v1268 = vld [vmem:[#allocation2 + $0x88] sm:$0xf]
        %v1269 = vld [vmem:[#allocation2 + $0x90] sm:$0xf]
        %v1270 = vld [vmem:[#allocation2 + $0x94] sm:$0xf]
        %v1271 = vld [vmem:[#allocation2 + $0x9c] sm:$0xf]
        %v1272 = vld [vmem:[#allocation2 + $0xa0] sm:$0xf]
        %v1273 = vld [vmem:[#allocation2 + $0xa8] sm:$0xf]
        %v1274 = vld [vmem:[#allocation2 + $0xac] sm:$0xf]
        %v1275 = vld [vmem:[#allocation2 + $0xb4] sm:$0xf]
        %v1276 = vld [vmem:[#allocation2 + $0xb8] sm:$0xf]
        %v1277 = vld [vmem:[%s3] sm:$0xf]
        %v1278 = vld [vmem:[%s3 + $0x4] sm:$0xf]
        %v1279 = vld [vmem:[%s3 + $0x8] sm:$0xf]
        %v1280 = vld [vmem:[%s3 + $0xc] sm:$0xf]
        %v1313 = vunpack.c.l.b16 %v1245
        %v1314 = vunpack.c.l.b16 %v1246
        %v1315 = vunpack.c.l.b16 %v1247
        %v1316 = vunpack.c.l.b16 %v1248
        %v1317 = vunpack.c.l.b16 %v1249
        %v1318 = vunpack.c.l.b16 %v1250
        %v1319 = vunpack.c.l.b16 %v1251
        %v1320 = vunpack.c.l.b16 %v1252
        %v1321 = vunpack.c.l.b16 %v1253
        %v1322 = vunpack.c.l.b16 %v1254
        %v1323 = vunpack.c.l.b16 %v1255
        %v1324 = vunpack.c.l.b16 %v1256
        %v1325 = vunpack.c.l.b16 %v1257
        %v1326 = vunpack.c.l.b16 %v1258
        %v1327 = vunpack.c.l.b16 %v1259
        %v1328 = vunpack.c.l.b16 %v1260
        %v1329 = vunpack.c.l.b16 %v1261
        %v1330 = vunpack.c.l.b16 %v1262
        %v1331 = vunpack.c.l.b16 %v1263
        %v1332 = vunpack.c.l.b16 %v1264
        %v1333 = vunpack.c.l.b16 %v1265
        %v1334 = vunpack.c.l.b16 %v1266
        %v1335 = vunpack.c.l.b16 %v1267
        %v1336 = vunpack.c.l.b16 %v1268
        %v1337 = vunpack.c.l.b16 %v1269
        %v1338 = vunpack.c.l.b16 %v1270
        %v1339 = vunpack.c.l.b16 %v1271
        %v1340 = vunpack.c.l.b16 %v1272
        %v1341 = vunpack.c.l.b16 %v1273
        %v1342 = vunpack.c.l.b16 %v1274
        %v1343 = vunpack.c.l.b16 %v1275
        %v1344 = vunpack.c.l.b16 %v1276
        %v1345 = vpack.c.b16 %v1314, %v1313
        %v1346 = vpack.c.b16 %v1316, %v1315
        %v1347 = vpack.c.b16 %v1318, %v1317
        %v1348 = vpack.c.b16 %v1320, %v1319
        %v1349 = vpack.c.b16 %v1322, %v1321
        %v1350 = vpack.c.b16 %v1324, %v1323
        %v1351 = vpack.c.b16 %v1326, %v1325
        %v1352 = vpack.c.b16 %v1328, %v1327
        %v1353 = vpack.c.b16 %v1330, %v1329
        %v1354 = vpack.c.b16 %v1332, %v1331
        %v1355 = vpack.c.b16 %v1334, %v1333
        %v1356 = vpack.c.b16 %v1336, %v1335
        %v1357 = vpack.c.b16 %v1338, %v1337
        %v1358 = vpack.c.b16 %v1340, %v1339
        %v1359 = vpack.c.b16 %v1342, %v1341
        %v1360 = vpack.c.b16 %v1344, %v1343
        %v1365 = vunpack.c.l.b16 %v1277
        %v1366 = vunpack.c.l.b16 %v1278
        %v1367 = vunpack.c.l.b16 %v1279
        %v1368 = vunpack.c.l.b16 %v1280
        %v1369 = vpack.c.b16 %v1366, %v1365
        %v1370 = vpack.c.b16 %v1368, %v1367
        %vm1373 = vcmask 261120
        %v1375 = vsel %vm1373, %v1345, 0
        %v1378 = vsel %vm1373, %v1346, 0
        %v1381 = vsel %vm1373, %v1347, 0
        %v1384 = vsel %vm1373, %v1348, 0
        %v1387 = vsel %vm1373, %v1349, 0
        %v1390 = vsel %vm1373, %v1350, 0
        %v1393 = vsel %vm1373, %v1351, 0
        %v1396 = vsel %vm1373, %v1352, 0
        %v1399 = vsel %vm1373, %v1353, 0
        %v1402 = vsel %vm1373, %v1354, 0
        %v1405 = vsel %vm1373, %v1355, 0
        %v1408 = vsel %vm1373, %v1356, 0
        %v1411 = vsel %vm1373, %v1357, 0
        %v1414 = vsel %vm1373, %v1358, 0
        %v1417 = vsel %vm1373, %v1359, 0
        %v1420 = vsel %vm1373, %v1360, 0
        %1422 = vmatprep.subr.bf16.mxu0 0
        %1423 = vmatpush1.bf16.msra.mxu0 %v1369
        %1424 = vmatprep.subr.bf16.mxu0 0
        %1425 = vmatpush1.bf16.msra.mxu0 %v1370
        %1426 = vmatprep.subr.bf16.mxu0 0
        %1427 = vmatpush1.bf16.msra.mxu0 0
        %1428 = vmatprep.subr.bf16.mxu0 0
        %1429 = vmatpush1.bf16.msra.mxu0 0
        %1430 = vmatprep.subr.bf16.mxu0 0
        %1431 = vmatpush1.bf16.msra.mxu0 0
        %1432 = vmatprep.subr.bf16.mxu0 0
        %1433 = vmatpush1.bf16.msra.mxu0 0
        %1434 = vmatprep.subr.bf16.mxu0 0
        %1435 = vmatpush1.bf16.msra.mxu0 0
        %1436 = vmatprep.subr.bf16.mxu0 0
        %1437 = vmatpush1.bf16.msra.mxu0 0
        %1438 = vmatprep.subr.bf16.mxu0 0
        %1439 = vmatpush1.bf16.msra.mxu0 0
        %1440 = vmatprep.subr.bf16.mxu0 0
        %1441 = vmatpush1.bf16.msra.mxu0 0
        %1442 = vmatprep.subr.bf16.mxu0 0
        %1443 = vmatpush1.bf16.msra.mxu0 0
        %1444 = vmatprep.subr.bf16.mxu0 0
        %1445 = vmatpush1.bf16.msra.mxu0 0
        %1446 = vmatprep.subr.bf16.mxu0 0
        %1447 = vmatpush1.bf16.msra.mxu0 0
        %1448 = vmatprep.subr.bf16.mxu0 0
        %1449 = vmatpush1.bf16.msra.mxu0 0
        %1450 = vmatprep.subr.bf16.mxu0 0
        %1451 = vmatpush1.bf16.msra.mxu0 0
        %1452 = vmatprep.subr.bf16.mxu0 0
        %1453 = vmatpush1.bf16.msra.mxu0 0
        %1454 = vmatprep.mubr.bf16.mxu0 0
        %1455 = vmatmul.mubr.bf16.gmra.mrb[0].mxu0 %v1375
        %v1456 = vpop.f32.mrb[0].mxu0
        %v1457 = vadd.f32 0.0, %v1456
        %v1458 = vpop.f32.mrb[0].mxu0
        %v1459 = vpop.f32.mrb[0].mxu0
        %v1460 = vadd.f32 0.0, %v1459
        %v1461 = vpop.f32.mrb[0].mxu0
        %1462 = vmatprep.mubr.bf16.mxu0 0
        %1463 = vmatmul.mubr.bf16.gmra.mrb[0].mxu0 %v1378
        %v1464 = vpop.f32.mrb[0].mxu0
        %v1465 = vadd.f32 0.0, %v1464
        %v1466 = vpop.f32.mrb[0].mxu0
        %v1467 = vpop.f32.mrb[0].mxu0
        %v1468 = vadd.f32 0.0, %v1467
        %v1469 = vpop.f32.mrb[0].mxu0
        %1470 = vmatprep.mubr.bf16.mxu0 0
        %1471 = vmatmul.mubr.bf16.gmra.mrb[0].mxu0 %v1381
        %v1472 = vpop.f32.mrb[0].mxu0
        %v1473 = vadd.f32 0.0, %v1472
        %v1474 = vpop.f32.mrb[0].mxu0
        %v1475 = vpop.f32.mrb[0].mxu0
        %v1476 = vadd.f32 0.0, %v1475
        %v1477 = vpop.f32.mrb[0].mxu0
        %1478 = vmatprep.mubr.bf16.mxu0 0
        %1479 = vmatmul.mubr.bf16.gmra.mrb[0].mxu0 %v1384
        %v1480 = vpop.f32.mrb[0].mxu0
        %v1481 = vadd.f32 0.0, %v1480
        %v1482 = vpop.f32.mrb[0].mxu0
        %v1483 = vpop.f32.mrb[0].mxu0
        %v1484 = vadd.f32 0.0, %v1483
        %v1485 = vpop.f32.mrb[0].mxu0
        %1486 = vmatprep.mubr.bf16.mxu0 0
        %1487 = vmatmul.mubr.bf16.gmra.mrb[0].mxu0 %v1387
        %v1488 = vpop.f32.mrb[0].mxu0
        %v1489 = vadd.f32 0.0, %v1488
        %v1490 = vpop.f32.mrb[0].mxu0
        %v1491 = vpop.f32.mrb[0].mxu0
        %v1492 = vadd.f32 0.0, %v1491
        %v1493 = vpop.f32.mrb[0].mxu0
        %1494 = vmatprep.mubr.bf16.mxu0 0
        %1495 = vmatmul.mubr.bf16.gmra.mrb[0].mxu0 %v1390
        %v1496 = vpop.f32.mrb[0].mxu0
        %v1497 = vadd.f32 0.0, %v1496
        %v1498 = vpop.f32.mrb[0].mxu0
        %v1499 = vpop.f32.mrb[0].mxu0
        %v1500 = vadd.f32 0.0, %v1499
        %v1501 = vpop.f32.mrb[0].mxu0
        %1502 = vmatprep.mubr.bf16.mxu0 0
        %1503 = vmatmul.mubr.bf16.gmra.mrb[0].mxu0 %v1393
        %v1504 = vpop.f32.mrb[0].mxu0
        %v1505 = vadd.f32 0.0, %v1504
        %v1506 = vpop.f32.mrb[0].mxu0
        %v1507 = vpop.f32.mrb[0].mxu0
        %v1508 = vadd.f32 0.0, %v1507
        %v1509 = vpop.f32.mrb[0].mxu0
        %1510 = vmatprep.mubr.bf16.mxu0 0
        %1511 = vmatmul.mubr.bf16.gmra.mrb[0].mxu0 %v1396
        %v1512 = vpop.f32.mrb[0].mxu0
        %v1513 = vadd.f32 0.0, %v1512
        %v1514 = vpop.f32.mrb[0].mxu0
        %v1515 = vpop.f32.mrb[0].mxu0
        %v1516 = vadd.f32 0.0, %v1515
        %v1517 = vpop.f32.mrb[0].mxu0
        %1518 = vmatprep.mubr.bf16.mxu0 0
        %1519 = vmatmul.mubr.bf16.gmra.mrb[0].mxu0 %v1399
        %v1520 = vpop.f32.mrb[0].mxu0
        %v1521 = vadd.f32 0.0, %v1520
        %v1522 = vpop.f32.mrb[0].mxu0
        %v1523 = vpop.f32.mrb[0].mxu0
        %v1524 = vadd.f32 0.0, %v1523
        %v1525 = vpop.f32.mrb[0].mxu0
        %1526 = vmatprep.mubr.bf16.mxu0 0
        %1527 = vmatmul.mubr.bf16.gmra.mrb[0].mxu0 %v1402
        %v1528 = vpop.f32.mrb[0].mxu0
        %v1529 = vadd.f32 0.0, %v1528
        %v1530 = vpop.f32.mrb[0].mxu0
        %v1531 = vpop.f32.mrb[0].mxu0
        %v1532 = vadd.f32 0.0, %v1531
        %v1533 = vpop.f32.mrb[0].mxu0
        %1534 = vmatprep.mubr.bf16.mxu0 0
        %1535 = vmatmul.mubr.bf16.gmra.mrb[0].mxu0 %v1405
        %v1536 = vpop.f32.mrb[0].mxu0
        %v1537 = vadd.f32 0.0, %v1536
        %v1538 = vpop.f32.mrb[0].mxu0
        %v1539 = vpop.f32.mrb[0].mxu0
        %v1540 = vadd.f32 0.0, %v1539
        %v1541 = vpop.f32.mrb[0].mxu0
        %1542 = vmatprep.mubr.bf16.mxu0 0
        %1543 = vmatmul.mubr.bf16.gmra.mrb[0].mxu0 %v1408
        %v1544 = vpop.f32.mrb[0].mxu0
        %v1545 = vadd.f32 0.0, %v1544
        %v1546 = vpop.f32.mrb[0].mxu0
        %v1547 = vpop.f32.mrb[0].mxu0
        %v1548 = vadd.f32 0.0, %v1547
        %v1549 = vpop.f32.mrb[0].mxu0
        %1550 = vmatprep.mubr.bf16.mxu0 0
        %1551 = vmatmul.mubr.bf16.gmra.mrb[0].mxu0 %v1411
        %v1552 = vpop.f32.mrb[0].mxu0
        %v1553 = vadd.f32 0.0, %v1552
        %v1554 = vpop.f32.mrb[0].mxu0
        %v1555 = vpop.f32.mrb[0].mxu0
        %v1556 = vadd.f32 0.0, %v1555
        %v1557 = vpop.f32.mrb[0].mxu0
        %1558 = vmatprep.mubr.bf16.mxu0 0
        %1559 = vmatmul.mubr.bf16.gmra.mrb[0].mxu0 %v1414
        %v1560 = vpop.f32.mrb[0].mxu0
        %v1561 = vadd.f32 0.0, %v1560
        %v1562 = vpop.f32.mrb[0].mxu0
        %v1563 = vpop.f32.mrb[0].mxu0
        %v1564 = vadd.f32 0.0, %v1563
        %v1565 = vpop.f32.mrb[0].mxu0
        %1566 = vmatprep.mubr.bf16.mxu0 0
        %1567 = vmatmul.mubr.bf16.gmra.mrb[0].mxu0 %v1417
        %v1568 = vpop.f32.mrb[0].mxu0
        %v1569 = vadd.f32 0.0, %v1568
        %v1570 = vpop.f32.mrb[0].mxu0
        %v1571 = vpop.f32.mrb[0].mxu0
        %v1572 = vadd.f32 0.0, %v1571
        %v1573 = vpop.f32.mrb[0].mxu0
        %1574 = vmatprep.mubr.bf16.mxu0 0
        %1575 = vmatmul.mubr.bf16.gmra.mrb[0].mxu0 %v1420
        %v1576 = vpop.f32.mrb[0].mxu0
        %v1577 = vadd.f32 0.0, %v1576
        %v1578 = vpop.f32.mrb[0].mxu0
        %v1579 = vpop.f32.mrb[0].mxu0
        %v1580 = vadd.f32 0.0, %v1579
        %v1581 = vpop.f32.mrb[0].mxu0
        %1582 = vdwg.mxu0
        %1583 = vst.msk [vmem:[#allocation3] sm:$0xff] %vm1373, %v1457
        %1584 = vst.msk [vmem:[#allocation3 + $0x8] sm:$0xff] %vm1373, %v1460
        %1585 = vst.msk [vmem:[#allocation3 + $0x10] sm:$0xff] %vm1373, %v1465
        %1586 = vst.msk [vmem:[#allocation3 + $0x18] sm:$0xff] %vm1373, %v1468
        %1587 = vst.msk [vmem:[#allocation3 + $0x20] sm:$0xff] %vm1373, %v1473
        %1588 = vst.msk [vmem:[#allocation3 + $0x28] sm:$0xff] %vm1373, %v1476
        %1589 = vst.msk [vmem:[#allocation3 + $0x30] sm:$0xff] %vm1373, %v1481
        %1590 = vst.msk [vmem:[#allocation3 + $0x38] sm:$0xff] %vm1373, %v1484
        %1591 = vst.msk [vmem:[#allocation3 + $0x40] sm:$0xff] %vm1373, %v1489
        %1592 = vst.msk [vmem:[#allocation3 + $0x48] sm:$0xff] %vm1373, %v1492
        %1593 = vst.msk [vmem:[#allocation3 + $0x50] sm:$0xff] %vm1373, %v1497
        %1594 = vst.msk [vmem:[#allocation3 + $0x58] sm:$0xff] %vm1373, %v1500
        %1595 = vst.msk [vmem:[#allocation3 + $0x60] sm:$0xff] %vm1373, %v1505
        %1596 = vst.msk [vmem:[#allocation3 + $0x68] sm:$0xff] %vm1373, %v1508
        %1597 = vst.msk [vmem:[#allocation3 + $0x70] sm:$0xff] %vm1373, %v1513
        %1598 = vst.msk [vmem:[#allocation3 + $0x78] sm:$0xff] %vm1373, %v1516
        %1599 = vst.msk [vmem:[#allocation3 + $0x80] sm:$0xff] %vm1373, %v1521
        %1600 = vst.msk [vmem:[#allocation3 + $0x88] sm:$0xff] %vm1373, %v1524
        %1601 = vst.msk [vmem:[#allocation3 + $0x90] sm:$0xff] %vm1373, %v1529
        %1602 = vst.msk [vmem:[#allocation3 + $0x98] sm:$0xff] %vm1373, %v1532
        %1603 = vst.msk [vmem:[#allocation3 + $0xa0] sm:$0xff] %vm1373, %v1537
        %1604 = vst.msk [vmem:[#allocation3 + $0xa8] sm:$0xff] %vm1373, %v1540
        %1605 = vst.msk [vmem:[#allocation3 + $0xb0] sm:$0xff] %vm1373, %v1545
        %1606 = vst.msk [vmem:[#allocation3 + $0xb8] sm:$0xff] %vm1373, %v1548
        %1607 = vst.msk [vmem:[#allocation3 + $0xc0] sm:$0xff] %vm1373, %v1553
        %1608 = vst.msk [vmem:[#allocation3 + $0xc8] sm:$0xff] %vm1373, %v1556
        %1609 = vst.msk [vmem:[#allocation3 + $0xd0] sm:$0xff] %vm1373, %v1561
        %1610 = vst.msk [vmem:[#allocation3 + $0xd8] sm:$0xff] %vm1373, %v1564
        %1611 = vst.msk [vmem:[#allocation3 + $0xe0] sm:$0xff] %vm1373, %v1569
        %1612 = vst.msk [vmem:[#allocation3 + $0xe8] sm:$0xff] %vm1373, %v1572
        %1613 = vst.msk [vmem:[#allocation3 + $0xf0] sm:$0xff] %vm1373, %v1577
        %1614 = vst.msk [vmem:[#allocation3 + $0xf8] sm:$0xff] %vm1373, %v1580
        %v1615 = vld [vmem:[#allocation2] sm:$0xf]
        %v1616 = vld [vmem:[#allocation2 + $0x4] sm:$0xf]
        %v1617 = vld [vmem:[#allocation2 + $0x8] sm:$0x1]
        %v1618 = vld [vmem:[#allocation2 + $0xc] sm:$0xf]
        %v1619 = vld [vmem:[#allocation2 + $0x10] sm:$0xf]
        %v1620 = vld [vmem:[#allocation2 + $0x14] sm:$0x1]
        %v1621 = vld [vmem:[#allocation2 + $0x18] sm:$0xf]
        %v1622 = vld [vmem:[#allocation2 + $0x1c] sm:$0xf]
        %v1623 = vld [vmem:[#allocation2 + $0x20] sm:$0x1]
        %v1624 = vld [vmem:[#allocation2 + $0x24] sm:$0xf]
        %v1625 = vld [vmem:[#allocation2 + $0x28] sm:$0xf]
        %v1626 = vld [vmem:[#allocation2 + $0x2c] sm:$0x1]
        %v1627 = vld [vmem:[#allocation2 + $0x30] sm:$0xf]
        %v1628 = vld [vmem:[#allocation2 + $0x34] sm:$0xf]
        %v1629 = vld [vmem:[#allocation2 + $0x38] sm:$0x1]
        %v1630 = vld [vmem:[#allocation2 + $0x3c] sm:$0xf]
        %v1631 = vld [vmem:[#allocation2 + $0x40] sm:$0xf]
        %v1632 = vld [vmem:[#allocation2 + $0x44] sm:$0x1]
        %v1633 = vld [vmem:[#allocation2 + $0x48] sm:$0xf]
        %v1634 = vld [vmem:[#allocation2 + $0x4c] sm:$0xf]
        %v1635 = vld [vmem:[#allocation2 + $0x50] sm:$0x1]
        %v1636 = vld [vmem:[#allocation2 + $0x54] sm:$0xf]
        %v1637 = vld [vmem:[#allocation2 + $0x58] sm:$0xf]
        %v1638 = vld [vmem:[#allocation2 + $0x5c] sm:$0x1]
        %v1639 = vld [vmem:[#allocation2 + $0x60] sm:$0xf]
        %v1640 = vld [vmem:[#allocation2 + $0x64] sm:$0xf]
        %v1641 = vld [vmem:[#allocation2 + $0x68] sm:$0x1]
        %v1642 = vld [vmem:[#allocation2 + $0x6c] sm:$0xf]
        %v1643 = vld [vmem:[#allocation2 + $0x70] sm:$0xf]
        %v1644 = vld [vmem:[#allocation2 + $0x74] sm:$0x1]
        %v1645 = vld [vmem:[#allocation2 + $0x78] sm:$0xf]
        %v1646 = vld [vmem:[#allocation2 + $0x7c] sm:$0xf]
        %v1647 = vld [vmem:[#allocation2 + $0x80] sm:$0x1]
        %v1648 = vld [vmem:[#allocation2 + $0x84] sm:$0xf]
        %v1649 = vld [vmem:[#allocation2 + $0x88] sm:$0xf]
        %v1650 = vld [vmem:[#allocation2 + $0x8c] sm:$0x1]
        %v1651 = vld [vmem:[#allocation2 + $0x90] sm:$0xf]
        %v1652 = vld [vmem:[#allocation2 + $0x94] sm:$0xf]
        %v1653 = vld [vmem:[#allocation2 + $0x98] sm:$0x1]
        %v1654 = vld [vmem:[#allocation2 + $0x9c] sm:$0xf]
        %v1655 = vld [vmem:[#allocation2 + $0xa0] sm:$0xf]
        %v1656 = vld [vmem:[#allocation2 + $0xa4] sm:$0x1]
        %v1657 = vld [vmem:[#allocation2 + $0xa8] sm:$0xf]
        %v1658 = vld [vmem:[#allocation2 + $0xac] sm:$0xf]
        %v1659 = vld [vmem:[#allocation2 + $0xb0] sm:$0x1]
        %v1660 = vld [vmem:[#allocation2 + $0xb4] sm:$0xf]
        %v1661 = vld [vmem:[#allocation2 + $0xb8] sm:$0xf]
        %v1662 = vld [vmem:[#allocation2 + $0xbc] sm:$0x1]
        %vm1663 = vsmask.f32 3328
        %vm1664 = vsmask.f32 7440
        %vm1665 = vmor %vm1663, %vm1664
        %v1667 = vshrl.u32 %v1615, 16
        %v1669 = vrot.slane %v1667, 4
        %v1670 = vshll.u32 %v1615, 16
        %v1672 = vrot.slane %v1670, 5
        %v1673 = vor.u32 %v1669, %v1672
        %v1674 = vrot.slane %v1673, 4
        %v1676 = vshll.u32 %v1616, 16
        %v1678 = vrot.slane %v1676, 5
        %v1679 = vsel %vm1665, %v1674, %v1678
        %v1680 = vshrl.u32 %v1616, 16
        %v1682 = vrot.slane %v1680, 4
        %v1683 = vor.u32 %v1682, %v1678
        %v1684 = vrot.slane %v1683, 4
        %v1686 = vshll.u32 %v1617, 16
        %v1688 = vrot.slane %v1686, 5
        %v1689 = vsel %vm1665, %v1684, %v1688
        %v1691 = vshrl.u32 %v1618, 16
        %v1693 = vrot.slane %v1691, 4
        %v1694 = vshll.u32 %v1618, 16
        %v1696 = vrot.slane %v1694, 5
        %v1697 = vor.u32 %v1693, %v1696
        %v1698 = vrot.slane %v1697, 4
        %v1700 = vshll.u32 %v1619, 16
        %v1702 = vrot.slane %v1700, 5
        %v1703 = vsel %vm1665, %v1698, %v1702
        %v1704 = vshrl.u32 %v1619, 16
        %v1706 = vrot.slane %v1704, 4
        %v1707 = vor.u32 %v1706, %v1702
        %v1708 = vrot.slane %v1707, 4
        %v1710 = vshll.u32 %v1620, 16
        %v1712 = vrot.slane %v1710, 5
        %v1713 = vsel %vm1665, %v1708, %v1712
        %v1715 = vshrl.u32 %v1621, 16
        %v1717 = vrot.slane %v1715, 4
        %v1718 = vshll.u32 %v1621, 16
        %v1720 = vrot.slane %v1718, 5
        %v1721 = vor.u32 %v1717, %v1720
        %v1722 = vrot.slane %v1721, 4
        %v1724 = vshll.u32 %v1622, 16
        %v1726 = vrot.slane %v1724, 5
        %v1727 = vsel %vm1665, %v1722, %v1726
        %v1728 = vshrl.u32 %v1622, 16
        %v1730 = vrot.slane %v1728, 4
        %v1731 = vor.u32 %v1730, %v1726
        %v1732 = vrot.slane %v1731, 4
        %v1734 = vshll.u32 %v1623, 16
        %v1736 = vrot.slane %v1734, 5
        %v1737 = vsel %vm1665, %v1732, %v1736
        %v1739 = vshrl.u32 %v1624, 16
        %v1741 = vrot.slane %v1739, 4
        %v1742 = vshll.u32 %v1624, 16
        %v1744 = vrot.slane %v1742, 5
        %v1745 = vor.u32 %v1741, %v1744
        %v1746 = vrot.slane %v1745, 4
        %v1748 = vshll.u32 %v1625, 16
        %v1750 = vrot.slane %v1748, 5
        %v1751 = vsel %vm1665, %v1746, %v1750
        %v1752 = vshrl.u32 %v1625, 16
        %v1754 = vrot.slane %v1752, 4
        %v1755 = vor.u32 %v1754, %v1750
        %v1756 = vrot.slane %v1755, 4
        %v1758 = vshll.u32 %v1626, 16
        %v1760 = vrot.slane %v1758, 5
        %v1761 = vsel %vm1665, %v1756, %v1760
        %v1763 = vshrl.u32 %v1627, 16
        %v1765 = vrot.slane %v1763, 4
        %v1766 = vshll.u32 %v1627, 16
        %v1768 = vrot.slane %v1766, 5
        %v1769 = vor.u32 %v1765, %v1768
        %v1770 = vrot.slane %v1769, 4
        %v1772 = vshll.u32 %v1628, 16
        %v1774 = vrot.slane %v1772, 5
        %v1775 = vsel %vm1665, %v1770, %v1774
        %v1776 = vshrl.u32 %v1628, 16
        %v1778 = vrot.slane %v1776, 4
        %v1779 = vor.u32 %v1778, %v1774
        %v1780 = vrot.slane %v1779, 4
        %v1782 = vshll.u32 %v1629, 16
        %v1784 = vrot.slane %v1782, 5
        %v1785 = vsel %vm1665, %v1780, %v1784
        %v1787 = vshrl.u32 %v1630, 16
        %v1789 = vrot.slane %v1787, 4
        %v1790 = vshll.u32 %v1630, 16
        %v1792 = vrot.slane %v1790, 5
        %v1793 = vor.u32 %v1789, %v1792
        %v1794 = vrot.slane %v1793, 4
        %v1796 = vshll.u32 %v1631, 16
        %v1798 = vrot.slane %v1796, 5
        %v1799 = vsel %vm1665, %v1794, %v1798
        %v1800 = vshrl.u32 %v1631, 16
        %v1802 = vrot.slane %v1800, 4
        %v1803 = vor.u32 %v1802, %v1798
        %v1804 = vrot.slane %v1803, 4
        %v1806 = vshll.u32 %v1632, 16
        %v1808 = vrot.slane %v1806, 5
        %v1809 = vsel %vm1665, %v1804, %v1808
        %v1811 = vshrl.u32 %v1633, 16
        %v1813 = vrot.slane %v1811, 4
        %v1814 = vshll.u32 %v1633, 16
        %v1816 = vrot.slane %v1814, 5
        %v1817 = vor.u32 %v1813, %v1816
        %v1818 = vrot.slane %v1817, 4
        %v1820 = vshll.u32 %v1634, 16
        %v1822 = vrot.slane %v1820, 5
        %v1823 = vsel %vm1665, %v1818, %v1822
        %v1824 = vshrl.u32 %v1634, 16
        %v1826 = vrot.slane %v1824, 4
        %v1827 = vor.u32 %v1826, %v1822
        %v1828 = vrot.slane %v1827, 4
        %v1830 = vshll.u32 %v1635, 16
        %v1832 = vrot.slane %v1830, 5
        %v1833 = vsel %vm1665, %v1828, %v1832
        %v1835 = vshrl.u32 %v1636, 16
        %v1837 = vrot.slane %v1835, 4
        %v1838 = vshll.u32 %v1636, 16
        %v1840 = vrot.slane %v1838, 5
        %v1841 = vor.u32 %v1837, %v1840
        %v1842 = vrot.slane %v1841, 4
        %v1844 = vshll.u32 %v1637, 16
        %v1846 = vrot.slane %v1844, 5
        %v1847 = vsel %vm1665, %v1842, %v1846
        %v1848 = vshrl.u32 %v1637, 16
        %v1850 = vrot.slane %v1848, 4
        %v1851 = vor.u32 %v1850, %v1846
        %v1852 = vrot.slane %v1851, 4
        %v1854 = vshll.u32 %v1638, 16
        %v1856 = vrot.slane %v1854, 5
        %v1857 = vsel %vm1665, %v1852, %v1856
        %v1859 = vshrl.u32 %v1639, 16
        %v1861 = vrot.slane %v1859, 4
        %v1862 = vshll.u32 %v1639, 16
        %v1864 = vrot.slane %v1862, 5
        %v1865 = vor.u32 %v1861, %v1864
        %v1866 = vrot.slane %v1865, 4
        %v1868 = vshll.u32 %v1640, 16
        %v1870 = vrot.slane %v1868, 5
        %v1871 = vsel %vm1665, %v1866, %v1870
        %v1872 = vshrl.u32 %v1640, 16
        %v1874 = vrot.slane %v1872, 4
        %v1875 = vor.u32 %v1874, %v1870
        %v1876 = vrot.slane %v1875, 4
        %v1878 = vshll.u32 %v1641, 16
        %v1880 = vrot.slane %v1878, 5
        %v1881 = vsel %vm1665, %v1876, %v1880
        %v1883 = vshrl.u32 %v1642, 16
        %v1885 = vrot.slane %v1883, 4
        %v1886 = vshll.u32 %v1642, 16
        %v1888 = vrot.slane %v1886, 5
        %v1889 = vor.u32 %v1885, %v1888
        %v1890 = vrot.slane %v1889, 4
        %v1892 = vshll.u32 %v1643, 16
        %v1894 = vrot.slane %v1892, 5
        %v1895 = vsel %vm1665, %v1890, %v1894
        %v1896 = vshrl.u32 %v1643, 16
        %v1898 = vrot.slane %v1896, 4
        %v1899 = vor.u32 %v1898, %v1894
        %v1900 = vrot.slane %v1899, 4
        %v1902 = vshll.u32 %v1644, 16
        %v1904 = vrot.slane %v1902, 5
        %v1905 = vsel %vm1665, %v1900, %v1904
        %v1907 = vshrl.u32 %v1645, 16
        %v1909 = vrot.slane %v1907, 4
        %v1910 = vshll.u32 %v1645, 16
        %v1912 = vrot.slane %v1910, 5
        %v1913 = vor.u32 %v1909, %v1912
        %v1914 = vrot.slane %v1913, 4
        %v1916 = vshll.u32 %v1646, 16
        %v1918 = vrot.slane %v1916, 5
        %v1919 = vsel %vm1665, %v1914, %v1918
        %v1920 = vshrl.u32 %v1646, 16
        %v1922 = vrot.slane %v1920, 4
        %v1923 = vor.u32 %v1922, %v1918
        %v1924 = vrot.slane %v1923, 4
        %v1926 = vshll.u32 %v1647, 16
        %v1928 = vrot.slane %v1926, 5
        %v1929 = vsel %vm1665, %v1924, %v1928
        %v1931 = vshrl.u32 %v1648, 16
        %v1933 = vrot.slane %v1931, 4
        %v1934 = vshll.u32 %v1648, 16
        %v1936 = vrot.slane %v1934, 5
        %v1937 = vor.u32 %v1933, %v1936
        %v1938 = vrot.slane %v1937, 4
        %v1940 = vshll.u32 %v1649, 16
        %v1942 = vrot.slane %v1940, 5
        %v1943 = vsel %vm1665, %v1938, %v1942
        %v1944 = vshrl.u32 %v1649, 16
        %v1946 = vrot.slane %v1944, 4
        %v1947 = vor.u32 %v1946, %v1942
        %v1948 = vrot.slane %v1947, 4
        %v1950 = vshll.u32 %v1650, 16
        %v1952 = vrot.slane %v1950, 5
        %v1953 = vsel %vm1665, %v1948, %v1952
        %v1955 = vshrl.u32 %v1651, 16
        %v1957 = vrot.slane %v1955, 4
        %v1958 = vshll.u32 %v1651, 16
        %v1960 = vrot.slane %v1958, 5
        %v1961 = vor.u32 %v1957, %v1960
        %v1962 = vrot.slane %v1961, 4
        %v1964 = vshll.u32 %v1652, 16
        %v1966 = vrot.slane %v1964, 5
        %v1967 = vsel %vm1665, %v1962, %v1966
        %v1968 = vshrl.u32 %v1652, 16
        %v1970 = vrot.slane %v1968, 4
        %v1971 = vor.u32 %v1970, %v1966
        %v1972 = vrot.slane %v1971, 4
        %v1974 = vshll.u32 %v1653, 16
        %v1976 = vrot.slane %v1974, 5
        %v1977 = vsel %vm1665, %v1972, %v1976
        %v1979 = vshrl.u32 %v1654, 16
        %v1981 = vrot.slane %v1979, 4
        %v1982 = vshll.u32 %v1654, 16
        %v1984 = vrot.slane %v1982, 5
        %v1985 = vor.u32 %v1981, %v1984
        %v1986 = vrot.slane %v1985, 4
        %v1988 = vshll.u32 %v1655, 16
        %v1990 = vrot.slane %v1988, 5
        %v1991 = vsel %vm1665, %v1986, %v1990
        %v1992 = vshrl.u32 %v1655, 16
        %v1994 = vrot.slane %v1992, 4
        %v1995 = vor.u32 %v1994, %v1990
        %v1996 = vrot.slane %v1995, 4
        %v1998 = vshll.u32 %v1656, 16
        %v2000 = vrot.slane %v1998, 5
        %v2001 = vsel %vm1665, %v1996, %v2000
        %v2003 = vshrl.u32 %v1657, 16
        %v2005 = vrot.slane %v2003, 4
        %v2006 = vshll.u32 %v1657, 16
        %v2008 = vrot.slane %v2006, 5
        %v2009 = vor.u32 %v2005, %v2008
        %v2010 = vrot.slane %v2009, 4
        %v2012 = vshll.u32 %v1658, 16
        %v2014 = vrot.slane %v2012, 5
        %v2015 = vsel %vm1665, %v2010, %v2014
        %v2016 = vshrl.u32 %v1658, 16
        %v2018 = vrot.slane %v2016, 4
        %v2019 = vor.u32 %v2018, %v2014
        %v2020 = vrot.slane %v2019, 4
        %v2022 = vshll.u32 %v1659, 16
        %v2024 = vrot.slane %v2022, 5
        %v2025 = vsel %vm1665, %v2020, %v2024
        %v2027 = vshrl.u32 %v1660, 16
        %v2029 = vrot.slane %v2027, 4
        %v2030 = vshll.u32 %v1660, 16
        %v2032 = vrot.slane %v2030, 5
        %v2033 = vor.u32 %v2029, %v2032
        %v2034 = vrot.slane %v2033, 4
        %v2036 = vshll.u32 %v1661, 16
        %v2038 = vrot.slane %v2036, 5
        %v2039 = vsel %vm1665, %v2034, %v2038
        %v2040 = vshrl.u32 %v1661, 16
        %v2042 = vrot.slane %v2040, 4
        %v2043 = vor.u32 %v2042, %v2038
        %v2044 = vrot.slane %v2043, 4
        %v2046 = vshll.u32 %v1662, 16
        %v2048 = vrot.slane %v2046, 5
        %v2049 = vsel %vm1665, %v2044, %v2048
        %s2050 = scalar_lea.vmem %s3, 16
        %v2051 = vld [vmem:[%s2050] sm:$0xf]
        %v2052 = vld [vmem:[%s2050 + $0x4] sm:$0xf]
        %v2053 = vld [vmem:[%s2050 + $0x8] sm:$0xf]
        %v2054 = vld [vmem:[%s2050 + $0xc] sm:$0xf]
        %v2055 = vunpack.c.l.b16 %v1679
        %v2056 = vunpack.c.l.b16 %v1689
        %v2057 = vunpack.c.l.b16 %v1703
        %v2058 = vunpack.c.l.b16 %v1713
        %v2059 = vunpack.c.l.b16 %v1727
        %v2060 = vunpack.c.l.b16 %v1737
        %v2061 = vunpack.c.l.b16 %v1751
        %v2062 = vunpack.c.l.b16 %v1761
        %v2063 = vunpack.c.l.b16 %v1775
        %v2064 = vunpack.c.l.b16 %v1785
        %v2065 = vunpack.c.l.b16 %v1799
        %v2066 = vunpack.c.l.b16 %v1809
        %v2067 = vunpack.c.l.b16 %v1823
        %v2068 = vunpack.c.l.b16 %v1833
        %v2069 = vunpack.c.l.b16 %v1847
        %v2070 = vunpack.c.l.b16 %v1857
        %v2071 = vunpack.c.l.b16 %v1871
        %v2072 = vunpack.c.l.b16 %v1881
        %v2073 = vunpack.c.l.b16 %v1895
        %v2074 = vunpack.c.l.b16 %v1905
        %v2075 = vunpack.c.l.b16 %v1919
        %v2076 = vunpack.c.l.b16 %v1929
        %v2077 = vunpack.c.l.b16 %v1943
        %v2078 = vunpack.c.l.b16 %v1953
        %v2079 = vunpack.c.l.b16 %v1967
        %v2080 = vunpack.c.l.b16 %v1977
        %v2081 = vunpack.c.l.b16 %v1991
        %v2082 = vunpack.c.l.b16 %v2001
        %v2083 = vunpack.c.l.b16 %v2015
        %v2084 = vunpack.c.l.b16 %v2025
        %v2085 = vunpack.c.l.b16 %v2039
        %v2086 = vunpack.c.l.b16 %v2049
        %v2087 = vpack.c.b16 %v2056, %v2055
        %v2088 = vpack.c.b16 %v2058, %v2057
        %v2089 = vpack.c.b16 %v2060, %v2059
        %v2090 = vpack.c.b16 %v2062, %v2061
        %v2091 = vpack.c.b16 %v2064, %v2063
        %v2092 = vpack.c.b16 %v2066, %v2065
        %v2093 = vpack.c.b16 %v2068, %v2067
        %v2094 = vpack.c.b16 %v2070, %v2069
        %v2095 = vpack.c.b16 %v2072, %v2071
        %v2096 = vpack.c.b16 %v2074, %v2073
        %v2097 = vpack.c.b16 %v2076, %v2075
        %v2098 = vpack.c.b16 %v2078, %v2077
        %v2099 = vpack.c.b16 %v2080, %v2079
        %v2100 = vpack.c.b16 %v2082, %v2081
        %v2101 = vpack.c.b16 %v2084, %v2083
        %v2102 = vpack.c.b16 %v2086, %v2085
        %v2107 = vunpack.c.l.b16 %v2051
        %v2108 = vunpack.c.l.b16 %v2052
        %v2109 = vunpack.c.l.b16 %v2053
        %v2110 = vunpack.c.l.b16 %v2054
        %v2111 = vpack.c.b16 %v2108, %v2107
        %v2112 = vpack.c.b16 %v2110, %v2109
        %v2116 = vsel %vm1373, %v2087, 0
        %v2119 = vsel %vm1373, %v2088, 0
        %v2122 = vsel %vm1373, %v2089, 0
        %v2125 = vsel %vm1373, %v2090, 0
        %v2128 = vsel %vm1373, %v2091, 0
        %v2131 = vsel %vm1373, %v2092, 0
        %v2134 = vsel %vm1373, %v2093, 0
        %v2137 = vsel %vm1373, %v2094, 0
        %v2140 = vsel %vm1373, %v2095, 0
        %v2143 = vsel %vm1373, %v2096, 0
        %v2146 = vsel %vm1373, %v2097, 0
        %v2149 = vsel %vm1373, %v2098, 0
        %v2152 = vsel %vm1373, %v2099, 0
        %v2155 = vsel %vm1373, %v2100, 0
        %v2158 = vsel %vm1373, %v2101, 0
        %v2161 = vsel %vm1373, %v2102, 0
        %2163 = vmatprep.subr.bf16.mxu0 0
        %2164 = vmatpush1.bf16.msra.mxu0 %v2111
        %2165 = vmatprep.subr.bf16.mxu0 0
        %2166 = vmatpush1.bf16.msra.mxu0 %v2112
        %2167 = vmatprep.subr.bf16.mxu0 0
        %2168 = vmatpush1.bf16.msra.mxu0 0
        %2169 = vmatprep.subr.bf16.mxu0 0
        %2170 = vmatpush1.bf16.msra.mxu0 0
        %2171 = vmatprep.subr.bf16.mxu0 0
        %2172 = vmatpush1.bf16.msra.mxu0 0
        %2173 = vmatprep.subr.bf16.mxu0 0
        %2174 = vmatpush1.bf16.msra.mxu0 0
        %2175 = vmatprep.subr.bf16.mxu0 0
        %2176 = vmatpush1.bf16.msra.mxu0 0
        %2177 = vmatprep.subr.bf16.mxu0 0
        %2178 = vmatpush1.bf16.msra.mxu0 0
        %2179 = vmatprep.subr.bf16.mxu0 0
        %2180 = vmatpush1.bf16.msra.mxu0 0
        %2181 = vmatprep.subr.bf16.mxu0 0
        %2182 = vmatpush1.bf16.msra.mxu0 0
        %2183 = vmatprep.subr.bf16.mxu0 0
        %2184 = vmatpush1.bf16.msra.mxu0 0
        %2185 = vmatprep.subr.bf16.mxu0 0
        %2186 = vmatpush1.bf16.msra.mxu0 0
        %2187 = vmatprep.subr.bf16.mxu0 0
        %2188 = vmatpush1.bf16.msra.mxu0 0
        %2189 = vmatprep.subr.bf16.mxu0 0
        %2190 = vmatpush1.bf16.msra.mxu0 0
        %2191 = vmatprep.subr.bf16.mxu0 0
        %2192 = vmatpush1.bf16.msra.mxu0 0
        %2193 = vmatprep.subr.bf16.mxu0 0
        %2194 = vmatpush1.bf16.msra.mxu0 0
        %2195 = vmatprep.mubr.bf16.mxu0 0
        %2196 = vmatmul.mubr.bf16.gmra.mrb[0].mxu0 %v2116
        %v2197 = vpop.f32.mrb[0].mxu0
        %v2198 = vadd.f32 0.0, %v2197
        %v2199 = vpop.f32.mrb[0].mxu0
        %v2200 = vpop.f32.mrb[0].mxu0
        %v2201 = vadd.f32 0.0, %v2200
        %v2202 = vpop.f32.mrb[0].mxu0
        %2203 = vmatprep.mubr.bf16.mxu0 0
        %2204 = vmatmul.mubr.bf16.gmra.mrb[0].mxu0 %v2119
        %v2205 = vpop.f32.mrb[0].mxu0
        %v2206 = vadd.f32 0.0, %v2205
        %v2207 = vpop.f32.mrb[0].mxu0
        %v2208 = vpop.f32.mrb[0].mxu0
        %v2209 = vadd.f32 0.0, %v2208
        %v2210 = vpop.f32.mrb[0].mxu0
        %2211 = vmatprep.mubr.bf16.mxu0 0
        %2212 = vmatmul.mubr.bf16.gmra.mrb[0].mxu0 %v2122
        %v2213 = vpop.f32.mrb[0].mxu0
        %v2214 = vadd.f32 0.0, %v2213
        %v2215 = vpop.f32.mrb[0].mxu0
        %v2216 = vpop.f32.mrb[0].mxu0
        %v2217 = vadd.f32 0.0, %v2216
        %v2218 = vpop.f32.mrb[0].mxu0
        %2219 = vmatprep.mubr.bf16.mxu0 0
        %2220 = vmatmul.mubr.bf16.gmra.mrb[0].mxu0 %v2125
        %v2221 = vpop.f32.mrb[0].mxu0
        %v2222 = vadd.f32 0.0, %v2221
        %v2223 = vpop.f32.mrb[0].mxu0
        %v2224 = vpop.f32.mrb[0].mxu0
        %v2225 = vadd.f32 0.0, %v2224
        %v2226 = vpop.f32.mrb[0].mxu0
        %2227 = vmatprep.mubr.bf16.mxu0 0
        %2228 = vmatmul.mubr.bf16.gmra.mrb[0].mxu0 %v2128
        %v2229 = vpop.f32.mrb[0].mxu0
        %v2230 = vadd.f32 0.0, %v2229
        %v2231 = vpop.f32.mrb[0].mxu0
        %v2232 = vpop.f32.mrb[0].mxu0
        %v2233 = vadd.f32 0.0, %v2232
        %v2234 = vpop.f32.mrb[0].mxu0
        %2235 = vmatprep.mubr.bf16.mxu0 0
        %2236 = vmatmul.mubr.bf16.gmra.mrb[0].mxu0 %v2131
        %v2237 = vpop.f32.mrb[0].mxu0
        %v2238 = vadd.f32 0.0, %v2237
        %v2239 = vpop.f32.mrb[0].mxu0
        %v2240 = vpop.f32.mrb[0].mxu0
        %v2241 = vadd.f32 0.0, %v2240
        %v2242 = vpop.f32.mrb[0].mxu0
        %2243 = vmatprep.mubr.bf16.mxu0 0
        %2244 = vmatmul.mubr.bf16.gmra.mrb[0].mxu0 %v2134
        %v2245 = vpop.f32.mrb[0].mxu0
        %v2246 = vadd.f32 0.0, %v2245
        %v2247 = vpop.f32.mrb[0].mxu0
        %v2248 = vpop.f32.mrb[0].mxu0
        %v2249 = vadd.f32 0.0, %v2248
        %v2250 = vpop.f32.mrb[0].mxu0
        %2251 = vmatprep.mubr.bf16.mxu0 0
        %2252 = vmatmul.mubr.bf16.gmra.mrb[0].mxu0 %v2137
        %v2253 = vpop.f32.mrb[0].mxu0
        %v2254 = vadd.f32 0.0, %v2253
        %v2255 = vpop.f32.mrb[0].mxu0
        %v2256 = vpop.f32.mrb[0].mxu0
        %v2257 = vadd.f32 0.0, %v2256
        %v2258 = vpop.f32.mrb[0].mxu0
        %2259 = vmatprep.mubr.bf16.mxu0 0
        %2260 = vmatmul.mubr.bf16.gmra.mrb[0].mxu0 %v2140
        %v2261 = vpop.f32.mrb[0].mxu0
        %v2262 = vadd.f32 0.0, %v2261
        %v2263 = vpop.f32.mrb[0].mxu0
        %v2264 = vpop.f32.mrb[0].mxu0
        %v2265 = vadd.f32 0.0, %v2264
        %v2266 = vpop.f32.mrb[0].mxu0
        %2267 = vmatprep.mubr.bf16.mxu0 0
        %2268 = vmatmul.mubr.bf16.gmra.mrb[0].mxu0 %v2143
        %v2269 = vpop.f32.mrb[0].mxu0
        %v2270 = vadd.f32 0.0, %v2269
        %v2271 = vpop.f32.mrb[0].mxu0
        %v2272 = vpop.f32.mrb[0].mxu0
        %v2273 = vadd.f32 0.0, %v2272
        %v2274 = vpop.f32.mrb[0].mxu0
        %2275 = vmatprep.mubr.bf16.mxu0 0
        %2276 = vmatmul.mubr.bf16.gmra.mrb[0].mxu0 %v2146
        %v2277 = vpop.f32.mrb[0].mxu0
        %v2278 = vadd.f32 0.0, %v2277
        %v2279 = vpop.f32.mrb[0].mxu0
        %v2280 = vpop.f32.mrb[0].mxu0
        %v2281 = vadd.f32 0.0, %v2280
        %v2282 = vpop.f32.mrb[0].mxu0
        %2283 = vmatprep.mubr.bf16.mxu0 0
        %2284 = vmatmul.mubr.bf16.gmra.mrb[0].mxu0 %v2149
        %v2285 = vpop.f32.mrb[0].mxu0
        %v2286 = vadd.f32 0.0, %v2285
        %v2287 = vpop.f32.mrb[0].mxu0
        %v2288 = vpop.f32.mrb[0].mxu0
        %v2289 = vadd.f32 0.0, %v2288
        %v2290 = vpop.f32.mrb[0].mxu0
        %2291 = vmatprep.mubr.bf16.mxu0 0
        %2292 = vmatmul.mubr.bf16.gmra.mrb[0].mxu0 %v2152
        %v2293 = vpop.f32.mrb[0].mxu0
        %v2294 = vadd.f32 0.0, %v2293
        %v2295 = vpop.f32.mrb[0].mxu0
        %v2296 = vpop.f32.mrb[0].mxu0
        %v2297 = vadd.f32 0.0, %v2296
        %v2298 = vpop.f32.mrb[0].mxu0
        %2299 = vmatprep.mubr.bf16.mxu0 0
        %2300 = vmatmul.mubr.bf16.gmra.mrb[0].mxu0 %v2155
        %v2301 = vpop.f32.mrb[0].mxu0
        %v2302 = vadd.f32 0.0, %v2301
        %v2303 = vpop.f32.mrb[0].mxu0
        %v2304 = vpop.f32.mrb[0].mxu0
        %v2305 = vadd.f32 0.0, %v2304
        %v2306 = vpop.f32.mrb[0].mxu0
        %2307 = vmatprep.mubr.bf16.mxu0 0
        %2308 = vmatmul.mubr.bf16.gmra.mrb[0].mxu0 %v2158
        %v2309 = vpop.f32.mrb[0].mxu0
        %v2310 = vadd.f32 0.0, %v2309
        %v2311 = vpop.f32.mrb[0].mxu0
        %v2312 = vpop.f32.mrb[0].mxu0
        %v2313 = vadd.f32 0.0, %v2312
        %v2314 = vpop.f32.mrb[0].mxu0
        %2315 = vmatprep.mubr.bf16.mxu0 0
        %2316 = vmatmul.mubr.bf16.gmra.mrb[0].mxu0 %v2161
        %v2317 = vpop.f32.mrb[0].mxu0
        %v2318 = vadd.f32 0.0, %v2317
        %v2319 = vpop.f32.mrb[0].mxu0
        %v2320 = vpop.f32.mrb[0].mxu0
        %v2321 = vadd.f32 0.0, %v2320
        %v2322 = vpop.f32.mrb[0].mxu0
        %2323 = vdwg.mxu0
        %v2324 = vld [vmem:[#allocation3] sm:$0xff]
        %v2325 = vld [vmem:[#allocation3 + $0x8] sm:$0xff]
        %v2326 = vld [vmem:[#allocation3 + $0x10] sm:$0xff]
        %v2327 = vld [vmem:[#allocation3 + $0x18] sm:$0xff]
        %v2328 = vld [vmem:[#allocation3 + $0x20] sm:$0xff]
        %v2329 = vld [vmem:[#allocation3 + $0x28] sm:$0xff]
        %v2330 = vld [vmem:[#allocation3 + $0x30] sm:$0xff]
        %v2331 = vld [vmem:[#allocation3 + $0x38] sm:$0xff]
        %v2332 = vld [vmem:[#allocation3 + $0x40] sm:$0xff]
        %v2333 = vld [vmem:[#allocation3 + $0x48] sm:$0xff]
        %v2334 = vld [vmem:[#allocation3 + $0x50] sm:$0xff]
        %v2335 = vld [vmem:[#allocation3 + $0x58] sm:$0xff]
        %v2336 = vld [vmem:[#allocation3 + $0x60] sm:$0xff]
        %v2337 = vld [vmem:[#allocation3 + $0x68] sm:$0xff]
        %v2338 = vld [vmem:[#allocation3 + $0x70] sm:$0xff]
        %v2339 = vld [vmem:[#allocation3 + $0x78] sm:$0xff]
        %v2340 = vld [vmem:[#allocation3 + $0x80] sm:$0xff]
        %v2341 = vld [vmem:[#allocation3 + $0x88] sm:$0xff]
        %v2342 = vld [vmem:[#allocation3 + $0x90] sm:$0xff]
        %v2343 = vld [vmem:[#allocation3 + $0x98] sm:$0xff]
        %v2344 = vld [vmem:[#allocation3 + $0xa0] sm:$0xff]
        %v2345 = vld [vmem:[#allocation3 + $0xa8] sm:$0xff]
        %v2346 = vld [vmem:[#allocation3 + $0xb0] sm:$0xff]
        %v2347 = vld [vmem:[#allocation3 + $0xb8] sm:$0xff]
        %v2348 = vld [vmem:[#allocation3 + $0xc0] sm:$0xff]
        %v2349 = vld [vmem:[#allocation3 + $0xc8] sm:$0xff]
        %v2350 = vld [vmem:[#allocation3 + $0xd0] sm:$0xff]
        %v2351 = vld [vmem:[#allocation3 + $0xd8] sm:$0xff]
        %v2352 = vld [vmem:[#allocation3 + $0xe0] sm:$0xff]
        %v2353 = vld [vmem:[#allocation3 + $0xe8] sm:$0xff]
        %v2354 = vld [vmem:[#allocation3 + $0xf0] sm:$0xff]
        %v2355 = vld [vmem:[#allocation3 + $0xf8] sm:$0xff]
        %v2356 = vadd.f32 %v2324, %v2198
        %v2357 = vadd.f32 %v2325, %v2201
        %v2358 = vadd.f32 %v2326, %v2206
        %v2359 = vadd.f32 %v2327, %v2209
        %v2360 = vadd.f32 %v2328, %v2214
        %v2361 = vadd.f32 %v2329, %v2217
        %v2362 = vadd.f32 %v2330, %v2222
        %v2363 = vadd.f32 %v2331, %v2225
        %v2364 = vadd.f32 %v2332, %v2230
        %v2365 = vadd.f32 %v2333, %v2233
        %v2366 = vadd.f32 %v2334, %v2238
        %v2367 = vadd.f32 %v2335, %v2241
        %v2368 = vadd.f32 %v2336, %v2246
        %v2369 = vadd.f32 %v2337, %v2249
        %v2370 = vadd.f32 %v2338, %v2254
        %v2371 = vadd.f32 %v2339, %v2257
        %v2372 = vadd.f32 %v2340, %v2262
        %v2373 = vadd.f32 %v2341, %v2265
        %v2374 = vadd.f32 %v2342, %v2270
        %v2375 = vadd.f32 %v2343, %v2273
        %v2376 = vadd.f32 %v2344, %v2278
        %v2377 = vadd.f32 %v2345, %v2281
        %v2378 = vadd.f32 %v2346, %v2286
        %v2379 = vadd.f32 %v2347, %v2289
        %v2380 = vadd.f32 %v2348, %v2294
        %v2381 = vadd.f32 %v2349, %v2297
        %v2382 = vadd.f32 %v2350, %v2302
        %v2383 = vadd.f32 %v2351, %v2305
        %v2384 = vadd.f32 %v2352, %v2310
        %v2385 = vadd.f32 %v2353, %v2313
        %v2386 = vadd.f32 %v2354, %v2318
        %v2387 = vadd.f32 %v2355, %v2321
        %2388 = vst.msk [vmem:[#allocation3] sm:$0xff] %vm1373, %v2356
        %2389 = vst.msk [vmem:[#allocation3 + $0x8] sm:$0xff] %vm1373, %v2357
        %2390 = vst.msk [vmem:[#allocation3 + $0x10] sm:$0xff] %vm1373, %v2358
        %2391 = vst.msk [vmem:[#allocation3 + $0x18] sm:$0xff] %vm1373, %v2359
        %2392 = vst.msk [vmem:[#allocation3 + $0x20] sm:$0xff] %vm1373, %v2360
        %2393 = vst.msk [vmem:[#allocation3 + $0x28] sm:$0xff] %vm1373, %v2361
        %2394 = vst.msk [vmem:[#allocation3 + $0x30] sm:$0xff] %vm1373, %v2362
        %2395 = vst.msk [vmem:[#allocation3 + $0x38] sm:$0xff] %vm1373, %v2363
        %2396 = vst.msk [vmem:[#allocation3 + $0x40] sm:$0xff] %vm1373, %v2364
        %2397 = vst.msk [vmem:[#allocation3 + $0x48] sm:$0xff] %vm1373, %v2365
        %2398 = vst.msk [vmem:[#allocation3 + $0x50] sm:$0xff] %vm1373, %v2366
        %2399 = vst.msk [vmem:[#allocation3 + $0x58] sm:$0xff] %vm1373, %v2367
        %2400 = vst.msk [vmem:[#allocation3 + $0x60] sm:$0xff] %vm1373, %v2368
        %2401 = vst.msk [vmem:[#allocation3 + $0x68] sm:$0xff] %vm1373, %v2369
        %2402 = vst.msk [vmem:[#allocation3 + $0x70] sm:$0xff] %vm1373, %v2370
        %2403 = vst.msk [vmem:[#allocation3 + $0x78] sm:$0xff] %vm1373, %v2371
        %2404 = vst.msk [vmem:[#allocation3 + $0x80] sm:$0xff] %vm1373, %v2372
        %2405 = vst.msk [vmem:[#allocation3 + $0x88] sm:$0xff] %vm1373, %v2373
        %2406 = vst.msk [vmem:[#allocation3 + $0x90] sm:$0xff] %vm1373, %v2374
        %2407 = vst.msk [vmem:[#allocation3 + $0x98] sm:$0xff] %vm1373, %v2375
        %2408 = vst.msk [vmem:[#allocation3 + $0xa0] sm:$0xff] %vm1373, %v2376
        %2409 = vst.msk [vmem:[#allocation3 + $0xa8] sm:$0xff] %vm1373, %v2377
        %2410 = vst.msk [vmem:[#allocation3 + $0xb0] sm:$0xff] %vm1373, %v2378
        %2411 = vst.msk [vmem:[#allocation3 + $0xb8] sm:$0xff] %vm1373, %v2379
        %2412 = vst.msk [vmem:[#allocation3 + $0xc0] sm:$0xff] %vm1373, %v2380
        %2413 = vst.msk [vmem:[#allocation3 + $0xc8] sm:$0xff] %vm1373, %v2381
        %2414 = vst.msk [vmem:[#allocation3 + $0xd0] sm:$0xff] %vm1373, %v2382
        %2415 = vst.msk [vmem:[#allocation3 + $0xd8] sm:$0xff] %vm1373, %v2383
        %2416 = vst.msk [vmem:[#allocation3 + $0xe0] sm:$0xff] %vm1373, %v2384
        %2417 = vst.msk [vmem:[#allocation3 + $0xe8] sm:$0xff] %vm1373, %v2385
        %2418 = vst.msk [vmem:[#allocation3 + $0xf0] sm:$0xff] %vm1373, %v2386
        %2419 = vst.msk [vmem:[#allocation3 + $0xf8] sm:$0xff] %vm1373, %v2387
        %v2420 = vld [vmem:[#allocation2] sm:$0xe]
        %v2421 = vld [vmem:[#allocation2 + $0x4] sm:$0xf]
        %v2422 = vld [vmem:[#allocation2 + $0x8] sm:$0x1]
        %v2423 = vld [vmem:[#allocation2 + $0xc] sm:$0xe]
        %v2424 = vld [vmem:[#allocation2 + $0x10] sm:$0xf]
        %v2425 = vld [vmem:[#allocation2 + $0x14] sm:$0x1]
        %v2426 = vld [vmem:[#allocation2 + $0x18] sm:$0xe]
        %v2427 = vld [vmem:[#allocation2 + $0x1c] sm:$0xf]
        %v2428 = vld [vmem:[#allocation2 + $0x20] sm:$0x1]
        %v2429 = vld [vmem:[#allocation2 + $0x24] sm:$0xe]
        %v2430 = vld [vmem:[#allocation2 + $0x28] sm:$0xf]
        %v2431 = vld [vmem:[#allocation2 + $0x2c] sm:$0x1]
        %v2432 = vld [vmem:[#allocation2 + $0x30] sm:$0xe]
        %v2433 = vld [vmem:[#allocation2 + $0x34] sm:$0xf]
        %v2434 = vld [vmem:[#allocation2 + $0x38] sm:$0x1]
        %v2435 = vld [vmem:[#allocation2 + $0x3c] sm:$0xe]
        %v2436 = vld [vmem:[#allocation2 + $0x40] sm:$0xf]
        %v2437 = vld [vmem:[#allocation2 + $0x44] sm:$0x1]
        %v2438 = vld [vmem:[#allocation2 + $0x48] sm:$0xe]
        %v2439 = vld [vmem:[#allocation2 + $0x4c] sm:$0xf]
        %v2440 = vld [vmem:[#allocation2 + $0x50] sm:$0x1]
        %v2441 = vld [vmem:[#allocation2 + $0x54] sm:$0xe]
        %v2442 = vld [vmem:[#allocation2 + $0x58] sm:$0xf]
        %v2443 = vld [vmem:[#allocation2 + $0x5c] sm:$0x1]
        %v2444 = vld [vmem:[#allocation2 + $0x60] sm:$0xe]
        %v2445 = vld [vmem:[#allocation2 + $0x64] sm:$0xf]
        %v2446 = vld [vmem:[#allocation2 + $0x68] sm:$0x1]
        %v2447 = vld [vmem:[#allocation2 + $0x6c] sm:$0xe]
        %v2448 = vld [vmem:[#allocation2 + $0x70] sm:$0xf]
        %v2449 = vld [vmem:[#allocation2 + $0x74] sm:$0x1]
        %v2450 = vld [vmem:[#allocation2 + $0x78] sm:$0xe]
        %v2451 = vld [vmem:[#allocation2 + $0x7c] sm:$0xf]
        %v2452 = vld [vmem:[#allocation2 + $0x80] sm:$0x1]
        %v2453 = vld [vmem:[#allocation2 + $0x84] sm:$0xe]
        %v2454 = vld [vmem:[#allocation2 + $0x88] sm:$0xf]
        %v2455 = vld [vmem:[#allocation2 + $0x8c] sm:$0x1]
        %v2456 = vld [vmem:[#allocation2 + $0x90] sm:$0xe]
        %v2457 = vld [vmem:[#allocation2 + $0x94] sm:$0xf]
        %v2458 = vld [vmem:[#allocation2 + $0x98] sm:$0x1]
        %v2459 = vld [vmem:[#allocation2 + $0x9c] sm:$0xe]
        %v2460 = vld [vmem:[#allocation2 + $0xa0] sm:$0xf]
        %v2461 = vld [vmem:[#allocation2 + $0xa4] sm:$0x1]
        %v2462 = vld [vmem:[#allocation2 + $0xa8] sm:$0xe]
        %v2463 = vld [vmem:[#allocation2 + $0xac] sm:$0xf]
        %v2464 = vld [vmem:[#allocation2 + $0xb0] sm:$0x1]
        %v2465 = vld [vmem:[#allocation2 + $0xb4] sm:$0xe]
        %v2466 = vld [vmem:[#allocation2 + $0xb8] sm:$0xf]
        %v2467 = vld [vmem:[#allocation2 + $0xbc] sm:$0x1]
        %vm2516 = vcmask 1042432
        %vm2517 = vcmask 1046532
        %vm2518 = vmor %vm2516, %vm2517
        %v2519 = vrot.slane %v2420, 5
        %v2520 = vrot.slane %v2519, 4
        %v2521 = vrot.slane %v2421, 5
        %v2522 = vsel %vm2518, %v2520, %v2521
        %v2523 = vrot.slane %v2521, 4
        %v2524 = vrot.slane %v2422, 5
        %v2525 = vsel %vm2518, %v2523, %v2524
        %v2526 = vrot.slane %v2423, 5
        %v2527 = vrot.slane %v2526, 4
        %v2528 = vrot.slane %v2424, 5
        %v2529 = vsel %vm2518, %v2527, %v2528
        %v2530 = vrot.slane %v2528, 4
        %v2531 = vrot.slane %v2425, 5
        %v2532 = vsel %vm2518, %v2530, %v2531
        %v2533 = vrot.slane %v2426, 5
        %v2534 = vrot.slane %v2533, 4
        %v2535 = vrot.slane %v2427, 5
        %v2536 = vsel %vm2518, %v2534, %v2535
        %v2537 = vrot.slane %v2535, 4
        %v2538 = vrot.slane %v2428, 5
        %v2539 = vsel %vm2518, %v2537, %v2538
        %v2540 = vrot.slane %v2429, 5
        %v2541 = vrot.slane %v2540, 4
        %v2542 = vrot.slane %v2430, 5
        %v2543 = vsel %vm2518, %v2541, %v2542
        %v2544 = vrot.slane %v2542, 4
        %v2545 = vrot.slane %v2431, 5
        %v2546 = vsel %vm2518, %v2544, %v2545
        %v2547 = vrot.slane %v2432, 5
        %v2548 = vrot.slane %v2547, 4
        %v2549 = vrot.slane %v2433, 5
        %v2550 = vsel %vm2518, %v2548, %v2549
        %v2551 = vrot.slane %v2549, 4
        %v2552 = vrot.slane %v2434, 5
        %v2553 = vsel %vm2518, %v2551, %v2552
        %v2554 = vrot.slane %v2435, 5
        %v2555 = vrot.slane %v2554, 4
        %v2556 = vrot.slane %v2436, 5
        %v2557 = vsel %vm2518, %v2555, %v2556
        %v2558 = vrot.slane %v2556, 4
        %v2559 = vrot.slane %v2437, 5
        %v2560 = vsel %vm2518, %v2558, %v2559
        %v2561 = vrot.slane %v2438, 5
        %v2562 = vrot.slane %v2561, 4
        %v2563 = vrot.slane %v2439, 5
        %v2564 = vsel %vm2518, %v2562, %v2563
        %v2565 = vrot.slane %v2563, 4
        %v2566 = vrot.slane %v2440, 5
        %v2567 = vsel %vm2518, %v2565, %v2566
        %v2568 = vrot.slane %v2441, 5
        %v2569 = vrot.slane %v2568, 4
        %v2570 = vrot.slane %v2442, 5
        %v2571 = vsel %vm2518, %v2569, %v2570
        %v2572 = vrot.slane %v2570, 4
        %v2573 = vrot.slane %v2443, 5
        %v2574 = vsel %vm2518, %v2572, %v2573
        %v2575 = vrot.slane %v2444, 5
        %v2576 = vrot.slane %v2575, 4
        %v2577 = vrot.slane %v2445, 5
        %v2578 = vsel %vm2518, %v2576, %v2577
        %v2579 = vrot.slane %v2577, 4
        %v2580 = vrot.slane %v2446, 5
        %v2581 = vsel %vm2518, %v2579, %v2580
        %v2582 = vrot.slane %v2447, 5
        %v2583 = vrot.slane %v2582, 4
        %v2584 = vrot.slane %v2448, 5
        %v2585 = vsel %vm2518, %v2583, %v2584
        %v2586 = vrot.slane %v2584, 4
        %v2587 = vrot.slane %v2449, 5
        %v2588 = vsel %vm2518, %v2586, %v2587
        %v2589 = vrot.slane %v2450, 5
        %v2590 = vrot.slane %v2589, 4
        %v2591 = vrot.slane %v2451, 5
        %v2592 = vsel %vm2518, %v2590, %v2591
        %v2593 = vrot.slane %v2591, 4
        %v2594 = vrot.slane %v2452, 5
        %v2595 = vsel %vm2518, %v2593, %v2594
        %v2596 = vrot.slane %v2453, 5
        %v2597 = vrot.slane %v2596, 4
        %v2598 = vrot.slane %v2454, 5
        %v2599 = vsel %vm2518, %v2597, %v2598
        %v2600 = vrot.slane %v2598, 4
        %v2601 = vrot.slane %v2455, 5
        %v2602 = vsel %vm2518, %v2600, %v2601
        %v2603 = vrot.slane %v2456, 5
        %v2604 = vrot.slane %v2603, 4
        %v2605 = vrot.slane %v2457, 5
        %v2606 = vsel %vm2518, %v2604, %v2605
        %v2607 = vrot.slane %v2605, 4
        %v2608 = vrot.slane %v2458, 5
        %v2609 = vsel %vm2518, %v2607, %v2608
        %v2610 = vrot.slane %v2459, 5
        %v2611 = vrot.slane %v2610, 4
        %v2612 = vrot.slane %v2460, 5
        %v2613 = vsel %vm2518, %v2611, %v2612
        %v2614 = vrot.slane %v2612, 4
        %v2615 = vrot.slane %v2461, 5
        %v2616 = vsel %vm2518, %v2614, %v2615
        %v2617 = vrot.slane %v2462, 5
        %v2618 = vrot.slane %v2617, 4
        %v2619 = vrot.slane %v2463, 5
        %v2620 = vsel %vm2518, %v2618, %v2619
        %v2621 = vrot.slane %v2619, 4
        %v2622 = vrot.slane %v2464, 5
        %v2623 = vsel %vm2518, %v2621, %v2622
        %v2624 = vrot.slane %v2465, 5
        %v2625 = vrot.slane %v2624, 4
        %v2626 = vrot.slane %v2466, 5
        %v2627 = vsel %vm2518, %v2625, %v2626
        %v2628 = vrot.slane %v2626, 4
        %v2629 = vrot.slane %v2467, 5
        %v2630 = vsel %vm2518, %v2628, %v2629
        %s2631 = scalar_lea.vmem %s3, 32
        %v2632 = vld [vmem:[%s2631] sm:$0xf]
        %v2633 = vld [vmem:[%s2631 + $0x4] sm:$0xf]
        %v2634 = vld [vmem:[%s2631 + $0x8] sm:$0xf]
        %v2635 = vld [vmem:[%s2631 + $0xc] sm:$0xf]
        %v2636 = vunpack.c.l.b16 %v2522
        %v2637 = vunpack.c.l.b16 %v2525
        %v2638 = vunpack.c.l.b16 %v2529
        %v2639 = vunpack.c.l.b16 %v2532
        %v2640 = vunpack.c.l.b16 %v2536
        %v2641 = vunpack.c.l.b16 %v2539
        %v2642 = vunpack.c.l.b16 %v2543
        %v2643 = vunpack.c.l.b16 %v2546
        %v2644 = vunpack.c.l.b16 %v2550
        %v2645 = vunpack.c.l.b16 %v2553
        %v2646 = vunpack.c.l.b16 %v2557
        %v2647 = vunpack.c.l.b16 %v2560
        %v2648 = vunpack.c.l.b16 %v2564
        %v2649 = vunpack.c.l.b16 %v2567
        %v2650 = vunpack.c.l.b16 %v2571
        %v2651 = vunpack.c.l.b16 %v2574
        %v2652 = vunpack.c.l.b16 %v2578
        %v2653 = vunpack.c.l.b16 %v2581
        %v2654 = vunpack.c.l.b16 %v2585
        %v2655 = vunpack.c.l.b16 %v2588
        %v2656 = vunpack.c.l.b16 %v2592
        %v2657 = vunpack.c.l.b16 %v2595
        %v2658 = vunpack.c.l.b16 %v2599
        %v2659 = vunpack.c.l.b16 %v2602
        %v2660 = vunpack.c.l.b16 %v2606
        %v2661 = vunpack.c.l.b16 %v2609
        %v2662 = vunpack.c.l.b16 %v2613
        %v2663 = vunpack.c.l.b16 %v2616
        %v2664 = vunpack.c.l.b16 %v2620
        %v2665 = vunpack.c.l.b16 %v2623
        %v2666 = vunpack.c.l.b16 %v2627
        %v2667 = vunpack.c.l.b16 %v2630
        %v2668 = vpack.c.b16 %v2637, %v2636
        %v2669 = vpack.c.b16 %v2639, %v2638
        %v2670 = vpack.c.b16 %v2641, %v2640
        %v2671 = vpack.c.b16 %v2643, %v2642
        %v2672 = vpack.c.b16 %v2645, %v2644
        %v2673 = vpack.c.b16 %v2647, %v2646
        %v2674 = vpack.c.b16 %v2649, %v2648
        %v2675 = vpack.c.b16 %v2651, %v2650
        %v2676 = vpack.c.b16 %v2653, %v2652
        %v2677 = vpack.c.b16 %v2655, %v2654
        %v2678 = vpack.c.b16 %v2657, %v2656
        %v2679 = vpack.c.b16 %v2659, %v2658
        %v2680 = vpack.c.b16 %v2661, %v2660
        %v2681 = vpack.c.b16 %v2663, %v2662
        %v2682 = vpack.c.b16 %v2665, %v2664
        %v2683 = vpack.c.b16 %v2667, %v2666
        %v2688 = vunpack.c.l.b16 %v2632
        %v2689 = vunpack.c.l.b16 %v2633
        %v2690 = vunpack.c.l.b16 %v2634
        %v2691 = vunpack.c.l.b16 %v2635
        %v2692 = vpack.c.b16 %v2689, %v2688
        %v2693 = vpack.c.b16 %v2691, %v2690
        %v2697 = vsel %vm1373, %v2668, 0
        %v2700 = vsel %vm1373, %v2669, 0
        %v2703 = vsel %vm1373, %v2670, 0
        %v2706 = vsel %vm1373, %v2671, 0
        %v2709 = vsel %vm1373, %v2672, 0
        %v2712 = vsel %vm1373, %v2673, 0
        %v2715 = vsel %vm1373, %v2674, 0
        %v2718 = vsel %vm1373, %v2675, 0
        %v2721 = vsel %vm1373, %v2676, 0
        %v2724 = vsel %vm1373, %v2677, 0
        %v2727 = vsel %vm1373, %v2678, 0
        %v2730 = vsel %vm1373, %v2679, 0
        %v2733 = vsel %vm1373, %v2680, 0
        %v2736 = vsel %vm1373, %v2681, 0
        %v2739 = vsel %vm1373, %v2682, 0
        %v2742 = vsel %vm1373, %v2683, 0
        %2744 = vmatprep.subr.bf16.mxu0 0
        %2745 = vmatpush1.bf16.msra.mxu0 %v2692
        %2746 = vmatprep.subr.bf16.mxu0 0
        %2747 = vmatpush1.bf16.msra.mxu0 %v2693
        %2748 = vmatprep.subr.bf16.mxu0 0
        %2749 = vmatpush1.bf16.msra.mxu0 0
        %2750 = vmatprep.subr.bf16.mxu0 0
        %2751 = vmatpush1.bf16.msra.mxu0 0
        %2752 = vmatprep.subr.bf16.mxu0 0
        %2753 = vmatpush1.bf16.msra.mxu0 0
        %2754 = vmatprep.subr.bf16.mxu0 0
        %2755 = vmatpush1.bf16.msra.mxu0 0
        %2756 = vmatprep.subr.bf16.mxu0 0
        %2757 = vmatpush1.bf16.msra.mxu0 0
        %2758 = vmatprep.subr.bf16.mxu0 0
        %2759 = vmatpush1.bf16.msra.mxu0 0
        %2760 = vmatprep.subr.bf16.mxu0 0
        %2761 = vmatpush1.bf16.msra.mxu0 0
        %2762 = vmatprep.subr.bf16.mxu0 0
        %2763 = vmatpush1.bf16.msra.mxu0 0
        %2764 = vmatprep.subr.bf16.mxu0 0
        %2765 = vmatpush1.bf16.msra.mxu0 0
        %2766 = vmatprep.subr.bf16.mxu0 0
        %2767 = vmatpush1.bf16.msra.mxu0 0
        %2768 = vmatprep.subr.bf16.mxu0 0
        %2769 = vmatpush1.bf16.msra.mxu0 0
        %2770 = vmatprep.subr.bf16.mxu0 0
        %2771 = vmatpush1.bf16.msra.mxu0 0
        %2772 = vmatprep.subr.bf16.mxu0 0
        %2773 = vmatpush1.bf16.msra.mxu0 0
        %2774 = vmatprep.subr.bf16.mxu0 0
        %2775 = vmatpush1.bf16.msra.mxu0 0
        %2776 = vmatprep.mubr.bf16.mxu0 0
        %2777 = vmatmul.mubr.bf16.gmra.mrb[0].mxu0 %v2697
        %v2778 = vpop.f32.mrb[0].mxu0
        %v2779 = vadd.f32 0.0, %v2778
        %v2780 = vpop.f32.mrb[0].mxu0
        %v2781 = vpop.f32.mrb[0].mxu0
        %v2782 = vadd.f32 0.0, %v2781
        %v2783 = vpop.f32.mrb[0].mxu0
        %2784 = vmatprep.mubr.bf16.mxu0 0
        %2785 = vmatmul.mubr.bf16.gmra.mrb[0].mxu0 %v2700
        %v2786 = vpop.f32.mrb[0].mxu0
        %v2787 = vadd.f32 0.0, %v2786
        %v2788 = vpop.f32.mrb[0].mxu0
        %v2789 = vpop.f32.mrb[0].mxu0
        %v2790 = vadd.f32 0.0, %v2789
        %v2791 = vpop.f32.mrb[0].mxu0
        %2792 = vmatprep.mubr.bf16.mxu0 0
        %2793 = vmatmul.mubr.bf16.gmra.mrb[0].mxu0 %v2703
        %v2794 = vpop.f32.mrb[0].mxu0
        %v2795 = vadd.f32 0.0, %v2794
        %v2796 = vpop.f32.mrb[0].mxu0
        %v2797 = vpop.f32.mrb[0].mxu0
        %v2798 = vadd.f32 0.0, %v2797
        %v2799 = vpop.f32.mrb[0].mxu0
        %2800 = vmatprep.mubr.bf16.mxu0 0
        %2801 = vmatmul.mubr.bf16.gmra.mrb[0].mxu0 %v2706
        %v2802 = vpop.f32.mrb[0].mxu0
        %v2803 = vadd.f32 0.0, %v2802
        %v2804 = vpop.f32.mrb[0].mxu0
        %v2805 = vpop.f32.mrb[0].mxu0
        %v2806 = vadd.f32 0.0, %v2805
        %v2807 = vpop.f32.mrb[0].mxu0
        %2808 = vmatprep.mubr.bf16.mxu0 0
        %2809 = vmatmul.mubr.bf16.gmra.mrb[0].mxu0 %v2709
        %v2810 = vpop.f32.mrb[0].mxu0
        %v2811 = vadd.f32 0.0, %v2810
        %v2812 = vpop.f32.mrb[0].mxu0
        %v2813 = vpop.f32.mrb[0].mxu0
        %v2814 = vadd.f32 0.0, %v2813
        %v2815 = vpop.f32.mrb[0].mxu0
        %2816 = vmatprep.mubr.bf16.mxu0 0
        %2817 = vmatmul.mubr.bf16.gmra.mrb[0].mxu0 %v2712
        %v2818 = vpop.f32.mrb[0].mxu0
        %v2819 = vadd.f32 0.0, %v2818
        %v2820 = vpop.f32.mrb[0].mxu0
        %v2821 = vpop.f32.mrb[0].mxu0
        %v2822 = vadd.f32 0.0, %v2821
        %v2823 = vpop.f32.mrb[0].mxu0
        %2824 = vmatprep.mubr.bf16.mxu0 0
        %2825 = vmatmul.mubr.bf16.gmra.mrb[0].mxu0 %v2715
        %v2826 = vpop.f32.mrb[0].mxu0
        %v2827 = vadd.f32 0.0, %v2826
        %v2828 = vpop.f32.mrb[0].mxu0
        %v2829 = vpop.f32.mrb[0].mxu0
        %v2830 = vadd.f32 0.0, %v2829
        %v2831 = vpop.f32.mrb[0].mxu0
        %2832 = vmatprep.mubr.bf16.mxu0 0
        %2833 = vmatmul.mubr.bf16.gmra.mrb[0].mxu0 %v2718
        %v2834 = vpop.f32.mrb[0].mxu0
        %v2835 = vadd.f32 0.0, %v2834
        %v2836 = vpop.f32.mrb[0].mxu0
        %v2837 = vpop.f32.mrb[0].mxu0
        %v2838 = vadd.f32 0.0, %v2837
        %v2839 = vpop.f32.mrb[0].mxu0
        %2840 = vmatprep.mubr.bf16.mxu0 0
        %2841 = vmatmul.mubr.bf16.gmra.mrb[0].mxu0 %v2721
        %v2842 = vpop.f32.mrb[0].mxu0
        %v2843 = vadd.f32 0.0, %v2842
        %v2844 = vpop.f32.mrb[0].mxu0
        %v2845 = vpop.f32.mrb[0].mxu0
        %v2846 = vadd.f32 0.0, %v2845
        %v2847 = vpop.f32.mrb[0].mxu0
        %2848 = vmatprep.mubr.bf16.mxu0 0
        %2849 = vmatmul.mubr.bf16.gmra.mrb[0].mxu0 %v2724
        %v2850 = vpop.f32.mrb[0].mxu0
        %v2851 = vadd.f32 0.0, %v2850
        %v2852 = vpop.f32.mrb[0].mxu0
        %v2853 = vpop.f32.mrb[0].mxu0
        %v2854 = vadd.f32 0.0, %v2853
        %v2855 = vpop.f32.mrb[0].mxu0
        %2856 = vmatprep.mubr.bf16.mxu0 0
        %2857 = vmatmul.mubr.bf16.gmra.mrb[0].mxu0 %v2727
        %v2858 = vpop.f32.mrb[0].mxu0
        %v2859 = vadd.f32 0.0, %v2858
        %v2860 = vpop.f32.mrb[0].mxu0
        %v2861 = vpop.f32.mrb[0].mxu0
        %v2862 = vadd.f32 0.0, %v2861
        %v2863 = vpop.f32.mrb[0].mxu0
        %2864 = vmatprep.mubr.bf16.mxu0 0
        %2865 = vmatmul.mubr.bf16.gmra.mrb[0].mxu0 %v2730
        %v2866 = vpop.f32.mrb[0].mxu0
        %v2867 = vadd.f32 0.0, %v2866
        %v2868 = vpop.f32.mrb[0].mxu0
        %v2869 = vpop.f32.mrb[0].mxu0
        %v2870 = vadd.f32 0.0, %v2869
        %v2871 = vpop.f32.mrb[0].mxu0
        %2872 = vmatprep.mubr.bf16.mxu0 0
        %2873 = vmatmul.mubr.bf16.gmra.mrb[0].mxu0 %v2733
        %v2874 = vpop.f32.mrb[0].mxu0
        %v2875 = vadd.f32 0.0, %v2874
        %v2876 = vpop.f32.mrb[0].mxu0
        %v2877 = vpop.f32.mrb[0].mxu0
        %v2878 = vadd.f32 0.0, %v2877
        %v2879 = vpop.f32.mrb[0].mxu0
        %2880 = vmatprep.mubr.bf16.mxu0 0
        %2881 = vmatmul.mubr.bf16.gmra.mrb[0].mxu0 %v2736
        %v2882 = vpop.f32.mrb[0].mxu0
        %v2883 = vadd.f32 0.0, %v2882
        %v2884 = vpop.f32.mrb[0].mxu0
        %v2885 = vpop.f32.mrb[0].mxu0
        %v2886 = vadd.f32 0.0, %v2885
        %v2887 = vpop.f32.mrb[0].mxu0
        %2888 = vmatprep.mubr.bf16.mxu0 0
        %2889 = vmatmul.mubr.bf16.gmra.mrb[0].mxu0 %v2739
        %v2890 = vpop.f32.mrb[0].mxu0
        %v2891 = vadd.f32 0.0, %v2890
        %v2892 = vpop.f32.mrb[0].mxu0
        %v2893 = vpop.f32.mrb[0].mxu0
        %v2894 = vadd.f32 0.0, %v2893
        %v2895 = vpop.f32.mrb[0].mxu0
        %2896 = vmatprep.mubr.bf16.mxu0 0
        %2897 = vmatmul.mubr.bf16.gmra.mrb[0].mxu0 %v2742
        %v2898 = vpop.f32.mrb[0].mxu0
        %v2899 = vadd.f32 0.0, %v2898
        %v2900 = vpop.f32.mrb[0].mxu0
        %v2901 = vpop.f32.mrb[0].mxu0
        %v2902 = vadd.f32 0.0, %v2901
        %v2903 = vpop.f32.mrb[0].mxu0
        %2904 = vdwg.mxu0
        %v2905 = vld [vmem:[#allocation3] sm:$0xff]
        %v2906 = vld [vmem:[#allocation3 + $0x8] sm:$0xff]
        %v2907 = vld [vmem:[#allocation3 + $0x10] sm:$0xff]
        %v2908 = vld [vmem:[#allocation3 + $0x18] sm:$0xff]
        %v2909 = vld [vmem:[#allocation3 + $0x20] sm:$0xff]
        %v2910 = vld [vmem:[#allocation3 + $0x28] sm:$0xff]
        %v2911 = vld [vmem:[#allocation3 + $0x30] sm:$0xff]
        %v2912 = vld [vmem:[#allocation3 + $0x38] sm:$0xff]
        %v2913 = vld [vmem:[#allocation3 + $0x40] sm:$0xff]
        %v2914 = vld [vmem:[#allocation3 + $0x48] sm:$0xff]
        %v2915 = vld [vmem:[#allocation3 + $0x50] sm:$0xff]
        %v2916 = vld [vmem:[#allocation3 + $0x58] sm:$0xff]
        %v2917 = vld [vmem:[#allocation3 + $0x60] sm:$0xff]
        %v2918 = vld [vmem:[#allocation3 + $0x68] sm:$0xff]
        %v2919 = vld [vmem:[#allocation3 + $0x70] sm:$0xff]
        %v2920 = vld [vmem:[#allocation3 + $0x78] sm:$0xff]
        %v2921 = vld [vmem:[#allocation3 + $0x80] sm:$0xff]
        %v2922 = vld [vmem:[#allocation3 + $0x88] sm:$0xff]
        %v2923 = vld [vmem:[#allocation3 + $0x90] sm:$0xff]
        %v2924 = vld [vmem:[#allocation3 + $0x98] sm:$0xff]
        %v2925 = vld [vmem:[#allocation3 + $0xa0] sm:$0xff]
        %v2926 = vld [vmem:[#allocation3 + $0xa8] sm:$0xff]
        %v2927 = vld [vmem:[#allocation3 + $0xb0] sm:$0xff]
        %v2928 = vld [vmem:[#allocation3 + $0xb8] sm:$0xff]
        %v2929 = vld [vmem:[#allocation3 + $0xc0] sm:$0xff]
        %v2930 = vld [vmem:[#allocation3 + $0xc8] sm:$0xff]
        %v2931 = vld [vmem:[#allocation3 + $0xd0] sm:$0xff]
        %v2932 = vld [vmem:[#allocation3 + $0xd8] sm:$0xff]
        %v2933 = vld [vmem:[#allocation3 + $0xe0] sm:$0xff]
        %v2934 = vld [vmem:[#allocation3 + $0xe8] sm:$0xff]
        %v2935 = vld [vmem:[#allocation3 + $0xf0] sm:$0xff]
        %v2936 = vld [vmem:[#allocation3 + $0xf8] sm:$0xff]
        %v2937 = vadd.f32 %v2905, %v2779
        %v2938 = vadd.f32 %v2906, %v2782
        %v2939 = vadd.f32 %v2907, %v2787
        %v2940 = vadd.f32 %v2908, %v2790
        %v2941 = vadd.f32 %v2909, %v2795
        %v2942 = vadd.f32 %v2910, %v2798
        %v2943 = vadd.f32 %v2911, %v2803
        %v2944 = vadd.f32 %v2912, %v2806
        %v2945 = vadd.f32 %v2913, %v2811
        %v2946 = vadd.f32 %v2914, %v2814
        %v2947 = vadd.f32 %v2915, %v2819
        %v2948 = vadd.f32 %v2916, %v2822
        %v2949 = vadd.f32 %v2917, %v2827
        %v2950 = vadd.f32 %v2918, %v2830
        %v2951 = vadd.f32 %v2919, %v2835
        %v2952 = vadd.f32 %v2920, %v2838
        %v2953 = vadd.f32 %v2921, %v2843
        %v2954 = vadd.f32 %v2922, %v2846
        %v2955 = vadd.f32 %v2923, %v2851
        %v2956 = vadd.f32 %v2924, %v2854
        %v2957 = vadd.f32 %v2925, %v2859
        %v2958 = vadd.f32 %v2926, %v2862
        %v2959 = vadd.f32 %v2927, %v2867
        %v2960 = vadd.f32 %v2928, %v2870
        %v2961 = vadd.f32 %v2929, %v2875
        %v2962 = vadd.f32 %v2930, %v2878
        %v2963 = vadd.f32 %v2931, %v2883
        %v2964 = vadd.f32 %v2932, %v2886
        %v2965 = vadd.f32 %v2933, %v2891
        %v2966 = vadd.f32 %v2934, %v2894
        %v2967 = vadd.f32 %v2935, %v2899
        %v2968 = vadd.f32 %v2936, %v2902
        %2969 = vst.msk [vmem:[#allocation3] sm:$0xff] %vm1373, %v2937
        %2970 = vst.msk [vmem:[#allocation3 + $0x8] sm:$0xff] %vm1373, %v2938
        %2971 = vst.msk [vmem:[#allocation3 + $0x10] sm:$0xff] %vm1373, %v2939
        %2972 = vst.msk [vmem:[#allocation3 + $0x18] sm:$0xff] %vm1373, %v2940
        %2973 = vst.msk [vmem:[#allocation3 + $0x20] sm:$0xff] %vm1373, %v2941
        %2974 = vst.msk [vmem:[#allocation3 + $0x28] sm:$0xff] %vm1373, %v2942
        %2975 = vst.msk [vmem:[#allocation3 + $0x30] sm:$0xff] %vm1373, %v2943
        %2976 = vst.msk [vmem:[#allocation3 + $0x38] sm:$0xff] %vm1373, %v2944
        %2977 = vst.msk [vmem:[#allocation3 + $0x40] sm:$0xff] %vm1373, %v2945
        %2978 = vst.msk [vmem:[#allocation3 + $0x48] sm:$0xff] %vm1373, %v2946
        %2979 = vst.msk [vmem:[#allocation3 + $0x50] sm:$0xff] %vm1373, %v2947
        %2980 = vst.msk [vmem:[#allocation3 + $0x58] sm:$0xff] %vm1373, %v2948
        %2981 = vst.msk [vmem:[#allocation3 + $0x60] sm:$0xff] %vm1373, %v2949
        %2982 = vst.msk [vmem:[#allocation3 + $0x68] sm:$0xff] %vm1373, %v2950
        %2983 = vst.msk [vmem:[#allocation3 + $0x70] sm:$0xff] %vm1373, %v2951
        %2984 = vst.msk [vmem:[#allocation3 + $0x78] sm:$0xff] %vm1373, %v2952
        %2985 = vst.msk [vmem:[#allocation3 + $0x80] sm:$0xff] %vm1373, %v2953
        %2986 = vst.msk [vmem:[#allocation3 + $0x88] sm:$0xff] %vm1373, %v2954
        %2987 = vst.msk [vmem:[#allocation3 + $0x90] sm:$0xff] %vm1373, %v2955
        %2988 = vst.msk [vmem:[#allocation3 + $0x98] sm:$0xff] %vm1373, %v2956
        %2989 = vst.msk [vmem:[#allocation3 + $0xa0] sm:$0xff] %vm1373, %v2957
        %2990 = vst.msk [vmem:[#allocation3 + $0xa8] sm:$0xff] %vm1373, %v2958
        %2991 = vst.msk [vmem:[#allocation3 + $0xb0] sm:$0xff] %vm1373, %v2959
        %2992 = vst.msk [vmem:[#allocation3 + $0xb8] sm:$0xff] %vm1373, %v2960
        %2993 = vst.msk [vmem:[#allocation3 + $0xc0] sm:$0xff] %vm1373, %v2961
        %2994 = vst.msk [vmem:[#allocation3 + $0xc8] sm:$0xff] %vm1373, %v2962
        %2995 = vst.msk [vmem:[#allocation3 + $0xd0] sm:$0xff] %vm1373, %v2963
        %2996 = vst.msk [vmem:[#allocation3 + $0xd8] sm:$0xff] %vm1373, %v2964
        %2997 = vst.msk [vmem:[#allocation3 + $0xe0] sm:$0xff] %vm1373, %v2965
        %2998 = vst.msk [vmem:[#allocation3 + $0xe8] sm:$0xff] %vm1373, %v2966
        %2999 = vst.msk [vmem:[#allocation3 + $0xf0] sm:$0xff] %vm1373, %v2967
        %3000 = vst.msk [vmem:[#allocation3 + $0xf8] sm:$0xff] %vm1373, %v2968
        %v3001 = vld [vmem:[%s1130] sm:$0xf]
        %v3002 = vld [vmem:[%s1130 + $0x4] sm:$0xf]
        %v3003 = vld [vmem:[%s1130 + $0xc] sm:$0xf]
        %v3004 = vld [vmem:[%s1130 + $0x10] sm:$0xf]
        %v3005 = vld [vmem:[%s1130 + $0x18] sm:$0xf]
        %v3006 = vld [vmem:[%s1130 + $0x1c] sm:$0xf]
        %v3007 = vld [vmem:[%s1130 + $0x24] sm:$0xf]
        %v3008 = vld [vmem:[%s1130 + $0x28] sm:$0xf]
        %v3009 = vld [vmem:[%s1130 + $0x30] sm:$0xf]
        %v3010 = vld [vmem:[%s1130 + $0x34] sm:$0xf]
        %v3011 = vld [vmem:[%s1130 + $0x3c] sm:$0xf]
        %v3012 = vld [vmem:[%s1130 + $0x40] sm:$0xf]
        %v3013 = vld [vmem:[%s1130 + $0x48] sm:$0xf]
        %v3014 = vld [vmem:[%s1130 + $0x4c] sm:$0xf]
        %v3015 = vld [vmem:[%s1130 + $0x54] sm:$0xf]
        %v3016 = vld [vmem:[%s1130 + $0x58] sm:$0xf]
        %v3017 = vld [vmem:[%s1130 + $0x60] sm:$0xf]
        %v3018 = vld [vmem:[%s1130 + $0x64] sm:$0xf]
        %v3019 = vld [vmem:[%s1130 + $0x6c] sm:$0xf]
        %v3020 = vld [vmem:[%s1130 + $0x70] sm:$0xf]
        %v3021 = vld [vmem:[%s1130 + $0x78] sm:$0xf]
        %v3022 = vld [vmem:[%s1130 + $0x7c] sm:$0xf]
        %v3023 = vld [vmem:[%s1130 + $0x84] sm:$0xf]
        %v3024 = vld [vmem:[%s1130 + $0x88] sm:$0xf]
        %v3025 = vld [vmem:[%s1130 + $0x90] sm:$0xf]
        %v3026 = vld [vmem:[%s1130 + $0x94] sm:$0xf]
        %v3027 = vld [vmem:[%s1130 + $0x9c] sm:$0xf]
        %v3028 = vld [vmem:[%s1130 + $0xa0] sm:$0xf]
        %v3029 = vld [vmem:[%s1130 + $0xa8] sm:$0xf]
        %v3030 = vld [vmem:[%s1130 + $0xac] sm:$0xf]
        %v3031 = vld [vmem:[%s1130 + $0xb4] sm:$0xf]
        %v3032 = vld [vmem:[%s1130 + $0xb8] sm:$0xf]
        %s3033 = scalar_lea.vmem %s3, 48
        %v3034 = vld [vmem:[%s3033] sm:$0xf]
        %v3035 = vld [vmem:[%s3033 + $0x4] sm:$0xf]
        %v3036 = vld [vmem:[%s3033 + $0x8] sm:$0xf]
        %v3037 = vld [vmem:[%s3033 + $0xc] sm:$0xf]
        %v3070 = vunpack.c.l.b16 %v3001
        %v3071 = vunpack.c.l.b16 %v3002
        %v3072 = vunpack.c.l.b16 %v3003
        %v3073 = vunpack.c.l.b16 %v3004
        %v3074 = vunpack.c.l.b16 %v3005
        %v3075 = vunpack.c.l.b16 %v3006
        %v3076 = vunpack.c.l.b16 %v3007
        %v3077 = vunpack.c.l.b16 %v3008
        %v3078 = vunpack.c.l.b16 %v3009
        %v3079 = vunpack.c.l.b16 %v3010
        %v3080 = vunpack.c.l.b16 %v3011
        %v3081 = vunpack.c.l.b16 %v3012
        %v3082 = vunpack.c.l.b16 %v3013
        %v3083 = vunpack.c.l.b16 %v3014
        %v3084 = vunpack.c.l.b16 %v3015
        %v3085 = vunpack.c.l.b16 %v3016
        %v3086 = vunpack.c.l.b16 %v3017
        %v3087 = vunpack.c.l.b16 %v3018
        %v3088 = vunpack.c.l.b16 %v3019
        %v3089 = vunpack.c.l.b16 %v3020
        %v3090 = vunpack.c.l.b16 %v3021
        %v3091 = vunpack.c.l.b16 %v3022
        %v3092 = vunpack.c.l.b16 %v3023
        %v3093 = vunpack.c.l.b16 %v3024
        %v3094 = vunpack.c.l.b16 %v3025
        %v3095 = vunpack.c.l.b16 %v3026
        %v3096 = vunpack.c.l.b16 %v3027
        %v3097 = vunpack.c.l.b16 %v3028
        %v3098 = vunpack.c.l.b16 %v3029
        %v3099 = vunpack.c.l.b16 %v3030
        %v3100 = vunpack.c.l.b16 %v3031
        %v3101 = vunpack.c.l.b16 %v3032
        %v3102 = vpack.c.b16 %v3071, %v3070
        %v3103 = vpack.c.b16 %v3073, %v3072
        %v3104 = vpack.c.b16 %v3075, %v3074
        %v3105 = vpack.c.b16 %v3077, %v3076
        %v3106 = vpack.c.b16 %v3079, %v3078
        %v3107 = vpack.c.b16 %v3081, %v3080
        %v3108 = vpack.c.b16 %v3083, %v3082
        %v3109 = vpack.c.b16 %v3085, %v3084
        %v3110 = vpack.c.b16 %v3087, %v3086
        %v3111 = vpack.c.b16 %v3089, %v3088
        %v3112 = vpack.c.b16 %v3091, %v3090
        %v3113 = vpack.c.b16 %v3093, %v3092
        %v3114 = vpack.c.b16 %v3095, %v3094
        %v3115 = vpack.c.b16 %v3097, %v3096
        %v3116 = vpack.c.b16 %v3099, %v3098
        %v3117 = vpack.c.b16 %v3101, %v3100
        %v3122 = vunpack.c.l.b16 %v3034
        %v3123 = vunpack.c.l.b16 %v3035
        %v3124 = vunpack.c.l.b16 %v3036
        %v3125 = vunpack.c.l.b16 %v3037
        %v3126 = vpack.c.b16 %v3123, %v3122
        %v3127 = vpack.c.b16 %v3125, %v3124
        %v3131 = vsel %vm1373, %v3102, 0
        %v3134 = vsel %vm1373, %v3103, 0
        %v3137 = vsel %vm1373, %v3104, 0
        %v3140 = vsel %vm1373, %v3105, 0
        %v3143 = vsel %vm1373, %v3106, 0
        %v3146 = vsel %vm1373, %v3107, 0
        %v3149 = vsel %vm1373, %v3108, 0
        %v3152 = vsel %vm1373, %v3109, 0
        %v3155 = vsel %vm1373, %v3110, 0
        %v3158 = vsel %vm1373, %v3111, 0
        %v3161 = vsel %vm1373, %v3112, 0
        %v3164 = vsel %vm1373, %v3113, 0
        %v3167 = vsel %vm1373, %v3114, 0
        %v3170 = vsel %vm1373, %v3115, 0
        %v3173 = vsel %vm1373, %v3116, 0
        %v3176 = vsel %vm1373, %v3117, 0
        %3178 = vmatprep.subr.bf16.mxu0 0
        %3179 = vmatpush1.bf16.msra.mxu0 %v3126
        %3180 = vmatprep.subr.bf16.mxu0 0
        %3181 = vmatpush1.bf16.msra.mxu0 %v3127
        %3182 = vmatprep.subr.bf16.mxu0 0
        %3183 = vmatpush1.bf16.msra.mxu0 0
        %3184 = vmatprep.subr.bf16.mxu0 0
        %3185 = vmatpush1.bf16.msra.mxu0 0
        %3186 = vmatprep.subr.bf16.mxu0 0
        %3187 = vmatpush1.bf16.msra.mxu0 0
        %3188 = vmatprep.subr.bf16.mxu0 0
        %3189 = vmatpush1.bf16.msra.mxu0 0
        %3190 = vmatprep.subr.bf16.mxu0 0
        %3191 = vmatpush1.bf16.msra.mxu0 0
        %3192 = vmatprep.subr.bf16.mxu0 0
        %3193 = vmatpush1.bf16.msra.mxu0 0
        %3194 = vmatprep.subr.bf16.mxu0 0
        %3195 = vmatpush1.bf16.msra.mxu0 0
        %3196 = vmatprep.subr.bf16.mxu0 0
        %3197 = vmatpush1.bf16.msra.mxu0 0
        %3198 = vmatprep.subr.bf16.mxu0 0
        %3199 = vmatpush1.bf16.msra.mxu0 0
        %3200 = vmatprep.subr.bf16.mxu0 0
        %3201 = vmatpush1.bf16.msra.mxu0 0
        %3202 = vmatprep.subr.bf16.mxu0 0
        %3203 = vmatpush1.bf16.msra.mxu0 0
        %3204 = vmatprep.subr.bf16.mxu0 0
        %3205 = vmatpush1.bf16.msra.mxu0 0
        %3206 = vmatprep.subr.bf16.mxu0 0
        %3207 = vmatpush1.bf16.msra.mxu0 0
        %3208 = vmatprep.subr.bf16.mxu0 0
        %3209 = vmatpush1.bf16.msra.mxu0 0
        %3210 = vmatprep.mubr.bf16.mxu0 0
        %3211 = vmatmul.mubr.bf16.gmra.mrb[0].mxu0 %v3131
        %v3212 = vpop.f32.mrb[0].mxu0
        %v3213 = vadd.f32 0.0, %v3212
        %v3214 = vpop.f32.mrb[0].mxu0
        %v3215 = vpop.f32.mrb[0].mxu0
        %v3216 = vadd.f32 0.0, %v3215
        %v3217 = vpop.f32.mrb[0].mxu0
        %3218 = vmatprep.mubr.bf16.mxu0 0
        %3219 = vmatmul.mubr.bf16.gmra.mrb[0].mxu0 %v3134
        %v3220 = vpop.f32.mrb[0].mxu0
        %v3221 = vadd.f32 0.0, %v3220
        %v3222 = vpop.f32.mrb[0].mxu0
        %v3223 = vpop.f32.mrb[0].mxu0
        %v3224 = vadd.f32 0.0, %v3223
        %v3225 = vpop.f32.mrb[0].mxu0
        %3226 = vmatprep.mubr.bf16.mxu0 0
        %3227 = vmatmul.mubr.bf16.gmra.mrb[0].mxu0 %v3137
        %v3228 = vpop.f32.mrb[0].mxu0
        %v3229 = vadd.f32 0.0, %v3228
        %v3230 = vpop.f32.mrb[0].mxu0
        %v3231 = vpop.f32.mrb[0].mxu0
        %v3232 = vadd.f32 0.0, %v3231
        %v3233 = vpop.f32.mrb[0].mxu0
        %3234 = vmatprep.mubr.bf16.mxu0 0
        %3235 = vmatmul.mubr.bf16.gmra.mrb[0].mxu0 %v3140
        %v3236 = vpop.f32.mrb[0].mxu0
        %v3237 = vadd.f32 0.0, %v3236
        %v3238 = vpop.f32.mrb[0].mxu0
        %v3239 = vpop.f32.mrb[0].mxu0
        %v3240 = vadd.f32 0.0, %v3239
        %v3241 = vpop.f32.mrb[0].mxu0
        %3242 = vmatprep.mubr.bf16.mxu0 0
        %3243 = vmatmul.mubr.bf16.gmra.mrb[0].mxu0 %v3143
        %v3244 = vpop.f32.mrb[0].mxu0
        %v3245 = vadd.f32 0.0, %v3244
        %v3246 = vpop.f32.mrb[0].mxu0
        %v3247 = vpop.f32.mrb[0].mxu0
        %v3248 = vadd.f32 0.0, %v3247
        %v3249 = vpop.f32.mrb[0].mxu0
        %3250 = vmatprep.mubr.bf16.mxu0 0
        %3251 = vmatmul.mubr.bf16.gmra.mrb[0].mxu0 %v3146
        %v3252 = vpop.f32.mrb[0].mxu0
        %v3253 = vadd.f32 0.0, %v3252
        %v3254 = vpop.f32.mrb[0].mxu0
        %v3255 = vpop.f32.mrb[0].mxu0
        %v3256 = vadd.f32 0.0, %v3255
        %v3257 = vpop.f32.mrb[0].mxu0
        %3258 = vmatprep.mubr.bf16.mxu0 0
        %3259 = vmatmul.mubr.bf16.gmra.mrb[0].mxu0 %v3149
        %v3260 = vpop.f32.mrb[0].mxu0
        %v3261 = vadd.f32 0.0, %v3260
        %v3262 = vpop.f32.mrb[0].mxu0
        %v3263 = vpop.f32.mrb[0].mxu0
        %v3264 = vadd.f32 0.0, %v3263
        %v3265 = vpop.f32.mrb[0].mxu0
        %3266 = vmatprep.mubr.bf16.mxu0 0
        %3267 = vmatmul.mubr.bf16.gmra.mrb[0].mxu0 %v3152
        %v3268 = vpop.f32.mrb[0].mxu0
        %v3269 = vadd.f32 0.0, %v3268
        %v3270 = vpop.f32.mrb[0].mxu0
        %v3271 = vpop.f32.mrb[0].mxu0
        %v3272 = vadd.f32 0.0, %v3271
        %v3273 = vpop.f32.mrb[0].mxu0
        %3274 = vmatprep.mubr.bf16.mxu0 0
        %3275 = vmatmul.mubr.bf16.gmra.mrb[0].mxu0 %v3155
        %v3276 = vpop.f32.mrb[0].mxu0
        %v3277 = vadd.f32 0.0, %v3276
        %v3278 = vpop.f32.mrb[0].mxu0
        %v3279 = vpop.f32.mrb[0].mxu0
        %v3280 = vadd.f32 0.0, %v3279
        %v3281 = vpop.f32.mrb[0].mxu0
        %3282 = vmatprep.mubr.bf16.mxu0 0
        %3283 = vmatmul.mubr.bf16.gmra.mrb[0].mxu0 %v3158
        %v3284 = vpop.f32.mrb[0].mxu0
        %v3285 = vadd.f32 0.0, %v3284
        %v3286 = vpop.f32.mrb[0].mxu0
        %v3287 = vpop.f32.mrb[0].mxu0
        %v3288 = vadd.f32 0.0, %v3287
        %v3289 = vpop.f32.mrb[0].mxu0
        %3290 = vmatprep.mubr.bf16.mxu0 0
        %3291 = vmatmul.mubr.bf16.gmra.mrb[0].mxu0 %v3161
        %v3292 = vpop.f32.mrb[0].mxu0
        %v3293 = vadd.f32 0.0, %v3292
        %v3294 = vpop.f32.mrb[0].mxu0
        %v3295 = vpop.f32.mrb[0].mxu0
        %v3296 = vadd.f32 0.0, %v3295
        %v3297 = vpop.f32.mrb[0].mxu0
        %3298 = vmatprep.mubr.bf16.mxu0 0
        %3299 = vmatmul.mubr.bf16.gmra.mrb[0].mxu0 %v3164
        %v3300 = vpop.f32.mrb[0].mxu0
        %v3301 = vadd.f32 0.0, %v3300
        %v3302 = vpop.f32.mrb[0].mxu0
        %v3303 = vpop.f32.mrb[0].mxu0
        %v3304 = vadd.f32 0.0, %v3303
        %v3305 = vpop.f32.mrb[0].mxu0
        %3306 = vmatprep.mubr.bf16.mxu0 0
        %3307 = vmatmul.mubr.bf16.gmra.mrb[0].mxu0 %v3167
        %v3308 = vpop.f32.mrb[0].mxu0
        %v3309 = vadd.f32 0.0, %v3308
        %v3310 = vpop.f32.mrb[0].mxu0
        %v3311 = vpop.f32.mrb[0].mxu0
        %v3312 = vadd.f32 0.0, %v3311
        %v3313 = vpop.f32.mrb[0].mxu0
        %3314 = vmatprep.mubr.bf16.mxu0 0
        %3315 = vmatmul.mubr.bf16.gmra.mrb[0].mxu0 %v3170
        %v3316 = vpop.f32.mrb[0].mxu0
        %v3317 = vadd.f32 0.0, %v3316
        %v3318 = vpop.f32.mrb[0].mxu0
        %v3319 = vpop.f32.mrb[0].mxu0
        %v3320 = vadd.f32 0.0, %v3319
        %v3321 = vpop.f32.mrb[0].mxu0
        %3322 = vmatprep.mubr.bf16.mxu0 0
        %3323 = vmatmul.mubr.bf16.gmra.mrb[0].mxu0 %v3173
        %v3324 = vpop.f32.mrb[0].mxu0
        %v3325 = vadd.f32 0.0, %v3324
        %v3326 = vpop.f32.mrb[0].mxu0
        %v3327 = vpop.f32.mrb[0].mxu0
        %v3328 = vadd.f32 0.0, %v3327
        %v3329 = vpop.f32.mrb[0].mxu0
        %3330 = vmatprep.mubr.bf16.mxu0 0
        %3331 = vmatmul.mubr.bf16.gmra.mrb[0].mxu0 %v3176
        %v3332 = vpop.f32.mrb[0].mxu0
        %v3333 = vadd.f32 0.0, %v3332
        %v3334 = vpop.f32.mrb[0].mxu0
        %v3335 = vpop.f32.mrb[0].mxu0
        %v3336 = vadd.f32 0.0, %v3335
        %v3337 = vpop.f32.mrb[0].mxu0
        %3338 = vdwg.mxu0
        %v3339 = vld [vmem:[#allocation3] sm:$0xff]
        %v3340 = vld [vmem:[#allocation3 + $0x8] sm:$0xff]
        %v3341 = vld [vmem:[#allocation3 + $0x10] sm:$0xff]
        %v3342 = vld [vmem:[#allocation3 + $0x18] sm:$0xff]
        %v3343 = vld [vmem:[#allocation3 + $0x20] sm:$0xff]
        %v3344 = vld [vmem:[#allocation3 + $0x28] sm:$0xff]
        %v3345 = vld [vmem:[#allocation3 + $0x30] sm:$0xff]
        %v3346 = vld [vmem:[#allocation3 + $0x38] sm:$0xff]
        %v3347 = vld [vmem:[#allocation3 + $0x40] sm:$0xff]
        %v3348 = vld [vmem:[#allocation3 + $0x48] sm:$0xff]
        %v3349 = vld [vmem:[#allocation3 + $0x50] sm:$0xff]
        %v3350 = vld [vmem:[#allocation3 + $0x58] sm:$0xff]
        %v3351 = vld [vmem:[#allocation3 + $0x60] sm:$0xff]
        %v3352 = vld [vmem:[#allocation3 + $0x68] sm:$0xff]
        %v3353 = vld [vmem:[#allocation3 + $0x70] sm:$0xff]
        %v3354 = vld [vmem:[#allocation3 + $0x78] sm:$0xff]
        %v3355 = vld [vmem:[#allocation3 + $0x80] sm:$0xff]
        %v3356 = vld [vmem:[#allocation3 + $0x88] sm:$0xff]
        %v3357 = vld [vmem:[#allocation3 + $0x90] sm:$0xff]
        %v3358 = vld [vmem:[#allocation3 + $0x98] sm:$0xff]
        %v3359 = vld [vmem:[#allocation3 + $0xa0] sm:$0xff]
        %v3360 = vld [vmem:[#allocation3 + $0xa8] sm:$0xff]
        %v3361 = vld [vmem:[#allocation3 + $0xb0] sm:$0xff]
        %v3362 = vld [vmem:[#allocation3 + $0xb8] sm:$0xff]
        %v3363 = vld [vmem:[#allocation3 + $0xc0] sm:$0xff]
        %v3364 = vld [vmem:[#allocation3 + $0xc8] sm:$0xff]
        %v3365 = vld [vmem:[#allocation3 + $0xd0] sm:$0xff]
        %v3366 = vld [vmem:[#allocation3 + $0xd8] sm:$0xff]
        %v3367 = vld [vmem:[#allocation3 + $0xe0] sm:$0xff]
        %v3368 = vld [vmem:[#allocation3 + $0xe8] sm:$0xff]
        %v3369 = vld [vmem:[#allocation3 + $0xf0] sm:$0xff]
        %v3370 = vld [vmem:[#allocation3 + $0xf8] sm:$0xff]
        %v3371 = vadd.f32 %v3339, %v3213
        %v3372 = vadd.f32 %v3340, %v3216
        %v3373 = vadd.f32 %v3341, %v3221
        %v3374 = vadd.f32 %v3342, %v3224
        %v3375 = vadd.f32 %v3343, %v3229
        %v3376 = vadd.f32 %v3344, %v3232
        %v3377 = vadd.f32 %v3345, %v3237
        %v3378 = vadd.f32 %v3346, %v3240
        %v3379 = vadd.f32 %v3347, %v3245
        %v3380 = vadd.f32 %v3348, %v3248
        %v3381 = vadd.f32 %v3349, %v3253
        %v3382 = vadd.f32 %v3350, %v3256
        %v3383 = vadd.f32 %v3351, %v3261
        %v3384 = vadd.f32 %v3352, %v3264
        %v3385 = vadd.f32 %v3353, %v3269
        %v3386 = vadd.f32 %v3354, %v3272
        %v3387 = vadd.f32 %v3355, %v3277
        %v3388 = vadd.f32 %v3356, %v3280
        %v3389 = vadd.f32 %v3357, %v3285
        %v3390 = vadd.f32 %v3358, %v3288
        %v3391 = vadd.f32 %v3359, %v3293
        %v3392 = vadd.f32 %v3360, %v3296
        %v3393 = vadd.f32 %v3361, %v3301
        %v3394 = vadd.f32 %v3362, %v3304
        %v3395 = vadd.f32 %v3363, %v3309
        %v3396 = vadd.f32 %v3364, %v3312
        %v3397 = vadd.f32 %v3365, %v3317
        %v3398 = vadd.f32 %v3366, %v3320
        %v3399 = vadd.f32 %v3367, %v3325
        %v3400 = vadd.f32 %v3368, %v3328
        %v3401 = vadd.f32 %v3369, %v3333
        %v3402 = vadd.f32 %v3370, %v3336
        %3403 = vst.msk [vmem:[#allocation3] sm:$0xff] %vm1373, %v3371
        %3404 = vst.msk [vmem:[#allocation3 + $0x8] sm:$0xff] %vm1373, %v3372
        %3405 = vst.msk [vmem:[#allocation3 + $0x10] sm:$0xff] %vm1373, %v3373
        %3406 = vst.msk [vmem:[#allocation3 + $0x18] sm:$0xff] %vm1373, %v3374
        %3407 = vst.msk [vmem:[#allocation3 + $0x20] sm:$0xff] %vm1373, %v3375
        %3408 = vst.msk [vmem:[#allocation3 + $0x28] sm:$0xff] %vm1373, %v3376
        %3409 = vst.msk [vmem:[#allocation3 + $0x30] sm:$0xff] %vm1373, %v3377
        %3410 = vst.msk [vmem:[#allocation3 + $0x38] sm:$0xff] %vm1373, %v3378
        %3411 = vst.msk [vmem:[#allocation3 + $0x40] sm:$0xff] %vm1373, %v3379
        %3412 = vst.msk [vmem:[#allocation3 + $0x48] sm:$0xff] %vm1373, %v3380
        %3413 = vst.msk [vmem:[#allocation3 + $0x50] sm:$0xff] %vm1373, %v3381
        %3414 = vst.msk [vmem:[#allocation3 + $0x58] sm:$0xff] %vm1373, %v3382
        %3415 = vst.msk [vmem:[#allocation3 + $0x60] sm:$0xff] %vm1373, %v3383
        %3416 = vst.msk [vmem:[#allocation3 + $0x68] sm:$0xff] %vm1373, %v3384
        %3417 = vst.msk [vmem:[#allocation3 + $0x70] sm:$0xff] %vm1373, %v3385
        %3418 = vst.msk [vmem:[#allocation3 + $0x78] sm:$0xff] %vm1373, %v3386
        %3419 = vst.msk [vmem:[#allocation3 + $0x80] sm:$0xff] %vm1373, %v3387
        %3420 = vst.msk [vmem:[#allocation3 + $0x88] sm:$0xff] %vm1373, %v3388
        %3421 = vst.msk [vmem:[#allocation3 + $0x90] sm:$0xff] %vm1373, %v3389
        %3422 = vst.msk [vmem:[#allocation3 + $0x98] sm:$0xff] %vm1373, %v3390
        %3423 = vst.msk [vmem:[#allocation3 + $0xa0] sm:$0xff] %vm1373, %v3391
        %3424 = vst.msk [vmem:[#allocation3 + $0xa8] sm:$0xff] %vm1373, %v3392
        %3425 = vst.msk [vmem:[#allocation3 + $0xb0] sm:$0xff] %vm1373, %v3393
        %3426 = vst.msk [vmem:[#allocation3 + $0xb8] sm:$0xff] %vm1373, %v3394
        %3427 = vst.msk [vmem:[#allocation3 + $0xc0] sm:$0xff] %vm1373, %v3395
        %3428 = vst.msk [vmem:[#allocation3 + $0xc8] sm:$0xff] %vm1373, %v3396
        %3429 = vst.msk [vmem:[#allocation3 + $0xd0] sm:$0xff] %vm1373, %v3397
        %3430 = vst.msk [vmem:[#allocation3 + $0xd8] sm:$0xff] %vm1373, %v3398
        %3431 = vst.msk [vmem:[#allocation3 + $0xe0] sm:$0xff] %vm1373, %v3399
        %3432 = vst.msk [vmem:[#allocation3 + $0xe8] sm:$0xff] %vm1373, %v3400
        %3433 = vst.msk [vmem:[#allocation3 + $0xf0] sm:$0xff] %vm1373, %v3401
        %3434 = vst.msk [vmem:[#allocation3 + $0xf8] sm:$0xff] %vm1373, %v3402
        %v3435 = vld [vmem:[%s1130] sm:$0xf]
        %v3436 = vld [vmem:[%s1130 + $0x4] sm:$0xf]
        %v3437 = vld [vmem:[%s1130 + $0x8] sm:$0x1]
        %v3438 = vld [vmem:[%s1130 + $0xc] sm:$0xf]
        %v3439 = vld [vmem:[%s1130 + $0x10] sm:$0xf]
        %v3440 = vld [vmem:[%s1130 + $0x14] sm:$0x1]
        %v3441 = vld [vmem:[%s1130 + $0x18] sm:$0xf]
        %v3442 = vld [vmem:[%s1130 + $0x1c] sm:$0xf]
        %v3443 = vld [vmem:[%s1130 + $0x20] sm:$0x1]
        %v3444 = vld [vmem:[%s1130 + $0x24] sm:$0xf]
        %v3445 = vld [vmem:[%s1130 + $0x28] sm:$0xf]
        %v3446 = vld [vmem:[%s1130 + $0x2c] sm:$0x1]
        %v3447 = vld [vmem:[%s1130 + $0x30] sm:$0xf]
        %v3448 = vld [vmem:[%s1130 + $0x34] sm:$0xf]
        %v3449 = vld [vmem:[%s1130 + $0x38] sm:$0x1]
        %v3450 = vld [vmem:[%s1130 + $0x3c] sm:$0xf]
        %v3451 = vld [vmem:[%s1130 + $0x40] sm:$0xf]
        %v3452 = vld [vmem:[%s1130 + $0x44] sm:$0x1]
        %v3453 = vld [vmem:[%s1130 + $0x48] sm:$0xf]
        %v3454 = vld [vmem:[%s1130 + $0x4c] sm:$0xf]
        %v3455 = vld [vmem:[%s1130 + $0x50] sm:$0x1]
        %v3456 = vld [vmem:[%s1130 + $0x54] sm:$0xf]
        %v3457 = vld [vmem:[%s1130 + $0x58] sm:$0xf]
        %v3458 = vld [vmem:[%s1130 + $0x5c] sm:$0x1]
        %v3459 = vld [vmem:[%s1130 + $0x60] sm:$0xf]
        %v3460 = vld [vmem:[%s1130 + $0x64] sm:$0xf]
        %v3461 = vld [vmem:[%s1130 + $0x68] sm:$0x1]
        %v3462 = vld [vmem:[%s1130 + $0x6c] sm:$0xf]
        %v3463 = vld [vmem:[%s1130 + $0x70] sm:$0xf]
        %v3464 = vld [vmem:[%s1130 + $0x74] sm:$0x1]
        %v3465 = vld [vmem:[%s1130 + $0x78] sm:$0xf]
        %v3466 = vld [vmem:[%s1130 + $0x7c] sm:$0xf]
        %v3467 = vld [vmem:[%s1130 + $0x80] sm:$0x1]
        %v3468 = vld [vmem:[%s1130 + $0x84] sm:$0xf]
        %v3469 = vld [vmem:[%s1130 + $0x88] sm:$0xf]
        %v3470 = vld [vmem:[%s1130 + $0x8c] sm:$0x1]
        %v3471 = vld [vmem:[%s1130 + $0x90] sm:$0xf]
        %v3472 = vld [vmem:[%s1130 + $0x94] sm:$0xf]
        %v3473 = vld [vmem:[%s1130 + $0x98] sm:$0x1]
        %v3474 = vld [vmem:[%s1130 + $0x9c] sm:$0xf]
        %v3475 = vld [vmem:[%s1130 + $0xa0] sm:$0xf]
        %v3476 = vld [vmem:[%s1130 + $0xa4] sm:$0x1]
        %v3477 = vld [vmem:[%s1130 + $0xa8] sm:$0xf]
        %v3478 = vld [vmem:[%s1130 + $0xac] sm:$0xf]
        %v3479 = vld [vmem:[%s1130 + $0xb0] sm:$0x1]
        %v3480 = vld [vmem:[%s1130 + $0xb4] sm:$0xf]
        %v3481 = vld [vmem:[%s1130 + $0xb8] sm:$0xf]
        %v3482 = vld [vmem:[%s1130 + $0xbc] sm:$0x1]
        %v3484 = vshrl.u32 %v3435, 16
        %v3486 = vrot.slane %v3484, 4
        %v3487 = vshll.u32 %v3435, 16
        %v3489 = vrot.slane %v3487, 5
        %v3490 = vor.u32 %v3486, %v3489
        %v3491 = vrot.slane %v3490, 4
        %v3493 = vshll.u32 %v3436, 16
        %v3495 = vrot.slane %v3493, 5
        %v3496 = vsel %vm1665, %v3491, %v3495
        %v3497 = vshrl.u32 %v3436, 16
        %v3499 = vrot.slane %v3497, 4
        %v3500 = vor.u32 %v3499, %v3495
        %v3501 = vrot.slane %v3500, 4
        %v3503 = vshll.u32 %v3437, 16
        %v3505 = vrot.slane %v3503, 5
        %v3506 = vsel %vm1665, %v3501, %v3505
        %v3508 = vshrl.u32 %v3438, 16
        %v3510 = vrot.slane %v3508, 4
        %v3511 = vshll.u32 %v3438, 16
        %v3513 = vrot.slane %v3511, 5
        %v3514 = vor.u32 %v3510, %v3513
        %v3515 = vrot.slane %v3514, 4
        %v3517 = vshll.u32 %v3439, 16
        %v3519 = vrot.slane %v3517, 5
        %v3520 = vsel %vm1665, %v3515, %v3519
        %v3521 = vshrl.u32 %v3439, 16
        %v3523 = vrot.slane %v3521, 4
        %v3524 = vor.u32 %v3523, %v3519
        %v3525 = vrot.slane %v3524, 4
        %v3527 = vshll.u32 %v3440, 16
        %v3529 = vrot.slane %v3527, 5
        %v3530 = vsel %vm1665, %v3525, %v3529
        %v3532 = vshrl.u32 %v3441, 16
        %v3534 = vrot.slane %v3532, 4
        %v3535 = vshll.u32 %v3441, 16
        %v3537 = vrot.slane %v3535, 5
        %v3538 = vor.u32 %v3534, %v3537
        %v3539 = vrot.slane %v3538, 4
        %v3541 = vshll.u32 %v3442, 16
        %v3543 = vrot.slane %v3541, 5
        %v3544 = vsel %vm1665, %v3539, %v3543
        %v3545 = vshrl.u32 %v3442, 16
        %v3547 = vrot.slane %v3545, 4
        %v3548 = vor.u32 %v3547, %v3543
        %v3549 = vrot.slane %v3548, 4
        %v3551 = vshll.u32 %v3443, 16
        %v3553 = vrot.slane %v3551, 5
        %v3554 = vsel %vm1665, %v3549, %v3553
        %v3556 = vshrl.u32 %v3444, 16
        %v3558 = vrot.slane %v3556, 4
        %v3559 = vshll.u32 %v3444, 16
        %v3561 = vrot.slane %v3559, 5
        %v3562 = vor.u32 %v3558, %v3561
        %v3563 = vrot.slane %v3562, 4
        %v3565 = vshll.u32 %v3445, 16
        %v3567 = vrot.slane %v3565, 5
        %v3568 = vsel %vm1665, %v3563, %v3567
        %v3569 = vshrl.u32 %v3445, 16
        %v3571 = vrot.slane %v3569, 4
        %v3572 = vor.u32 %v3571, %v3567
        %v3573 = vrot.slane %v3572, 4
        %v3575 = vshll.u32 %v3446, 16
        %v3577 = vrot.slane %v3575, 5
        %v3578 = vsel %vm1665, %v3573, %v3577
        %v3580 = vshrl.u32 %v3447, 16
        %v3582 = vrot.slane %v3580, 4
        %v3583 = vshll.u32 %v3447, 16
        %v3585 = vrot.slane %v3583, 5
        %v3586 = vor.u32 %v3582, %v3585
        %v3587 = vrot.slane %v3586, 4
        %v3589 = vshll.u32 %v3448, 16
        %v3591 = vrot.slane %v3589, 5
        %v3592 = vsel %vm1665, %v3587, %v3591
        %v3593 = vshrl.u32 %v3448, 16
        %v3595 = vrot.slane %v3593, 4
        %v3596 = vor.u32 %v3595, %v3591
        %v3597 = vrot.slane %v3596, 4
        %v3599 = vshll.u32 %v3449, 16
        %v3601 = vrot.slane %v3599, 5
        %v3602 = vsel %vm1665, %v3597, %v3601
        %v3604 = vshrl.u32 %v3450, 16
        %v3606 = vrot.slane %v3604, 4
        %v3607 = vshll.u32 %v3450, 16
        %v3609 = vrot.slane %v3607, 5
        %v3610 = vor.u32 %v3606, %v3609
        %v3611 = vrot.slane %v3610, 4
        %v3613 = vshll.u32 %v3451, 16
        %v3615 = vrot.slane %v3613, 5
        %v3616 = vsel %vm1665, %v3611, %v3615
        %v3617 = vshrl.u32 %v3451, 16
        %v3619 = vrot.slane %v3617, 4
        %v3620 = vor.u32 %v3619, %v3615
        %v3621 = vrot.slane %v3620, 4
        %v3623 = vshll.u32 %v3452, 16
        %v3625 = vrot.slane %v3623, 5
        %v3626 = vsel %vm1665, %v3621, %v3625
        %v3628 = vshrl.u32 %v3453, 16
        %v3630 = vrot.slane %v3628, 4
        %v3631 = vshll.u32 %v3453, 16
        %v3633 = vrot.slane %v3631, 5
        %v3634 = vor.u32 %v3630, %v3633
        %v3635 = vrot.slane %v3634, 4
        %v3637 = vshll.u32 %v3454, 16
        %v3639 = vrot.slane %v3637, 5
        %v3640 = vsel %vm1665, %v3635, %v3639
        %v3641 = vshrl.u32 %v3454, 16
        %v3643 = vrot.slane %v3641, 4
        %v3644 = vor.u32 %v3643, %v3639
        %v3645 = vrot.slane %v3644, 4
        %v3647 = vshll.u32 %v3455, 16
        %v3649 = vrot.slane %v3647, 5
        %v3650 = vsel %vm1665, %v3645, %v3649
        %v3652 = vshrl.u32 %v3456, 16
        %v3654 = vrot.slane %v3652, 4
        %v3655 = vshll.u32 %v3456, 16
        %v3657 = vrot.slane %v3655, 5
        %v3658 = vor.u32 %v3654, %v3657
        %v3659 = vrot.slane %v3658, 4
        %v3661 = vshll.u32 %v3457, 16
        %v3663 = vrot.slane %v3661, 5
        %v3664 = vsel %vm1665, %v3659, %v3663
        %v3665 = vshrl.u32 %v3457, 16
        %v3667 = vrot.slane %v3665, 4
        %v3668 = vor.u32 %v3667, %v3663
        %v3669 = vrot.slane %v3668, 4
        %v3671 = vshll.u32 %v3458, 16
        %v3673 = vrot.slane %v3671, 5
        %v3674 = vsel %vm1665, %v3669, %v3673
        %v3676 = vshrl.u32 %v3459, 16
        %v3678 = vrot.slane %v3676, 4
        %v3679 = vshll.u32 %v3459, 16
        %v3681 = vrot.slane %v3679, 5
        %v3682 = vor.u32 %v3678, %v3681
        %v3683 = vrot.slane %v3682, 4
        %v3685 = vshll.u32 %v3460, 16
        %v3687 = vrot.slane %v3685, 5
        %v3688 = vsel %vm1665, %v3683, %v3687
        %v3689 = vshrl.u32 %v3460, 16
        %v3691 = vrot.slane %v3689, 4
        %v3692 = vor.u32 %v3691, %v3687
        %v3693 = vrot.slane %v3692, 4
        %v3695 = vshll.u32 %v3461, 16
        %v3697 = vrot.slane %v3695, 5
        %v3698 = vsel %vm1665, %v3693, %v3697
        %v3700 = vshrl.u32 %v3462, 16
        %v3702 = vrot.slane %v3700, 4
        %v3703 = vshll.u32 %v3462, 16
        %v3705 = vrot.slane %v3703, 5
        %v3706 = vor.u32 %v3702, %v3705
        %v3707 = vrot.slane %v3706, 4
        %v3709 = vshll.u32 %v3463, 16
        %v3711 = vrot.slane %v3709, 5
        %v3712 = vsel %vm1665, %v3707, %v3711
        %v3713 = vshrl.u32 %v3463, 16
        %v3715 = vrot.slane %v3713, 4
        %v3716 = vor.u32 %v3715, %v3711
        %v3717 = vrot.slane %v3716, 4
        %v3719 = vshll.u32 %v3464, 16
        %v3721 = vrot.slane %v3719, 5
        %v3722 = vsel %vm1665, %v3717, %v3721
        %v3724 = vshrl.u32 %v3465, 16
        %v3726 = vrot.slane %v3724, 4
        %v3727 = vshll.u32 %v3465, 16
        %v3729 = vrot.slane %v3727, 5
        %v3730 = vor.u32 %v3726, %v3729
        %v3731 = vrot.slane %v3730, 4
        %v3733 = vshll.u32 %v3466, 16
        %v3735 = vrot.slane %v3733, 5
        %v3736 = vsel %vm1665, %v3731, %v3735
        %v3737 = vshrl.u32 %v3466, 16
        %v3739 = vrot.slane %v3737, 4
        %v3740 = vor.u32 %v3739, %v3735
        %v3741 = vrot.slane %v3740, 4
        %v3743 = vshll.u32 %v3467, 16
        %v3745 = vrot.slane %v3743, 5
        %v3746 = vsel %vm1665, %v3741, %v3745
        %v3748 = vshrl.u32 %v3468, 16
        %v3750 = vrot.slane %v3748, 4
        %v3751 = vshll.u32 %v3468, 16
        %v3753 = vrot.slane %v3751, 5
        %v3754 = vor.u32 %v3750, %v3753
        %v3755 = vrot.slane %v3754, 4
        %v3757 = vshll.u32 %v3469, 16
        %v3759 = vrot.slane %v3757, 5
        %v3760 = vsel %vm1665, %v3755, %v3759
        %v3761 = vshrl.u32 %v3469, 16
        %v3763 = vrot.slane %v3761, 4
        %v3764 = vor.u32 %v3763, %v3759
        %v3765 = vrot.slane %v3764, 4
        %v3767 = vshll.u32 %v3470, 16
        %v3769 = vrot.slane %v3767, 5
        %v3770 = vsel %vm1665, %v3765, %v3769
        %v3772 = vshrl.u32 %v3471, 16
        %v3774 = vrot.slane %v3772, 4
        %v3775 = vshll.u32 %v3471, 16
        %v3777 = vrot.slane %v3775, 5
        %v3778 = vor.u32 %v3774, %v3777
        %v3779 = vrot.slane %v3778, 4
        %v3781 = vshll.u32 %v3472, 16
        %v3783 = vrot.slane %v3781, 5
        %v3784 = vsel %vm1665, %v3779, %v3783
        %v3785 = vshrl.u32 %v3472, 16
        %v3787 = vrot.slane %v3785, 4
        %v3788 = vor.u32 %v3787, %v3783
        %v3789 = vrot.slane %v3788, 4
        %v3791 = vshll.u32 %v3473, 16
        %v3793 = vrot.slane %v3791, 5
        %v3794 = vsel %vm1665, %v3789, %v3793
        %v3796 = vshrl.u32 %v3474, 16
        %v3798 = vrot.slane %v3796, 4
        %v3799 = vshll.u32 %v3474, 16
        %v3801 = vrot.slane %v3799, 5
        %v3802 = vor.u32 %v3798, %v3801
        %v3803 = vrot.slane %v3802, 4
        %v3805 = vshll.u32 %v3475, 16
        %v3807 = vrot.slane %v3805, 5
        %v3808 = vsel %vm1665, %v3803, %v3807
        %v3809 = vshrl.u32 %v3475, 16
        %v3811 = vrot.slane %v3809, 4
        %v3812 = vor.u32 %v3811, %v3807
        %v3813 = vrot.slane %v3812, 4
        %v3815 = vshll.u32 %v3476, 16
        %v3817 = vrot.slane %v3815, 5
        %v3818 = vsel %vm1665, %v3813, %v3817
        %v3820 = vshrl.u32 %v3477, 16
        %v3822 = vrot.slane %v3820, 4
        %v3823 = vshll.u32 %v3477, 16
        %v3825 = vrot.slane %v3823, 5
        %v3826 = vor.u32 %v3822, %v3825
        %v3827 = vrot.slane %v3826, 4
        %v3829 = vshll.u32 %v3478, 16
        %v3831 = vrot.slane %v3829, 5
        %v3832 = vsel %vm1665, %v3827, %v3831
        %v3833 = vshrl.u32 %v3478, 16
        %v3835 = vrot.slane %v3833, 4
        %v3836 = vor.u32 %v3835, %v3831
        %v3837 = vrot.slane %v3836, 4
        %v3839 = vshll.u32 %v3479, 16
        %v3841 = vrot.slane %v3839, 5
        %v3842 = vsel %vm1665, %v3837, %v3841
        %v3844 = vshrl.u32 %v3480, 16
        %v3846 = vrot.slane %v3844, 4
        %v3847 = vshll.u32 %v3480, 16
        %v3849 = vrot.slane %v3847, 5
        %v3850 = vor.u32 %v3846, %v3849
        %v3851 = vrot.slane %v3850, 4
        %v3853 = vshll.u32 %v3481, 16
        %v3855 = vrot.slane %v3853, 5
        %v3856 = vsel %vm1665, %v3851, %v3855
        %v3857 = vshrl.u32 %v3481, 16
        %v3859 = vrot.slane %v3857, 4
        %v3860 = vor.u32 %v3859, %v3855
        %v3861 = vrot.slane %v3860, 4
        %v3863 = vshll.u32 %v3482, 16
        %v3865 = vrot.slane %v3863, 5
        %v3866 = vsel %vm1665, %v3861, %v3865
        %s3867 = scalar_lea.vmem %s3, 64
        %v3868 = vld [vmem:[%s3867] sm:$0xf]
        %v3869 = vld [vmem:[%s3867 + $0x4] sm:$0xf]
        %v3870 = vld [vmem:[%s3867 + $0x8] sm:$0xf]
        %v3871 = vld [vmem:[%s3867 + $0xc] sm:$0xf]
        %v3872 = vunpack.c.l.b16 %v3496
        %v3873 = vunpack.c.l.b16 %v3506
        %v3874 = vunpack.c.l.b16 %v3520
        %v3875 = vunpack.c.l.b16 %v3530
        %v3876 = vunpack.c.l.b16 %v3544
        %v3877 = vunpack.c.l.b16 %v3554
        %v3878 = vunpack.c.l.b16 %v3568
        %v3879 = vunpack.c.l.b16 %v3578
        %v3880 = vunpack.c.l.b16 %v3592
        %v3881 = vunpack.c.l.b16 %v3602
        %v3882 = vunpack.c.l.b16 %v3616
        %v3883 = vunpack.c.l.b16 %v3626
        %v3884 = vunpack.c.l.b16 %v3640
        %v3885 = vunpack.c.l.b16 %v3650
        %v3886 = vunpack.c.l.b16 %v3664
        %v3887 = vunpack.c.l.b16 %v3674
        %v3888 = vunpack.c.l.b16 %v3688
        %v3889 = vunpack.c.l.b16 %v3698
        %v3890 = vunpack.c.l.b16 %v3712
        %v3891 = vunpack.c.l.b16 %v3722
        %v3892 = vunpack.c.l.b16 %v3736
        %v3893 = vunpack.c.l.b16 %v3746
        %v3894 = vunpack.c.l.b16 %v3760
        %v3895 = vunpack.c.l.b16 %v3770
        %v3896 = vunpack.c.l.b16 %v3784
        %v3897 = vunpack.c.l.b16 %v3794
        %v3898 = vunpack.c.l.b16 %v3808
        %v3899 = vunpack.c.l.b16 %v3818
        %v3900 = vunpack.c.l.b16 %v3832
        %v3901 = vunpack.c.l.b16 %v3842
        %v3902 = vunpack.c.l.b16 %v3856
        %v3903 = vunpack.c.l.b16 %v3866
        %v3904 = vpack.c.b16 %v3873, %v3872
        %v3905 = vpack.c.b16 %v3875, %v3874
        %v3906 = vpack.c.b16 %v3877, %v3876
        %v3907 = vpack.c.b16 %v3879, %v3878
        %v3908 = vpack.c.b16 %v3881, %v3880
        %v3909 = vpack.c.b16 %v3883, %v3882
        %v3910 = vpack.c.b16 %v3885, %v3884
        %v3911 = vpack.c.b16 %v3887, %v3886
        %v3912 = vpack.c.b16 %v3889, %v3888
        %v3913 = vpack.c.b16 %v3891, %v3890
        %v3914 = vpack.c.b16 %v3893, %v3892
        %v3915 = vpack.c.b16 %v3895, %v3894
        %v3916 = vpack.c.b16 %v3897, %v3896
        %v3917 = vpack.c.b16 %v3899, %v3898
        %v3918 = vpack.c.b16 %v3901, %v3900
        %v3919 = vpack.c.b16 %v3903, %v3902
        %v3924 = vunpack.c.l.b16 %v3868
        %v3925 = vunpack.c.l.b16 %v3869
        %v3926 = vunpack.c.l.b16 %v3870
        %v3927 = vunpack.c.l.b16 %v3871
        %v3928 = vpack.c.b16 %v3925, %v3924
        %v3929 = vpack.c.b16 %v3927, %v3926
        %v3933 = vsel %vm1373, %v3904, 0
        %v3936 = vsel %vm1373, %v3905, 0
        %v3939 = vsel %vm1373, %v3906, 0
        %v3942 = vsel %vm1373, %v3907, 0
        %v3945 = vsel %vm1373, %v3908, 0
        %v3948 = vsel %vm1373, %v3909, 0
        %v3951 = vsel %vm1373, %v3910, 0
        %v3954 = vsel %vm1373, %v3911, 0
        %v3957 = vsel %vm1373, %v3912, 0
        %v3960 = vsel %vm1373, %v3913, 0
        %v3963 = vsel %vm1373, %v3914, 0
        %v3966 = vsel %vm1373, %v3915, 0
        %v3969 = vsel %vm1373, %v3916, 0
        %v3972 = vsel %vm1373, %v3917, 0
        %v3975 = vsel %vm1373, %v3918, 0
        %v3978 = vsel %vm1373, %v3919, 0
        %3980 = vmatprep.subr.bf16.mxu0 0
        %3981 = vmatpush1.bf16.msra.mxu0 %v3928
        %3982 = vmatprep.subr.bf16.mxu0 0
        %3983 = vmatpush1.bf16.msra.mxu0 %v3929
        %3984 = vmatprep.subr.bf16.mxu0 0
        %3985 = vmatpush1.bf16.msra.mxu0 0
        %3986 = vmatprep.subr.bf16.mxu0 0
        %3987 = vmatpush1.bf16.msra.mxu0 0
        %3988 = vmatprep.subr.bf16.mxu0 0
        %3989 = vmatpush1.bf16.msra.mxu0 0
        %3990 = vmatprep.subr.bf16.mxu0 0
        %3991 = vmatpush1.bf16.msra.mxu0 0
        %3992 = vmatprep.subr.bf16.mxu0 0
        %3993 = vmatpush1.bf16.msra.mxu0 0
        %3994 = vmatprep.subr.bf16.mxu0 0
        %3995 = vmatpush1.bf16.msra.mxu0 0
        %3996 = vmatprep.subr.bf16.mxu0 0
        %3997 = vmatpush1.bf16.msra.mxu0 0
        %3998 = vmatprep.subr.bf16.mxu0 0
        %3999 = vmatpush1.bf16.msra.mxu0 0
        %4000 = vmatprep.subr.bf16.mxu0 0
        %4001 = vmatpush1.bf16.msra.mxu0 0
        %4002 = vmatprep.subr.bf16.mxu0 0
        %4003 = vmatpush1.bf16.msra.mxu0 0
        %4004 = vmatprep.subr.bf16.mxu0 0
        %4005 = vmatpush1.bf16.msra.mxu0 0
        %4006 = vmatprep.subr.bf16.mxu0 0
        %4007 = vmatpush1.bf16.msra.mxu0 0
        %4008 = vmatprep.subr.bf16.mxu0 0
        %4009 = vmatpush1.bf16.msra.mxu0 0
        %4010 = vmatprep.subr.bf16.mxu0 0
        %4011 = vmatpush1.bf16.msra.mxu0 0
        %4012 = vmatprep.mubr.bf16.mxu0 0
        %4013 = vmatmul.mubr.bf16.gmra.mrb[0].mxu0 %v3933
        %v4014 = vpop.f32.mrb[0].mxu0
        %v4015 = vadd.f32 0.0, %v4014
        %v4016 = vpop.f32.mrb[0].mxu0
        %v4017 = vpop.f32.mrb[0].mxu0
        %v4018 = vadd.f32 0.0, %v4017
        %v4019 = vpop.f32.mrb[0].mxu0
        %4020 = vmatprep.mubr.bf16.mxu0 0
        %4021 = vmatmul.mubr.bf16.gmra.mrb[0].mxu0 %v3936
        %v4022 = vpop.f32.mrb[0].mxu0
        %v4023 = vadd.f32 0.0, %v4022
        %v4024 = vpop.f32.mrb[0].mxu0
        %v4025 = vpop.f32.mrb[0].mxu0
        %v4026 = vadd.f32 0.0, %v4025
        %v4027 = vpop.f32.mrb[0].mxu0
        %4028 = vmatprep.mubr.bf16.mxu0 0
        %4029 = vmatmul.mubr.bf16.gmra.mrb[0].mxu0 %v3939
        %v4030 = vpop.f32.mrb[0].mxu0
        %v4031 = vadd.f32 0.0, %v4030
        %v4032 = vpop.f32.mrb[0].mxu0
        %v4033 = vpop.f32.mrb[0].mxu0
        %v4034 = vadd.f32 0.0, %v4033
        %v4035 = vpop.f32.mrb[0].mxu0
        %4036 = vmatprep.mubr.bf16.mxu0 0
        %4037 = vmatmul.mubr.bf16.gmra.mrb[0].mxu0 %v3942
        %v4038 = vpop.f32.mrb[0].mxu0
        %v4039 = vadd.f32 0.0, %v4038
        %v4040 = vpop.f32.mrb[0].mxu0
        %v4041 = vpop.f32.mrb[0].mxu0
        %v4042 = vadd.f32 0.0, %v4041
        %v4043 = vpop.f32.mrb[0].mxu0
        %4044 = vmatprep.mubr.bf16.mxu0 0
        %4045 = vmatmul.mubr.bf16.gmra.mrb[0].mxu0 %v3945
        %v4046 = vpop.f32.mrb[0].mxu0
        %v4047 = vadd.f32 0.0, %v4046
        %v4048 = vpop.f32.mrb[0].mxu0
        %v4049 = vpop.f32.mrb[0].mxu0
        %v4050 = vadd.f32 0.0, %v4049
        %v4051 = vpop.f32.mrb[0].mxu0
        %4052 = vmatprep.mubr.bf16.mxu0 0
        %4053 = vmatmul.mubr.bf16.gmra.mrb[0].mxu0 %v3948
        %v4054 = vpop.f32.mrb[0].mxu0
        %v4055 = vadd.f32 0.0, %v4054
        %v4056 = vpop.f32.mrb[0].mxu0
        %v4057 = vpop.f32.mrb[0].mxu0
        %v4058 = vadd.f32 0.0, %v4057
        %v4059 = vpop.f32.mrb[0].mxu0
        %4060 = vmatprep.mubr.bf16.mxu0 0
        %4061 = vmatmul.mubr.bf16.gmra.mrb[0].mxu0 %v3951
        %v4062 = vpop.f32.mrb[0].mxu0
        %v4063 = vadd.f32 0.0, %v4062
        %v4064 = vpop.f32.mrb[0].mxu0
        %v4065 = vpop.f32.mrb[0].mxu0
        %v4066 = vadd.f32 0.0, %v4065
        %v4067 = vpop.f32.mrb[0].mxu0
        %4068 = vmatprep.mubr.bf16.mxu0 0
        %4069 = vmatmul.mubr.bf16.gmra.mrb[0].mxu0 %v3954
        %v4070 = vpop.f32.mrb[0].mxu0
        %v4071 = vadd.f32 0.0, %v4070
        %v4072 = vpop.f32.mrb[0].mxu0
        %v4073 = vpop.f32.mrb[0].mxu0
        %v4074 = vadd.f32 0.0, %v4073
        %v4075 = vpop.f32.mrb[0].mxu0
        %4076 = vmatprep.mubr.bf16.mxu0 0
        %4077 = vmatmul.mubr.bf16.gmra.mrb[0].mxu0 %v3957
        %v4078 = vpop.f32.mrb[0].mxu0
        %v4079 = vadd.f32 0.0, %v4078
        %v4080 = vpop.f32.mrb[0].mxu0
        %v4081 = vpop.f32.mrb[0].mxu0
        %v4082 = vadd.f32 0.0, %v4081
        %v4083 = vpop.f32.mrb[0].mxu0
        %4084 = vmatprep.mubr.bf16.mxu0 0
        %4085 = vmatmul.mubr.bf16.gmra.mrb[0].mxu0 %v3960
        %v4086 = vpop.f32.mrb[0].mxu0
        %v4087 = vadd.f32 0.0, %v4086
        %v4088 = vpop.f32.mrb[0].mxu0
        %v4089 = vpop.f32.mrb[0].mxu0
        %v4090 = vadd.f32 0.0, %v4089
        %v4091 = vpop.f32.mrb[0].mxu0
        %4092 = vmatprep.mubr.bf16.mxu0 0
        %4093 = vmatmul.mubr.bf16.gmra.mrb[0].mxu0 %v3963
        %v4094 = vpop.f32.mrb[0].mxu0
        %v4095 = vadd.f32 0.0, %v4094
        %v4096 = vpop.f32.mrb[0].mxu0
        %v4097 = vpop.f32.mrb[0].mxu0
        %v4098 = vadd.f32 0.0, %v4097
        %v4099 = vpop.f32.mrb[0].mxu0
        %4100 = vmatprep.mubr.bf16.mxu0 0
        %4101 = vmatmul.mubr.bf16.gmra.mrb[0].mxu0 %v3966
        %v4102 = vpop.f32.mrb[0].mxu0
        %v4103 = vadd.f32 0.0, %v4102
        %v4104 = vpop.f32.mrb[0].mxu0
        %v4105 = vpop.f32.mrb[0].mxu0
        %v4106 = vadd.f32 0.0, %v4105
        %v4107 = vpop.f32.mrb[0].mxu0
        %4108 = vmatprep.mubr.bf16.mxu0 0
        %4109 = vmatmul.mubr.bf16.gmra.mrb[0].mxu0 %v3969
        %v4110 = vpop.f32.mrb[0].mxu0
        %v4111 = vadd.f32 0.0, %v4110
        %v4112 = vpop.f32.mrb[0].mxu0
        %v4113 = vpop.f32.mrb[0].mxu0
        %v4114 = vadd.f32 0.0, %v4113
        %v4115 = vpop.f32.mrb[0].mxu0
        %4116 = vmatprep.mubr.bf16.mxu0 0
        %4117 = vmatmul.mubr.bf16.gmra.mrb[0].mxu0 %v3972
        %v4118 = vpop.f32.mrb[0].mxu0
        %v4119 = vadd.f32 0.0, %v4118
        %v4120 = vpop.f32.mrb[0].mxu0
        %v4121 = vpop.f32.mrb[0].mxu0
        %v4122 = vadd.f32 0.0, %v4121
        %v4123 = vpop.f32.mrb[0].mxu0
        %4124 = vmatprep.mubr.bf16.mxu0 0
        %4125 = vmatmul.mubr.bf16.gmra.mrb[0].mxu0 %v3975
        %v4126 = vpop.f32.mrb[0].mxu0
        %v4127 = vadd.f32 0.0, %v4126
        %v4128 = vpop.f32.mrb[0].mxu0
        %v4129 = vpop.f32.mrb[0].mxu0
        %v4130 = vadd.f32 0.0, %v4129
        %v4131 = vpop.f32.mrb[0].mxu0
        %4132 = vmatprep.mubr.bf16.mxu0 0
        %4133 = vmatmul.mubr.bf16.gmra.mrb[0].mxu0 %v3978
        %v4134 = vpop.f32.mrb[0].mxu0
        %v4135 = vadd.f32 0.0, %v4134
        %v4136 = vpop.f32.mrb[0].mxu0
        %v4137 = vpop.f32.mrb[0].mxu0
        %v4138 = vadd.f32 0.0, %v4137
        %v4139 = vpop.f32.mrb[0].mxu0
        %4140 = vdwg.mxu0
        %v4141 = vld [vmem:[#allocation3] sm:$0xff]
        %v4142 = vld [vmem:[#allocation3 + $0x8] sm:$0xff]
        %v4143 = vld [vmem:[#allocation3 + $0x10] sm:$0xff]
        %v4144 = vld [vmem:[#allocation3 + $0x18] sm:$0xff]
        %v4145 = vld [vmem:[#allocation3 + $0x20] sm:$0xff]
        %v4146 = vld [vmem:[#allocation3 + $0x28] sm:$0xff]
        %v4147 = vld [vmem:[#allocation3 + $0x30] sm:$0xff]
        %v4148 = vld [vmem:[#allocation3 + $0x38] sm:$0xff]
        %v4149 = vld [vmem:[#allocation3 + $0x40] sm:$0xff]
        %v4150 = vld [vmem:[#allocation3 + $0x48] sm:$0xff]
        %v4151 = vld [vmem:[#allocation3 + $0x50] sm:$0xff]
        %v4152 = vld [vmem:[#allocation3 + $0x58] sm:$0xff]
        %v4153 = vld [vmem:[#allocation3 + $0x60] sm:$0xff]
        %v4154 = vld [vmem:[#allocation3 + $0x68] sm:$0xff]
        %v4155 = vld [vmem:[#allocation3 + $0x70] sm:$0xff]
        %v4156 = vld [vmem:[#allocation3 + $0x78] sm:$0xff]
        %v4157 = vld [vmem:[#allocation3 + $0x80] sm:$0xff]
        %v4158 = vld [vmem:[#allocation3 + $0x88] sm:$0xff]
        %v4159 = vld [vmem:[#allocation3 + $0x90] sm:$0xff]
        %v4160 = vld [vmem:[#allocation3 + $0x98] sm:$0xff]
        %v4161 = vld [vmem:[#allocation3 + $0xa0] sm:$0xff]
        %v4162 = vld [vmem:[#allocation3 + $0xa8] sm:$0xff]
        %v4163 = vld [vmem:[#allocation3 + $0xb0] sm:$0xff]
        %v4164 = vld [vmem:[#allocation3 + $0xb8] sm:$0xff]
        %v4165 = vld [vmem:[#allocation3 + $0xc0] sm:$0xff]
        %v4166 = vld [vmem:[#allocation3 + $0xc8] sm:$0xff]
        %v4167 = vld [vmem:[#allocation3 + $0xd0] sm:$0xff]
        %v4168 = vld [vmem:[#allocation3 + $0xd8] sm:$0xff]
        %v4169 = vld [vmem:[#allocation3 + $0xe0] sm:$0xff]
        %v4170 = vld [vmem:[#allocation3 + $0xe8] sm:$0xff]
        %v4171 = vld [vmem:[#allocation3 + $0xf0] sm:$0xff]
        %v4172 = vld [vmem:[#allocation3 + $0xf8] sm:$0xff]
        %v4173 = vadd.f32 %v4141, %v4015
        %v4174 = vadd.f32 %v4142, %v4018
        %v4175 = vadd.f32 %v4143, %v4023
        %v4176 = vadd.f32 %v4144, %v4026
        %v4177 = vadd.f32 %v4145, %v4031
        %v4178 = vadd.f32 %v4146, %v4034
        %v4179 = vadd.f32 %v4147, %v4039
        %v4180 = vadd.f32 %v4148, %v4042
        %v4181 = vadd.f32 %v4149, %v4047
        %v4182 = vadd.f32 %v4150, %v4050
        %v4183 = vadd.f32 %v4151, %v4055
        %v4184 = vadd.f32 %v4152, %v4058
        %v4185 = vadd.f32 %v4153, %v4063
        %v4186 = vadd.f32 %v4154, %v4066
        %v4187 = vadd.f32 %v4155, %v4071
        %v4188 = vadd.f32 %v4156, %v4074
        %v4189 = vadd.f32 %v4157, %v4079
        %v4190 = vadd.f32 %v4158, %v4082
        %v4191 = vadd.f32 %v4159, %v4087
        %v4192 = vadd.f32 %v4160, %v4090
        %v4193 = vadd.f32 %v4161, %v4095
        %v4194 = vadd.f32 %v4162, %v4098
        %v4195 = vadd.f32 %v4163, %v4103
        %v4196 = vadd.f32 %v4164, %v4106
        %v4197 = vadd.f32 %v4165, %v4111
        %v4198 = vadd.f32 %v4166, %v4114
        %v4199 = vadd.f32 %v4167, %v4119
        %v4200 = vadd.f32 %v4168, %v4122
        %v4201 = vadd.f32 %v4169, %v4127
        %v4202 = vadd.f32 %v4170, %v4130
        %v4203 = vadd.f32 %v4171, %v4135
        %v4204 = vadd.f32 %v4172, %v4138
        %4205 = vst.msk [vmem:[#allocation3] sm:$0xff] %vm1373, %v4173
        %4206 = vst.msk [vmem:[#allocation3 + $0x8] sm:$0xff] %vm1373, %v4174
        %4207 = vst.msk [vmem:[#allocation3 + $0x10] sm:$0xff] %vm1373, %v4175
        %4208 = vst.msk [vmem:[#allocation3 + $0x18] sm:$0xff] %vm1373, %v4176
        %4209 = vst.msk [vmem:[#allocation3 + $0x20] sm:$0xff] %vm1373, %v4177
        %4210 = vst.msk [vmem:[#allocation3 + $0x28] sm:$0xff] %vm1373, %v4178
        %4211 = vst.msk [vmem:[#allocation3 + $0x30] sm:$0xff] %vm1373, %v4179
        %4212 = vst.msk [vmem:[#allocation3 + $0x38] sm:$0xff] %vm1373, %v4180
        %4213 = vst.msk [vmem:[#allocation3 + $0x40] sm:$0xff] %vm1373, %v4181
        %4214 = vst.msk [vmem:[#allocation3 + $0x48] sm:$0xff] %vm1373, %v4182
        %4215 = vst.msk [vmem:[#allocation3 + $0x50] sm:$0xff] %vm1373, %v4183
        %4216 = vst.msk [vmem:[#allocation3 + $0x58] sm:$0xff] %vm1373, %v4184
        %4217 = vst.msk [vmem:[#allocation3 + $0x60] sm:$0xff] %vm1373, %v4185
        %4218 = vst.msk [vmem:[#allocation3 + $0x68] sm:$0xff] %vm1373, %v4186
        %4219 = vst.msk [vmem:[#allocation3 + $0x70] sm:$0xff] %vm1373, %v4187
        %4220 = vst.msk [vmem:[#allocation3 + $0x78] sm:$0xff] %vm1373, %v4188
        %4221 = vst.msk [vmem:[#allocation3 + $0x80] sm:$0xff] %vm1373, %v4189
        %4222 = vst.msk [vmem:[#allocation3 + $0x88] sm:$0xff] %vm1373, %v4190
        %4223 = vst.msk [vmem:[#allocation3 + $0x90] sm:$0xff] %vm1373, %v4191
        %4224 = vst.msk [vmem:[#allocation3 + $0x98] sm:$0xff] %vm1373, %v4192
        %4225 = vst.msk [vmem:[#allocation3 + $0xa0] sm:$0xff] %vm1373, %v4193
        %4226 = vst.msk [vmem:[#allocation3 + $0xa8] sm:$0xff] %vm1373, %v4194
        %4227 = vst.msk [vmem:[#allocation3 + $0xb0] sm:$0xff] %vm1373, %v4195
        %4228 = vst.msk [vmem:[#allocation3 + $0xb8] sm:$0xff] %vm1373, %v4196
        %4229 = vst.msk [vmem:[#allocation3 + $0xc0] sm:$0xff] %vm1373, %v4197
        %4230 = vst.msk [vmem:[#allocation3 + $0xc8] sm:$0xff] %vm1373, %v4198
        %4231 = vst.msk [vmem:[#allocation3 + $0xd0] sm:$0xff] %vm1373, %v4199
        %4232 = vst.msk [vmem:[#allocation3 + $0xd8] sm:$0xff] %vm1373, %v4200
        %4233 = vst.msk [vmem:[#allocation3 + $0xe0] sm:$0xff] %vm1373, %v4201
        %4234 = vst.msk [vmem:[#allocation3 + $0xe8] sm:$0xff] %vm1373, %v4202
        %4235 = vst.msk [vmem:[#allocation3 + $0xf0] sm:$0xff] %vm1373, %v4203
        %4236 = vst.msk [vmem:[#allocation3 + $0xf8] sm:$0xff] %vm1373, %v4204
        %v4237 = vld [vmem:[%s1130] sm:$0xe]
        %v4238 = vld [vmem:[%s1130 + $0x4] sm:$0xf]
        %v4239 = vld [vmem:[%s1130 + $0x8] sm:$0x1]
        %v4240 = vld [vmem:[%s1130 + $0xc] sm:$0xe]
        %v4241 = vld [vmem:[%s1130 + $0x10] sm:$0xf]
        %v4242 = vld [vmem:[%s1130 + $0x14] sm:$0x1]
        %v4243 = vld [vmem:[%s1130 + $0x18] sm:$0xe]
        %v4244 = vld [vmem:[%s1130 + $0x1c] sm:$0xf]
        %v4245 = vld [vmem:[%s1130 + $0x20] sm:$0x1]
        %v4246 = vld [vmem:[%s1130 + $0x24] sm:$0xe]
        %v4247 = vld [vmem:[%s1130 + $0x28] sm:$0xf]
        %v4248 = vld [vmem:[%s1130 + $0x2c] sm:$0x1]
        %v4249 = vld [vmem:[%s1130 + $0x30] sm:$0xe]
        %v4250 = vld [vmem:[%s1130 + $0x34] sm:$0xf]
        %v4251 = vld [vmem:[%s1130 + $0x38] sm:$0x1]
        %v4252 = vld [vmem:[%s1130 + $0x3c] sm:$0xe]
        %v4253 = vld [vmem:[%s1130 + $0x40] sm:$0xf]
        %v4254 = vld [vmem:[%s1130 + $0x44] sm:$0x1]
        %v4255 = vld [vmem:[%s1130 + $0x48] sm:$0xe]
        %v4256 = vld [vmem:[%s1130 + $0x4c] sm:$0xf]
        %v4257 = vld [vmem:[%s1130 + $0x50] sm:$0x1]
        %v4258 = vld [vmem:[%s1130 + $0x54] sm:$0xe]
        %v4259 = vld [vmem:[%s1130 + $0x58] sm:$0xf]
        %v4260 = vld [vmem:[%s1130 + $0x5c] sm:$0x1]
        %v4261 = vld [vmem:[%s1130 + $0x60] sm:$0xe]
        %v4262 = vld [vmem:[%s1130 + $0x64] sm:$0xf]
        %v4263 = vld [vmem:[%s1130 + $0x68] sm:$0x1]
        %v4264 = vld [vmem:[%s1130 + $0x6c] sm:$0xe]
        %v4265 = vld [vmem:[%s1130 + $0x70] sm:$0xf]
        %v4266 = vld [vmem:[%s1130 + $0x74] sm:$0x1]
        %v4267 = vld [vmem:[%s1130 + $0x78] sm:$0xe]
        %v4268 = vld [vmem:[%s1130 + $0x7c] sm:$0xf]
        %v4269 = vld [vmem:[%s1130 + $0x80] sm:$0x1]
        %v4270 = vld [vmem:[%s1130 + $0x84] sm:$0xe]
        %v4271 = vld [vmem:[%s1130 + $0x88] sm:$0xf]
        %v4272 = vld [vmem:[%s1130 + $0x8c] sm:$0x1]
        %v4273 = vld [vmem:[%s1130 + $0x90] sm:$0xe]
        %v4274 = vld [vmem:[%s1130 + $0x94] sm:$0xf]
        %v4275 = vld [vmem:[%s1130 + $0x98] sm:$0x1]
        %v4276 = vld [vmem:[%s1130 + $0x9c] sm:$0xe]
        %v4277 = vld [vmem:[%s1130 + $0xa0] sm:$0xf]
        %v4278 = vld [vmem:[%s1130 + $0xa4] sm:$0x1]
        %v4279 = vld [vmem:[%s1130 + $0xa8] sm:$0xe]
        %v4280 = vld [vmem:[%s1130 + $0xac] sm:$0xf]
        %v4281 = vld [vmem:[%s1130 + $0xb0] sm:$0x1]
        %v4282 = vld [vmem:[%s1130 + $0xb4] sm:$0xe]
        %v4283 = vld [vmem:[%s1130 + $0xb8] sm:$0xf]
        %v4284 = vld [vmem:[%s1130 + $0xbc] sm:$0x1]
        %v4333 = vrot.slane %v4237, 5
        %v4334 = vrot.slane %v4333, 4
        %v4335 = vrot.slane %v4238, 5
        %v4336 = vsel %vm2518, %v4334, %v4335
        %v4337 = vrot.slane %v4335, 4
        %v4338 = vrot.slane %v4239, 5
        %v4339 = vsel %vm2518, %v4337, %v4338
        %v4340 = vrot.slane %v4240, 5
        %v4341 = vrot.slane %v4340, 4
        %v4342 = vrot.slane %v4241, 5
        %v4343 = vsel %vm2518, %v4341, %v4342
        %v4344 = vrot.slane %v4342, 4
        %v4345 = vrot.slane %v4242, 5
        %v4346 = vsel %vm2518, %v4344, %v4345
        %v4347 = vrot.slane %v4243, 5
        %v4348 = vrot.slane %v4347, 4
        %v4349 = vrot.slane %v4244, 5
        %v4350 = vsel %vm2518, %v4348, %v4349
        %v4351 = vrot.slane %v4349, 4
        %v4352 = vrot.slane %v4245, 5
        %v4353 = vsel %vm2518, %v4351, %v4352
        %v4354 = vrot.slane %v4246, 5
        %v4355 = vrot.slane %v4354, 4
        %v4356 = vrot.slane %v4247, 5
        %v4357 = vsel %vm2518, %v4355, %v4356
        %v4358 = vrot.slane %v4356, 4
        %v4359 = vrot.slane %v4248, 5
        %v4360 = vsel %vm2518, %v4358, %v4359
        %v4361 = vrot.slane %v4249, 5
        %v4362 = vrot.slane %v4361, 4
        %v4363 = vrot.slane %v4250, 5
        %v4364 = vsel %vm2518, %v4362, %v4363
        %v4365 = vrot.slane %v4363, 4
        %v4366 = vrot.slane %v4251, 5
        %v4367 = vsel %vm2518, %v4365, %v4366
        %v4368 = vrot.slane %v4252, 5
        %v4369 = vrot.slane %v4368, 4
        %v4370 = vrot.slane %v4253, 5
        %v4371 = vsel %vm2518, %v4369, %v4370
        %v4372 = vrot.slane %v4370, 4
        %v4373 = vrot.slane %v4254, 5
        %v4374 = vsel %vm2518, %v4372, %v4373
        %v4375 = vrot.slane %v4255, 5
        %v4376 = vrot.slane %v4375, 4
        %v4377 = vrot.slane %v4256, 5
        %v4378 = vsel %vm2518, %v4376, %v4377
        %v4379 = vrot.slane %v4377, 4
        %v4380 = vrot.slane %v4257, 5
        %v4381 = vsel %vm2518, %v4379, %v4380
        %v4382 = vrot.slane %v4258, 5
        %v4383 = vrot.slane %v4382, 4
        %v4384 = vrot.slane %v4259, 5
        %v4385 = vsel %vm2518, %v4383, %v4384
        %v4386 = vrot.slane %v4384, 4
        %v4387 = vrot.slane %v4260, 5
        %v4388 = vsel %vm2518, %v4386, %v4387
        %v4389 = vrot.slane %v4261, 5
        %v4390 = vrot.slane %v4389, 4
        %v4391 = vrot.slane %v4262, 5
        %v4392 = vsel %vm2518, %v4390, %v4391
        %v4393 = vrot.slane %v4391, 4
        %v4394 = vrot.slane %v4263, 5
        %v4395 = vsel %vm2518, %v4393, %v4394
        %v4396 = vrot.slane %v4264, 5
        %v4397 = vrot.slane %v4396, 4
        %v4398 = vrot.slane %v4265, 5
        %v4399 = vsel %vm2518, %v4397, %v4398
        %v4400 = vrot.slane %v4398, 4
        %v4401 = vrot.slane %v4266, 5
        %v4402 = vsel %vm2518, %v4400, %v4401
        %v4403 = vrot.slane %v4267, 5
        %v4404 = vrot.slane %v4403, 4
        %v4405 = vrot.slane %v4268, 5
        %v4406 = vsel %vm2518, %v4404, %v4405
        %v4407 = vrot.slane %v4405, 4
        %v4408 = vrot.slane %v4269, 5
        %v4409 = vsel %vm2518, %v4407, %v4408
        %v4410 = vrot.slane %v4270, 5
        %v4411 = vrot.slane %v4410, 4
        %v4412 = vrot.slane %v4271, 5
        %v4413 = vsel %vm2518, %v4411, %v4412
        %v4414 = vrot.slane %v4412, 4
        %v4415 = vrot.slane %v4272, 5
        %v4416 = vsel %vm2518, %v4414, %v4415
        %v4417 = vrot.slane %v4273, 5
        %v4418 = vrot.slane %v4417, 4
        %v4419 = vrot.slane %v4274, 5
        %v4420 = vsel %vm2518, %v4418, %v4419
        %v4421 = vrot.slane %v4419, 4
        %v4422 = vrot.slane %v4275, 5
        %v4423 = vsel %vm2518, %v4421, %v4422
        %v4424 = vrot.slane %v4276, 5
        %v4425 = vrot.slane %v4424, 4
        %v4426 = vrot.slane %v4277, 5
        %v4427 = vsel %vm2518, %v4425, %v4426
        %v4428 = vrot.slane %v4426, 4
        %v4429 = vrot.slane %v4278, 5
        %v4430 = vsel %vm2518, %v4428, %v4429
        %v4431 = vrot.slane %v4279, 5
        %v4432 = vrot.slane %v4431, 4
        %v4433 = vrot.slane %v4280, 5
        %v4434 = vsel %vm2518, %v4432, %v4433
        %v4435 = vrot.slane %v4433, 4
        %v4436 = vrot.slane %v4281, 5
        %v4437 = vsel %vm2518, %v4435, %v4436
        %v4438 = vrot.slane %v4282, 5
        %v4439 = vrot.slane %v4438, 4
        %v4440 = vrot.slane %v4283, 5
        %v4441 = vsel %vm2518, %v4439, %v4440
        %v4442 = vrot.slane %v4440, 4
        %v4443 = vrot.slane %v4284, 5
        %v4444 = vsel %vm2518, %v4442, %v4443
        %s4445 = scalar_lea.vmem %s3, 80
        %v4446 = vld [vmem:[%s4445] sm:$0xf]
        %v4447 = vld [vmem:[%s4445 + $0x4] sm:$0xf]
        %v4448 = vld [vmem:[%s4445 + $0x8] sm:$0xf]
        %v4449 = vld [vmem:[%s4445 + $0xc] sm:$0xf]
        %v4450 = vunpack.c.l.b16 %v4336
        %v4451 = vunpack.c.l.b16 %v4339
        %v4452 = vunpack.c.l.b16 %v4343
        %v4453 = vunpack.c.l.b16 %v4346
        %v4454 = vunpack.c.l.b16 %v4350
        %v4455 = vunpack.c.l.b16 %v4353
        %v4456 = vunpack.c.l.b16 %v4357
        %v4457 = vunpack.c.l.b16 %v4360
        %v4458 = vunpack.c.l.b16 %v4364
        %v4459 = vunpack.c.l.b16 %v4367
        %v4460 = vunpack.c.l.b16 %v4371
        %v4461 = vunpack.c.l.b16 %v4374
        %v4462 = vunpack.c.l.b16 %v4378
        %v4463 = vunpack.c.l.b16 %v4381
        %v4464 = vunpack.c.l.b16 %v4385
        %v4465 = vunpack.c.l.b16 %v4388
        %v4466 = vunpack.c.l.b16 %v4392
        %v4467 = vunpack.c.l.b16 %v4395
        %v4468 = vunpack.c.l.b16 %v4399
        %v4469 = vunpack.c.l.b16 %v4402
        %v4470 = vunpack.c.l.b16 %v4406
        %v4471 = vunpack.c.l.b16 %v4409
        %v4472 = vunpack.c.l.b16 %v4413
        %v4473 = vunpack.c.l.b16 %v4416
        %v4474 = vunpack.c.l.b16 %v4420
        %v4475 = vunpack.c.l.b16 %v4423
        %v4476 = vunpack.c.l.b16 %v4427
        %v4477 = vunpack.c.l.b16 %v4430
        %v4478 = vunpack.c.l.b16 %v4434
        %v4479 = vunpack.c.l.b16 %v4437
        %v4480 = vunpack.c.l.b16 %v4441
        %v4481 = vunpack.c.l.b16 %v4444
        %v4482 = vpack.c.b16 %v4451, %v4450
        %v4483 = vpack.c.b16 %v4453, %v4452
        %v4484 = vpack.c.b16 %v4455, %v4454
        %v4485 = vpack.c.b16 %v4457, %v4456
        %v4486 = vpack.c.b16 %v4459, %v4458
        %v4487 = vpack.c.b16 %v4461, %v4460
        %v4488 = vpack.c.b16 %v4463, %v4462
        %v4489 = vpack.c.b16 %v4465, %v4464
        %v4490 = vpack.c.b16 %v4467, %v4466
        %v4491 = vpack.c.b16 %v4469, %v4468
        %v4492 = vpack.c.b16 %v4471, %v4470
        %v4493 = vpack.c.b16 %v4473, %v4472
        %v4494 = vpack.c.b16 %v4475, %v4474
        %v4495 = vpack.c.b16 %v4477, %v4476
        %v4496 = vpack.c.b16 %v4479, %v4478
        %v4497 = vpack.c.b16 %v4481, %v4480
        %v4502 = vunpack.c.l.b16 %v4446
        %v4503 = vunpack.c.l.b16 %v4447
        %v4504 = vunpack.c.l.b16 %v4448
        %v4505 = vunpack.c.l.b16 %v4449
        %v4506 = vpack.c.b16 %v4503, %v4502
        %v4507 = vpack.c.b16 %v4505, %v4504
        %v4511 = vsel %vm1373, %v4482, 0
        %v4514 = vsel %vm1373, %v4483, 0
        %v4517 = vsel %vm1373, %v4484, 0
        %v4520 = vsel %vm1373, %v4485, 0
        %v4523 = vsel %vm1373, %v4486, 0
        %v4526 = vsel %vm1373, %v4487, 0
        %v4529 = vsel %vm1373, %v4488, 0
        %v4532 = vsel %vm1373, %v4489, 0
        %v4535 = vsel %vm1373, %v4490, 0
        %v4538 = vsel %vm1373, %v4491, 0
        %v4541 = vsel %vm1373, %v4492, 0
        %v4544 = vsel %vm1373, %v4493, 0
        %v4547 = vsel %vm1373, %v4494, 0
        %v4550 = vsel %vm1373, %v4495, 0
        %v4553 = vsel %vm1373, %v4496, 0
        %v4556 = vsel %vm1373, %v4497, 0
        %4558 = vmatprep.subr.bf16.mxu0 0
        %4559 = vmatpush1.bf16.msra.mxu0 %v4506
        %4560 = vmatprep.subr.bf16.mxu0 0
        %4561 = vmatpush1.bf16.msra.mxu0 %v4507
        %4562 = vmatprep.subr.bf16.mxu0 0
        %4563 = vmatpush1.bf16.msra.mxu0 0
        %4564 = vmatprep.subr.bf16.mxu0 0
        %4565 = vmatpush1.bf16.msra.mxu0 0
        %4566 = vmatprep.subr.bf16.mxu0 0
        %4567 = vmatpush1.bf16.msra.mxu0 0
        %4568 = vmatprep.subr.bf16.mxu0 0
        %4569 = vmatpush1.bf16.msra.mxu0 0
        %4570 = vmatprep.subr.bf16.mxu0 0
        %4571 = vmatpush1.bf16.msra.mxu0 0
        %4572 = vmatprep.subr.bf16.mxu0 0
        %4573 = vmatpush1.bf16.msra.mxu0 0
        %4574 = vmatprep.subr.bf16.mxu0 0
        %4575 = vmatpush1.bf16.msra.mxu0 0
        %4576 = vmatprep.subr.bf16.mxu0 0
        %4577 = vmatpush1.bf16.msra.mxu0 0
        %4578 = vmatprep.subr.bf16.mxu0 0
        %4579 = vmatpush1.bf16.msra.mxu0 0
        %4580 = vmatprep.subr.bf16.mxu0 0
        %4581 = vmatpush1.bf16.msra.mxu0 0
        %4582 = vmatprep.subr.bf16.mxu0 0
        %4583 = vmatpush1.bf16.msra.mxu0 0
        %4584 = vmatprep.subr.bf16.mxu0 0
        %4585 = vmatpush1.bf16.msra.mxu0 0
        %4586 = vmatprep.subr.bf16.mxu0 0
        %4587 = vmatpush1.bf16.msra.mxu0 0
        %4588 = vmatprep.subr.bf16.mxu0 0
        %4589 = vmatpush1.bf16.msra.mxu0 0
        %4590 = vmatprep.mubr.bf16.mxu0 0
        %4591 = vmatmul.mubr.bf16.gmra.mrb[0].mxu0 %v4511
        %v4592 = vpop.f32.mrb[0].mxu0
        %v4593 = vadd.f32 0.0, %v4592
        %v4594 = vpop.f32.mrb[0].mxu0
        %v4595 = vpop.f32.mrb[0].mxu0
        %v4596 = vadd.f32 0.0, %v4595
        %v4597 = vpop.f32.mrb[0].mxu0
        %4598 = vmatprep.mubr.bf16.mxu0 0
        %4599 = vmatmul.mubr.bf16.gmra.mrb[0].mxu0 %v4514
        %v4600 = vpop.f32.mrb[0].mxu0
        %v4601 = vadd.f32 0.0, %v4600
        %v4602 = vpop.f32.mrb[0].mxu0
        %v4603 = vpop.f32.mrb[0].mxu0
        %v4604 = vadd.f32 0.0, %v4603
        %v4605 = vpop.f32.mrb[0].mxu0
        %4606 = vmatprep.mubr.bf16.mxu0 0
        %4607 = vmatmul.mubr.bf16.gmra.mrb[0].mxu0 %v4517
        %v4608 = vpop.f32.mrb[0].mxu0
        %v4609 = vadd.f32 0.0, %v4608
        %v4610 = vpop.f32.mrb[0].mxu0
        %v4611 = vpop.f32.mrb[0].mxu0
        %v4612 = vadd.f32 0.0, %v4611
        %v4613 = vpop.f32.mrb[0].mxu0
        %4614 = vmatprep.mubr.bf16.mxu0 0
        %4615 = vmatmul.mubr.bf16.gmra.mrb[0].mxu0 %v4520
        %v4616 = vpop.f32.mrb[0].mxu0
        %v4617 = vadd.f32 0.0, %v4616
        %v4618 = vpop.f32.mrb[0].mxu0
        %v4619 = vpop.f32.mrb[0].mxu0
        %v4620 = vadd.f32 0.0, %v4619
        %v4621 = vpop.f32.mrb[0].mxu0
        %4622 = vmatprep.mubr.bf16.mxu0 0
        %4623 = vmatmul.mubr.bf16.gmra.mrb[0].mxu0 %v4523
        %v4624 = vpop.f32.mrb[0].mxu0
        %v4625 = vadd.f32 0.0, %v4624
        %v4626 = vpop.f32.mrb[0].mxu0
        %v4627 = vpop.f32.mrb[0].mxu0
        %v4628 = vadd.f32 0.0, %v4627
        %v4629 = vpop.f32.mrb[0].mxu0
        %4630 = vmatprep.mubr.bf16.mxu0 0
        %4631 = vmatmul.mubr.bf16.gmra.mrb[0].mxu0 %v4526
        %v4632 = vpop.f32.mrb[0].mxu0
        %v4633 = vadd.f32 0.0, %v4632
        %v4634 = vpop.f32.mrb[0].mxu0
        %v4635 = vpop.f32.mrb[0].mxu0
        %v4636 = vadd.f32 0.0, %v4635
        %v4637 = vpop.f32.mrb[0].mxu0
        %4638 = vmatprep.mubr.bf16.mxu0 0
        %4639 = vmatmul.mubr.bf16.gmra.mrb[0].mxu0 %v4529
        %v4640 = vpop.f32.mrb[0].mxu0
        %v4641 = vadd.f32 0.0, %v4640
        %v4642 = vpop.f32.mrb[0].mxu0
        %v4643 = vpop.f32.mrb[0].mxu0
        %v4644 = vadd.f32 0.0, %v4643
        %v4645 = vpop.f32.mrb[0].mxu0
        %4646 = vmatprep.mubr.bf16.mxu0 0
        %4647 = vmatmul.mubr.bf16.gmra.mrb[0].mxu0 %v4532
        %v4648 = vpop.f32.mrb[0].mxu0
        %v4649 = vadd.f32 0.0, %v4648
        %v4650 = vpop.f32.mrb[0].mxu0
        %v4651 = vpop.f32.mrb[0].mxu0
        %v4652 = vadd.f32 0.0, %v4651
        %v4653 = vpop.f32.mrb[0].mxu0
        %4654 = vmatprep.mubr.bf16.mxu0 0
        %4655 = vmatmul.mubr.bf16.gmra.mrb[0].mxu0 %v4535
        %v4656 = vpop.f32.mrb[0].mxu0
        %v4657 = vadd.f32 0.0, %v4656
        %v4658 = vpop.f32.mrb[0].mxu0
        %v4659 = vpop.f32.mrb[0].mxu0
        %v4660 = vadd.f32 0.0, %v4659
        %v4661 = vpop.f32.mrb[0].mxu0
        %4662 = vmatprep.mubr.bf16.mxu0 0
        %4663 = vmatmul.mubr.bf16.gmra.mrb[0].mxu0 %v4538
        %v4664 = vpop.f32.mrb[0].mxu0
        %v4665 = vadd.f32 0.0, %v4664
        %v4666 = vpop.f32.mrb[0].mxu0
        %v4667 = vpop.f32.mrb[0].mxu0
        %v4668 = vadd.f32 0.0, %v4667
        %v4669 = vpop.f32.mrb[0].mxu0
        %4670 = vmatprep.mubr.bf16.mxu0 0
        %4671 = vmatmul.mubr.bf16.gmra.mrb[0].mxu0 %v4541
        %v4672 = vpop.f32.mrb[0].mxu0
        %v4673 = vadd.f32 0.0, %v4672
        %v4674 = vpop.f32.mrb[0].mxu0
        %v4675 = vpop.f32.mrb[0].mxu0
        %v4676 = vadd.f32 0.0, %v4675
        %v4677 = vpop.f32.mrb[0].mxu0
        %4678 = vmatprep.mubr.bf16.mxu0 0
        %4679 = vmatmul.mubr.bf16.gmra.mrb[0].mxu0 %v4544
        %v4680 = vpop.f32.mrb[0].mxu0
        %v4681 = vadd.f32 0.0, %v4680
        %v4682 = vpop.f32.mrb[0].mxu0
        %v4683 = vpop.f32.mrb[0].mxu0
        %v4684 = vadd.f32 0.0, %v4683
        %v4685 = vpop.f32.mrb[0].mxu0
        %4686 = vmatprep.mubr.bf16.mxu0 0
        %4687 = vmatmul.mubr.bf16.gmra.mrb[0].mxu0 %v4547
        %v4688 = vpop.f32.mrb[0].mxu0
        %v4689 = vadd.f32 0.0, %v4688
        %v4690 = vpop.f32.mrb[0].mxu0
        %v4691 = vpop.f32.mrb[0].mxu0
        %v4692 = vadd.f32 0.0, %v4691
        %v4693 = vpop.f32.mrb[0].mxu0
        %4694 = vmatprep.mubr.bf16.mxu0 0
        %4695 = vmatmul.mubr.bf16.gmra.mrb[0].mxu0 %v4550
        %v4696 = vpop.f32.mrb[0].mxu0
        %v4697 = vadd.f32 0.0, %v4696
        %v4698 = vpop.f32.mrb[0].mxu0
        %v4699 = vpop.f32.mrb[0].mxu0
        %v4700 = vadd.f32 0.0, %v4699
        %v4701 = vpop.f32.mrb[0].mxu0
        %4702 = vmatprep.mubr.bf16.mxu0 0
        %4703 = vmatmul.mubr.bf16.gmra.mrb[0].mxu0 %v4553
        %v4704 = vpop.f32.mrb[0].mxu0
        %v4705 = vadd.f32 0.0, %v4704
        %v4706 = vpop.f32.mrb[0].mxu0
        %v4707 = vpop.f32.mrb[0].mxu0
        %v4708 = vadd.f32 0.0, %v4707
        %v4709 = vpop.f32.mrb[0].mxu0
        %4710 = vmatprep.mubr.bf16.mxu0 0
        %4711 = vmatmul.mubr.bf16.gmra.mrb[0].mxu0 %v4556
        %v4712 = vpop.f32.mrb[0].mxu0
        %v4713 = vadd.f32 0.0, %v4712
        %v4714 = vpop.f32.mrb[0].mxu0
        %v4715 = vpop.f32.mrb[0].mxu0
        %v4716 = vadd.f32 0.0, %v4715
        %v4717 = vpop.f32.mrb[0].mxu0
        %4718 = vdwg.mxu0
        %v4719 = vld [vmem:[#allocation3] sm:$0xff]
        %v4720 = vld [vmem:[#allocation3 + $0x8] sm:$0xff]
        %v4721 = vld [vmem:[#allocation3 + $0x10] sm:$0xff]
        %v4722 = vld [vmem:[#allocation3 + $0x18] sm:$0xff]
        %v4723 = vld [vmem:[#allocation3 + $0x20] sm:$0xff]
        %v4724 = vld [vmem:[#allocation3 + $0x28] sm:$0xff]
        %v4725 = vld [vmem:[#allocation3 + $0x30] sm:$0xff]
        %v4726 = vld [vmem:[#allocation3 + $0x38] sm:$0xff]
        %v4727 = vld [vmem:[#allocation3 + $0x40] sm:$0xff]
        %v4728 = vld [vmem:[#allocation3 + $0x48] sm:$0xff]
        %v4729 = vld [vmem:[#allocation3 + $0x50] sm:$0xff]
        %v4730 = vld [vmem:[#allocation3 + $0x58] sm:$0xff]
        %v4731 = vld [vmem:[#allocation3 + $0x60] sm:$0xff]
        %v4732 = vld [vmem:[#allocation3 + $0x68] sm:$0xff]
        %v4733 = vld [vmem:[#allocation3 + $0x70] sm:$0xff]
        %v4734 = vld [vmem:[#allocation3 + $0x78] sm:$0xff]
        %v4735 = vld [vmem:[#allocation3 + $0x80] sm:$0xff]
        %v4736 = vld [vmem:[#allocation3 + $0x88] sm:$0xff]
        %v4737 = vld [vmem:[#allocation3 + $0x90] sm:$0xff]
        %v4738 = vld [vmem:[#allocation3 + $0x98] sm:$0xff]
        %v4739 = vld [vmem:[#allocation3 + $0xa0] sm:$0xff]
        %v4740 = vld [vmem:[#allocation3 + $0xa8] sm:$0xff]
        %v4741 = vld [vmem:[#allocation3 + $0xb0] sm:$0xff]
        %v4742 = vld [vmem:[#allocation3 + $0xb8] sm:$0xff]
        %v4743 = vld [vmem:[#allocation3 + $0xc0] sm:$0xff]
        %v4744 = vld [vmem:[#allocation3 + $0xc8] sm:$0xff]
        %v4745 = vld [vmem:[#allocation3 + $0xd0] sm:$0xff]
        %v4746 = vld [vmem:[#allocation3 + $0xd8] sm:$0xff]
        %v4747 = vld [vmem:[#allocation3 + $0xe0] sm:$0xff]
        %v4748 = vld [vmem:[#allocation3 + $0xe8] sm:$0xff]
        %v4749 = vld [vmem:[#allocation3 + $0xf0] sm:$0xff]
        %v4750 = vld [vmem:[#allocation3 + $0xf8] sm:$0xff]
        %v4751 = vadd.f32 %v4719, %v4593
        %v4752 = vadd.f32 %v4720, %v4596
        %v4753 = vadd.f32 %v4721, %v4601
        %v4754 = vadd.f32 %v4722, %v4604
        %v4755 = vadd.f32 %v4723, %v4609
        %v4756 = vadd.f32 %v4724, %v4612
        %v4757 = vadd.f32 %v4725, %v4617
        %v4758 = vadd.f32 %v4726, %v4620
        %v4759 = vadd.f32 %v4727, %v4625
        %v4760 = vadd.f32 %v4728, %v4628
        %v4761 = vadd.f32 %v4729, %v4633
        %v4762 = vadd.f32 %v4730, %v4636
        %v4763 = vadd.f32 %v4731, %v4641
        %v4764 = vadd.f32 %v4732, %v4644
        %v4765 = vadd.f32 %v4733, %v4649
        %v4766 = vadd.f32 %v4734, %v4652
        %v4767 = vadd.f32 %v4735, %v4657
        %v4768 = vadd.f32 %v4736, %v4660
        %v4769 = vadd.f32 %v4737, %v4665
        %v4770 = vadd.f32 %v4738, %v4668
        %v4771 = vadd.f32 %v4739, %v4673
        %v4772 = vadd.f32 %v4740, %v4676
        %v4773 = vadd.f32 %v4741, %v4681
        %v4774 = vadd.f32 %v4742, %v4684
        %v4775 = vadd.f32 %v4743, %v4689
        %v4776 = vadd.f32 %v4744, %v4692
        %v4777 = vadd.f32 %v4745, %v4697
        %v4778 = vadd.f32 %v4746, %v4700
        %v4779 = vadd.f32 %v4747, %v4705
        %v4780 = vadd.f32 %v4748, %v4708
        %v4781 = vadd.f32 %v4749, %v4713
        %v4782 = vadd.f32 %v4750, %v4716
        %4783 = vst.msk [vmem:[#allocation3] sm:$0xff] %vm1373, %v4751
        %4784 = vst.msk [vmem:[#allocation3 + $0x8] sm:$0xff] %vm1373, %v4752
        %4785 = vst.msk [vmem:[#allocation3 + $0x10] sm:$0xff] %vm1373, %v4753
        %4786 = vst.msk [vmem:[#allocation3 + $0x18] sm:$0xff] %vm1373, %v4754
        %4787 = vst.msk [vmem:[#allocation3 + $0x20] sm:$0xff] %vm1373, %v4755
        %4788 = vst.msk [vmem:[#allocation3 + $0x28] sm:$0xff] %vm1373, %v4756
        %4789 = vst.msk [vmem:[#allocation3 + $0x30] sm:$0xff] %vm1373, %v4757
        %4790 = vst.msk [vmem:[#allocation3 + $0x38] sm:$0xff] %vm1373, %v4758
        %4791 = vst.msk [vmem:[#allocation3 + $0x40] sm:$0xff] %vm1373, %v4759
        %4792 = vst.msk [vmem:[#allocation3 + $0x48] sm:$0xff] %vm1373, %v4760
        %4793 = vst.msk [vmem:[#allocation3 + $0x50] sm:$0xff] %vm1373, %v4761
        %4794 = vst.msk [vmem:[#allocation3 + $0x58] sm:$0xff] %vm1373, %v4762
        %4795 = vst.msk [vmem:[#allocation3 + $0x60] sm:$0xff] %vm1373, %v4763
        %4796 = vst.msk [vmem:[#allocation3 + $0x68] sm:$0xff] %vm1373, %v4764
        %4797 = vst.msk [vmem:[#allocation3 + $0x70] sm:$0xff] %vm1373, %v4765
        %4798 = vst.msk [vmem:[#allocation3 + $0x78] sm:$0xff] %vm1373, %v4766
        %4799 = vst.msk [vmem:[#allocation3 + $0x80] sm:$0xff] %vm1373, %v4767
        %4800 = vst.msk [vmem:[#allocation3 + $0x88] sm:$0xff] %vm1373, %v4768
        %4801 = vst.msk [vmem:[#allocation3 + $0x90] sm:$0xff] %vm1373, %v4769
        %4802 = vst.msk [vmem:[#allocation3 + $0x98] sm:$0xff] %vm1373, %v4770
        %4803 = vst.msk [vmem:[#allocation3 + $0xa0] sm:$0xff] %vm1373, %v4771
        %4804 = vst.msk [vmem:[#allocation3 + $0xa8] sm:$0xff] %vm1373, %v4772
        %4805 = vst.msk [vmem:[#allocation3 + $0xb0] sm:$0xff] %vm1373, %v4773
        %4806 = vst.msk [vmem:[#allocation3 + $0xb8] sm:$0xff] %vm1373, %v4774
        %4807 = vst.msk [vmem:[#allocation3 + $0xc0] sm:$0xff] %vm1373, %v4775
        %4808 = vst.msk [vmem:[#allocation3 + $0xc8] sm:$0xff] %vm1373, %v4776
        %4809 = vst.msk [vmem:[#allocation3 + $0xd0] sm:$0xff] %vm1373, %v4777
        %4810 = vst.msk [vmem:[#allocation3 + $0xd8] sm:$0xff] %vm1373, %v4778
        %4811 = vst.msk [vmem:[#allocation3 + $0xe0] sm:$0xff] %vm1373, %v4779
        %4812 = vst.msk [vmem:[#allocation3 + $0xe8] sm:$0xff] %vm1373, %v4780
        %4813 = vst.msk [vmem:[#allocation3 + $0xf0] sm:$0xff] %vm1373, %v4781
        %4814 = vst.msk [vmem:[#allocation3 + $0xf8] sm:$0xff] %vm1373, %v4782
        %s4815 = scalar_lea.vmem [#allocation2], 24
        %v4816 = vld [vmem:[%s4815] sm:$0xf]
        %v4817 = vld [vmem:[%s4815 + $0x4] sm:$0xf]
        %v4818 = vld [vmem:[%s4815 + $0xc] sm:$0xf]
        %v4819 = vld [vmem:[%s4815 + $0x10] sm:$0xf]
        %v4820 = vld [vmem:[%s4815 + $0x18] sm:$0xf]
        %v4821 = vld [vmem:[%s4815 + $0x1c] sm:$0xf]
        %v4822 = vld [vmem:[%s4815 + $0x24] sm:$0xf]
        %v4823 = vld [vmem:[%s4815 + $0x28] sm:$0xf]
        %v4824 = vld [vmem:[%s4815 + $0x30] sm:$0xf]
        %v4825 = vld [vmem:[%s4815 + $0x34] sm:$0xf]
        %v4826 = vld [vmem:[%s4815 + $0x3c] sm:$0xf]
        %v4827 = vld [vmem:[%s4815 + $0x40] sm:$0xf]
        %v4828 = vld [vmem:[%s4815 + $0x48] sm:$0xf]
        %v4829 = vld [vmem:[%s4815 + $0x4c] sm:$0xf]
        %v4830 = vld [vmem:[%s4815 + $0x54] sm:$0xf]
        %v4831 = vld [vmem:[%s4815 + $0x58] sm:$0xf]
        %v4832 = vld [vmem:[%s4815 + $0x60] sm:$0xf]
        %v4833 = vld [vmem:[%s4815 + $0x64] sm:$0xf]
        %v4834 = vld [vmem:[%s4815 + $0x6c] sm:$0xf]
        %v4835 = vld [vmem:[%s4815 + $0x70] sm:$0xf]
        %v4836 = vld [vmem:[%s4815 + $0x78] sm:$0xf]
        %v4837 = vld [vmem:[%s4815 + $0x7c] sm:$0xf]
        %v4838 = vld [vmem:[%s4815 + $0x84] sm:$0xf]
        %v4839 = vld [vmem:[%s4815 + $0x88] sm:$0xf]
        %v4840 = vld [vmem:[%s4815 + $0x90] sm:$0xf]
        %v4841 = vld [vmem:[%s4815 + $0x94] sm:$0xf]
        %v4842 = vld [vmem:[%s4815 + $0x9c] sm:$0xf]
        %v4843 = vld [vmem:[%s4815 + $0xa0] sm:$0xf]
        %v4844 = vld [vmem:[%s4815 + $0xa8] sm:$0xf]
        %v4845 = vld [vmem:[%s4815 + $0xac] sm:$0xf]
        %v4846 = vld [vmem:[%s4815 + $0xb4] sm:$0xf]
        %v4847 = vld [vmem:[%s4815 + $0xb8] sm:$0xf]
        %s4848 = scalar_lea.vmem %s3, 96
        %v4849 = vld [vmem:[%s4848] sm:$0xf]
        %v4850 = vld [vmem:[%s4848 + $0x4] sm:$0xf]
        %v4851 = vld [vmem:[%s4848 + $0x8] sm:$0xf]
        %v4852 = vld [vmem:[%s4848 + $0xc] sm:$0xf]
        %v4885 = vunpack.c.l.b16 %v4816
        %v4886 = vunpack.c.l.b16 %v4817
        %v4887 = vunpack.c.l.b16 %v4818
        %v4888 = vunpack.c.l.b16 %v4819
        %v4889 = vunpack.c.l.b16 %v4820
        %v4890 = vunpack.c.l.b16 %v4821
        %v4891 = vunpack.c.l.b16 %v4822
        %v4892 = vunpack.c.l.b16 %v4823
        %v4893 = vunpack.c.l.b16 %v4824
        %v4894 = vunpack.c.l.b16 %v4825
        %v4895 = vunpack.c.l.b16 %v4826
        %v4896 = vunpack.c.l.b16 %v4827
        %v4897 = vunpack.c.l.b16 %v4828
        %v4898 = vunpack.c.l.b16 %v4829
        %v4899 = vunpack.c.l.b16 %v4830
        %v4900 = vunpack.c.l.b16 %v4831
        %v4901 = vunpack.c.l.b16 %v4832
        %v4902 = vunpack.c.l.b16 %v4833
        %v4903 = vunpack.c.l.b16 %v4834
        %v4904 = vunpack.c.l.b16 %v4835
        %v4905 = vunpack.c.l.b16 %v4836
        %v4906 = vunpack.c.l.b16 %v4837
        %v4907 = vunpack.c.l.b16 %v4838
        %v4908 = vunpack.c.l.b16 %v4839
        %v4909 = vunpack.c.l.b16 %v4840
        %v4910 = vunpack.c.l.b16 %v4841
        %v4911 = vunpack.c.l.b16 %v4842
        %v4912 = vunpack.c.l.b16 %v4843
        %v4913 = vunpack.c.l.b16 %v4844
        %v4914 = vunpack.c.l.b16 %v4845
        %v4915 = vunpack.c.l.b16 %v4846
        %v4916 = vunpack.c.l.b16 %v4847
        %v4917 = vpack.c.b16 %v4886, %v4885
        %v4918 = vpack.c.b16 %v4888, %v4887
        %v4919 = vpack.c.b16 %v4890, %v4889
        %v4920 = vpack.c.b16 %v4892, %v4891
        %v4921 = vpack.c.b16 %v4894, %v4893
        %v4922 = vpack.c.b16 %v4896, %v4895
        %v4923 = vpack.c.b16 %v4898, %v4897
        %v4924 = vpack.c.b16 %v4900, %v4899
        %v4925 = vpack.c.b16 %v4902, %v4901
        %v4926 = vpack.c.b16 %v4904, %v4903
        %v4927 = vpack.c.b16 %v4906, %v4905
        %v4928 = vpack.c.b16 %v4908, %v4907
        %v4929 = vpack.c.b16 %v4910, %v4909
        %v4930 = vpack.c.b16 %v4912, %v4911
        %v4931 = vpack.c.b16 %v4914, %v4913
        %v4932 = vpack.c.b16 %v4916, %v4915
        %v4937 = vunpack.c.l.b16 %v4849
        %v4938 = vunpack.c.l.b16 %v4850
        %v4939 = vunpack.c.l.b16 %v4851
        %v4940 = vunpack.c.l.b16 %v4852
        %v4941 = vpack.c.b16 %v4938, %v4937
        %v4942 = vpack.c.b16 %v4940, %v4939
        %v4946 = vsel %vm1373, %v4917, 0
        %v4949 = vsel %vm1373, %v4918, 0
        %v4952 = vsel %vm1373, %v4919, 0
        %v4955 = vsel %vm1373, %v4920, 0
        %v4958 = vsel %vm1373, %v4921, 0
        %v4961 = vsel %vm1373, %v4922, 0
        %v4964 = vsel %vm1373, %v4923, 0
        %v4967 = vsel %vm1373, %v4924, 0
        %v4970 = vsel %vm1373, %v4925, 0
        %v4973 = vsel %vm1373, %v4926, 0
        %v4976 = vsel %vm1373, %v4927, 0
        %v4979 = vsel %vm1373, %v4928, 0
        %v4982 = vsel %vm1373, %v4929, 0
        %v4985 = vsel %vm1373, %v4930, 0
        %v4988 = vsel %vm1373, %v4931, 0
        %v4991 = vsel %vm1373, %v4932, 0
        %4993 = vmatprep.subr.bf16.mxu0 0
        %4994 = vmatpush1.bf16.msra.mxu0 %v4941
        %4995 = vmatprep.subr.bf16.mxu0 0
        %4996 = vmatpush1.bf16.msra.mxu0 %v4942
        %4997 = vmatprep.subr.bf16.mxu0 0
        %4998 = vmatpush1.bf16.msra.mxu0 0
        %4999 = vmatprep.subr.bf16.mxu0 0
        %5000 = vmatpush1.bf16.msra.mxu0 0
        %5001 = vmatprep.subr.bf16.mxu0 0
        %5002 = vmatpush1.bf16.msra.mxu0 0
        %5003 = vmatprep.subr.bf16.mxu0 0
        %5004 = vmatpush1.bf16.msra.mxu0 0
        %5005 = vmatprep.subr.bf16.mxu0 0
        %5006 = vmatpush1.bf16.msra.mxu0 0
        %5007 = vmatprep.subr.bf16.mxu0 0
        %5008 = vmatpush1.bf16.msra.mxu0 0
        %5009 = vmatprep.subr.bf16.mxu0 0
        %5010 = vmatpush1.bf16.msra.mxu0 0
        %5011 = vmatprep.subr.bf16.mxu0 0
        %5012 = vmatpush1.bf16.msra.mxu0 0
        %5013 = vmatprep.subr.bf16.mxu0 0
        %5014 = vmatpush1.bf16.msra.mxu0 0
        %5015 = vmatprep.subr.bf16.mxu0 0
        %5016 = vmatpush1.bf16.msra.mxu0 0
        %5017 = vmatprep.subr.bf16.mxu0 0
        %5018 = vmatpush1.bf16.msra.mxu0 0
        %5019 = vmatprep.subr.bf16.mxu0 0
        %5020 = vmatpush1.bf16.msra.mxu0 0
        %5021 = vmatprep.subr.bf16.mxu0 0
        %5022 = vmatpush1.bf16.msra.mxu0 0
        %5023 = vmatprep.subr.bf16.mxu0 0
        %5024 = vmatpush1.bf16.msra.mxu0 0
        %5025 = vmatprep.mubr.bf16.mxu0 0
        %5026 = vmatmul.mubr.bf16.gmra.mrb[0].mxu0 %v4946
        %v5027 = vpop.f32.mrb[0].mxu0
        %v5028 = vadd.f32 0.0, %v5027
        %v5029 = vpop.f32.mrb[0].mxu0
        %v5030 = vpop.f32.mrb[0].mxu0
        %v5031 = vadd.f32 0.0, %v5030
        %v5032 = vpop.f32.mrb[0].mxu0
        %5033 = vmatprep.mubr.bf16.mxu0 0
        %5034 = vmatmul.mubr.bf16.gmra.mrb[0].mxu0 %v4949
        %v5035 = vpop.f32.mrb[0].mxu0
        %v5036 = vadd.f32 0.0, %v5035
        %v5037 = vpop.f32.mrb[0].mxu0
        %v5038 = vpop.f32.mrb[0].mxu0
        %v5039 = vadd.f32 0.0, %v5038
        %v5040 = vpop.f32.mrb[0].mxu0
        %5041 = vmatprep.mubr.bf16.mxu0 0
        %5042 = vmatmul.mubr.bf16.gmra.mrb[0].mxu0 %v4952
        %v5043 = vpop.f32.mrb[0].mxu0
        %v5044 = vadd.f32 0.0, %v5043
        %v5045 = vpop.f32.mrb[0].mxu0
        %v5046 = vpop.f32.mrb[0].mxu0
        %v5047 = vadd.f32 0.0, %v5046
        %v5048 = vpop.f32.mrb[0].mxu0
        %5049 = vmatprep.mubr.bf16.mxu0 0
        %5050 = vmatmul.mubr.bf16.gmra.mrb[0].mxu0 %v4955
        %v5051 = vpop.f32.mrb[0].mxu0
        %v5052 = vadd.f32 0.0, %v5051
        %v5053 = vpop.f32.mrb[0].mxu0
        %v5054 = vpop.f32.mrb[0].mxu0
        %v5055 = vadd.f32 0.0, %v5054
        %v5056 = vpop.f32.mrb[0].mxu0
        %5057 = vmatprep.mubr.bf16.mxu0 0
        %5058 = vmatmul.mubr.bf16.gmra.mrb[0].mxu0 %v4958
        %v5059 = vpop.f32.mrb[0].mxu0
        %v5060 = vadd.f32 0.0, %v5059
        %v5061 = vpop.f32.mrb[0].mxu0
        %v5062 = vpop.f32.mrb[0].mxu0
        %v5063 = vadd.f32 0.0, %v5062
        %v5064 = vpop.f32.mrb[0].mxu0
        %5065 = vmatprep.mubr.bf16.mxu0 0
        %5066 = vmatmul.mubr.bf16.gmra.mrb[0].mxu0 %v4961
        %v5067 = vpop.f32.mrb[0].mxu0
        %v5068 = vadd.f32 0.0, %v5067
        %v5069 = vpop.f32.mrb[0].mxu0
        %v5070 = vpop.f32.mrb[0].mxu0
        %v5071 = vadd.f32 0.0, %v5070
        %v5072 = vpop.f32.mrb[0].mxu0
        %5073 = vmatprep.mubr.bf16.mxu0 0
        %5074 = vmatmul.mubr.bf16.gmra.mrb[0].mxu0 %v4964
        %v5075 = vpop.f32.mrb[0].mxu0
        %v5076 = vadd.f32 0.0, %v5075
        %v5077 = vpop.f32.mrb[0].mxu0
        %v5078 = vpop.f32.mrb[0].mxu0
        %v5079 = vadd.f32 0.0, %v5078
        %v5080 = vpop.f32.mrb[0].mxu0
        %5081 = vmatprep.mubr.bf16.mxu0 0
        %5082 = vmatmul.mubr.bf16.gmra.mrb[0].mxu0 %v4967
        %v5083 = vpop.f32.mrb[0].mxu0
        %v5084 = vadd.f32 0.0, %v5083
        %v5085 = vpop.f32.mrb[0].mxu0
        %v5086 = vpop.f32.mrb[0].mxu0
        %v5087 = vadd.f32 0.0, %v5086
        %v5088 = vpop.f32.mrb[0].mxu0
        %5089 = vmatprep.mubr.bf16.mxu0 0
        %5090 = vmatmul.mubr.bf16.gmra.mrb[0].mxu0 %v4970
        %v5091 = vpop.f32.mrb[0].mxu0
        %v5092 = vadd.f32 0.0, %v5091
        %v5093 = vpop.f32.mrb[0].mxu0
        %v5094 = vpop.f32.mrb[0].mxu0
        %v5095 = vadd.f32 0.0, %v5094
        %v5096 = vpop.f32.mrb[0].mxu0
        %5097 = vmatprep.mubr.bf16.mxu0 0
        %5098 = vmatmul.mubr.bf16.gmra.mrb[0].mxu0 %v4973
        %v5099 = vpop.f32.mrb[0].mxu0
        %v5100 = vadd.f32 0.0, %v5099
        %v5101 = vpop.f32.mrb[0].mxu0
        %v5102 = vpop.f32.mrb[0].mxu0
        %v5103 = vadd.f32 0.0, %v5102
        %v5104 = vpop.f32.mrb[0].mxu0
        %5105 = vmatprep.mubr.bf16.mxu0 0
        %5106 = vmatmul.mubr.bf16.gmra.mrb[0].mxu0 %v4976
        %v5107 = vpop.f32.mrb[0].mxu0
        %v5108 = vadd.f32 0.0, %v5107
        %v5109 = vpop.f32.mrb[0].mxu0
        %v5110 = vpop.f32.mrb[0].mxu0
        %v5111 = vadd.f32 0.0, %v5110
        %v5112 = vpop.f32.mrb[0].mxu0
        %5113 = vmatprep.mubr.bf16.mxu0 0
        %5114 = vmatmul.mubr.bf16.gmra.mrb[0].mxu0 %v4979
        %v5115 = vpop.f32.mrb[0].mxu0
        %v5116 = vadd.f32 0.0, %v5115
        %v5117 = vpop.f32.mrb[0].mxu0
        %v5118 = vpop.f32.mrb[0].mxu0
        %v5119 = vadd.f32 0.0, %v5118
        %v5120 = vpop.f32.mrb[0].mxu0
        %5121 = vmatprep.mubr.bf16.mxu0 0
        %5122 = vmatmul.mubr.bf16.gmra.mrb[0].mxu0 %v4982
        %v5123 = vpop.f32.mrb[0].mxu0
        %v5124 = vadd.f32 0.0, %v5123
        %v5125 = vpop.f32.mrb[0].mxu0
        %v5126 = vpop.f32.mrb[0].mxu0
        %v5127 = vadd.f32 0.0, %v5126
        %v5128 = vpop.f32.mrb[0].mxu0
        %5129 = vmatprep.mubr.bf16.mxu0 0
        %5130 = vmatmul.mubr.bf16.gmra.mrb[0].mxu0 %v4985
        %v5131 = vpop.f32.mrb[0].mxu0
        %v5132 = vadd.f32 0.0, %v5131
        %v5133 = vpop.f32.mrb[0].mxu0
        %v5134 = vpop.f32.mrb[0].mxu0
        %v5135 = vadd.f32 0.0, %v5134
        %v5136 = vpop.f32.mrb[0].mxu0
        %5137 = vmatprep.mubr.bf16.mxu0 0
        %5138 = vmatmul.mubr.bf16.gmra.mrb[0].mxu0 %v4988
        %v5139 = vpop.f32.mrb[0].mxu0
        %v5140 = vadd.f32 0.0, %v5139
        %v5141 = vpop.f32.mrb[0].mxu0
        %v5142 = vpop.f32.mrb[0].mxu0
        %v5143 = vadd.f32 0.0, %v5142
        %v5144 = vpop.f32.mrb[0].mxu0
        %5145 = vmatprep.mubr.bf16.mxu0 0
        %5146 = vmatmul.mubr.bf16.gmra.mrb[0].mxu0 %v4991
        %v5147 = vpop.f32.mrb[0].mxu0
        %v5148 = vadd.f32 0.0, %v5147
        %v5149 = vpop.f32.mrb[0].mxu0
        %v5150 = vpop.f32.mrb[0].mxu0
        %v5151 = vadd.f32 0.0, %v5150
        %v5152 = vpop.f32.mrb[0].mxu0
        %5153 = vdwg.mxu0
        %v5154 = vld [vmem:[#allocation3] sm:$0xff]
        %v5155 = vld [vmem:[#allocation3 + $0x8] sm:$0xff]
        %v5156 = vld [vmem:[#allocation3 + $0x10] sm:$0xff]
        %v5157 = vld [vmem:[#allocation3 + $0x18] sm:$0xff]
        %v5158 = vld [vmem:[#allocation3 + $0x20] sm:$0xff]
        %v5159 = vld [vmem:[#allocation3 + $0x28] sm:$0xff]
        %v5160 = vld [vmem:[#allocation3 + $0x30] sm:$0xff]
        %v5161 = vld [vmem:[#allocation3 + $0x38] sm:$0xff]
        %v5162 = vld [vmem:[#allocation3 + $0x40] sm:$0xff]
        %v5163 = vld [vmem:[#allocation3 + $0x48] sm:$0xff]
        %v5164 = vld [vmem:[#allocation3 + $0x50] sm:$0xff]
        %v5165 = vld [vmem:[#allocation3 + $0x58] sm:$0xff]
        %v5166 = vld [vmem:[#allocation3 + $0x60] sm:$0xff]
        %v5167 = vld [vmem:[#allocation3 + $0x68] sm:$0xff]
        %v5168 = vld [vmem:[#allocation3 + $0x70] sm:$0xff]
        %v5169 = vld [vmem:[#allocation3 + $0x78] sm:$0xff]
        %v5170 = vld [vmem:[#allocation3 + $0x80] sm:$0xff]
        %v5171 = vld [vmem:[#allocation3 + $0x88] sm:$0xff]
        %v5172 = vld [vmem:[#allocation3 + $0x90] sm:$0xff]
        %v5173 = vld [vmem:[#allocation3 + $0x98] sm:$0xff]
        %v5174 = vld [vmem:[#allocation3 + $0xa0] sm:$0xff]
        %v5175 = vld [vmem:[#allocation3 + $0xa8] sm:$0xff]
        %v5176 = vld [vmem:[#allocation3 + $0xb0] sm:$0xff]
        %v5177 = vld [vmem:[#allocation3 + $0xb8] sm:$0xff]
        %v5178 = vld [vmem:[#allocation3 + $0xc0] sm:$0xff]
        %v5179 = vld [vmem:[#allocation3 + $0xc8] sm:$0xff]
        %v5180 = vld [vmem:[#allocation3 + $0xd0] sm:$0xff]
        %v5181 = vld [vmem:[#allocation3 + $0xd8] sm:$0xff]
        %v5182 = vld [vmem:[#allocation3 + $0xe0] sm:$0xff]
        %v5183 = vld [vmem:[#allocation3 + $0xe8] sm:$0xff]
        %v5184 = vld [vmem:[#allocation3 + $0xf0] sm:$0xff]
        %v5185 = vld [vmem:[#allocation3 + $0xf8] sm:$0xff]
        %v5186 = vadd.f32 %v5154, %v5028
        %v5187 = vadd.f32 %v5155, %v5031
        %v5188 = vadd.f32 %v5156, %v5036
        %v5189 = vadd.f32 %v5157, %v5039
        %v5190 = vadd.f32 %v5158, %v5044
        %v5191 = vadd.f32 %v5159, %v5047
        %v5192 = vadd.f32 %v5160, %v5052
        %v5193 = vadd.f32 %v5161, %v5055
        %v5194 = vadd.f32 %v5162, %v5060
        %v5195 = vadd.f32 %v5163, %v5063
        %v5196 = vadd.f32 %v5164, %v5068
        %v5197 = vadd.f32 %v5165, %v5071
        %v5198 = vadd.f32 %v5166, %v5076
        %v5199 = vadd.f32 %v5167, %v5079
        %v5200 = vadd.f32 %v5168, %v5084
        %v5201 = vadd.f32 %v5169, %v5087
        %v5202 = vadd.f32 %v5170, %v5092
        %v5203 = vadd.f32 %v5171, %v5095
        %v5204 = vadd.f32 %v5172, %v5100
        %v5205 = vadd.f32 %v5173, %v5103
        %v5206 = vadd.f32 %v5174, %v5108
        %v5207 = vadd.f32 %v5175, %v5111
        %v5208 = vadd.f32 %v5176, %v5116
        %v5209 = vadd.f32 %v5177, %v5119
        %v5210 = vadd.f32 %v5178, %v5124
        %v5211 = vadd.f32 %v5179, %v5127
        %v5212 = vadd.f32 %v5180, %v5132
        %v5213 = vadd.f32 %v5181, %v5135
        %v5214 = vadd.f32 %v5182, %v5140
        %v5215 = vadd.f32 %v5183, %v5143
        %v5216 = vadd.f32 %v5184, %v5148
        %v5217 = vadd.f32 %v5185, %v5151
        %5218 = vst.msk [vmem:[#allocation3] sm:$0xff] %vm1373, %v5186
        %5219 = vst.msk [vmem:[#allocation3 + $0x8] sm:$0xff] %vm1373, %v5187
        %5220 = vst.msk [vmem:[#allocation3 + $0x10] sm:$0xff] %vm1373, %v5188
        %5221 = vst.msk [vmem:[#allocation3 + $0x18] sm:$0xff] %vm1373, %v5189
        %5222 = vst.msk [vmem:[#allocation3 + $0x20] sm:$0xff] %vm1373, %v5190
        %5223 = vst.msk [vmem:[#allocation3 + $0x28] sm:$0xff] %vm1373, %v5191
        %5224 = vst.msk [vmem:[#allocation3 + $0x30] sm:$0xff] %vm1373, %v5192
        %5225 = vst.msk [vmem:[#allocation3 + $0x38] sm:$0xff] %vm1373, %v5193
        %5226 = vst.msk [vmem:[#allocation3 + $0x40] sm:$0xff] %vm1373, %v5194
        %5227 = vst.msk [vmem:[#allocation3 + $0x48] sm:$0xff] %vm1373, %v5195
        %5228 = vst.msk [vmem:[#allocation3 + $0x50] sm:$0xff] %vm1373, %v5196
        %5229 = vst.msk [vmem:[#allocation3 + $0x58] sm:$0xff] %vm1373, %v5197
        %5230 = vst.msk [vmem:[#allocation3 + $0x60] sm:$0xff] %vm1373, %v5198
        %5231 = vst.msk [vmem:[#allocation3 + $0x68] sm:$0xff] %vm1373, %v5199
        %5232 = vst.msk [vmem:[#allocation3 + $0x70] sm:$0xff] %vm1373, %v5200
        %5233 = vst.msk [vmem:[#allocation3 + $0x78] sm:$0xff] %vm1373, %v5201
        %5234 = vst.msk [vmem:[#allocation3 + $0x80] sm:$0xff] %vm1373, %v5202
        %5235 = vst.msk [vmem:[#allocation3 + $0x88] sm:$0xff] %vm1373, %v5203
        %5236 = vst.msk [vmem:[#allocation3 + $0x90] sm:$0xff] %vm1373, %v5204
        %5237 = vst.msk [vmem:[#allocation3 + $0x98] sm:$0xff] %vm1373, %v5205
        %5238 = vst.msk [vmem:[#allocation3 + $0xa0] sm:$0xff] %vm1373, %v5206
        %5239 = vst.msk [vmem:[#allocation3 + $0xa8] sm:$0xff] %vm1373, %v5207
        %5240 = vst.msk [vmem:[#allocation3 + $0xb0] sm:$0xff] %vm1373, %v5208
        %5241 = vst.msk [vmem:[#allocation3 + $0xb8] sm:$0xff] %vm1373, %v5209
        %5242 = vst.msk [vmem:[#allocation3 + $0xc0] sm:$0xff] %vm1373, %v5210
        %5243 = vst.msk [vmem:[#allocation3 + $0xc8] sm:$0xff] %vm1373, %v5211
        %5244 = vst.msk [vmem:[#allocation3 + $0xd0] sm:$0xff] %vm1373, %v5212
        %5245 = vst.msk [vmem:[#allocation3 + $0xd8] sm:$0xff] %vm1373, %v5213
        %5246 = vst.msk [vmem:[#allocation3 + $0xe0] sm:$0xff] %vm1373, %v5214
        %5247 = vst.msk [vmem:[#allocation3 + $0xe8] sm:$0xff] %vm1373, %v5215
        %5248 = vst.msk [vmem:[#allocation3 + $0xf0] sm:$0xff] %vm1373, %v5216
        %5249 = vst.msk [vmem:[#allocation3 + $0xf8] sm:$0xff] %vm1373, %v5217
        %v5250 = vld [vmem:[%s4815] sm:$0xf]
        %v5251 = vld [vmem:[%s4815 + $0x4] sm:$0xf]
        %v5252 = vld [vmem:[%s4815 + $0x8] sm:$0x1]
        %v5253 = vld [vmem:[%s4815 + $0xc] sm:$0xf]
        %v5254 = vld [vmem:[%s4815 + $0x10] sm:$0xf]
        %v5255 = vld [vmem:[%s4815 + $0x14] sm:$0x1]
        %v5256 = vld [vmem:[%s4815 + $0x18] sm:$0xf]
        %v5257 = vld [vmem:[%s4815 + $0x1c] sm:$0xf]
        %v5258 = vld [vmem:[%s4815 + $0x20] sm:$0x1]
        %v5259 = vld [vmem:[%s4815 + $0x24] sm:$0xf]
        %v5260 = vld [vmem:[%s4815 + $0x28] sm:$0xf]
        %v5261 = vld [vmem:[%s4815 + $0x2c] sm:$0x1]
        %v5262 = vld [vmem:[%s4815 + $0x30] sm:$0xf]
        %v5263 = vld [vmem:[%s4815 + $0x34] sm:$0xf]
        %v5264 = vld [vmem:[%s4815 + $0x38] sm:$0x1]
        %v5265 = vld [vmem:[%s4815 + $0x3c] sm:$0xf]
        %v5266 = vld [vmem:[%s4815 + $0x40] sm:$0xf]
        %v5267 = vld [vmem:[%s4815 + $0x44] sm:$0x1]
        %v5268 = vld [vmem:[%s4815 + $0x48] sm:$0xf]
        %v5269 = vld [vmem:[%s4815 + $0x4c] sm:$0xf]
        %v5270 = vld [vmem:[%s4815 + $0x50] sm:$0x1]
        %v5271 = vld [vmem:[%s4815 + $0x54] sm:$0xf]
        %v5272 = vld [vmem:[%s4815 + $0x58] sm:$0xf]
        %v5273 = vld [vmem:[%s4815 + $0x5c] sm:$0x1]
        %v5274 = vld [vmem:[%s4815 + $0x60] sm:$0xf]
        %v5275 = vld [vmem:[%s4815 + $0x64] sm:$0xf]
        %v5276 = vld [vmem:[%s4815 + $0x68] sm:$0x1]
        %v5277 = vld [vmem:[%s4815 + $0x6c] sm:$0xf]
        %v5278 = vld [vmem:[%s4815 + $0x70] sm:$0xf]
        %v5279 = vld [vmem:[%s4815 + $0x74] sm:$0x1]
        %v5280 = vld [vmem:[%s4815 + $0x78] sm:$0xf]
        %v5281 = vld [vmem:[%s4815 + $0x7c] sm:$0xf]
        %v5282 = vld [vmem:[%s4815 + $0x80] sm:$0x1]
        %v5283 = vld [vmem:[%s4815 + $0x84] sm:$0xf]
        %v5284 = vld [vmem:[%s4815 + $0x88] sm:$0xf]
        %v5285 = vld [vmem:[%s4815 + $0x8c] sm:$0x1]
        %v5286 = vld [vmem:[%s4815 + $0x90] sm:$0xf]
        %v5287 = vld [vmem:[%s4815 + $0x94] sm:$0xf]
        %v5288 = vld [vmem:[%s4815 + $0x98] sm:$0x1]
        %v5289 = vld [vmem:[%s4815 + $0x9c] sm:$0xf]
        %v5290 = vld [vmem:[%s4815 + $0xa0] sm:$0xf]
        %v5291 = vld [vmem:[%s4815 + $0xa4] sm:$0x1]
        %v5292 = vld [vmem:[%s4815 + $0xa8] sm:$0xf]
        %v5293 = vld [vmem:[%s4815 + $0xac] sm:$0xf]
        %v5294 = vld [vmem:[%s4815 + $0xb0] sm:$0x1]
        %v5295 = vld [vmem:[%s4815 + $0xb4] sm:$0xf]
        %v5296 = vld [vmem:[%s4815 + $0xb8] sm:$0xf]
        %v5297 = vld [vmem:[%s4815 + $0xbc] sm:$0x1]
        %v5299 = vshrl.u32 %v5250, 16
        %v5301 = vrot.slane %v5299, 4
        %v5302 = vshll.u32 %v5250, 16
        %v5304 = vrot.slane %v5302, 5
        %v5305 = vor.u32 %v5301, %v5304
        %v5306 = vrot.slane %v5305, 4
        %v5308 = vshll.u32 %v5251, 16
        %v5310 = vrot.slane %v5308, 5
        %v5311 = vsel %vm1665, %v5306, %v5310
        %v5312 = vshrl.u32 %v5251, 16
        %v5314 = vrot.slane %v5312, 4
        %v5315 = vor.u32 %v5314, %v5310
        %v5316 = vrot.slane %v5315, 4
        %v5318 = vshll.u32 %v5252, 16
        %v5320 = vrot.slane %v5318, 5
        %v5321 = vsel %vm1665, %v5316, %v5320
        %v5323 = vshrl.u32 %v5253, 16
        %v5325 = vrot.slane %v5323, 4
        %v5326 = vshll.u32 %v5253, 16
        %v5328 = vrot.slane %v5326, 5
        %v5329 = vor.u32 %v5325, %v5328
        %v5330 = vrot.slane %v5329, 4
        %v5332 = vshll.u32 %v5254, 16
        %v5334 = vrot.slane %v5332, 5
        %v5335 = vsel %vm1665, %v5330, %v5334
        %v5336 = vshrl.u32 %v5254, 16
        %v5338 = vrot.slane %v5336, 4
        %v5339 = vor.u32 %v5338, %v5334
        %v5340 = vrot.slane %v5339, 4
        %v5342 = vshll.u32 %v5255, 16
        %v5344 = vrot.slane %v5342, 5
        %v5345 = vsel %vm1665, %v5340, %v5344
        %v5347 = vshrl.u32 %v5256, 16
        %v5349 = vrot.slane %v5347, 4
        %v5350 = vshll.u32 %v5256, 16
        %v5352 = vrot.slane %v5350, 5
        %v5353 = vor.u32 %v5349, %v5352
        %v5354 = vrot.slane %v5353, 4
        %v5356 = vshll.u32 %v5257, 16
        %v5358 = vrot.slane %v5356, 5
        %v5359 = vsel %vm1665, %v5354, %v5358
        %v5360 = vshrl.u32 %v5257, 16
        %v5362 = vrot.slane %v5360, 4
        %v5363 = vor.u32 %v5362, %v5358
        %v5364 = vrot.slane %v5363, 4
        %v5366 = vshll.u32 %v5258, 16
        %v5368 = vrot.slane %v5366, 5
        %v5369 = vsel %vm1665, %v5364, %v5368
        %v5371 = vshrl.u32 %v5259, 16
        %v5373 = vrot.slane %v5371, 4
        %v5374 = vshll.u32 %v5259, 16
        %v5376 = vrot.slane %v5374, 5
        %v5377 = vor.u32 %v5373, %v5376
        %v5378 = vrot.slane %v5377, 4
        %v5380 = vshll.u32 %v5260, 16
        %v5382 = vrot.slane %v5380, 5
        %v5383 = vsel %vm1665, %v5378, %v5382
        %v5384 = vshrl.u32 %v5260, 16
        %v5386 = vrot.slane %v5384, 4
        %v5387 = vor.u32 %v5386, %v5382
        %v5388 = vrot.slane %v5387, 4
        %v5390 = vshll.u32 %v5261, 16
        %v5392 = vrot.slane %v5390, 5
        %v5393 = vsel %vm1665, %v5388, %v5392
        %v5395 = vshrl.u32 %v5262, 16
        %v5397 = vrot.slane %v5395, 4
        %v5398 = vshll.u32 %v5262, 16
        %v5400 = vrot.slane %v5398, 5
        %v5401 = vor.u32 %v5397, %v5400
        %v5402 = vrot.slane %v5401, 4
        %v5404 = vshll.u32 %v5263, 16
        %v5406 = vrot.slane %v5404, 5
        %v5407 = vsel %vm1665, %v5402, %v5406
        %v5408 = vshrl.u32 %v5263, 16
        %v5410 = vrot.slane %v5408, 4
        %v5411 = vor.u32 %v5410, %v5406
        %v5412 = vrot.slane %v5411, 4
        %v5414 = vshll.u32 %v5264, 16
        %v5416 = vrot.slane %v5414, 5
        %v5417 = vsel %vm1665, %v5412, %v5416
        %v5419 = vshrl.u32 %v5265, 16
        %v5421 = vrot.slane %v5419, 4
        %v5422 = vshll.u32 %v5265, 16
        %v5424 = vrot.slane %v5422, 5
        %v5425 = vor.u32 %v5421, %v5424
        %v5426 = vrot.slane %v5425, 4
        %v5428 = vshll.u32 %v5266, 16
        %v5430 = vrot.slane %v5428, 5
        %v5431 = vsel %vm1665, %v5426, %v5430
        %v5432 = vshrl.u32 %v5266, 16
        %v5434 = vrot.slane %v5432, 4
        %v5435 = vor.u32 %v5434, %v5430
        %v5436 = vrot.slane %v5435, 4
        %v5438 = vshll.u32 %v5267, 16
        %v5440 = vrot.slane %v5438, 5
        %v5441 = vsel %vm1665, %v5436, %v5440
        %v5443 = vshrl.u32 %v5268, 16
        %v5445 = vrot.slane %v5443, 4
        %v5446 = vshll.u32 %v5268, 16
        %v5448 = vrot.slane %v5446, 5
        %v5449 = vor.u32 %v5445, %v5448
        %v5450 = vrot.slane %v5449, 4
        %v5452 = vshll.u32 %v5269, 16
        %v5454 = vrot.slane %v5452, 5
        %v5455 = vsel %vm1665, %v5450, %v5454
        %v5456 = vshrl.u32 %v5269, 16
        %v5458 = vrot.slane %v5456, 4
        %v5459 = vor.u32 %v5458, %v5454
        %v5460 = vrot.slane %v5459, 4
        %v5462 = vshll.u32 %v5270, 16
        %v5464 = vrot.slane %v5462, 5
        %v5465 = vsel %vm1665, %v5460, %v5464
        %v5467 = vshrl.u32 %v5271, 16
        %v5469 = vrot.slane %v5467, 4
        %v5470 = vshll.u32 %v5271, 16
        %v5472 = vrot.slane %v5470, 5
        %v5473 = vor.u32 %v5469, %v5472
        %v5474 = vrot.slane %v5473, 4
        %v5476 = vshll.u32 %v5272, 16
        %v5478 = vrot.slane %v5476, 5
        %v5479 = vsel %vm1665, %v5474, %v5478
        %v5480 = vshrl.u32 %v5272, 16
        %v5482 = vrot.slane %v5480, 4
        %v5483 = vor.u32 %v5482, %v5478
        %v5484 = vrot.slane %v5483, 4
        %v5486 = vshll.u32 %v5273, 16
        %v5488 = vrot.slane %v5486, 5
        %v5489 = vsel %vm1665, %v5484, %v5488
        %v5491 = vshrl.u32 %v5274, 16
        %v5493 = vrot.slane %v5491, 4
        %v5494 = vshll.u32 %v5274, 16
        %v5496 = vrot.slane %v5494, 5
        %v5497 = vor.u32 %v5493, %v5496
        %v5498 = vrot.slane %v5497, 4
        %v5500 = vshll.u32 %v5275, 16
        %v5502 = vrot.slane %v5500, 5
        %v5503 = vsel %vm1665, %v5498, %v5502
        %v5504 = vshrl.u32 %v5275, 16
        %v5506 = vrot.slane %v5504, 4
        %v5507 = vor.u32 %v5506, %v5502
        %v5508 = vrot.slane %v5507, 4
        %v5510 = vshll.u32 %v5276, 16
        %v5512 = vrot.slane %v5510, 5
        %v5513 = vsel %vm1665, %v5508, %v5512
        %v5515 = vshrl.u32 %v5277, 16
        %v5517 = vrot.slane %v5515, 4
        %v5518 = vshll.u32 %v5277, 16
        %v5520 = vrot.slane %v5518, 5
        %v5521 = vor.u32 %v5517, %v5520
        %v5522 = vrot.slane %v5521, 4
        %v5524 = vshll.u32 %v5278, 16
        %v5526 = vrot.slane %v5524, 5
        %v5527 = vsel %vm1665, %v5522, %v5526
        %v5528 = vshrl.u32 %v5278, 16
        %v5530 = vrot.slane %v5528, 4
        %v5531 = vor.u32 %v5530, %v5526
        %v5532 = vrot.slane %v5531, 4
        %v5534 = vshll.u32 %v5279, 16
        %v5536 = vrot.slane %v5534, 5
        %v5537 = vsel %vm1665, %v5532, %v5536
        %v5539 = vshrl.u32 %v5280, 16
        %v5541 = vrot.slane %v5539, 4
        %v5542 = vshll.u32 %v5280, 16
        %v5544 = vrot.slane %v5542, 5
        %v5545 = vor.u32 %v5541, %v5544
        %v5546 = vrot.slane %v5545, 4
        %v5548 = vshll.u32 %v5281, 16
        %v5550 = vrot.slane %v5548, 5
        %v5551 = vsel %vm1665, %v5546, %v5550
        %v5552 = vshrl.u32 %v5281, 16
        %v5554 = vrot.slane %v5552, 4
        %v5555 = vor.u32 %v5554, %v5550
        %v5556 = vrot.slane %v5555, 4
        %v5558 = vshll.u32 %v5282, 16
        %v5560 = vrot.slane %v5558, 5
        %v5561 = vsel %vm1665, %v5556, %v5560
        %v5563 = vshrl.u32 %v5283, 16
        %v5565 = vrot.slane %v5563, 4
        %v5566 = vshll.u32 %v5283, 16
        %v5568 = vrot.slane %v5566, 5
        %v5569 = vor.u32 %v5565, %v5568
        %v5570 = vrot.slane %v5569, 4
        %v5572 = vshll.u32 %v5284, 16
        %v5574 = vrot.slane %v5572, 5
        %v5575 = vsel %vm1665, %v5570, %v5574
        %v5576 = vshrl.u32 %v5284, 16
        %v5578 = vrot.slane %v5576, 4
        %v5579 = vor.u32 %v5578, %v5574
        %v5580 = vrot.slane %v5579, 4
        %v5582 = vshll.u32 %v5285, 16
        %v5584 = vrot.slane %v5582, 5
        %v5585 = vsel %vm1665, %v5580, %v5584
        %v5587 = vshrl.u32 %v5286, 16
        %v5589 = vrot.slane %v5587, 4
        %v5590 = vshll.u32 %v5286, 16
        %v5592 = vrot.slane %v5590, 5
        %v5593 = vor.u32 %v5589, %v5592
        %v5594 = vrot.slane %v5593, 4
        %v5596 = vshll.u32 %v5287, 16
        %v5598 = vrot.slane %v5596, 5
        %v5599 = vsel %vm1665, %v5594, %v5598
        %v5600 = vshrl.u32 %v5287, 16
        %v5602 = vrot.slane %v5600, 4
        %v5603 = vor.u32 %v5602, %v5598
        %v5604 = vrot.slane %v5603, 4
        %v5606 = vshll.u32 %v5288, 16
        %v5608 = vrot.slane %v5606, 5
        %v5609 = vsel %vm1665, %v5604, %v5608
        %v5611 = vshrl.u32 %v5289, 16
        %v5613 = vrot.slane %v5611, 4
        %v5614 = vshll.u32 %v5289, 16
        %v5616 = vrot.slane %v5614, 5
        %v5617 = vor.u32 %v5613, %v5616
        %v5618 = vrot.slane %v5617, 4
        %v5620 = vshll.u32 %v5290, 16
        %v5622 = vrot.slane %v5620, 5
        %v5623 = vsel %vm1665, %v5618, %v5622
        %v5624 = vshrl.u32 %v5290, 16
        %v5626 = vrot.slane %v5624, 4
        %v5627 = vor.u32 %v5626, %v5622
        %v5628 = vrot.slane %v5627, 4
        %v5630 = vshll.u32 %v5291, 16
        %v5632 = vrot.slane %v5630, 5
        %v5633 = vsel %vm1665, %v5628, %v5632
        %v5635 = vshrl.u32 %v5292, 16
        %v5637 = vrot.slane %v5635, 4
        %v5638 = vshll.u32 %v5292, 16
        %v5640 = vrot.slane %v5638, 5
        %v5641 = vor.u32 %v5637, %v5640
        %v5642 = vrot.slane %v5641, 4
        %v5644 = vshll.u32 %v5293, 16
        %v5646 = vrot.slane %v5644, 5
        %v5647 = vsel %vm1665, %v5642, %v5646
        %v5648 = vshrl.u32 %v5293, 16
        %v5650 = vrot.slane %v5648, 4
        %v5651 = vor.u32 %v5650, %v5646
        %v5652 = vrot.slane %v5651, 4
        %v5654 = vshll.u32 %v5294, 16
        %v5656 = vrot.slane %v5654, 5
        %v5657 = vsel %vm1665, %v5652, %v5656
        %v5659 = vshrl.u32 %v5295, 16
        %v5661 = vrot.slane %v5659, 4
        %v5662 = vshll.u32 %v5295, 16
        %v5664 = vrot.slane %v5662, 5
        %v5665 = vor.u32 %v5661, %v5664
        %v5666 = vrot.slane %v5665, 4
        %v5668 = vshll.u32 %v5296, 16
        %v5670 = vrot.slane %v5668, 5
        %v5671 = vsel %vm1665, %v5666, %v5670
        %v5672 = vshrl.u32 %v5296, 16
        %v5674 = vrot.slane %v5672, 4
        %v5675 = vor.u32 %v5674, %v5670
        %v5676 = vrot.slane %v5675, 4
        %v5678 = vshll.u32 %v5297, 16
        %v5680 = vrot.slane %v5678, 5
        %v5681 = vsel %vm1665, %v5676, %v5680
        %s5682 = scalar_lea.vmem %s3, 112
        %v5683 = vld [vmem:[%s5682] sm:$0xf]
        %v5684 = vld [vmem:[%s5682 + $0x4] sm:$0xf]
        %v5685 = vld [vmem:[%s5682 + $0x8] sm:$0xf]
        %v5686 = vld [vmem:[%s5682 + $0xc] sm:$0xf]
        %v5687 = vunpack.c.l.b16 %v5311
        %v5688 = vunpack.c.l.b16 %v5321
        %v5689 = vunpack.c.l.b16 %v5335
        %v5690 = vunpack.c.l.b16 %v5345
        %v5691 = vunpack.c.l.b16 %v5359
        %v5692 = vunpack.c.l.b16 %v5369
        %v5693 = vunpack.c.l.b16 %v5383
        %v5694 = vunpack.c.l.b16 %v5393
        %v5695 = vunpack.c.l.b16 %v5407
        %v5696 = vunpack.c.l.b16 %v5417
        %v5697 = vunpack.c.l.b16 %v5431
        %v5698 = vunpack.c.l.b16 %v5441
        %v5699 = vunpack.c.l.b16 %v5455
        %v5700 = vunpack.c.l.b16 %v5465
        %v5701 = vunpack.c.l.b16 %v5479
        %v5702 = vunpack.c.l.b16 %v5489
        %v5703 = vunpack.c.l.b16 %v5503
        %v5704 = vunpack.c.l.b16 %v5513
        %v5705 = vunpack.c.l.b16 %v5527
        %v5706 = vunpack.c.l.b16 %v5537
        %v5707 = vunpack.c.l.b16 %v5551
        %v5708 = vunpack.c.l.b16 %v5561
        %v5709 = vunpack.c.l.b16 %v5575
        %v5710 = vunpack.c.l.b16 %v5585
        %v5711 = vunpack.c.l.b16 %v5599
        %v5712 = vunpack.c.l.b16 %v5609
        %v5713 = vunpack.c.l.b16 %v5623
        %v5714 = vunpack.c.l.b16 %v5633
        %v5715 = vunpack.c.l.b16 %v5647
        %v5716 = vunpack.c.l.b16 %v5657
        %v5717 = vunpack.c.l.b16 %v5671
        %v5718 = vunpack.c.l.b16 %v5681
        %v5719 = vpack.c.b16 %v5688, %v5687
        %v5720 = vpack.c.b16 %v5690, %v5689
        %v5721 = vpack.c.b16 %v5692, %v5691
        %v5722 = vpack.c.b16 %v5694, %v5693
        %v5723 = vpack.c.b16 %v5696, %v5695
        %v5724 = vpack.c.b16 %v5698, %v5697
        %v5725 = vpack.c.b16 %v5700, %v5699
        %v5726 = vpack.c.b16 %v5702, %v5701
        %v5727 = vpack.c.b16 %v5704, %v5703
        %v5728 = vpack.c.b16 %v5706, %v5705
        %v5729 = vpack.c.b16 %v5708, %v5707
        %v5730 = vpack.c.b16 %v5710, %v5709
        %v5731 = vpack.c.b16 %v5712, %v5711
        %v5732 = vpack.c.b16 %v5714, %v5713
        %v5733 = vpack.c.b16 %v5716, %v5715
        %v5734 = vpack.c.b16 %v5718, %v5717
        %v5739 = vunpack.c.l.b16 %v5683
        %v5740 = vunpack.c.l.b16 %v5684
        %v5741 = vunpack.c.l.b16 %v5685
        %v5742 = vunpack.c.l.b16 %v5686
        %v5743 = vpack.c.b16 %v5740, %v5739
        %v5744 = vpack.c.b16 %v5742, %v5741
        %v5748 = vsel %vm1373, %v5719, 0
        %v5751 = vsel %vm1373, %v5720, 0
        %v5754 = vsel %vm1373, %v5721, 0
        %v5757 = vsel %vm1373, %v5722, 0
        %v5760 = vsel %vm1373, %v5723, 0
        %v5763 = vsel %vm1373, %v5724, 0
        %v5766 = vsel %vm1373, %v5725, 0
        %v5769 = vsel %vm1373, %v5726, 0
        %v5772 = vsel %vm1373, %v5727, 0
        %v5775 = vsel %vm1373, %v5728, 0
        %v5778 = vsel %vm1373, %v5729, 0
        %v5781 = vsel %vm1373, %v5730, 0
        %v5784 = vsel %vm1373, %v5731, 0
        %v5787 = vsel %vm1373, %v5732, 0
        %v5790 = vsel %vm1373, %v5733, 0
        %v5793 = vsel %vm1373, %v5734, 0
        %5795 = vmatprep.subr.bf16.mxu0 0
        %5796 = vmatpush1.bf16.msra.mxu0 %v5743
        %5797 = vmatprep.subr.bf16.mxu0 0
        %5798 = vmatpush1.bf16.msra.mxu0 %v5744
        %5799 = vmatprep.subr.bf16.mxu0 0
        %5800 = vmatpush1.bf16.msra.mxu0 0
        %5801 = vmatprep.subr.bf16.mxu0 0
        %5802 = vmatpush1.bf16.msra.mxu0 0
        %5803 = vmatprep.subr.bf16.mxu0 0
        %5804 = vmatpush1.bf16.msra.mxu0 0
        %5805 = vmatprep.subr.bf16.mxu0 0
        %5806 = vmatpush1.bf16.msra.mxu0 0
        %5807 = vmatprep.subr.bf16.mxu0 0
        %5808 = vmatpush1.bf16.msra.mxu0 0
        %5809 = vmatprep.subr.bf16.mxu0 0
        %5810 = vmatpush1.bf16.msra.mxu0 0
        %5811 = vmatprep.subr.bf16.mxu0 0
        %5812 = vmatpush1.bf16.msra.mxu0 0
        %5813 = vmatprep.subr.bf16.mxu0 0
        %5814 = vmatpush1.bf16.msra.mxu0 0
        %5815 = vmatprep.subr.bf16.mxu0 0
        %5816 = vmatpush1.bf16.msra.mxu0 0
        %5817 = vmatprep.subr.bf16.mxu0 0
        %5818 = vmatpush1.bf16.msra.mxu0 0
        %5819 = vmatprep.subr.bf16.mxu0 0
        %5820 = vmatpush1.bf16.msra.mxu0 0
        %5821 = vmatprep.subr.bf16.mxu0 0
        %5822 = vmatpush1.bf16.msra.mxu0 0
        %5823 = vmatprep.subr.bf16.mxu0 0
        %5824 = vmatpush1.bf16.msra.mxu0 0
        %5825 = vmatprep.subr.bf16.mxu0 0
        %5826 = vmatpush1.bf16.msra.mxu0 0
        %5827 = vmatprep.mubr.bf16.mxu0 0
        %5828 = vmatmul.mubr.bf16.gmra.mrb[0].mxu0 %v5748
        %v5829 = vpop.f32.mrb[0].mxu0
        %v5830 = vadd.f32 0.0, %v5829
        %v5831 = vpop.f32.mrb[0].mxu0
        %v5832 = vpop.f32.mrb[0].mxu0
        %v5833 = vadd.f32 0.0, %v5832
        %v5834 = vpop.f32.mrb[0].mxu0
        %5835 = vmatprep.mubr.bf16.mxu0 0
        %5836 = vmatmul.mubr.bf16.gmra.mrb[0].mxu0 %v5751
        %v5837 = vpop.f32.mrb[0].mxu0
        %v5838 = vadd.f32 0.0, %v5837
        %v5839 = vpop.f32.mrb[0].mxu0
        %v5840 = vpop.f32.mrb[0].mxu0
        %v5841 = vadd.f32 0.0, %v5840
        %v5842 = vpop.f32.mrb[0].mxu0
        %5843 = vmatprep.mubr.bf16.mxu0 0
        %5844 = vmatmul.mubr.bf16.gmra.mrb[0].mxu0 %v5754
        %v5845 = vpop.f32.mrb[0].mxu0
        %v5846 = vadd.f32 0.0, %v5845
        %v5847 = vpop.f32.mrb[0].mxu0
        %v5848 = vpop.f32.mrb[0].mxu0
        %v5849 = vadd.f32 0.0, %v5848
        %v5850 = vpop.f32.mrb[0].mxu0
        %5851 = vmatprep.mubr.bf16.mxu0 0
        %5852 = vmatmul.mubr.bf16.gmra.mrb[0].mxu0 %v5757
        %v5853 = vpop.f32.mrb[0].mxu0
        %v5854 = vadd.f32 0.0, %v5853
        %v5855 = vpop.f32.mrb[0].mxu0
        %v5856 = vpop.f32.mrb[0].mxu0
        %v5857 = vadd.f32 0.0, %v5856
        %v5858 = vpop.f32.mrb[0].mxu0
        %5859 = vmatprep.mubr.bf16.mxu0 0
        %5860 = vmatmul.mubr.bf16.gmra.mrb[0].mxu0 %v5760
        %v5861 = vpop.f32.mrb[0].mxu0
        %v5862 = vadd.f32 0.0, %v5861
        %v5863 = vpop.f32.mrb[0].mxu0
        %v5864 = vpop.f32.mrb[0].mxu0
        %v5865 = vadd.f32 0.0, %v5864
        %v5866 = vpop.f32.mrb[0].mxu0
        %5867 = vmatprep.mubr.bf16.mxu0 0
        %5868 = vmatmul.mubr.bf16.gmra.mrb[0].mxu0 %v5763
        %v5869 = vpop.f32.mrb[0].mxu0
        %v5870 = vadd.f32 0.0, %v5869
        %v5871 = vpop.f32.mrb[0].mxu0
        %v5872 = vpop.f32.mrb[0].mxu0
        %v5873 = vadd.f32 0.0, %v5872
        %v5874 = vpop.f32.mrb[0].mxu0
        %5875 = vmatprep.mubr.bf16.mxu0 0
        %5876 = vmatmul.mubr.bf16.gmra.mrb[0].mxu0 %v5766
        %v5877 = vpop.f32.mrb[0].mxu0
        %v5878 = vadd.f32 0.0, %v5877
        %v5879 = vpop.f32.mrb[0].mxu0
        %v5880 = vpop.f32.mrb[0].mxu0
        %v5881 = vadd.f32 0.0, %v5880
        %v5882 = vpop.f32.mrb[0].mxu0
        %5883 = vmatprep.mubr.bf16.mxu0 0
        %5884 = vmatmul.mubr.bf16.gmra.mrb[0].mxu0 %v5769
        %v5885 = vpop.f32.mrb[0].mxu0
        %v5886 = vadd.f32 0.0, %v5885
        %v5887 = vpop.f32.mrb[0].mxu0
        %v5888 = vpop.f32.mrb[0].mxu0
        %v5889 = vadd.f32 0.0, %v5888
        %v5890 = vpop.f32.mrb[0].mxu0
        %5891 = vmatprep.mubr.bf16.mxu0 0
        %5892 = vmatmul.mubr.bf16.gmra.mrb[0].mxu0 %v5772
        %v5893 = vpop.f32.mrb[0].mxu0
        %v5894 = vadd.f32 0.0, %v5893
        %v5895 = vpop.f32.mrb[0].mxu0
        %v5896 = vpop.f32.mrb[0].mxu0
        %v5897 = vadd.f32 0.0, %v5896
        %v5898 = vpop.f32.mrb[0].mxu0
        %5899 = vmatprep.mubr.bf16.mxu0 0
        %5900 = vmatmul.mubr.bf16.gmra.mrb[0].mxu0 %v5775
        %v5901 = vpop.f32.mrb[0].mxu0
        %v5902 = vadd.f32 0.0, %v5901
        %v5903 = vpop.f32.mrb[0].mxu0
        %v5904 = vpop.f32.mrb[0].mxu0
        %v5905 = vadd.f32 0.0, %v5904
        %v5906 = vpop.f32.mrb[0].mxu0
        %5907 = vmatprep.mubr.bf16.mxu0 0
        %5908 = vmatmul.mubr.bf16.gmra.mrb[0].mxu0 %v5778
        %v5909 = vpop.f32.mrb[0].mxu0
        %v5910 = vadd.f32 0.0, %v5909
        %v5911 = vpop.f32.mrb[0].mxu0
        %v5912 = vpop.f32.mrb[0].mxu0
        %v5913 = vadd.f32 0.0, %v5912
        %v5914 = vpop.f32.mrb[0].mxu0
        %5915 = vmatprep.mubr.bf16.mxu0 0
        %5916 = vmatmul.mubr.bf16.gmra.mrb[0].mxu0 %v5781
        %v5917 = vpop.f32.mrb[0].mxu0
        %v5918 = vadd.f32 0.0, %v5917
        %v5919 = vpop.f32.mrb[0].mxu0
        %v5920 = vpop.f32.mrb[0].mxu0
        %v5921 = vadd.f32 0.0, %v5920
        %v5922 = vpop.f32.mrb[0].mxu0
        %5923 = vmatprep.mubr.bf16.mxu0 0
        %5924 = vmatmul.mubr.bf16.gmra.mrb[0].mxu0 %v5784
        %v5925 = vpop.f32.mrb[0].mxu0
        %v5926 = vadd.f32 0.0, %v5925
        %v5927 = vpop.f32.mrb[0].mxu0
        %v5928 = vpop.f32.mrb[0].mxu0
        %v5929 = vadd.f32 0.0, %v5928
        %v5930 = vpop.f32.mrb[0].mxu0
        %5931 = vmatprep.mubr.bf16.mxu0 0
        %5932 = vmatmul.mubr.bf16.gmra.mrb[0].mxu0 %v5787
        %v5933 = vpop.f32.mrb[0].mxu0
        %v5934 = vadd.f32 0.0, %v5933
        %v5935 = vpop.f32.mrb[0].mxu0
        %v5936 = vpop.f32.mrb[0].mxu0
        %v5937 = vadd.f32 0.0, %v5936
        %v5938 = vpop.f32.mrb[0].mxu0
        %5939 = vmatprep.mubr.bf16.mxu0 0
        %5940 = vmatmul.mubr.bf16.gmra.mrb[0].mxu0 %v5790
        %v5941 = vpop.f32.mrb[0].mxu0
        %v5942 = vadd.f32 0.0, %v5941
        %v5943 = vpop.f32.mrb[0].mxu0
        %v5944 = vpop.f32.mrb[0].mxu0
        %v5945 = vadd.f32 0.0, %v5944
        %v5946 = vpop.f32.mrb[0].mxu0
        %5947 = vmatprep.mubr.bf16.mxu0 0
        %5948 = vmatmul.mubr.bf16.gmra.mrb[0].mxu0 %v5793
        %v5949 = vpop.f32.mrb[0].mxu0
        %v5950 = vadd.f32 0.0, %v5949
        %v5951 = vpop.f32.mrb[0].mxu0
        %v5952 = vpop.f32.mrb[0].mxu0
        %v5953 = vadd.f32 0.0, %v5952
        %v5954 = vpop.f32.mrb[0].mxu0
        %5955 = vdwg.mxu0
        %v5956 = vld [vmem:[#allocation3] sm:$0xff]
        %v5957 = vld [vmem:[#allocation3 + $0x8] sm:$0xff]
        %v5958 = vld [vmem:[#allocation3 + $0x10] sm:$0xff]
        %v5959 = vld [vmem:[#allocation3 + $0x18] sm:$0xff]
        %v5960 = vld [vmem:[#allocation3 + $0x20] sm:$0xff]
        %v5961 = vld [vmem:[#allocation3 + $0x28] sm:$0xff]
        %v5962 = vld [vmem:[#allocation3 + $0x30] sm:$0xff]
        %v5963 = vld [vmem:[#allocation3 + $0x38] sm:$0xff]
        %v5964 = vld [vmem:[#allocation3 + $0x40] sm:$0xff]
        %v5965 = vld [vmem:[#allocation3 + $0x48] sm:$0xff]
        %v5966 = vld [vmem:[#allocation3 + $0x50] sm:$0xff]
        %v5967 = vld [vmem:[#allocation3 + $0x58] sm:$0xff]
        %v5968 = vld [vmem:[#allocation3 + $0x60] sm:$0xff]
        %v5969 = vld [vmem:[#allocation3 + $0x68] sm:$0xff]
        %v5970 = vld [vmem:[#allocation3 + $0x70] sm:$0xff]
        %v5971 = vld [vmem:[#allocation3 + $0x78] sm:$0xff]
        %v5972 = vld [vmem:[#allocation3 + $0x80] sm:$0xff]
        %v5973 = vld [vmem:[#allocation3 + $0x88] sm:$0xff]
        %v5974 = vld [vmem:[#allocation3 + $0x90] sm:$0xff]
        %v5975 = vld [vmem:[#allocation3 + $0x98] sm:$0xff]
        %v5976 = vld [vmem:[#allocation3 + $0xa0] sm:$0xff]
        %v5977 = vld [vmem:[#allocation3 + $0xa8] sm:$0xff]
        %v5978 = vld [vmem:[#allocation3 + $0xb0] sm:$0xff]
        %v5979 = vld [vmem:[#allocation3 + $0xb8] sm:$0xff]
        %v5980 = vld [vmem:[#allocation3 + $0xc0] sm:$0xff]
        %v5981 = vld [vmem:[#allocation3 + $0xc8] sm:$0xff]
        %v5982 = vld [vmem:[#allocation3 + $0xd0] sm:$0xff]
        %v5983 = vld [vmem:[#allocation3 + $0xd8] sm:$0xff]
        %v5984 = vld [vmem:[#allocation3 + $0xe0] sm:$0xff]
        %v5985 = vld [vmem:[#allocation3 + $0xe8] sm:$0xff]
        %v5986 = vld [vmem:[#allocation3 + $0xf0] sm:$0xff]
        %v5987 = vld [vmem:[#allocation3 + $0xf8] sm:$0xff]
        %v5988 = vadd.f32 %v5956, %v5830
        %v5989 = vadd.f32 %v5957, %v5833
        %v5990 = vadd.f32 %v5958, %v5838
        %v5991 = vadd.f32 %v5959, %v5841
        %v5992 = vadd.f32 %v5960, %v5846
        %v5993 = vadd.f32 %v5961, %v5849
        %v5994 = vadd.f32 %v5962, %v5854
        %v5995 = vadd.f32 %v5963, %v5857
        %v5996 = vadd.f32 %v5964, %v5862
        %v5997 = vadd.f32 %v5965, %v5865
        %v5998 = vadd.f32 %v5966, %v5870
        %v5999 = vadd.f32 %v5967, %v5873
        %v6000 = vadd.f32 %v5968, %v5878
        %v6001 = vadd.f32 %v5969, %v5881
        %v6002 = vadd.f32 %v5970, %v5886
        %v6003 = vadd.f32 %v5971, %v5889
        %v6004 = vadd.f32 %v5972, %v5894
        %v6005 = vadd.f32 %v5973, %v5897
        %v6006 = vadd.f32 %v5974, %v5902
        %v6007 = vadd.f32 %v5975, %v5905
        %v6008 = vadd.f32 %v5976, %v5910
        %v6009 = vadd.f32 %v5977, %v5913
        %v6010 = vadd.f32 %v5978, %v5918
        %v6011 = vadd.f32 %v5979, %v5921
        %v6012 = vadd.f32 %v5980, %v5926
        %v6013 = vadd.f32 %v5981, %v5929
        %v6014 = vadd.f32 %v5982, %v5934
        %v6015 = vadd.f32 %v5983, %v5937
        %v6016 = vadd.f32 %v5984, %v5942
        %v6017 = vadd.f32 %v5985, %v5945
        %v6018 = vadd.f32 %v5986, %v5950
        %v6019 = vadd.f32 %v5987, %v5953
        %6020 = vst.msk [vmem:[#allocation3] sm:$0xff] %vm1373, %v5988
        %6021 = vst.msk [vmem:[#allocation3 + $0x8] sm:$0xff] %vm1373, %v5989
        %6022 = vst.msk [vmem:[#allocation3 + $0x10] sm:$0xff] %vm1373, %v5990
        %6023 = vst.msk [vmem:[#allocation3 + $0x18] sm:$0xff] %vm1373, %v5991
        %6024 = vst.msk [vmem:[#allocation3 + $0x20] sm:$0xff] %vm1373, %v5992
        %6025 = vst.msk [vmem:[#allocation3 + $0x28] sm:$0xff] %vm1373, %v5993
        %6026 = vst.msk [vmem:[#allocation3 + $0x30] sm:$0xff] %vm1373, %v5994
        %6027 = vst.msk [vmem:[#allocation3 + $0x38] sm:$0xff] %vm1373, %v5995
        %6028 = vst.msk [vmem:[#allocation3 + $0x40] sm:$0xff] %vm1373, %v5996
        %6029 = vst.msk [vmem:[#allocation3 + $0x48] sm:$0xff] %vm1373, %v5997
        %6030 = vst.msk [vmem:[#allocation3 + $0x50] sm:$0xff] %vm1373, %v5998
        %6031 = vst.msk [vmem:[#allocation3 + $0x58] sm:$0xff] %vm1373, %v5999
        %6032 = vst.msk [vmem:[#allocation3 + $0x60] sm:$0xff] %vm1373, %v6000
        %6033 = vst.msk [vmem:[#allocation3 + $0x68] sm:$0xff] %vm1373, %v6001
        %6034 = vst.msk [vmem:[#allocation3 + $0x70] sm:$0xff] %vm1373, %v6002
        %6035 = vst.msk [vmem:[#allocation3 + $0x78] sm:$0xff] %vm1373, %v6003
        %6036 = vst.msk [vmem:[#allocation3 + $0x80] sm:$0xff] %vm1373, %v6004
        %6037 = vst.msk [vmem:[#allocation3 + $0x88] sm:$0xff] %vm1373, %v6005
        %6038 = vst.msk [vmem:[#allocation3 + $0x90] sm:$0xff] %vm1373, %v6006
        %6039 = vst.msk [vmem:[#allocation3 + $0x98] sm:$0xff] %vm1373, %v6007
        %6040 = vst.msk [vmem:[#allocation3 + $0xa0] sm:$0xff] %vm1373, %v6008
        %6041 = vst.msk [vmem:[#allocation3 + $0xa8] sm:$0xff] %vm1373, %v6009
        %6042 = vst.msk [vmem:[#allocation3 + $0xb0] sm:$0xff] %vm1373, %v6010
        %6043 = vst.msk [vmem:[#allocation3 + $0xb8] sm:$0xff] %vm1373, %v6011
        %6044 = vst.msk [vmem:[#allocation3 + $0xc0] sm:$0xff] %vm1373, %v6012
        %6045 = vst.msk [vmem:[#allocation3 + $0xc8] sm:$0xff] %vm1373, %v6013
        %6046 = vst.msk [vmem:[#allocation3 + $0xd0] sm:$0xff] %vm1373, %v6014
        %6047 = vst.msk [vmem:[#allocation3 + $0xd8] sm:$0xff] %vm1373, %v6015
        %6048 = vst.msk [vmem:[#allocation3 + $0xe0] sm:$0xff] %vm1373, %v6016
        %6049 = vst.msk [vmem:[#allocation3 + $0xe8] sm:$0xff] %vm1373, %v6017
        %6050 = vst.msk [vmem:[#allocation3 + $0xf0] sm:$0xff] %vm1373, %v6018
        %6051 = vst.msk [vmem:[#allocation3 + $0xf8] sm:$0xff] %vm1373, %v6019
        %v6052 = vld [vmem:[%s4815] sm:$0xe]
        %v6053 = vld [vmem:[%s4815 + $0x4] sm:$0xf]
        %v6054 = vld [vmem:[%s4815 + $0x8] sm:$0x1]
        %v6055 = vld [vmem:[%s4815 + $0xc] sm:$0xe]
        %v6056 = vld [vmem:[%s4815 + $0x10] sm:$0xf]
        %v6057 = vld [vmem:[%s4815 + $0x14] sm:$0x1]
        %v6058 = vld [vmem:[%s4815 + $0x18] sm:$0xe]
        %v6059 = vld [vmem:[%s4815 + $0x1c] sm:$0xf]
        %v6060 = vld [vmem:[%s4815 + $0x20] sm:$0x1]
        %v6061 = vld [vmem:[%s4815 + $0x24] sm:$0xe]
        %v6062 = vld [vmem:[%s4815 + $0x28] sm:$0xf]
        %v6063 = vld [vmem:[%s4815 + $0x2c] sm:$0x1]
        %v6064 = vld [vmem:[%s4815 + $0x30] sm:$0xe]
        %v6065 = vld [vmem:[%s4815 + $0x34] sm:$0xf]
        %v6066 = vld [vmem:[%s4815 + $0x38] sm:$0x1]
        %v6067 = vld [vmem:[%s4815 + $0x3c] sm:$0xe]
        %v6068 = vld [vmem:[%s4815 + $0x40] sm:$0xf]
        %v6069 = vld [vmem:[%s4815 + $0x44] sm:$0x1]
        %v6070 = vld [vmem:[%s4815 + $0x48] sm:$0xe]
        %v6071 = vld [vmem:[%s4815 + $0x4c] sm:$0xf]
        %v6072 = vld [vmem:[%s4815 + $0x50] sm:$0x1]
        %v6073 = vld [vmem:[%s4815 + $0x54] sm:$0xe]
        %v6074 = vld [vmem:[%s4815 + $0x58] sm:$0xf]
        %v6075 = vld [vmem:[%s4815 + $0x5c] sm:$0x1]
        %v6076 = vld [vmem:[%s4815 + $0x60] sm:$0xe]
        %v6077 = vld [vmem:[%s4815 + $0x64] sm:$0xf]
        %v6078 = vld [vmem:[%s4815 + $0x68] sm:$0x1]
        %v6079 = vld [vmem:[%s4815 + $0x6c] sm:$0xe]
        %v6080 = vld [vmem:[%s4815 + $0x70] sm:$0xf]
        %v6081 = vld [vmem:[%s4815 + $0x74] sm:$0x1]
        %v6082 = vld [vmem:[%s4815 + $0x78] sm:$0xe]
        %v6083 = vld [vmem:[%s4815 + $0x7c] sm:$0xf]
        %v6084 = vld [vmem:[%s4815 + $0x80] sm:$0x1]
        %v6085 = vld [vmem:[%s4815 + $0x84] sm:$0xe]
        %v6086 = vld [vmem:[%s4815 + $0x88] sm:$0xf]
        %v6087 = vld [vmem:[%s4815 + $0x8c] sm:$0x1]
        %v6088 = vld [vmem:[%s4815 + $0x90] sm:$0xe]
        %v6089 = vld [vmem:[%s4815 + $0x94] sm:$0xf]
        %v6090 = vld [vmem:[%s4815 + $0x98] sm:$0x1]
        %v6091 = vld [vmem:[%s4815 + $0x9c] sm:$0xe]
        %v6092 = vld [vmem:[%s4815 + $0xa0] sm:$0xf]
        %v6093 = vld [vmem:[%s4815 + $0xa4] sm:$0x1]
        %v6094 = vld [vmem:[%s4815 + $0xa8] sm:$0xe]
        %v6095 = vld [vmem:[%s4815 + $0xac] sm:$0xf]
        %v6096 = vld [vmem:[%s4815 + $0xb0] sm:$0x1]
        %v6097 = vld [vmem:[%s4815 + $0xb4] sm:$0xe]
        %v6098 = vld [vmem:[%s4815 + $0xb8] sm:$0xf]
        %v6099 = vld [vmem:[%s4815 + $0xbc] sm:$0x1]
        %v6148 = vrot.slane %v6052, 5
        %v6149 = vrot.slane %v6148, 4
        %v6150 = vrot.slane %v6053, 5
        %v6151 = vsel %vm2518, %v6149, %v6150
        %v6152 = vrot.slane %v6150, 4
        %v6153 = vrot.slane %v6054, 5
        %v6154 = vsel %vm2518, %v6152, %v6153
        %v6155 = vrot.slane %v6055, 5
        %v6156 = vrot.slane %v6155, 4
        %v6157 = vrot.slane %v6056, 5
        %v6158 = vsel %vm2518, %v6156, %v6157
        %v6159 = vrot.slane %v6157, 4
        %v6160 = vrot.slane %v6057, 5
        %v6161 = vsel %vm2518, %v6159, %v6160
        %v6162 = vrot.slane %v6058, 5
        %v6163 = vrot.slane %v6162, 4
        %v6164 = vrot.slane %v6059, 5
        %v6165 = vsel %vm2518, %v6163, %v6164
        %v6166 = vrot.slane %v6164, 4
        %v6167 = vrot.slane %v6060, 5
        %v6168 = vsel %vm2518, %v6166, %v6167
        %v6169 = vrot.slane %v6061, 5
        %v6170 = vrot.slane %v6169, 4
        %v6171 = vrot.slane %v6062, 5
        %v6172 = vsel %vm2518, %v6170, %v6171
        %v6173 = vrot.slane %v6171, 4
        %v6174 = vrot.slane %v6063, 5
        %v6175 = vsel %vm2518, %v6173, %v6174
        %v6176 = vrot.slane %v6064, 5
        %v6177 = vrot.slane %v6176, 4
        %v6178 = vrot.slane %v6065, 5
        %v6179 = vsel %vm2518, %v6177, %v6178
        %v6180 = vrot.slane %v6178, 4
        %v6181 = vrot.slane %v6066, 5
        %v6182 = vsel %vm2518, %v6180, %v6181
        %v6183 = vrot.slane %v6067, 5
        %v6184 = vrot.slane %v6183, 4
        %v6185 = vrot.slane %v6068, 5
        %v6186 = vsel %vm2518, %v6184, %v6185
        %v6187 = vrot.slane %v6185, 4
        %v6188 = vrot.slane %v6069, 5
        %v6189 = vsel %vm2518, %v6187, %v6188
        %v6190 = vrot.slane %v6070, 5
        %v6191 = vrot.slane %v6190, 4
        %v6192 = vrot.slane %v6071, 5
        %v6193 = vsel %vm2518, %v6191, %v6192
        %v6194 = vrot.slane %v6192, 4
        %v6195 = vrot.slane %v6072, 5
        %v6196 = vsel %vm2518, %v6194, %v6195
        %v6197 = vrot.slane %v6073, 5
        %v6198 = vrot.slane %v6197, 4
        %v6199 = vrot.slane %v6074, 5
        %v6200 = vsel %vm2518, %v6198, %v6199
        %v6201 = vrot.slane %v6199, 4
        %v6202 = vrot.slane %v6075, 5
        %v6203 = vsel %vm2518, %v6201, %v6202
        %v6204 = vrot.slane %v6076, 5
        %v6205 = vrot.slane %v6204, 4
        %v6206 = vrot.slane %v6077, 5
        %v6207 = vsel %vm2518, %v6205, %v6206
        %v6208 = vrot.slane %v6206, 4
        %v6209 = vrot.slane %v6078, 5
        %v6210 = vsel %vm2518, %v6208, %v6209
        %v6211 = vrot.slane %v6079, 5
        %v6212 = vrot.slane %v6211, 4
        %v6213 = vrot.slane %v6080, 5
        %v6214 = vsel %vm2518, %v6212, %v6213
        %v6215 = vrot.slane %v6213, 4
        %v6216 = vrot.slane %v6081, 5
        %v6217 = vsel %vm2518, %v6215, %v6216
        %v6218 = vrot.slane %v6082, 5
        %v6219 = vrot.slane %v6218, 4
        %v6220 = vrot.slane %v6083, 5
        %v6221 = vsel %vm2518, %v6219, %v6220
        %v6222 = vrot.slane %v6220, 4
        %v6223 = vrot.slane %v6084, 5
        %v6224 = vsel %vm2518, %v6222, %v6223
        %v6225 = vrot.slane %v6085, 5
        %v6226 = vrot.slane %v6225, 4
        %v6227 = vrot.slane %v6086, 5
        %v6228 = vsel %vm2518, %v6226, %v6227
        %v6229 = vrot.slane %v6227, 4
        %v6230 = vrot.slane %v6087, 5
        %v6231 = vsel %vm2518, %v6229, %v6230
        %v6232 = vrot.slane %v6088, 5
        %v6233 = vrot.slane %v6232, 4
        %v6234 = vrot.slane %v6089, 5
        %v6235 = vsel %vm2518, %v6233, %v6234
        %v6236 = vrot.slane %v6234, 4
        %v6237 = vrot.slane %v6090, 5
        %v6238 = vsel %vm2518, %v6236, %v6237
        %v6239 = vrot.slane %v6091, 5
        %v6240 = vrot.slane %v6239, 4
        %v6241 = vrot.slane %v6092, 5
        %v6242 = vsel %vm2518, %v6240, %v6241
        %v6243 = vrot.slane %v6241, 4
        %v6244 = vrot.slane %v6093, 5
        %v6245 = vsel %vm2518, %v6243, %v6244
        %v6246 = vrot.slane %v6094, 5
        %v6247 = vrot.slane %v6246, 4
        %v6248 = vrot.slane %v6095, 5
        %v6249 = vsel %vm2518, %v6247, %v6248
        %v6250 = vrot.slane %v6248, 4
        %v6251 = vrot.slane %v6096, 5
        %v6252 = vsel %vm2518, %v6250, %v6251
        %v6253 = vrot.slane %v6097, 5
        %v6254 = vrot.slane %v6253, 4
        %v6255 = vrot.slane %v6098, 5
        %v6256 = vsel %vm2518, %v6254, %v6255
        %v6257 = vrot.slane %v6255, 4
        %v6258 = vrot.slane %v6099, 5
        %v6259 = vsel %vm2518, %v6257, %v6258
        %s6260 = scalar_lea.vmem %s3, 128
        %v6261 = vld [vmem:[%s6260] sm:$0xf]
        %v6262 = vld [vmem:[%s6260 + $0x4] sm:$0xf]
        %v6263 = vld [vmem:[%s6260 + $0x8] sm:$0xf]
        %v6264 = vld [vmem:[%s6260 + $0xc] sm:$0xf]
        %v6265 = vunpack.c.l.b16 %v6151
        %v6266 = vunpack.c.l.b16 %v6154
        %v6267 = vunpack.c.l.b16 %v6158
        %v6268 = vunpack.c.l.b16 %v6161
        %v6269 = vunpack.c.l.b16 %v6165
        %v6270 = vunpack.c.l.b16 %v6168
        %v6271 = vunpack.c.l.b16 %v6172
        %v6272 = vunpack.c.l.b16 %v6175
        %v6273 = vunpack.c.l.b16 %v6179
        %v6274 = vunpack.c.l.b16 %v6182
        %v6275 = vunpack.c.l.b16 %v6186
        %v6276 = vunpack.c.l.b16 %v6189
        %v6277 = vunpack.c.l.b16 %v6193
        %v6278 = vunpack.c.l.b16 %v6196
        %v6279 = vunpack.c.l.b16 %v6200
        %v6280 = vunpack.c.l.b16 %v6203
        %v6281 = vunpack.c.l.b16 %v6207
        %v6282 = vunpack.c.l.b16 %v6210
        %v6283 = vunpack.c.l.b16 %v6214
        %v6284 = vunpack.c.l.b16 %v6217
        %v6285 = vunpack.c.l.b16 %v6221
        %v6286 = vunpack.c.l.b16 %v6224
        %v6287 = vunpack.c.l.b16 %v6228
        %v6288 = vunpack.c.l.b16 %v6231
        %v6289 = vunpack.c.l.b16 %v6235
        %v6290 = vunpack.c.l.b16 %v6238
        %v6291 = vunpack.c.l.b16 %v6242
        %v6292 = vunpack.c.l.b16 %v6245
        %v6293 = vunpack.c.l.b16 %v6249
        %v6294 = vunpack.c.l.b16 %v6252
        %v6295 = vunpack.c.l.b16 %v6256
        %v6296 = vunpack.c.l.b16 %v6259
        %v6297 = vpack.c.b16 %v6266, %v6265
        %v6298 = vpack.c.b16 %v6268, %v6267
        %v6299 = vpack.c.b16 %v6270, %v6269
        %v6300 = vpack.c.b16 %v6272, %v6271
        %v6301 = vpack.c.b16 %v6274, %v6273
        %v6302 = vpack.c.b16 %v6276, %v6275
        %v6303 = vpack.c.b16 %v6278, %v6277
        %v6304 = vpack.c.b16 %v6280, %v6279
        %v6305 = vpack.c.b16 %v6282, %v6281
        %v6306 = vpack.c.b16 %v6284, %v6283
        %v6307 = vpack.c.b16 %v6286, %v6285
        %v6308 = vpack.c.b16 %v6288, %v6287
        %v6309 = vpack.c.b16 %v6290, %v6289
        %v6310 = vpack.c.b16 %v6292, %v6291
        %v6311 = vpack.c.b16 %v6294, %v6293
        %v6312 = vpack.c.b16 %v6296, %v6295
        %v6317 = vunpack.c.l.b16 %v6261
        %v6318 = vunpack.c.l.b16 %v6262
        %v6319 = vunpack.c.l.b16 %v6263
        %v6320 = vunpack.c.l.b16 %v6264
        %v6321 = vpack.c.b16 %v6318, %v6317
        %v6322 = vpack.c.b16 %v6320, %v6319
        %v6326 = vsel %vm1373, %v6297, 0
        %v6329 = vsel %vm1373, %v6298, 0
        %v6332 = vsel %vm1373, %v6299, 0
        %v6335 = vsel %vm1373, %v6300, 0
        %v6338 = vsel %vm1373, %v6301, 0
        %v6341 = vsel %vm1373, %v6302, 0
        %v6344 = vsel %vm1373, %v6303, 0
        %v6347 = vsel %vm1373, %v6304, 0
        %v6350 = vsel %vm1373, %v6305, 0
        %v6353 = vsel %vm1373, %v6306, 0
        %v6356 = vsel %vm1373, %v6307, 0
        %v6359 = vsel %vm1373, %v6308, 0
        %v6362 = vsel %vm1373, %v6309, 0
        %v6365 = vsel %vm1373, %v6310, 0
        %v6368 = vsel %vm1373, %v6311, 0
        %v6371 = vsel %vm1373, %v6312, 0
        %6373 = vmatprep.subr.bf16.mxu0 0
        %6374 = vmatpush1.bf16.msra.mxu0 %v6321
        %6375 = vmatprep.subr.bf16.mxu0 0
        %6376 = vmatpush1.bf16.msra.mxu0 %v6322
        %6377 = vmatprep.subr.bf16.mxu0 0
        %6378 = vmatpush1.bf16.msra.mxu0 0
        %6379 = vmatprep.subr.bf16.mxu0 0
        %6380 = vmatpush1.bf16.msra.mxu0 0
        %6381 = vmatprep.subr.bf16.mxu0 0
        %6382 = vmatpush1.bf16.msra.mxu0 0
        %6383 = vmatprep.subr.bf16.mxu0 0
        %6384 = vmatpush1.bf16.msra.mxu0 0
        %6385 = vmatprep.subr.bf16.mxu0 0
        %6386 = vmatpush1.bf16.msra.mxu0 0
        %6387 = vmatprep.subr.bf16.mxu0 0
        %6388 = vmatpush1.bf16.msra.mxu0 0
        %6389 = vmatprep.subr.bf16.mxu0 0
        %6390 = vmatpush1.bf16.msra.mxu0 0
        %6391 = vmatprep.subr.bf16.mxu0 0
        %6392 = vmatpush1.bf16.msra.mxu0 0
        %6393 = vmatprep.subr.bf16.mxu0 0
        %6394 = vmatpush1.bf16.msra.mxu0 0
        %6395 = vmatprep.subr.bf16.mxu0 0
        %6396 = vmatpush1.bf16.msra.mxu0 0
        %6397 = vmatprep.subr.bf16.mxu0 0
        %6398 = vmatpush1.bf16.msra.mxu0 0
        %6399 = vmatprep.subr.bf16.mxu0 0
        %6400 = vmatpush1.bf16.msra.mxu0 0
        %6401 = vmatprep.subr.bf16.mxu0 0
        %6402 = vmatpush1.bf16.msra.mxu0 0
        %6403 = vmatprep.subr.bf16.mxu0 0
        %6404 = vmatpush1.bf16.msra.mxu0 0
        %6405 = vmatprep.mubr.bf16.mxu0 0
        %6406 = vmatmul.mubr.bf16.gmra.mrb[0].mxu0 %v6326
        %v6407 = vpop.f32.mrb[0].mxu0
        %v6408 = vadd.f32 0.0, %v6407
        %v6409 = vpop.f32.mrb[0].mxu0
        %v6410 = vpop.f32.mrb[0].mxu0
        %v6411 = vadd.f32 0.0, %v6410
        %v6412 = vpop.f32.mrb[0].mxu0
        %6413 = vmatprep.mubr.bf16.mxu0 0
        %6414 = vmatmul.mubr.bf16.gmra.mrb[0].mxu0 %v6329
        %v6415 = vpop.f32.mrb[0].mxu0
        %v6416 = vadd.f32 0.0, %v6415
        %v6417 = vpop.f32.mrb[0].mxu0
        %v6418 = vpop.f32.mrb[0].mxu0
        %v6419 = vadd.f32 0.0, %v6418
        %v6420 = vpop.f32.mrb[0].mxu0
        %6421 = vmatprep.mubr.bf16.mxu0 0
        %6422 = vmatmul.mubr.bf16.gmra.mrb[0].mxu0 %v6332
        %v6423 = vpop.f32.mrb[0].mxu0
        %v6424 = vadd.f32 0.0, %v6423
        %v6425 = vpop.f32.mrb[0].mxu0
        %v6426 = vpop.f32.mrb[0].mxu0
        %v6427 = vadd.f32 0.0, %v6426
        %v6428 = vpop.f32.mrb[0].mxu0
        %6429 = vmatprep.mubr.bf16.mxu0 0
        %6430 = vmatmul.mubr.bf16.gmra.mrb[0].mxu0 %v6335
        %v6431 = vpop.f32.mrb[0].mxu0
        %v6432 = vadd.f32 0.0, %v6431
        %v6433 = vpop.f32.mrb[0].mxu0
        %v6434 = vpop.f32.mrb[0].mxu0
        %v6435 = vadd.f32 0.0, %v6434
        %v6436 = vpop.f32.mrb[0].mxu0
        %6437 = vmatprep.mubr.bf16.mxu0 0
        %6438 = vmatmul.mubr.bf16.gmra.mrb[0].mxu0 %v6338
        %v6439 = vpop.f32.mrb[0].mxu0
        %v6440 = vadd.f32 0.0, %v6439
        %v6441 = vpop.f32.mrb[0].mxu0
        %v6442 = vpop.f32.mrb[0].mxu0
        %v6443 = vadd.f32 0.0, %v6442
        %v6444 = vpop.f32.mrb[0].mxu0
        %6445 = vmatprep.mubr.bf16.mxu0 0
        %6446 = vmatmul.mubr.bf16.gmra.mrb[0].mxu0 %v6341
        %v6447 = vpop.f32.mrb[0].mxu0
        %v6448 = vadd.f32 0.0, %v6447
        %v6449 = vpop.f32.mrb[0].mxu0
        %v6450 = vpop.f32.mrb[0].mxu0
        %v6451 = vadd.f32 0.0, %v6450
        %v6452 = vpop.f32.mrb[0].mxu0
        %6453 = vmatprep.mubr.bf16.mxu0 0
        %6454 = vmatmul.mubr.bf16.gmra.mrb[0].mxu0 %v6344
        %v6455 = vpop.f32.mrb[0].mxu0
        %v6456 = vadd.f32 0.0, %v6455
        %v6457 = vpop.f32.mrb[0].mxu0
        %v6458 = vpop.f32.mrb[0].mxu0
        %v6459 = vadd.f32 0.0, %v6458
        %v6460 = vpop.f32.mrb[0].mxu0
        %6461 = vmatprep.mubr.bf16.mxu0 0
        %6462 = vmatmul.mubr.bf16.gmra.mrb[0].mxu0 %v6347
        %v6463 = vpop.f32.mrb[0].mxu0
        %v6464 = vadd.f32 0.0, %v6463
        %v6465 = vpop.f32.mrb[0].mxu0
        %v6466 = vpop.f32.mrb[0].mxu0
        %v6467 = vadd.f32 0.0, %v6466
        %v6468 = vpop.f32.mrb[0].mxu0
        %6469 = vmatprep.mubr.bf16.mxu0 0
        %6470 = vmatmul.mubr.bf16.gmra.mrb[0].mxu0 %v6350
        %v6471 = vpop.f32.mrb[0].mxu0
        %v6472 = vadd.f32 0.0, %v6471
        %v6473 = vpop.f32.mrb[0].mxu0
        %v6474 = vpop.f32.mrb[0].mxu0
        %v6475 = vadd.f32 0.0, %v6474
        %v6476 = vpop.f32.mrb[0].mxu0
        %6477 = vmatprep.mubr.bf16.mxu0 0
        %6478 = vmatmul.mubr.bf16.gmra.mrb[0].mxu0 %v6353
        %v6479 = vpop.f32.mrb[0].mxu0
        %v6480 = vadd.f32 0.0, %v6479
        %v6481 = vpop.f32.mrb[0].mxu0
        %v6482 = vpop.f32.mrb[0].mxu0
        %v6483 = vadd.f32 0.0, %v6482
        %v6484 = vpop.f32.mrb[0].mxu0
        %6485 = vmatprep.mubr.bf16.mxu0 0
        %6486 = vmatmul.mubr.bf16.gmra.mrb[0].mxu0 %v6356
        %v6487 = vpop.f32.mrb[0].mxu0
        %v6488 = vadd.f32 0.0, %v6487
        %v6489 = vpop.f32.mrb[0].mxu0
        %v6490 = vpop.f32.mrb[0].mxu0
        %v6491 = vadd.f32 0.0, %v6490
        %v6492 = vpop.f32.mrb[0].mxu0
        %6493 = vmatprep.mubr.bf16.mxu0 0
        %6494 = vmatmul.mubr.bf16.gmra.mrb[0].mxu0 %v6359
        %v6495 = vpop.f32.mrb[0].mxu0
        %v6496 = vadd.f32 0.0, %v6495
        %v6497 = vpop.f32.mrb[0].mxu0
        %v6498 = vpop.f32.mrb[0].mxu0
        %v6499 = vadd.f32 0.0, %v6498
        %v6500 = vpop.f32.mrb[0].mxu0
        %6501 = vmatprep.mubr.bf16.mxu0 0
        %6502 = vmatmul.mubr.bf16.gmra.mrb[0].mxu0 %v6362
        %v6503 = vpop.f32.mrb[0].mxu0
        %v6504 = vadd.f32 0.0, %v6503
        %v6505 = vpop.f32.mrb[0].mxu0
        %v6506 = vpop.f32.mrb[0].mxu0
        %v6507 = vadd.f32 0.0, %v6506
        %v6508 = vpop.f32.mrb[0].mxu0
        %6509 = vmatprep.mubr.bf16.mxu0 0
        %6510 = vmatmul.mubr.bf16.gmra.mrb[0].mxu0 %v6365
        %v6511 = vpop.f32.mrb[0].mxu0
        %v6512 = vadd.f32 0.0, %v6511
        %v6513 = vpop.f32.mrb[0].mxu0
        %v6514 = vpop.f32.mrb[0].mxu0
        %v6515 = vadd.f32 0.0, %v6514
        %v6516 = vpop.f32.mrb[0].mxu0
        %6517 = vmatprep.mubr.bf16.mxu0 0
        %6518 = vmatmul.mubr.bf16.gmra.mrb[0].mxu0 %v6368
        %v6519 = vpop.f32.mrb[0].mxu0
        %v6520 = vadd.f32 0.0, %v6519
        %v6521 = vpop.f32.mrb[0].mxu0
        %v6522 = vpop.f32.mrb[0].mxu0
        %v6523 = vadd.f32 0.0, %v6522
        %v6524 = vpop.f32.mrb[0].mxu0
        %6525 = vmatprep.mubr.bf16.mxu0 0
        %6526 = vmatmul.mubr.bf16.gmra.mrb[0].mxu0 %v6371
        %v6527 = vpop.f32.mrb[0].mxu0
        %v6528 = vadd.f32 0.0, %v6527
        %v6529 = vpop.f32.mrb[0].mxu0
        %v6530 = vpop.f32.mrb[0].mxu0
        %v6531 = vadd.f32 0.0, %v6530
        %v6532 = vpop.f32.mrb[0].mxu0
        %6533 = vdwg.mxu0
        %v6534 = vld [vmem:[#allocation3] sm:$0xff]
        %v6535 = vld [vmem:[#allocation3 + $0x8] sm:$0xff]
        %v6536 = vld [vmem:[#allocation3 + $0x10] sm:$0xff]
        %v6537 = vld [vmem:[#allocation3 + $0x18] sm:$0xff]
        %v6538 = vld [vmem:[#allocation3 + $0x20] sm:$0xff]
        %v6539 = vld [vmem:[#allocation3 + $0x28] sm:$0xff]
        %v6540 = vld [vmem:[#allocation3 + $0x30] sm:$0xff]
        %v6541 = vld [vmem:[#allocation3 + $0x38] sm:$0xff]
        %v6542 = vld [vmem:[#allocation3 + $0x40] sm:$0xff]
        %v6543 = vld [vmem:[#allocation3 + $0x48] sm:$0xff]
        %v6544 = vld [vmem:[#allocation3 + $0x50] sm:$0xff]
        %v6545 = vld [vmem:[#allocation3 + $0x58] sm:$0xff]
        %v6546 = vld [vmem:[#allocation3 + $0x60] sm:$0xff]
        %v6547 = vld [vmem:[#allocation3 + $0x68] sm:$0xff]
        %v6548 = vld [vmem:[#allocation3 + $0x70] sm:$0xff]
        %v6549 = vld [vmem:[#allocation3 + $0x78] sm:$0xff]
        %v6550 = vld [vmem:[#allocation3 + $0x80] sm:$0xff]
        %v6551 = vld [vmem:[#allocation3 + $0x88] sm:$0xff]
        %v6552 = vld [vmem:[#allocation3 + $0x90] sm:$0xff]
        %v6553 = vld [vmem:[#allocation3 + $0x98] sm:$0xff]
        %v6554 = vld [vmem:[#allocation3 + $0xa0] sm:$0xff]
        %v6555 = vld [vmem:[#allocation3 + $0xa8] sm:$0xff]
        %v6556 = vld [vmem:[#allocation3 + $0xb0] sm:$0xff]
        %v6557 = vld [vmem:[#allocation3 + $0xb8] sm:$0xff]
        %v6558 = vld [vmem:[#allocation3 + $0xc0] sm:$0xff]
        %v6559 = vld [vmem:[#allocation3 + $0xc8] sm:$0xff]
        %v6560 = vld [vmem:[#allocation3 + $0xd0] sm:$0xff]
        %v6561 = vld [vmem:[#allocation3 + $0xd8] sm:$0xff]
        %v6562 = vld [vmem:[#allocation3 + $0xe0] sm:$0xff]
        %v6563 = vld [vmem:[#allocation3 + $0xe8] sm:$0xff]
        %v6564 = vld [vmem:[#allocation3 + $0xf0] sm:$0xff]
        %v6565 = vld [vmem:[#allocation3 + $0xf8] sm:$0xff]
        %v6566 = vadd.f32 %v6534, %v6408
        %v6567 = vadd.f32 %v6535, %v6411
        %v6568 = vadd.f32 %v6536, %v6416
        %v6569 = vadd.f32 %v6537, %v6419
        %v6570 = vadd.f32 %v6538, %v6424
        %v6571 = vadd.f32 %v6539, %v6427
        %v6572 = vadd.f32 %v6540, %v6432
        %v6573 = vadd.f32 %v6541, %v6435
        %v6574 = vadd.f32 %v6542, %v6440
        %v6575 = vadd.f32 %v6543, %v6443
        %v6576 = vadd.f32 %v6544, %v6448
        %v6577 = vadd.f32 %v6545, %v6451
        %v6578 = vadd.f32 %v6546, %v6456
        %v6579 = vadd.f32 %v6547, %v6459
        %v6580 = vadd.f32 %v6548, %v6464
        %v6581 = vadd.f32 %v6549, %v6467
        %v6582 = vadd.f32 %v6550, %v6472
        %v6583 = vadd.f32 %v6551, %v6475
        %v6584 = vadd.f32 %v6552, %v6480
        %v6585 = vadd.f32 %v6553, %v6483
        %v6586 = vadd.f32 %v6554, %v6488
        %v6587 = vadd.f32 %v6555, %v6491
        %v6588 = vadd.f32 %v6556, %v6496
        %v6589 = vadd.f32 %v6557, %v6499
        %v6590 = vadd.f32 %v6558, %v6504
        %v6591 = vadd.f32 %v6559, %v6507
        %v6592 = vadd.f32 %v6560, %v6512
        %v6593 = vadd.f32 %v6561, %v6515
        %v6594 = vadd.f32 %v6562, %v6520
        %v6595 = vadd.f32 %v6563, %v6523
        %v6596 = vadd.f32 %v6564, %v6528
        %v6597 = vadd.f32 %v6565, %v6531
        %6598 = vst.msk [vmem:[#allocation3] sm:$0xff] %vm1373, %v6566
        %6599 = vst.msk [vmem:[#allocation3 + $0x8] sm:$0xff] %vm1373, %v6567
        %6600 = vst.msk [vmem:[#allocation3 + $0x10] sm:$0xff] %vm1373, %v6568
        %6601 = vst.msk [vmem:[#allocation3 + $0x18] sm:$0xff] %vm1373, %v6569
        %6602 = vst.msk [vmem:[#allocation3 + $0x20] sm:$0xff] %vm1373, %v6570
        %6603 = vst.msk [vmem:[#allocation3 + $0x28] sm:$0xff] %vm1373, %v6571
        %6604 = vst.msk [vmem:[#allocation3 + $0x30] sm:$0xff] %vm1373, %v6572
        %6605 = vst.msk [vmem:[#allocation3 + $0x38] sm:$0xff] %vm1373, %v6573
        %6606 = vst.msk [vmem:[#allocation3 + $0x40] sm:$0xff] %vm1373, %v6574
        %6607 = vst.msk [vmem:[#allocation3 + $0x48] sm:$0xff] %vm1373, %v6575
        %6608 = vst.msk [vmem:[#allocation3 + $0x50] sm:$0xff] %vm1373, %v6576
        %6609 = vst.msk [vmem:[#allocation3 + $0x58] sm:$0xff] %vm1373, %v6577
        %6610 = vst.msk [vmem:[#allocation3 + $0x60] sm:$0xff] %vm1373, %v6578
        %6611 = vst.msk [vmem:[#allocation3 + $0x68] sm:$0xff] %vm1373, %v6579
        %6612 = vst.msk [vmem:[#allocation3 + $0x70] sm:$0xff] %vm1373, %v6580
        %6613 = vst.msk [vmem:[#allocation3 + $0x78] sm:$0xff] %vm1373, %v6581
        %6614 = vst.msk [vmem:[#allocation3 + $0x80] sm:$0xff] %vm1373, %v6582
        %6615 = vst.msk [vmem:[#allocation3 + $0x88] sm:$0xff] %vm1373, %v6583
        %6616 = vst.msk [vmem:[#allocation3 + $0x90] sm:$0xff] %vm1373, %v6584
        %6617 = vst.msk [vmem:[#allocation3 + $0x98] sm:$0xff] %vm1373, %v6585
        %6618 = vst.msk [vmem:[#allocation3 + $0xa0] sm:$0xff] %vm1373, %v6586
        %6619 = vst.msk [vmem:[#allocation3 + $0xa8] sm:$0xff] %vm1373, %v6587
        %6620 = vst.msk [vmem:[#allocation3 + $0xb0] sm:$0xff] %vm1373, %v6588
        %6621 = vst.msk [vmem:[#allocation3 + $0xb8] sm:$0xff] %vm1373, %v6589
        %6622 = vst.msk [vmem:[#allocation3 + $0xc0] sm:$0xff] %vm1373, %v6590
        %6623 = vst.msk [vmem:[#allocation3 + $0xc8] sm:$0xff] %vm1373, %v6591
        %6624 = vst.msk [vmem:[#allocation3 + $0xd0] sm:$0xff] %vm1373, %v6592
        %6625 = vst.msk [vmem:[#allocation3 + $0xd8] sm:$0xff] %vm1373, %v6593
        %6626 = vst.msk [vmem:[#allocation3 + $0xe0] sm:$0xff] %vm1373, %v6594
        %6627 = vst.msk [vmem:[#allocation3 + $0xe8] sm:$0xff] %vm1373, %v6595
        %6628 = vst.msk [vmem:[#allocation3 + $0xf0] sm:$0xff] %vm1373, %v6596
        %6629 = vst.msk [vmem:[#allocation3 + $0xf8] sm:$0xff] %vm1373, %v6597
        %v6630 = vld [vmem:[#allocation3] sm:$0xff]
        %v6631 = vld [vmem:[#allocation3 + $0x8] sm:$0xff]
        %v6632 = vld [vmem:[#allocation3 + $0x10] sm:$0xff]
        %v6633 = vld [vmem:[#allocation3 + $0x18] sm:$0xff]
        %v6634 = vld [vmem:[#allocation3 + $0x20] sm:$0xff]
        %v6635 = vld [vmem:[#allocation3 + $0x28] sm:$0xff]
        %v6636 = vld [vmem:[#allocation3 + $0x30] sm:$0xff]
        %v6637 = vld [vmem:[#allocation3 + $0x38] sm:$0xff]
        %v6638 = vld [vmem:[#allocation3 + $0x40] sm:$0xff]
        %v6639 = vld [vmem:[#allocation3 + $0x48] sm:$0xff]
        %v6640 = vld [vmem:[#allocation3 + $0x50] sm:$0xff]
        %v6641 = vld [vmem:[#allocation3 + $0x58] sm:$0xff]
        %v6642 = vld [vmem:[#allocation3 + $0x60] sm:$0xff]
        %v6643 = vld [vmem:[#allocation3 + $0x68] sm:$0xff]
        %v6644 = vld [vmem:[#allocation3 + $0x70] sm:$0xff]
        %v6645 = vld [vmem:[#allocation3 + $0x78] sm:$0xff]
        %v6646 = vld [vmem:[#allocation3 + $0x80] sm:$0xff]
        %v6647 = vld [vmem:[#allocation3 + $0x88] sm:$0xff]
        %v6648 = vld [vmem:[#allocation3 + $0x90] sm:$0xff]
        %v6649 = vld [vmem:[#allocation3 + $0x98] sm:$0xff]
        %v6650 = vld [vmem:[#allocation3 + $0xa0] sm:$0xff]
        %v6651 = vld [vmem:[#allocation3 + $0xa8] sm:$0xff]
        %v6652 = vld [vmem:[#allocation3 + $0xb0] sm:$0xff]
        %v6653 = vld [vmem:[#allocation3 + $0xb8] sm:$0xff]
        %v6654 = vld [vmem:[#allocation3 + $0xc0] sm:$0xff]
        %v6655 = vld [vmem:[#allocation3 + $0xc8] sm:$0xff]
        %v6656 = vld [vmem:[#allocation3 + $0xd0] sm:$0xff]
        %v6657 = vld [vmem:[#allocation3 + $0xd8] sm:$0xff]
        %v6658 = vld [vmem:[#allocation3 + $0xe0] sm:$0xff]
        %v6659 = vld [vmem:[#allocation3 + $0xe8] sm:$0xff]
        %v6660 = vld [vmem:[#allocation3 + $0xf0] sm:$0xff]
        %v6661 = vld [vmem:[#allocation3 + $0xf8] sm:$0xff]
        %v6662 = vld [vmem:[%s4] sm:$0x1]
        %v6664 = vlaneseq
        %v6665 = vshrl.u32 %v6664, 7
        %v6666 = vsub.s32 0, %v6665
        %v6667 = vrot.slane %v6662, %v6666
        %v6669 = vadd.f32 %v6630, %v6667
        %v6670 = vadd.f32 %v6631, %v6667
        %v6671 = vadd.f32 %v6632, %v6667
        %v6672 = vadd.f32 %v6633, %v6667
        %v6673 = vadd.f32 %v6634, %v6667
        %v6674 = vadd.f32 %v6635, %v6667
        %v6675 = vadd.f32 %v6636, %v6667
        %v6676 = vadd.f32 %v6637, %v6667
        %v6677 = vadd.f32 %v6638, %v6667
        %v6678 = vadd.f32 %v6639, %v6667
        %v6679 = vadd.f32 %v6640, %v6667
        %v6680 = vadd.f32 %v6641, %v6667
        %v6681 = vadd.f32 %v6642, %v6667
        %v6682 = vadd.f32 %v6643, %v6667
        %v6683 = vadd.f32 %v6644, %v6667
        %v6684 = vadd.f32 %v6645, %v6667
        %v6685 = vadd.f32 %v6646, %v6667
        %v6686 = vadd.f32 %v6647, %v6667
        %v6687 = vadd.f32 %v6648, %v6667
        %v6688 = vadd.f32 %v6649, %v6667
        %v6689 = vadd.f32 %v6650, %v6667
        %v6690 = vadd.f32 %v6651, %v6667
        %v6691 = vadd.f32 %v6652, %v6667
        %v6692 = vadd.f32 %v6653, %v6667
        %v6693 = vadd.f32 %v6654, %v6667
        %v6694 = vadd.f32 %v6655, %v6667
        %v6695 = vadd.f32 %v6656, %v6667
        %v6696 = vadd.f32 %v6657, %v6667
        %v6697 = vadd.f32 %v6658, %v6667
        %v6698 = vadd.f32 %v6659, %v6667
        %v6699 = vadd.f32 %v6660, %v6667
        %v6700 = vadd.f32 %v6661, %v6667
        %v6701 = vmax.f32 %v6669, 0.0
        %v6702 = vmax.f32 %v6670, 0.0
        %v6703 = vmax.f32 %v6671, 0.0
        %v6704 = vmax.f32 %v6672, 0.0
        %v6705 = vmax.f32 %v6673, 0.0
        %v6706 = vmax.f32 %v6674, 0.0
        %v6707 = vmax.f32 %v6675, 0.0
        %v6708 = vmax.f32 %v6676, 0.0
        %v6709 = vmax.f32 %v6677, 0.0
        %v6710 = vmax.f32 %v6678, 0.0
        %v6711 = vmax.f32 %v6679, 0.0
        %v6712 = vmax.f32 %v6680, 0.0
        %v6713 = vmax.f32 %v6681, 0.0
        %v6714 = vmax.f32 %v6682, 0.0
        %v6715 = vmax.f32 %v6683, 0.0
        %v6716 = vmax.f32 %v6684, 0.0
        %v6717 = vmax.f32 %v6685, 0.0
        %v6718 = vmax.f32 %v6686, 0.0
        %v6719 = vmax.f32 %v6687, 0.0
        %v6720 = vmax.f32 %v6688, 0.0
        %v6721 = vmax.f32 %v6689, 0.0
        %v6722 = vmax.f32 %v6690, 0.0
        %v6723 = vmax.f32 %v6691, 0.0
        %v6724 = vmax.f32 %v6692, 0.0
        %v6725 = vmax.f32 %v6693, 0.0
        %v6726 = vmax.f32 %v6694, 0.0
        %v6727 = vmax.f32 %v6695, 0.0
        %v6728 = vmax.f32 %v6696, 0.0
        %v6729 = vmax.f32 %v6697, 0.0
        %v6730 = vmax.f32 %v6698, 0.0
        %v6731 = vmax.f32 %v6699, 0.0
        %v6732 = vmax.f32 %v6700, 0.0
        %v6733 = vpack.c.bf16 %v6702, %v6701
        %v6734 = vpack.c.bf16 %v6704, %v6703
        %v6735 = vpack.c.bf16 %v6706, %v6705
        %v6736 = vpack.c.bf16 %v6708, %v6707
        %v6737 = vpack.c.bf16 %v6710, %v6709
        %v6738 = vpack.c.bf16 %v6712, %v6711
        %v6739 = vpack.c.bf16 %v6714, %v6713
        %v6740 = vpack.c.bf16 %v6716, %v6715
        %v6741 = vpack.c.bf16 %v6718, %v6717
        %v6742 = vpack.c.bf16 %v6720, %v6719
        %v6743 = vpack.c.bf16 %v6722, %v6721
        %v6744 = vpack.c.bf16 %v6724, %v6723
        %v6745 = vpack.c.bf16 %v6726, %v6725
        %v6746 = vpack.c.bf16 %v6728, %v6727
        %v6747 = vpack.c.bf16 %v6730, %v6729
        %v6748 = vpack.c.bf16 %v6732, %v6731
        %v6749 = vld [vmem:[%s5] sm:$0xf]
        %v6750 = vld [vmem:[%s5 + $0x4] sm:$0xf]
        %v6751 = vld [vmem:[%s5 + $0x8] sm:$0xf]
        %v6752 = vld [vmem:[%s5 + $0xc] sm:$0xf]
        %v6753 = vld [vmem:[%s6] sm:$0x1]
        %v6755 = vlaneseq
        %v6756 = vshrl.u32 %v6755, 7
        %v6757 = vsub.s32 0, %v6756
        %v6758 = vrot.slane %v6753, %v6757
        %v6764 = vunpack.c.l.b16 %v6749
        %v6765 = vunpack.c.l.b16 %v6750
        %v6766 = vunpack.c.l.b16 %v6751
        %v6767 = vunpack.c.l.b16 %v6752
        %v6768 = vpack.c.b16 %v6765, %v6764
        %v6769 = vpack.c.b16 %v6767, %v6766
        %v6773 = vsel %vm1373, %v6733, 0
        %v6776 = vsel %vm1373, %v6734, 0
        %v6779 = vsel %vm1373, %v6735, 0
        %v6782 = vsel %vm1373, %v6736, 0
        %v6785 = vsel %vm1373, %v6737, 0
        %v6788 = vsel %vm1373, %v6738, 0
        %v6791 = vsel %vm1373, %v6739, 0
        %v6794 = vsel %vm1373, %v6740, 0
        %v6797 = vsel %vm1373, %v6741, 0
        %v6800 = vsel %vm1373, %v6742, 0
        %v6803 = vsel %vm1373, %v6743, 0
        %v6806 = vsel %vm1373, %v6744, 0
        %v6809 = vsel %vm1373, %v6745, 0
        %v6812 = vsel %vm1373, %v6746, 0
        %v6815 = vsel %vm1373, %v6747, 0
        %v6818 = vsel %vm1373, %v6748, 0
        %6820 = vmatprep.subr.bf16.mxu0 0
        %6821 = vmatpush1.bf16.msra.mxu0 %v6768
        %6822 = vmatprep.subr.bf16.mxu0 0
        %6823 = vmatpush1.bf16.msra.mxu0 %v6769
        %6824 = vmatprep.subr.bf16.mxu0 0
        %6825 = vmatpush1.bf16.msra.mxu0 0
        %6826 = vmatprep.subr.bf16.mxu0 0
        %6827 = vmatpush1.bf16.msra.mxu0 0
        %6828 = vmatprep.subr.bf16.mxu0 0
        %6829 = vmatpush1.bf16.msra.mxu0 0
        %6830 = vmatprep.subr.bf16.mxu0 0
        %6831 = vmatpush1.bf16.msra.mxu0 0
        %6832 = vmatprep.subr.bf16.mxu0 0
        %6833 = vmatpush1.bf16.msra.mxu0 0
        %6834 = vmatprep.subr.bf16.mxu0 0
        %6835 = vmatpush1.bf16.msra.mxu0 0
        %6836 = vmatprep.subr.bf16.mxu0 0
        %6837 = vmatpush1.bf16.msra.mxu0 0
        %6838 = vmatprep.subr.bf16.mxu0 0
        %6839 = vmatpush1.bf16.msra.mxu0 0
        %6840 = vmatprep.subr.bf16.mxu0 0
        %6841 = vmatpush1.bf16.msra.mxu0 0
        %6842 = vmatprep.subr.bf16.mxu0 0
        %6843 = vmatpush1.bf16.msra.mxu0 0
        %6844 = vmatprep.subr.bf16.mxu0 0
        %6845 = vmatpush1.bf16.msra.mxu0 0
        %6846 = vmatprep.subr.bf16.mxu0 0
        %6847 = vmatpush1.bf16.msra.mxu0 0
        %6848 = vmatprep.subr.bf16.mxu0 0
        %6849 = vmatpush1.bf16.msra.mxu0 0
        %6850 = vmatprep.subr.bf16.mxu0 0
        %6851 = vmatpush1.bf16.msra.mxu0 0
        %6852 = vmatprep.mubr.bf16.mxu0 0
        %6853 = vmatmul.mubr.bf16.gmra.mrb[0].mxu0 %v6773
        %v6854 = vpop.f32.mrb[0].mxu0
        %v6855 = vadd.f32 %v6758, %v6854
        %v6856 = vpop.f32.mrb[0].mxu0
        %v6857 = vpop.f32.mrb[0].mxu0
        %v6858 = vadd.f32 %v6758, %v6857
        %v6859 = vpop.f32.mrb[0].mxu0
        %6860 = vmatprep.mubr.bf16.mxu0 0
        %6861 = vmatmul.mubr.bf16.gmra.mrb[0].mxu0 %v6776
        %v6862 = vpop.f32.mrb[0].mxu0
        %v6863 = vadd.f32 %v6758, %v6862
        %v6864 = vpop.f32.mrb[0].mxu0
        %v6865 = vpop.f32.mrb[0].mxu0
        %v6866 = vadd.f32 %v6758, %v6865
        %v6867 = vpop.f32.mrb[0].mxu0
        %6868 = vmatprep.mubr.bf16.mxu0 0
        %6869 = vmatmul.mubr.bf16.gmra.mrb[0].mxu0 %v6779
        %v6870 = vpop.f32.mrb[0].mxu0
        %v6871 = vadd.f32 %v6758, %v6870
        %v6872 = vpop.f32.mrb[0].mxu0
        %v6873 = vpop.f32.mrb[0].mxu0
        %v6874 = vadd.f32 %v6758, %v6873
        %v6875 = vpop.f32.mrb[0].mxu0
        %6876 = vmatprep.mubr.bf16.mxu0 0
        %6877 = vmatmul.mubr.bf16.gmra.mrb[0].mxu0 %v6782
        %v6878 = vpop.f32.mrb[0].mxu0
        %v6879 = vadd.f32 %v6758, %v6878
        %v6880 = vpop.f32.mrb[0].mxu0
        %v6881 = vpop.f32.mrb[0].mxu0
        %v6882 = vadd.f32 %v6758, %v6881
        %v6883 = vpop.f32.mrb[0].mxu0
        %6884 = vmatprep.mubr.bf16.mxu0 0
        %6885 = vmatmul.mubr.bf16.gmra.mrb[0].mxu0 %v6785
        %v6886 = vpop.f32.mrb[0].mxu0
        %v6887 = vadd.f32 %v6758, %v6886
        %v6888 = vpop.f32.mrb[0].mxu0
        %v6889 = vpop.f32.mrb[0].mxu0
        %v6890 = vadd.f32 %v6758, %v6889
        %v6891 = vpop.f32.mrb[0].mxu0
        %6892 = vmatprep.mubr.bf16.mxu0 0
        %6893 = vmatmul.mubr.bf16.gmra.mrb[0].mxu0 %v6788
        %v6894 = vpop.f32.mrb[0].mxu0
        %v6895 = vadd.f32 %v6758, %v6894
        %v6896 = vpop.f32.mrb[0].mxu0
        %v6897 = vpop.f32.mrb[0].mxu0
        %v6898 = vadd.f32 %v6758, %v6897
        %v6899 = vpop.f32.mrb[0].mxu0
        %6900 = vmatprep.mubr.bf16.mxu0 0
        %6901 = vmatmul.mubr.bf16.gmra.mrb[0].mxu0 %v6791
        %v6902 = vpop.f32.mrb[0].mxu0
        %v6903 = vadd.f32 %v6758, %v6902
        %v6904 = vpop.f32.mrb[0].mxu0
        %v6905 = vpop.f32.mrb[0].mxu0
        %v6906 = vadd.f32 %v6758, %v6905
        %v6907 = vpop.f32.mrb[0].mxu0
        %6908 = vmatprep.mubr.bf16.mxu0 0
        %6909 = vmatmul.mubr.bf16.gmra.mrb[0].mxu0 %v6794
        %v6910 = vpop.f32.mrb[0].mxu0
        %v6911 = vadd.f32 %v6758, %v6910
        %v6912 = vpop.f32.mrb[0].mxu0
        %v6913 = vpop.f32.mrb[0].mxu0
        %v6914 = vadd.f32 %v6758, %v6913
        %v6915 = vpop.f32.mrb[0].mxu0
        %6916 = vmatprep.mubr.bf16.mxu0 0
        %6917 = vmatmul.mubr.bf16.gmra.mrb[0].mxu0 %v6797
        %v6918 = vpop.f32.mrb[0].mxu0
        %v6919 = vadd.f32 %v6758, %v6918
        %v6920 = vpop.f32.mrb[0].mxu0
        %v6921 = vpop.f32.mrb[0].mxu0
        %v6922 = vadd.f32 %v6758, %v6921
        %v6923 = vpop.f32.mrb[0].mxu0
        %6924 = vmatprep.mubr.bf16.mxu0 0
        %6925 = vmatmul.mubr.bf16.gmra.mrb[0].mxu0 %v6800
        %v6926 = vpop.f32.mrb[0].mxu0
        %v6927 = vadd.f32 %v6758, %v6926
        %v6928 = vpop.f32.mrb[0].mxu0
        %v6929 = vpop.f32.mrb[0].mxu0
        %v6930 = vadd.f32 %v6758, %v6929
        %v6931 = vpop.f32.mrb[0].mxu0
        %6932 = vmatprep.mubr.bf16.mxu0 0
        %6933 = vmatmul.mubr.bf16.gmra.mrb[0].mxu0 %v6803
        %v6934 = vpop.f32.mrb[0].mxu0
        %v6935 = vadd.f32 %v6758, %v6934
        %v6936 = vpop.f32.mrb[0].mxu0
        %v6937 = vpop.f32.mrb[0].mxu0
        %v6938 = vadd.f32 %v6758, %v6937
        %v6939 = vpop.f32.mrb[0].mxu0
        %6940 = vmatprep.mubr.bf16.mxu0 0
        %6941 = vmatmul.mubr.bf16.gmra.mrb[0].mxu0 %v6806
        %v6942 = vpop.f32.mrb[0].mxu0
        %v6943 = vadd.f32 %v6758, %v6942
        %v6944 = vpop.f32.mrb[0].mxu0
        %v6945 = vpop.f32.mrb[0].mxu0
        %v6946 = vadd.f32 %v6758, %v6945
        %v6947 = vpop.f32.mrb[0].mxu0
        %6948 = vmatprep.mubr.bf16.mxu0 0
        %6949 = vmatmul.mubr.bf16.gmra.mrb[0].mxu0 %v6809
        %v6950 = vpop.f32.mrb[0].mxu0
        %v6951 = vadd.f32 %v6758, %v6950
        %v6952 = vpop.f32.mrb[0].mxu0
        %v6953 = vpop.f32.mrb[0].mxu0
        %v6954 = vadd.f32 %v6758, %v6953
        %v6955 = vpop.f32.mrb[0].mxu0
        %6956 = vmatprep.mubr.bf16.mxu0 0
        %6957 = vmatmul.mubr.bf16.gmra.mrb[0].mxu0 %v6812
        %v6958 = vpop.f32.mrb[0].mxu0
        %v6959 = vadd.f32 %v6758, %v6958
        %v6960 = vpop.f32.mrb[0].mxu0
        %v6961 = vpop.f32.mrb[0].mxu0
        %v6962 = vadd.f32 %v6758, %v6961
        %v6963 = vpop.f32.mrb[0].mxu0
        %6964 = vmatprep.mubr.bf16.mxu0 0
        %6965 = vmatmul.mubr.bf16.gmra.mrb[0].mxu0 %v6815
        %v6966 = vpop.f32.mrb[0].mxu0
        %v6967 = vadd.f32 %v6758, %v6966
        %v6968 = vpop.f32.mrb[0].mxu0
        %v6969 = vpop.f32.mrb[0].mxu0
        %v6970 = vadd.f32 %v6758, %v6969
        %v6971 = vpop.f32.mrb[0].mxu0
        %6972 = vmatprep.mubr.bf16.mxu0 0
        %6973 = vmatmul.mubr.bf16.gmra.mrb[0].mxu0 %v6818
        %v6974 = vpop.f32.mrb[0].mxu0
        %v6975 = vadd.f32 %v6758, %v6974
        %v6976 = vpop.f32.mrb[0].mxu0
        %v6977 = vpop.f32.mrb[0].mxu0
        %v6978 = vadd.f32 %v6758, %v6977
        %v6979 = vpop.f32.mrb[0].mxu0
        %6980 = vdwg.mxu0
        %v6981 = vadd.f32 %v6855, %v278
        %v6982 = vadd.f32 %v6858, %v279
        %v6983 = vadd.f32 %v6863, %v280
        %v6984 = vadd.f32 %v6866, %v281
        %v6985 = vadd.f32 %v6871, %v282
        %v6986 = vadd.f32 %v6874, %v283
        %v6987 = vadd.f32 %v6879, %v284
        %v6988 = vadd.f32 %v6882, %v285
        %v6989 = vadd.f32 %v6887, %v286
        %v6990 = vadd.f32 %v6890, %v287
        %v6991 = vadd.f32 %v6895, %v288
        %v6992 = vadd.f32 %v6898, %v289
        %v6993 = vadd.f32 %v6903, %v290
        %v6994 = vadd.f32 %v6906, %v291
        %v6995 = vadd.f32 %v6911, %v292
        %v6996 = vadd.f32 %v6914, %v293
        %v6997 = vadd.f32 %v6919, %v294
        %v6998 = vadd.f32 %v6922, %v295
        %v6999 = vadd.f32 %v6927, %v296
        %v7000 = vadd.f32 %v6930, %v297
        %v7001 = vadd.f32 %v6935, %v298
        %v7002 = vadd.f32 %v6938, %v299
        %v7003 = vadd.f32 %v6943, %v300
        %v7004 = vadd.f32 %v6946, %v301
        %v7005 = vadd.f32 %v6951, %v302
        %v7006 = vadd.f32 %v6954, %v303
        %v7007 = vadd.f32 %v6959, %v304
        %v7008 = vadd.f32 %v6962, %v305
        %v7009 = vadd.f32 %v6967, %v306
        %v7010 = vadd.f32 %v6970, %v307
        %v7011 = vadd.f32 %v6975, %v308
        %v7012 = vadd.f32 %v6978, %v309
        %v7013 = vmax.f32 %v6981, 0.0
        %v7014 = vmax.f32 %v6982, 0.0
        %v7015 = vmax.f32 %v6983, 0.0
        %v7016 = vmax.f32 %v6984, 0.0
        %v7017 = vmax.f32 %v6985, 0.0
        %v7018 = vmax.f32 %v6986, 0.0
        %v7019 = vmax.f32 %v6987, 0.0
        %v7020 = vmax.f32 %v6988, 0.0
        %v7021 = vmax.f32 %v6989, 0.0
        %v7022 = vmax.f32 %v6990, 0.0
        %v7023 = vmax.f32 %v6991, 0.0
        %v7024 = vmax.f32 %v6992, 0.0
        %v7025 = vmax.f32 %v6993, 0.0
        %v7026 = vmax.f32 %v6994, 0.0
        %v7027 = vmax.f32 %v6995, 0.0
        %v7028 = vmax.f32 %v6996, 0.0
        %v7029 = vmax.f32 %v6997, 0.0
        %v7030 = vmax.f32 %v6998, 0.0
        %v7031 = vmax.f32 %v6999, 0.0
        %v7032 = vmax.f32 %v7000, 0.0
        %v7033 = vmax.f32 %v7001, 0.0
        %v7034 = vmax.f32 %v7002, 0.0
        %v7035 = vmax.f32 %v7003, 0.0
        %v7036 = vmax.f32 %v7004, 0.0
        %v7037 = vmax.f32 %v7005, 0.0
        %v7038 = vmax.f32 %v7006, 0.0
        %v7039 = vmax.f32 %v7007, 0.0
        %v7040 = vmax.f32 %v7008, 0.0
        %v7041 = vmax.f32 %v7009, 0.0
        %v7042 = vmax.f32 %v7010, 0.0
        %v7043 = vmax.f32 %v7011, 0.0
        %v7044 = vmax.f32 %v7012, 0.0
        %7045 = vst [vmem:[%s271] sm:$0xff] %v7013
        %7046 = vst [vmem:[%s271 + $0x8] sm:$0xff] %v7014
        %7047 = vst [vmem:[%s271 + $0x10] sm:$0xff] %v7015
        %7048 = vst [vmem:[%s271 + $0x18] sm:$0xff] %v7016
        %7049 = vst [vmem:[%s271 + $0x20] sm:$0xff] %v7017
        %7050 = vst [vmem:[%s271 + $0x28] sm:$0xff] %v7018
        %7051 = vst [vmem:[%s271 + $0x30] sm:$0xff] %v7019
        %7052 = vst [vmem:[%s271 + $0x38] sm:$0xff] %v7020
        %7053 = vst [vmem:[%s271 + $0x40] sm:$0xff] %v7021
        %7054 = vst [vmem:[%s271 + $0x48] sm:$0xff] %v7022
        %7055 = vst [vmem:[%s271 + $0x50] sm:$0xff] %v7023
        %7056 = vst [vmem:[%s271 + $0x58] sm:$0xff] %v7024
        %7057 = vst [vmem:[%s271 + $0x60] sm:$0xff] %v7025
        %7058 = vst [vmem:[%s271 + $0x68] sm:$0xff] %v7026
        %7059 = vst [vmem:[%s271 + $0x70] sm:$0xff] %v7027
        %7060 = vst [vmem:[%s271 + $0x78] sm:$0xff] %v7028
        %7061 = vst [vmem:[%s271 + $0x80] sm:$0xff] %v7029
        %7062 = vst [vmem:[%s271 + $0x88] sm:$0xff] %v7030
        %7063 = vst [vmem:[%s271 + $0x90] sm:$0xff] %v7031
        %7064 = vst [vmem:[%s271 + $0x98] sm:$0xff] %v7032
        %7065 = vst [vmem:[%s271 + $0xa0] sm:$0xff] %v7033
        %7066 = vst [vmem:[%s271 + $0xa8] sm:$0xff] %v7034
        %7067 = vst [vmem:[%s271 + $0xb0] sm:$0xff] %v7035
        %7068 = vst [vmem:[%s271 + $0xb8] sm:$0xff] %v7036
        %7069 = vst [vmem:[%s271 + $0xc0] sm:$0xff] %v7037
        %7070 = vst [vmem:[%s271 + $0xc8] sm:$0xff] %v7038
        %7071 = vst [vmem:[%s271 + $0xd0] sm:$0xff] %v7039
        %7072 = vst [vmem:[%s271 + $0xd8] sm:$0xff] %v7040
        %7073 = vst [vmem:[%s271 + $0xe0] sm:$0xff] %v7041
        %7074 = vst [vmem:[%s271 + $0xe8] sm:$0xff] %v7042
        %7075 = vst [vmem:[%s271 + $0xf0] sm:$0xff] %v7043
        %7076 = vst [vmem:[%s271 + $0xf8] sm:$0xff] %v7044
        %s7077 = sand.u32 %s181, 1
        %s7078 = scalar_lea.sflag [#allocation5], %s7077
        %s7079 = sand.u32 %s181, 1
        %s7080 = smul.addr %s7079, 256
        %s7081 = scalar_lea.vmem [#allocation4], %s7080
        // Predicated region
        $region49: #{bottleneck_forward_nhwc.1} parent=47 // pred_check
          %p7082 = pneg %p191
        $region50: #{bottleneck_forward_nhwc.1} parent=47 // pred_check_branch
          %7084 = sbr.rel (%p7082) target = $region52
        $region51: #{bottleneck_forward_nhwc.1} parent=47 // pred_region
          %s7086 = ssub.s32 4096, 4096
          %7087 = vsyncadd %s7078, %s7086
          %s7088 = smul.addr %s21, 32
          %s7089 = smul.addr %s7088, 128
          %s7090 = scalar_lea.hbm %s7, %s7089
          %s7091 = sshll.u32 %s7081, 4
          %s7092 = int_to_ptr.vmem [resolvable:$true] %s7091
          %7097 = dma.vmem_to_hbm [thread:$0]  %s7092, 4096, %s7090, %s7078, 128, 128, 8
        $region52: #{bottleneck_forward_nhwc.1} parent=47 // pred_fallthru
          _
      $region48: #{bottleneck_forward_nhwc.1} parent=5 // pred_fallthru
        _
      %p7098 = scmp.le.s32.totalorder 2, %s16
      // Predicated region
      $region53: #{bottleneck_forward_nhwc.1} parent=5 // pred_check
        %p7099 = pneg %p7098
      $region54: #{bottleneck_forward_nhwc.1} parent=5 // pred_check_branch
        %7101 = sbr.rel (%p7099) target = $region56
      $region55: #{bottleneck_forward_nhwc.1} parent=5 // pred_region
        %s7102 = ssub.s32 %s16, 2
        // Predicated region
        $region57: #{bottleneck_forward_nhwc.1} parent=55 // pred_check
          %p7103 = pneg %p197
        $region58: #{bottleneck_forward_nhwc.1} parent=55 // pred_check_branch
          %7105 = sbr.rel (%p7103) target = $region60
        $region59: #{bottleneck_forward_nhwc.1} parent=55 // pred_region
          %s7106 = sand.u32 %s182, 1
          %s7107 = scalar_lea.sflag [#allocation5], %s7106
          %s7108 = sand.u32 %s182, 1
          %s7109 = smul.addr %s7108, 256
          %s7110 = scalar_lea.vmem [#allocation4], %s7109
          %7111 = dma.done %s7107, 4096
        $region60: #{bottleneck_forward_nhwc.1} parent=55 // pred_fallthru
          _
      $region56: #{bottleneck_forward_nhwc.1} parent=5 // pred_fallthru
        _
    $region6: #{bottleneck_forward_nhwc.1} parent=1 // loop_footer
      %s20 = sadd.s32 1, %s16
    $region7: #{bottleneck_forward_nhwc.1} parent=1 // loop_footer_branch
      %15 = sbr.rel target = $region3
    $region8: #{bottleneck_forward_nhwc.1} parent=1 // loop_exit
      _
    %7112 = vsyncpa [#allocation5], 1
    %s7113 = scalar_lea.sflag [#allocation5], 1
    %7114 = vsyncpa %s7113, 1

</llo_original>
